<compile_context>
chip_gen: v7x
topology: tpu7x:2x2x1
jax: 0.10.0
libtpu: 0.0.40
codegen_flags: <defaults>
</compile_context>

<pallas_src>
import functools

import jax
import jax.numpy as jnp
from jax import lax
from jax.experimental import pallas as pl
from jax.experimental.pallas import tpu as pltpu


# ----------------------------------------------------------------------------
# Fused ResBlock kernel (grid = batch).
# ----------------------------------------------------------------------------
def _make_resblock_kernel(res_scale):
    def kernel(xp_ref, wg_ref, bg_ref, a_ref, wm1_ref, bm1_ref, wm2_ref,
               bm2_ref, o_ref, gw_pad, h_pad):
        # xp_ref : (H+2, W+2, Cin)  bf16  (input, zero-padded by 1 in wrapper)
        # wg_ref : (9*Cin, Ce)      bf16  (fused 1x1 || 3x3 gate weights)
        # wm1_ref: (9*Ce,  Cm)      bf16
        # wm2_ref: (9*Cm,  Cf)      bf16
        # bg/bm1/bm2 : (1, C) f32 biases;  a_ref: (1, Ce) f32 PReLU slope
        # o_ref  : (H, W, Cf) f32
        Hp, Wp, Cin = xp_ref.shape
        H, W = Hp - 2, Wp - 2
        Ce = wg_ref.shape[-1]
        Cm = wm1_ref.shape[-1]
        Cf = wm2_ref.shape[-1]

        def im2col(ref, c, center=None):
            # 9 shifted (H*W, c) windows of a zero-padded (H+2, W+2, c) ref,
            # concatenated lane-wise -> one (H*W, 9*c) matrix, i.e. a single
            # K = 9*c MXU matmul per conv instead of 9 skinny K = c matmuls.
            cols = []
            for ky in range(3):
                for kx in range(3):
                    if ky == 1 and kx == 1 and center is not None:
                        cols.append(center)          # reuse preloaded centre tap
                    else:
                        cols.append(
                            ref[ky:ky + H, kx:kx + W, :].reshape(H * W, c))
            return jnp.concatenate(cols, axis=-1)

        # Centre tap of the padded input == unpadded x; reused for residual.
        x_center = xp_ref[1:H + 1, 1:W + 1, :].reshape(H * W, Cin)

        # ---- stage 1: fused [conv1x1 || conv3x3] + PReLU --------------------
        p1 = im2col(xp_ref, Cin, center=x_center)             # (H*W, 9*Cin) bf16
        gw = jnp.dot(p1, wg_ref[...], preferred_element_type=jnp.float32)
        gw = gw + bg_ref[...]
        gw = jnp.maximum(gw, 0.0) + a_ref[...] * jnp.minimum(gw, 0.0)
        gw_pad[...] = jnp.zeros(gw_pad.shape, gw_pad.dtype)   # zero halo ring
        gw_pad[1:H + 1, 1:W + 1, :] = gw.astype(gw_pad.dtype).reshape(H, W, Ce)

        # ---- stage 2: conv3x3 (no nonlinearity, matches nn.Sequential) ------
        p2 = im2col(gw_pad, Ce)                               # (H*W, 9*Ce)
        h = jnp.dot(p2, wm1_ref[...], preferred_element_type=jnp.float32)
        h = h + bm1_ref[...]
        h_pad[...] = jnp.zeros(h_pad.shape, h_pad.dtype)
        h_pad[1:H + 1, 1:W + 1, :] = h.astype(h_pad.dtype).reshape(H, W, Cm)

        # ---- stage 3: conv3x3 + residual -------------------------------------
        p3 = im2col(h_pad, Cm)                                # (H*W, 9*Cm)
        y = jnp.dot(p3, wm2_ref[...], preferred_element_type=jnp.float32)
        y = y + bm2_ref[...]
        out = x_center.astype(jnp.float32) + res_scale * y
        o_ref[...] = out.reshape(H, W, Cf)

    return kernel


# ----------------------------------------------------------------------------
# Parameter helpers (PyTorch layouts: Conv2d weight = (Cout, Cin, kh, kw)).
# ----------------------------------------------------------------------------
def _fold_weight_norm(v, g):
    # PyTorch weight_norm(dim=0): w = g * v / ||v||, norm over (Cin, kh, kw).
    norm = jnp.sqrt(jnp.sum(v * v, axis=(1, 2, 3), keepdims=True))
    return v * (g.reshape(-1, 1, 1, 1) / norm)


def init_params(key, n_feats, expansion_ratio, low_rank_ratio):
    ce2 = int(n_feats * expansion_ratio * 0.5)
    ce = 2 * ce2
    cm = int(n_feats * low_rank_ratio)
    ks = jax.random.split(key, 12)
    f = lambda k, s: 0.1 * jax.random.normal(k, s, jnp.float32)
    return {
        "gw1_v": f(ks[0], (ce2, n_feats, 1, 1)),
        "gw1_g": 1.0 + f(ks[1], (ce2,)),
        "gw1_b": f(ks[2], (ce2,)),
        "gw2_v": f(ks[3], (ce2, n_feats, 3, 3)),
        "gw2_g": 1.0 + f(ks[4], (ce2,)),
        "gw2_b": f(ks[5], (ce2,)),
        "prelu_a": jnp.full((1,), 0.25, jnp.float32),
        "m1_v": f(ks[6], (cm, ce, 3, 3)),
        "m1_g": 1.0 + f(ks[7], (cm,)),
        "m1_b": f(ks[8], (cm,)),
        "m2_v": f(ks[9], (n_feats, cm, 3, 3)),
        "m2_g": 1.0 + f(ks[10], (n_feats,)),
        "m2_b": f(ks[11], (n_feats,)),
    }


# ----------------------------------------------------------------------------
# Forward pass (Pallas path).  Inputs/outputs NCHW like PyTorch.
# ----------------------------------------------------------------------------
@functools.partial(jax.jit, static_argnums=(2,))
def resblock_forward(x_nchw, params, res_scale=1.0):
    N, Cf, H, W = x_nchw.shape

    # Fold weight_norm (exact, f32) and pack weights into matmul form (bf16).
    w_gw1 = _fold_weight_norm(params["gw1_v"], params["gw1_g"])   # (Ce2,Cf,1,1)
    w_gw2 = _fold_weight_norm(params["gw2_v"], params["gw2_g"])   # (Ce2,Cf,3,3)
    w_m1 = _fold_weight_norm(params["m1_v"], params["m1_g"])      # (Cm,Ce,3,3)
    w_m2 = _fold_weight_norm(params["m2_v"], params["m2_g"])      # (Cf,Cm,3,3)
    Ce2 = w_gw1.shape[0]
    Ce = 2 * Ce2
    Cm = w_m1.shape[0]

    # Combined gate weight (9*Cf, Ce): columns [:Ce2] = 1x1 branch (centre tap
    # rows only), columns [Ce2:] = 3x3 branch.  Row order = ((ky*3+kx)*Cin+ci),
    # matching the in-kernel im2col concat order.  torch.cat([gw1, gw2]) order.
    wg = jnp.zeros((9 * Cf, Ce), jnp.float32)
    wg = wg.at[4 * Cf:5 * Cf, :Ce2].set(w_gw1[:, :, 0, 0].T)
    wg = wg.at[:, Ce2:].set(w_gw2.transpose(2, 3, 1, 0).reshape(9 * Cf, Ce2))
    bg = jnp.concatenate([params["gw1_b"], params["gw2_b"]]).reshape(1, Ce)
    a_vec = jnp.broadcast_to(params["prelu_a"].reshape(1, 1), (1, Ce))
    a_vec = a_vec.astype(jnp.float32)

    wm1 = w_m1.transpose(2, 3, 1, 0).reshape(9 * Ce, Cm)
    wm2 = w_m2.transpose(2, 3, 1, 0).reshape(9 * Cm, Cf)
    bm1 = params["m1_b"].reshape(1, Cm)
    bm2 = params["m2_b"].reshape(1, Cf)

    wg = wg.astype(jnp.bfloat16)
    wm1 = wm1.astype(jnp.bfloat16)
    wm2 = wm2.astype(jnp.bfloat16)

    # NCHW -> NHWC (lane-dense on C), bf16, single halo pad of the input.
    x = jnp.transpose(x_nchw, (0, 2, 3, 1)).astype(jnp.bfloat16)
    xp = jnp.pad(x, ((0, 0), (1, 1), (1, 1), (0, 0)))

    # Advisory cost hint for the XLA scheduler around the custom call.
    flops = 2 * N * H * W * 9 * (Cf * Ce + Ce * Cm + Cm * Cf)
    bytes_accessed = (
        N * (H + 2) * (W + 2) * Cf * 2          # xp (bf16)
        + N * H * W * Cf * 4                    # output (f32)
        + (9 * Cf * Ce + 9 * Ce * Cm + 9 * Cm * Cf) * 2  # weights (bf16)
        + (Ce + Cm + Cf + Ce) * 4)              # biases + slope (f32)
    cost = pl.CostEstimate(flops=int(flops), transcendentals=0,
                           bytes_accessed=int(bytes_accessed))

    kernel = _make_resblock_kernel(float(res_scale))
    out = pl.pallas_call(
        kernel,
        out_shape=jax.ShapeDtypeStruct((N, H, W, Cf), jnp.float32),
        grid_spec=pltpu.PrefetchScalarGridSpec(
            num_scalar_prefetch=0,
            grid=(N,),
            in_specs=[
                pl.BlockSpec((None, H + 2, W + 2, Cf), lambda n: (n, 0, 0, 0)),
                pl.BlockSpec(wg.shape, lambda n: (0, 0)),
                pl.BlockSpec(bg.shape, lambda n: (0, 0)),
                pl.BlockSpec(a_vec.shape, lambda n: (0, 0)),
                pl.BlockSpec(wm1.shape, lambda n: (0, 0)),
                pl.BlockSpec(bm1.shape, lambda n: (0, 0)),
                pl.BlockSpec(wm2.shape, lambda n: (0, 0)),
                pl.BlockSpec(bm2.shape, lambda n: (0, 0)),
            ],
            out_specs=pl.BlockSpec((None, H, W, Cf), lambda n: (n, 0, 0, 0)),
            scratch_shapes=[
                pltpu.VMEM((H + 2, W + 2, Ce), jnp.bfloat16),  # padded gw
                pltpu.VMEM((H + 2, W + 2, Cm), jnp.bfloat16),  # padded h
            ],
        ),
        compiler_params=pltpu.CompilerParams(
            dimension_semantics=("parallel",),      # batch -> 2 TCs on v7x
            vmem_limit_bytes=32 * 1024 * 1024,
        ),
        cost_estimate=cost,
    )(xp, wg, bg, a_vec, wm1, bm1, wm2, bm2)

    return jnp.transpose(out, (0, 3, 1, 2))  # back to NCHW


# ----------------------------------------------------------------------------
# Pure-JAX reference (lax.conv) with the same bf16-weight / f32-accumulate
# numerics, used only to validate the Pallas path.
# ----------------------------------------------------------------------------
def resblock_reference(x_nchw, params, res_scale):
    w_gw1 = _fold_weight_norm(params["gw1_v"], params["gw1_g"]).astype(jnp.bfloat16)
    w_gw2 = _fold_weight_norm(params["gw2_v"], params["gw2_g"]).astype(jnp.bfloat16)
    w_m1 = _fold_weight_norm(params["m1_v"], params["m1_g"]).astype(jnp.bfloat16)
    w_m2 = _fold_weight_norm(params["m2_v"], params["m2_g"]).astype(jnp.bfloat16)
    xb = x_nchw.astype(jnp.bfloat16)

    def conv(x, w, pad):
        return lax.conv_general_dilated(
            x, w, window_strides=(1, 1), padding=((pad, pad), (pad, pad)),
            dimension_numbers=("NCHW", "OIHW", "NCHW"),
            preferred_element_type=jnp.float32)

    gw1 = conv(xb, w_gw1, 0) + params["gw1_b"].reshape(1, -1, 1, 1)
    gw2 = conv(xb, w_gw2, 1) + params["gw2_b"].reshape(1, -1, 1, 1)
    gw = jnp.concatenate([gw1, gw2], axis=1)
    a = params["prelu_a"].reshape(1, 1, 1, 1)
    gw = jnp.maximum(gw, 0.0) + a * jnp.minimum(gw, 0.0)
    h = conv(gw.astype(jnp.bfloat16), w_m1, 1) + params["m1_b"].reshape(1, -1, 1, 1)
    y = conv(h.astype(jnp.bfloat16), w_m2, 1) + params["m2_b"].reshape(1, -1, 1, 1)
    return xb.astype(jnp.float32) + res_scale * y


if __name__ == "__main__":
    n_feats, expansion_ratio, low_rank_ratio = 32, 2, 0.75
    res_scale = 0.1
    N, H, W = 2, 16, 16

    key = jax.random.PRNGKey(0)
    kx, kp = jax.random.split(key)
    x = jax.random.normal(kx, (N, n_feats, H, W), jnp.float32)
    params = init_params(kp, n_feats, expansion_ratio, low_rank_ratio)

    out = jax.block_until_ready(resblock_forward(x, params, res_scale))
    ref = jax.block_until_ready(resblock_reference(x, params, res_scale))

    assert out.shape == (N, n_feats, H, W), out.shape
    assert bool(jnp.all(jnp.isfinite(out)))
    max_err = float(jnp.max(jnp.abs(out - ref)))
    assert jnp.allclose(out, ref, atol=2e-2, rtol=2e-2), max_err

    print("KERNEL_OK")
</pallas_src>

<mosaic_0001>
module attributes {stable_mosaic.version = 11 : i64} {
  func.func @kernel(%arg0: i32, %arg1: memref<1x18x18x32xbf16, #tpu.memory_space<vmem>>, %arg2: memref<288x64xbf16, #tpu.memory_space<vmem>>, %arg3: memref<1x64xf32, #tpu.memory_space<vmem>>, %arg4: memref<1x64xf32, #tpu.memory_space<vmem>>, %arg5: memref<576x24xbf16, #tpu.memory_space<vmem>>, %arg6: memref<1x24xf32, #tpu.memory_space<vmem>>, %arg7: memref<216x32xbf16, #tpu.memory_space<vmem>>, %arg8: memref<1x32xf32, #tpu.memory_space<vmem>>, %arg9: memref<1x16x16x32xf32, #tpu.memory_space<vmem>>, %arg10: memref<18x18x64xbf16, #tpu.memory_space<vmem>>, %arg11: memref<18x18x24xbf16, #tpu.memory_space<vmem>>) attributes {dimension_semantics = [#tpu.dimension_semantics<parallel>], iteration_bounds = array<i64: 2>, scalar_prefetch = 0 : i64, scratch_operands = 2 : i64, tpu.core_type = #tpu.core_type<tc>, window_params = [{transform_indices = @transform_0, window_bounds = array<i64: 1, 18, 18, 32>}, {pipeline_mode = #tpu.pipeline_mode<synchronous>, transform_indices = @transform_1, window_bounds = array<i64: 288, 64>}, {pipeline_mode = #tpu.pipeline_mode<synchronous>, transform_indices = @transform_2, window_bounds = array<i64: 1, 64>}, {pipeline_mode = #tpu.pipeline_mode<synchronous>, transform_indices = @transform_3, window_bounds = array<i64: 1, 64>}, {pipeline_mode = #tpu.pipeline_mode<synchronous>, transform_indices = @transform_4, window_bounds = array<i64: 576, 24>}, {pipeline_mode = #tpu.pipeline_mode<synchronous>, transform_indices = @transform_5, window_bounds = array<i64: 1, 24>}, {pipeline_mode = #tpu.pipeline_mode<synchronous>, transform_indices = @transform_6, window_bounds = array<i64: 216, 32>}, {pipeline_mode = #tpu.pipeline_mode<synchronous>, transform_indices = @transform_7, window_bounds = array<i64: 1, 32>}, {transform_indices = @transform_8, window_bounds = array<i64: 1, 16, 16, 32>}]} {
    %c0 = arith.constant 0 : index
    %c1 = arith.constant 1 : index
    %c1_0 = arith.constant 1 : index
    %c0_1 = arith.constant 0 : index
    %0 = vector.load %arg1[%c0, %c1, %c1_0, %c0_1] : memref<1x18x18x32xbf16, #tpu.memory_space<vmem>>, vector<1x16x16x32xbf16>
    %1 = vector.shape_cast %0 : vector<1x16x16x32xbf16> to vector<16x16x32xbf16>
    %2 = vector.shape_cast %1 : vector<16x16x32xbf16> to vector<256x32xbf16>
    %c0_2 = arith.constant 0 : index
    %c0_3 = arith.constant 0 : index
    %c0_4 = arith.constant 0 : index
    %c0_5 = arith.constant 0 : index
    %3 = vector.load %arg1[%c0_2, %c0_3, %c0_4, %c0_5] : memref<1x18x18x32xbf16, #tpu.memory_space<vmem>>, vector<1x16x16x32xbf16>
    %4 = vector.shape_cast %3 : vector<1x16x16x32xbf16> to vector<16x16x32xbf16>
    %5 = vector.shape_cast %4 : vector<16x16x32xbf16> to vector<256x32xbf16>
    %c0_6 = arith.constant 0 : index
    %c0_7 = arith.constant 0 : index
    %c1_8 = arith.constant 1 : index
    %c0_9 = arith.constant 0 : index
    %6 = vector.load %arg1[%c0_6, %c0_7, %c1_8, %c0_9] : memref<1x18x18x32xbf16, #tpu.memory_space<vmem>>, vector<1x16x16x32xbf16>
    %7 = vector.shape_cast %6 : vector<1x16x16x32xbf16> to vector<16x16x32xbf16>
    %8 = vector.shape_cast %7 : vector<16x16x32xbf16> to vector<256x32xbf16>
    %c0_10 = arith.constant 0 : index
    %c0_11 = arith.constant 0 : index
    %c2 = arith.constant 2 : index
    %c0_12 = arith.constant 0 : index
    %9 = vector.load %arg1[%c0_10, %c0_11, %c2, %c0_12] : memref<1x18x18x32xbf16, #tpu.memory_space<vmem>>, vector<1x16x16x32xbf16>
    %10 = vector.shape_cast %9 : vector<1x16x16x32xbf16> to vector<16x16x32xbf16>
    %11 = vector.shape_cast %10 : vector<16x16x32xbf16> to vector<256x32xbf16>
    %c0_13 = arith.constant 0 : index
    %c1_14 = arith.constant 1 : index
    %c0_15 = arith.constant 0 : index
    %c0_16 = arith.constant 0 : index
    %12 = vector.load %arg1[%c0_13, %c1_14, %c0_15, %c0_16] : memref<1x18x18x32xbf16, #tpu.memory_space<vmem>>, vector<1x16x16x32xbf16>
    %13 = vector.shape_cast %12 : vector<1x16x16x32xbf16> to vector<16x16x32xbf16>
    %14 = vector.shape_cast %13 : vector<16x16x32xbf16> to vector<256x32xbf16>
    %c0_17 = arith.constant 0 : index
    %c1_18 = arith.constant 1 : index
    %c2_19 = arith.constant 2 : index
    %c0_20 = arith.constant 0 : index
    %15 = vector.load %arg1[%c0_17, %c1_18, %c2_19, %c0_20] : memref<1x18x18x32xbf16, #tpu.memory_space<vmem>>, vector<1x16x16x32xbf16>
    %16 = vector.shape_cast %15 : vector<1x16x16x32xbf16> to vector<16x16x32xbf16>
    %17 = vector.shape_cast %16 : vector<16x16x32xbf16> to vector<256x32xbf16>
    %c0_21 = arith.constant 0 : index
    %c2_22 = arith.constant 2 : index
    %c0_23 = arith.constant 0 : index
    %c0_24 = arith.constant 0 : index
    %18 = vector.load %arg1[%c0_21, %c2_22, %c0_23, %c0_24] : memref<1x18x18x32xbf16, #tpu.memory_space<vmem>>, vector<1x16x16x32xbf16>
    %19 = vector.shape_cast %18 : vector<1x16x16x32xbf16> to vector<16x16x32xbf16>
    %20 = vector.shape_cast %19 : vector<16x16x32xbf16> to vector<256x32xbf16>
    %c0_25 = arith.constant 0 : index
    %c2_26 = arith.constant 2 : index
    %c1_27 = arith.constant 1 : index
    %c0_28 = arith.constant 0 : index
    %21 = vector.load %arg1[%c0_25, %c2_26, %c1_27, %c0_28] : memref<1x18x18x32xbf16, #tpu.memory_space<vmem>>, vector<1x16x16x32xbf16>
    %22 = vector.shape_cast %21 : vector<1x16x16x32xbf16> to vector<16x16x32xbf16>
    %23 = vector.shape_cast %22 : vector<16x16x32xbf16> to vector<256x32xbf16>
    %c0_29 = arith.constant 0 : index
    %c2_30 = arith.constant 2 : index
    %c2_31 = arith.constant 2 : index
    %c0_32 = arith.constant 0 : index
    %24 = vector.load %arg1[%c0_29, %c2_30, %c2_31, %c0_32] : memref<1x18x18x32xbf16, #tpu.memory_space<vmem>>, vector<1x16x16x32xbf16>
    %25 = vector.shape_cast %24 : vector<1x16x16x32xbf16> to vector<16x16x32xbf16>
    %26 = vector.shape_cast %25 : vector<16x16x32xbf16> to vector<256x32xbf16>
    %27 = tpu.concatenate %5, %8, %11, %14, %2, %17, %20, %23, %26 in 1 : vector<256x32xbf16>, vector<256x32xbf16>, vector<256x32xbf16>, vector<256x32xbf16>, vector<256x32xbf16>, vector<256x32xbf16>, vector<256x32xbf16>, vector<256x32xbf16>, vector<256x32xbf16> -> vector<256x288xbf16>
    %c0_33 = arith.constant 0 : index
    %c0_34 = arith.constant 0 : index
    %28 = vector.load %arg2[%c0_33, %c0_34] : memref<288x64xbf16, #tpu.memory_space<vmem>>, vector<288x64xbf16>
    %cst = arith.constant dense<0.000000e+00> : vector<256x64xf32>
    %29 = tpu.matmul %27, %28, %cst {dimension_numbers = #tpu.dot_dimension_numbers<[1], [0], [0], [1], [0, 0, 1, 1], [], []>} : vector<256x288xbf16>, vector<288x64xbf16>, vector<256x64xf32> -> vector<256x64xf32>
    %c0_35 = arith.constant 0 : index
    %c0_36 = arith.constant 0 : index
    %30 = vector.load %arg3[%c0_35, %c0_36] : memref<1x64xf32, #tpu.memory_space<vmem>>, vector<1x64xf32>
    %31 = vector.broadcast %30 : vector<1x64xf32> to vector<256x64xf32>
    %32 = arith.addf %29, %31 : vector<256x64xf32>
    %cst_37 = arith.constant 0.000000e+00 : f32
    %33 = vector.broadcast %cst_37 : f32 to vector<256x64xf32>
    %34 = arith.maximumf %32, %33 : vector<256x64xf32>
    %c0_38 = arith.constant 0 : index
    %c0_39 = arith.constant 0 : index
    %35 = vector.load %arg4[%c0_38, %c0_39] : memref<1x64xf32, #tpu.memory_space<vmem>>, vector<1x64xf32>
    %cst_40 = arith.constant 0.000000e+00 : f32
    %36 = vector.broadcast %cst_40 : f32 to vector<256x64xf32>
    %37 = arith.minimumf %32, %36 : vector<256x64xf32>
    %38 = vector.broadcast %35 : vector<1x64xf32> to vector<256x64xf32>
    %39 = arith.mulf %38, %37 : vector<256x64xf32>
    %40 = arith.addf %34, %39 : vector<256x64xf32>
    %cst_41 = arith.constant 0.000000e+00 : bf16
    %41 = vector.broadcast %cst_41 : bf16 to vector<18x18x64xbf16>
    %c0_42 = arith.constant 0 : index
    %c0_43 = arith.constant 0 : index
    %c0_44 = arith.constant 0 : index
    %42 = vector.load %arg10[%c0_42, %c0_43, %c0_44] : memref<18x18x64xbf16, #tpu.memory_space<vmem>>, vector<18x18x64xbf16>
    tpu.vector_store %arg10[%c0_42, %c0_43, %c0_44], %41 {strides = array<i32>} : memref<18x18x64xbf16, #tpu.memory_space<vmem>>, vector<18x18x64xbf16>,
    %43 = arith.truncf %40 : vector<256x64xf32> to vector<256x64xbf16>
    %44 = vector.shape_cast %43 : vector<256x64xbf16> to vector<16x16x64xbf16>
    %c1_45 = arith.constant 1 : index
    %c1_46 = arith.constant 1 : index
    %c0_47 = arith.constant 0 : index
    %45 = vector.load %arg10[%c1_45, %c1_46, %c0_47] : memref<18x18x64xbf16, #tpu.memory_space<vmem>>, vector<16x16x64xbf16>
    tpu.vector_store %arg10[%c1_45, %c1_46, %c0_47], %44 {strides = array<i32>} : memref<18x18x64xbf16, #tpu.memory_space<vmem>>, vector<16x16x64xbf16>,
    %c0_48 = arith.constant 0 : index
    %c0_49 = arith.constant 0 : index
    %c0_50 = arith.constant 0 : index
    %46 = vector.load %arg10[%c0_48, %c0_49, %c0_50] : memref<18x18x64xbf16, #tpu.memory_space<vmem>>, vector<16x16x64xbf16>
    %47 = vector.shape_cast %46 : vector<16x16x64xbf16> to vector<256x64xbf16>
    %c0_51 = arith.constant 0 : index
    %c1_52 = arith.constant 1 : index
    %c0_53 = arith.constant 0 : index
    %48 = vector.load %arg10[%c0_51, %c1_52, %c0_53] : memref<18x18x64xbf16, #tpu.memory_space<vmem>>, vector<16x16x64xbf16>
    %49 = vector.shape_cast %48 : vector<16x16x64xbf16> to vector<256x64xbf16>
    %c0_54 = arith.constant 0 : index
    %c2_55 = arith.constant 2 : index
    %c0_56 = arith.constant 0 : index
    %50 = vector.load %arg10[%c0_54, %c2_55, %c0_56] : memref<18x18x64xbf16, #tpu.memory_space<vmem>>, vector<16x16x64xbf16>
    %51 = vector.shape_cast %50 : vector<16x16x64xbf16> to vector<256x64xbf16>
    %c1_57 = arith.constant 1 : index
    %c0_58 = arith.constant 0 : index
    %c0_59 = arith.constant 0 : index
    %52 = vector.load %arg10[%c1_57, %c0_58, %c0_59] : memref<18x18x64xbf16, #tpu.memory_space<vmem>>, vector<16x16x64xbf16>
    %53 = vector.shape_cast %52 : vector<16x16x64xbf16> to vector<256x64xbf16>
    %c1_60 = arith.constant 1 : index
    %c1_61 = arith.constant 1 : index
    %c0_62 = arith.constant 0 : index
    %54 = vector.load %arg10[%c1_60, %c1_61, %c0_62] : memref<18x18x64xbf16, #tpu.memory_space<vmem>>, vector<16x16x64xbf16>
    %55 = vector.shape_cast %54 : vector<16x16x64xbf16> to vector<256x64xbf16>
    %c1_63 = arith.constant 1 : index
    %c2_64 = arith.constant 2 : index
    %c0_65 = arith.constant 0 : index
    %56 = vector.load %arg10[%c1_63, %c2_64, %c0_65] : memref<18x18x64xbf16, #tpu.memory_space<vmem>>, vector<16x16x64xbf16>
    %57 = vector.shape_cast %56 : vector<16x16x64xbf16> to vector<256x64xbf16>
    %c2_66 = arith.constant 2 : index
    %c0_67 = arith.constant 0 : index
    %c0_68 = arith.constant 0 : index
    %58 = vector.load %arg10[%c2_66, %c0_67, %c0_68] : memref<18x18x64xbf16, #tpu.memory_space<vmem>>, vector<16x16x64xbf16>
    %59 = vector.shape_cast %58 : vector<16x16x64xbf16> to vector<256x64xbf16>
    %c2_69 = arith.constant 2 : index
    %c1_70 = arith.constant 1 : index
    %c0_71 = arith.constant 0 : index
    %60 = vector.load %arg10[%c2_69, %c1_70, %c0_71] : memref<18x18x64xbf16, #tpu.memory_space<vmem>>, vector<16x16x64xbf16>
    %61 = vector.shape_cast %60 : vector<16x16x64xbf16> to vector<256x64xbf16>
    %c2_72 = arith.constant 2 : index
    %c2_73 = arith.constant 2 : index
    %c0_74 = arith.constant 0 : index
    %62 = vector.load %arg10[%c2_72, %c2_73, %c0_74] : memref<18x18x64xbf16, #tpu.memory_space<vmem>>, vector<16x16x64xbf16>
    %63 = vector.shape_cast %62 : vector<16x16x64xbf16> to vector<256x64xbf16>
    %64 = tpu.concatenate %47, %49, %51, %53, %55, %57, %59, %61, %63 in 1 : vector<256x64xbf16>, vector<256x64xbf16>, vector<256x64xbf16>, vector<256x64xbf16>, vector<256x64xbf16>, vector<256x64xbf16>, vector<256x64xbf16>, vector<256x64xbf16>, vector<256x64xbf16> -> vector<256x576xbf16>
    %c0_75 = arith.constant 0 : index
    %c0_76 = arith.constant 0 : index
    %65 = vector.load %arg5[%c0_75, %c0_76] : memref<576x24xbf16, #tpu.memory_space<vmem>>, vector<576x24xbf16>
    %cst_77 = arith.constant dense<0.000000e+00> : vector<256x24xf32>
    %66 = tpu.matmul %64, %65, %cst_77 {dimension_numbers = #tpu.dot_dimension_numbers<[1], [0], [0], [1], [0, 0, 1, 1], [], []>} : vector<256x576xbf16>, vector<576x24xbf16>, vector<256x24xf32> -> vector<256x24xf32>
    %c0_78 = arith.constant 0 : index
    %c0_79 = arith.constant 0 : index
    %67 = vector.load %arg6[%c0_78, %c0_79] : memref<1x24xf32, #tpu.memory_space<vmem>>, vector<1x24xf32>
    %68 = vector.broadcast %67 : vector<1x24xf32> to vector<256x24xf32>
    %69 = arith.addf %66, %68 : vector<256x24xf32>
    %cst_80 = arith.constant 0.000000e+00 : bf16
    %70 = vector.broadcast %cst_80 : bf16 to vector<18x18x24xbf16>
    %c0_81 = arith.constant 0 : index
    %c0_82 = arith.constant 0 : index
    %c0_83 = arith.constant 0 : index
    %71 = vector.load %arg11[%c0_81, %c0_82, %c0_83] : memref<18x18x24xbf16, #tpu.memory_space<vmem>>, vector<18x18x24xbf16>
    tpu.vector_store %arg11[%c0_81, %c0_82, %c0_83], %70 {strides = array<i32>} : memref<18x18x24xbf16, #tpu.memory_space<vmem>>, vector<18x18x24xbf16>,
    %72 = arith.truncf %69 : vector<256x24xf32> to vector<256x24xbf16>
    %73 = vector.shape_cast %72 : vector<256x24xbf16> to vector<16x16x24xbf16>
    %c1_84 = arith.constant 1 : index
    %c1_85 = arith.constant 1 : index
    %c0_86 = arith.constant 0 : index
    %74 = vector.load %arg11[%c1_84, %c1_85, %c0_86] : memref<18x18x24xbf16, #tpu.memory_space<vmem>>, vector<16x16x24xbf16>
    tpu.vector_store %arg11[%c1_84, %c1_85, %c0_86], %73 {strides = array<i32>} : memref<18x18x24xbf16, #tpu.memory_space<vmem>>, vector<16x16x24xbf16>,
    %c0_87 = arith.constant 0 : index
    %c0_88 = arith.constant 0 : index
    %c0_89 = arith.constant 0 : index
    %75 = vector.load %arg11[%c0_87, %c0_88, %c0_89] : memref<18x18x24xbf16, #tpu.memory_space<vmem>>, vector<16x16x24xbf16>
    %76 = vector.shape_cast %75 : vector<16x16x24xbf16> to vector<256x24xbf16>
    %c0_90 = arith.constant 0 : index
    %c1_91 = arith.constant 1 : index
    %c0_92 = arith.constant 0 : index
    %77 = vector.load %arg11[%c0_90, %c1_91, %c0_92] : memref<18x18x24xbf16, #tpu.memory_space<vmem>>, vector<16x16x24xbf16>
    %78 = vector.shape_cast %77 : vector<16x16x24xbf16> to vector<256x24xbf16>
    %c0_93 = arith.constant 0 : index
    %c2_94 = arith.constant 2 : index
    %c0_95 = arith.constant 0 : index
    %79 = vector.load %arg11[%c0_93, %c2_94, %c0_95] : memref<18x18x24xbf16, #tpu.memory_space<vmem>>, vector<16x16x24xbf16>
    %80 = vector.shape_cast %79 : vector<16x16x24xbf16> to vector<256x24xbf16>
    %c1_96 = arith.constant 1 : index
    %c0_97 = arith.constant 0 : index
    %c0_98 = arith.constant 0 : index
    %81 = vector.load %arg11[%c1_96, %c0_97, %c0_98] : memref<18x18x24xbf16, #tpu.memory_space<vmem>>, vector<16x16x24xbf16>
    %82 = vector.shape_cast %81 : vector<16x16x24xbf16> to vector<256x24xbf16>
    %c1_99 = arith.constant 1 : index
    %c1_100 = arith.constant 1 : index
    %c0_101 = arith.constant 0 : index
    %83 = vector.load %arg11[%c1_99, %c1_100, %c0_101] : memref<18x18x24xbf16, #tpu.memory_space<vmem>>, vector<16x16x24xbf16>
    %84 = vector.shape_cast %83 : vector<16x16x24xbf16> to vector<256x24xbf16>
    %c1_102 = arith.constant 1 : index
    %c2_103 = arith.constant 2 : index
    %c0_104 = arith.constant 0 : index
    %85 = vector.load %arg11[%c1_102, %c2_103, %c0_104] : memref<18x18x24xbf16, #tpu.memory_space<vmem>>, vector<16x16x24xbf16>
    %86 = vector.shape_cast %85 : vector<16x16x24xbf16> to vector<256x24xbf16>
    %c2_105 = arith.constant 2 : index
    %c0_106 = arith.constant 0 : index
    %c0_107 = arith.constant 0 : index
    %87 = vector.load %arg11[%c2_105, %c0_106, %c0_107] : memref<18x18x24xbf16, #tpu.memory_space<vmem>>, vector<16x16x24xbf16>
    %88 = vector.shape_cast %87 : vector<16x16x24xbf16> to vector<256x24xbf16>
    %c2_108 = arith.constant 2 : index
    %c1_109 = arith.constant 1 : index
    %c0_110 = arith.constant 0 : index
    %89 = vector.load %arg11[%c2_108, %c1_109, %c0_110] : memref<18x18x24xbf16, #tpu.memory_space<vmem>>, vector<16x16x24xbf16>
    %90 = vector.shape_cast %89 : vector<16x16x24xbf16> to vector<256x24xbf16>
    %c2_111 = arith.constant 2 : index
    %c2_112 = arith.constant 2 : index
    %c0_113 = arith.constant 0 : index
    %91 = vector.load %arg11[%c2_111, %c2_112, %c0_113] : memref<18x18x24xbf16, #tpu.memory_space<vmem>>, vector<16x16x24xbf16>
    %92 = vector.shape_cast %91 : vector<16x16x24xbf16> to vector<256x24xbf16>
    %93 = tpu.concatenate %76, %78, %80, %82, %84, %86, %88, %90, %92 in 1 : vector<256x24xbf16>, vector<256x24xbf16>, vector<256x24xbf16>, vector<256x24xbf16>, vector<256x24xbf16>, vector<256x24xbf16>, vector<256x24xbf16>, vector<256x24xbf16>, vector<256x24xbf16> -> vector<256x216xbf16>
    %c0_114 = arith.constant 0 : index
    %c0_115 = arith.constant 0 : index
    %94 = vector.load %arg7[%c0_114, %c0_115] : memref<216x32xbf16, #tpu.memory_space<vmem>>, vector<216x32xbf16>
    %cst_116 = arith.constant dense<0.000000e+00> : vector<256x32xf32>
    %95 = tpu.matmul %93, %94, %cst_116 {dimension_numbers = #tpu.dot_dimension_numbers<[1], [0], [0], [1], [0, 0, 1, 1], [], []>} : vector<256x216xbf16>, vector<216x32xbf16>, vector<256x32xf32> -> vector<256x32xf32>
    %c0_117 = arith.constant 0 : index
    %c0_118 = arith.constant 0 : index
    %96 = vector.load %arg8[%c0_117, %c0_118] : memref<1x32xf32, #tpu.memory_space<vmem>>, vector<1x32xf32>
    %97 = vector.broadcast %96 : vector<1x32xf32> to vector<256x32xf32>
    %98 = arith.addf %95, %97 : vector<256x32xf32>
    %99 = arith.extf %2 : vector<256x32xbf16> to vector<256x32xf32>
    %cst_119 = arith.constant 1.000000e-01 : f32
    %100 = vector.broadcast %cst_119 : f32 to vector<256x32xf32>
    %101 = arith.mulf %100, %98 : vector<256x32xf32>
    %102 = arith.addf %99, %101 : vector<256x32xf32>
    %103 = vector.shape_cast %102 : vector<256x32xf32> to vector<16x16x32xf32>
    %c0_120 = arith.constant 0 : index
    %c0_121 = arith.constant 0 : index
    %c0_122 = arith.constant 0 : index
    %c0_123 = arith.constant 0 : index
    %104 = vector.load %arg9[%c0_120, %c0_121, %c0_122, %c0_123] : memref<1x16x16x32xf32, #tpu.memory_space<vmem>>, vector<1x16x16x32xf32>
    %105 = vector.shape_cast %104 : vector<1x16x16x32xf32> to vector<16x16x32xf32>
    %106 = vector.shape_cast %103 : vector<16x16x32xf32> to vector<1x16x16x32xf32>
    tpu.vector_store %arg9[%c0_120, %c0_121, %c0_122, %c0_123], %106 {strides = array<i32>} : memref<1x16x16x32xf32, #tpu.memory_space<vmem>>, vector<1x16x16x32xf32>,
    return
  }
  func.func @transform_0(%arg0: i32) -> (i32, i32, i32, i32) {
    %c0_i32 = arith.constant 0 : i32
    %c0_i32_0 = arith.constant 0 : i32
    %c0_i32_1 = arith.constant 0 : i32
    %c0_i32_2 = arith.constant 0 : i32
    return %arg0, %c0_i32, %c0_i32_0, %c0_i32_1 : i32, i32, i32, i32
  }
  func.func @transform_1(%arg0: i32) -> (i32, i32) {
    %c0_i32 = arith.constant 0 : i32
    %c0_i32_0 = arith.constant 0 : i32
    %c0_i32_1 = arith.constant 0 : i32
    return %c0_i32, %c0_i32_0 : i32, i32
  }
  func.func @transform_2(%arg0: i32) -> (i32, i32) {
    %c0_i32 = arith.constant 0 : i32
    %c0_i32_0 = arith.constant 0 : i32
    %c0_i32_1 = arith.constant 0 : i32
    return %c0_i32, %c0_i32_0 : i32, i32
  }
  func.func @transform_3(%arg0: i32) -> (i32, i32) {
    %c0_i32 = arith.constant 0 : i32
    %c0_i32_0 = arith.constant 0 : i32
    %c0_i32_1 = arith.constant 0 : i32
    return %c0_i32, %c0_i32_0 : i32, i32
  }
  func.func @transform_4(%arg0: i32) -> (i32, i32) {
    %c0_i32 = arith.constant 0 : i32
    %c0_i32_0 = arith.constant 0 : i32
    %c0_i32_1 = arith.constant 0 : i32
    return %c0_i32, %c0_i32_0 : i32, i32
  }
  func.func @transform_5(%arg0: i32) -> (i32, i32) {
    %c0_i32 = arith.constant 0 : i32
    %c0_i32_0 = arith.constant 0 : i32
    %c0_i32_1 = arith.constant 0 : i32
    return %c0_i32, %c0_i32_0 : i32, i32
  }
  func.func @transform_6(%arg0: i32) -> (i32, i32) {
    %c0_i32 = arith.constant 0 : i32
    %c0_i32_0 = arith.constant 0 : i32
    %c0_i32_1 = arith.constant 0 : i32
    return %c0_i32, %c0_i32_0 : i32, i32
  }
  func.func @transform_7(%arg0: i32) -> (i32, i32) {
    %c0_i32 = arith.constant 0 : i32
    %c0_i32_0 = arith.constant 0 : i32
    %c0_i32_1 = arith.constant 0 : i32
    return %c0_i32, %c0_i32_0 : i32, i32
  }
  func.func @transform_8(%arg0: i32) -> (i32, i32, i32, i32) {
    %c0_i32 = arith.constant 0 : i32
    %c0_i32_0 = arith.constant 0 : i32
    %c0_i32_1 = arith.constant 0 : i32
    %c0_i32_2 = arith.constant 0 : i32
    return %arg0, %c0_i32, %c0_i32_0, %c0_i32_1 : i32, i32, i32, i32
  }
}

</mosaic_0001>

<llo_original>
// kernel: resblock_forward.1
$region0: #{resblock_forward.1}
  #allocation0 [shape = 'u32[]', space=smem, size = 0x4, offset = 0x4, fixed_abs, tag = 'smem constant byte address 0x4 - core index']
  #allocation1 [shape = 'u32[144,128]{1,0:T(1,128)}', space=vmem, size = 0x12000, scoped, tag = 'internal scratch']
  #allocation2 [shape = 'bf16[18,18,64]{2,1,0:T(8,128)(2,1)}', space=vmem, size = 0x1b000, scoped, tag = 'scratch operand']
  #allocation3 [shape = 'bf16[18,18,24]{2,1,0:T(8,128)(2,1)}', space=vmem, size = 0x1b000, scoped, tag = 'scratch operand']
  %s0 = inlined_call_operand.vmem [shape: bf16[2,18,18,32], index: 0, kind: input, shape index: {}]
  %s1 = inlined_call_operand.vmem [shape: bf16[288,64], index: 1, kind: input, shape index: {}]
  %s2 = inlined_call_operand.vmem [shape: f32[1,64], index: 2, kind: input, shape index: {}]
  %s3 = inlined_call_operand.vmem [shape: f32[1,64], index: 3, kind: input, shape index: {}]
  %s4 = inlined_call_operand.vmem [shape: bf16[576,24], index: 4, kind: input, shape index: {}]
  %s5 = inlined_call_operand.vmem [shape: f32[1,24], index: 5, kind: input, shape index: {}]
  %s6 = inlined_call_operand.vmem [shape: bf16[216,32], index: 6, kind: input, shape index: {}]
  %s7 = inlined_call_operand.vmem [shape: f32[1,32], index: 7, kind: input, shape index: {}]
  %s8 = inlined_call_operand.hbm [shape: f32[2,16,16,32], index: 8, kind: output, shape index: {}]
  %s9 = sld [smem:[#allocation0]]
  $region65: #{resblock_forward.1} parent=0
    _
  %s11 = ssub.s32 1, %s9
  %s12 = scalar_select 0, %s11, %s9
  $region1: #{resblock_forward.1} parent=0
    #allocation4 [shape = 'u8[262144]{0}', space=vmem, size = 0x40000, scoped, tag = 'output window, operand 0']
    #allocation5 [shape = 's32[2]{0}', space=sflag, size = 0x8, scoped, tag = 'scoped memory for resblock_forward.1']
    %13 = vsyncpa [#allocation5], 0
    %s14 = scalar_lea.sflag [#allocation5], 1
    %15 = vsyncpa %s14, 0
    loop: start=0, step=1, limit=4
    $region2: #{resblock_forward.1} parent=1 // loop_pre_header
      _
    $region3: #{resblock_forward.1} parent=1 // loop_header
      %s17 = sphi 0, %s21
      %p18 = scmp.ge.s32.totalorder %s17, 4
      %s27 = sphi 0, %s29
      %s30 = sphi 0, %s27
      %s31 = sphi 0, %s30
      %s47 = sphi 0, %s31
      %s51 = sphi 0, %s51
      %s53 = sphi 0, %s51
      %s54 = sphi 0, %s53
      %s68 = sphi 0, %s54
      %s72 = sphi 0, %s72
      %s74 = sphi 0, %s72
      %s75 = sphi 0, %s74
      %s89 = sphi 0, %s75
      %s93 = sphi 0, %s93
      %s95 = sphi 0, %s93
      %s96 = sphi 0, %s95
      %s110 = sphi 0, %s96
      %s114 = sphi 0, %s114
      %s116 = sphi 0, %s114
      %s117 = sphi 0, %s116
      %s131 = sphi 0, %s117
      %s135 = sphi 0, %s135
      %s137 = sphi 0, %s135
      %s138 = sphi 0, %s137
      %s152 = sphi 0, %s138
      %s156 = sphi 0, %s156
      %s158 = sphi 0, %s156
      %s159 = sphi 0, %s158
      %s173 = sphi 0, %s159
      %s177 = sphi 0, %s177
      %s179 = sphi 0, %s177
      %s180 = sphi 0, %s179
      %s194 = sphi 0, %s180
      %s200 = sphi 0, %s202
      %s203 = sphi 0, %s200
      %s204 = sphi 0, %s203
      %s220 = sphi 0, %s204
    $region4: #{resblock_forward.1} parent=1 // loop_header_branch
      %20 = sbr.rel (%p18) target = $region8
    $region5: #{resblock_forward.1} parent=1 // loop_body
      %s22 = ssub.s32 %s17, 1
      %s23 = ssub.s32 %s17, 2
      %s24 = sadd.s32 %s17, 1
      %s25 = ssub.s32 %s17, %s24
      %p26 = scmp.eq.s32.totalorder %s25, 0
      %s28 = sadd.s32 %s27, 1
      %s29 = scalar_select %p26, %s27, %s28
      %p32 = pneg %p26
      %p33 = scmp.eq.s32.totalorder %s17, 1
      %p34 = por %p32, %p33
      %p35 = scmp.ne.s32.totalorder %s27, %s30
      %p36 = scmp.eq.s32.totalorder %s17, 0
      %p37 = por %p35, %p36
      %p38 = scmp.ne.s32.totalorder %s27, %s30
      %p39 = scmp.eq.s32.totalorder %s22, 1
      %p40 = por %p38, %p39
      %p41 = scmp.ne.s32.totalorder %s30, %s31
      %p42 = scmp.eq.s32.totalorder %s22, 0
      %p43 = por %p41, %p42
      %p44 = scmp.ne.s32.totalorder %s30, %s31
      %p45 = scmp.eq.s32.totalorder %s23, 1
      %p46 = por %p44, %p45
      %p48 = scmp.ne.s32.totalorder %s31, %s47
      %p49 = scmp.eq.s32.totalorder %s23, 0
      %p50 = por %p48, %p49
      %s52 = sadd.s32 %s51, 1
      %p55 = scmp.eq.s32.totalorder %s17, 1
      %p56 = scmp.ne.s32.totalorder %s51, %s53
      %p57 = scmp.eq.s32.totalorder %s17, 0
      %p58 = por %p56, %p57
      %p59 = scmp.ne.s32.totalorder %s51, %s53
      %p60 = scmp.eq.s32.totalorder %s22, 1
      %p61 = por %p59, %p60
      %p62 = scmp.ne.s32.totalorder %s53, %s54
      %p63 = scmp.eq.s32.totalorder %s22, 0
      %p64 = por %p62, %p63
      %p65 = scmp.ne.s32.totalorder %s53, %s54
      %p66 = scmp.eq.s32.totalorder %s23, 1
      %p67 = por %p65, %p66
      %p69 = scmp.ne.s32.totalorder %s54, %s68
      %p70 = scmp.eq.s32.totalorder %s23, 0
      %p71 = por %p69, %p70
      %s73 = sadd.s32 %s72, 1
      %p76 = scmp.eq.s32.totalorder %s17, 1
      %p77 = scmp.ne.s32.totalorder %s72, %s74
      %p78 = scmp.eq.s32.totalorder %s17, 0
      %p79 = por %p77, %p78
      %p80 = scmp.ne.s32.totalorder %s72, %s74
      %p81 = scmp.eq.s32.totalorder %s22, 1
      %p82 = por %p80, %p81
      %p83 = scmp.ne.s32.totalorder %s74, %s75
      %p84 = scmp.eq.s32.totalorder %s22, 0
      %p85 = por %p83, %p84
      %p86 = scmp.ne.s32.totalorder %s74, %s75
      %p87 = scmp.eq.s32.totalorder %s23, 1
      %p88 = por %p86, %p87
      %p90 = scmp.ne.s32.totalorder %s75, %s89
      %p91 = scmp.eq.s32.totalorder %s23, 0
      %p92 = por %p90, %p91
      %s94 = sadd.s32 %s93, 1
      %p97 = scmp.eq.s32.totalorder %s17, 1
      %p98 = scmp.ne.s32.totalorder %s93, %s95
      %p99 = scmp.eq.s32.totalorder %s17, 0
      %p100 = por %p98, %p99
      %p101 = scmp.ne.s32.totalorder %s93, %s95
      %p102 = scmp.eq.s32.totalorder %s22, 1
      %p103 = por %p101, %p102
      %p104 = scmp.ne.s32.totalorder %s95, %s96
      %p105 = scmp.eq.s32.totalorder %s22, 0
      %p106 = por %p104, %p105
      %p107 = scmp.ne.s32.totalorder %s95, %s96
      %p108 = scmp.eq.s32.totalorder %s23, 1
      %p109 = por %p107, %p108
      %p111 = scmp.ne.s32.totalorder %s96, %s110
      %p112 = scmp.eq.s32.totalorder %s23, 0
      %p113 = por %p111, %p112
      %s115 = sadd.s32 %s114, 1
      %p118 = scmp.eq.s32.totalorder %s17, 1
      %p119 = scmp.ne.s32.totalorder %s114, %s116
      %p120 = scmp.eq.s32.totalorder %s17, 0
      %p121 = por %p119, %p120
      %p122 = scmp.ne.s32.totalorder %s114, %s116
      %p123 = scmp.eq.s32.totalorder %s22, 1
      %p124 = por %p122, %p123
      %p125 = scmp.ne.s32.totalorder %s116, %s117
      %p126 = scmp.eq.s32.totalorder %s22, 0
      %p127 = por %p125, %p126
      %p128 = scmp.ne.s32.totalorder %s116, %s117
      %p129 = scmp.eq.s32.totalorder %s23, 1
      %p130 = por %p128, %p129
      %p132 = scmp.ne.s32.totalorder %s117, %s131
      %p133 = scmp.eq.s32.totalorder %s23, 0
      %p134 = por %p132, %p133
      %s136 = sadd.s32 %s135, 1
      %p139 = scmp.eq.s32.totalorder %s17, 1
      %p140 = scmp.ne.s32.totalorder %s135, %s137
      %p141 = scmp.eq.s32.totalorder %s17, 0
      %p142 = por %p140, %p141
      %p143 = scmp.ne.s32.totalorder %s135, %s137
      %p144 = scmp.eq.s32.totalorder %s22, 1
      %p145 = por %p143, %p144
      %p146 = scmp.ne.s32.totalorder %s137, %s138
      %p147 = scmp.eq.s32.totalorder %s22, 0
      %p148 = por %p146, %p147
      %p149 = scmp.ne.s32.totalorder %s137, %s138
      %p150 = scmp.eq.s32.totalorder %s23, 1
      %p151 = por %p149, %p150
      %p153 = scmp.ne.s32.totalorder %s138, %s152
      %p154 = scmp.eq.s32.totalorder %s23, 0
      %p155 = por %p153, %p154
      %s157 = sadd.s32 %s156, 1
      %p160 = scmp.eq.s32.totalorder %s17, 1
      %p161 = scmp.ne.s32.totalorder %s156, %s158
      %p162 = scmp.eq.s32.totalorder %s17, 0
      %p163 = por %p161, %p162
      %p164 = scmp.ne.s32.totalorder %s156, %s158
      %p165 = scmp.eq.s32.totalorder %s22, 1
      %p166 = por %p164, %p165
      %p167 = scmp.ne.s32.totalorder %s158, %s159
      %p168 = scmp.eq.s32.totalorder %s22, 0
      %p169 = por %p167, %p168
      %p170 = scmp.ne.s32.totalorder %s158, %s159
      %p171 = scmp.eq.s32.totalorder %s23, 1
      %p172 = por %p170, %p171
      %p174 = scmp.ne.s32.totalorder %s159, %s173
      %p175 = scmp.eq.s32.totalorder %s23, 0
      %p176 = por %p174, %p175
      %s178 = sadd.s32 %s177, 1
      %p181 = scmp.eq.s32.totalorder %s17, 1
      %p182 = scmp.ne.s32.totalorder %s177, %s179
      %p183 = scmp.eq.s32.totalorder %s17, 0
      %p184 = por %p182, %p183
      %p185 = scmp.ne.s32.totalorder %s177, %s179
      %p186 = scmp.eq.s32.totalorder %s22, 1
      %p187 = por %p185, %p186
      %p188 = scmp.ne.s32.totalorder %s179, %s180
      %p189 = scmp.eq.s32.totalorder %s22, 0
      %p190 = por %p188, %p189
      %p191 = scmp.ne.s32.totalorder %s179, %s180
      %p192 = scmp.eq.s32.totalorder %s23, 1
      %p193 = por %p191, %p192
      %p195 = scmp.ne.s32.totalorder %s180, %s194
      %p196 = scmp.eq.s32.totalorder %s23, 0
      %p197 = por %p195, %p196
      %s198 = ssub.s32 %s17, %s24
      %p199 = scmp.eq.s32.totalorder %s198, 0
      %s201 = sadd.s32 %s200, 1
      %s202 = scalar_select %p199, %s200, %s201
      %p205 = pneg %p199
      %p206 = scmp.eq.s32.totalorder %s17, 1
      %p207 = por %p205, %p206
      %p208 = scmp.ne.s32.totalorder %s200, %s203
      %p209 = scmp.eq.s32.totalorder %s17, 0
      %p210 = por %p208, %p209
      %p211 = scmp.ne.s32.totalorder %s200, %s203
      %p212 = scmp.eq.s32.totalorder %s22, 1
      %p213 = por %p211, %p212
      %p214 = scmp.ne.s32.totalorder %s203, %s204
      %p215 = scmp.eq.s32.totalorder %s22, 0
      %p216 = por %p214, %p215
      %p217 = scmp.ne.s32.totalorder %s203, %s204
      %p218 = scmp.eq.s32.totalorder %s23, 1
      %p219 = por %p217, %p218
      %p221 = scmp.ne.s32.totalorder %s204, %s220
      %p222 = scmp.eq.s32.totalorder %s23, 0
      %p223 = por %p221, %p222
      %p224 = scmp.le.s32.totalorder 1, %s17
      %p225 = scmp.lt.s32.totalorder %s17, 3
      %p226 = pnand %p224, %p225
      %p227 = pneg %p226
      // Predicated region
      $region9: #{resblock_forward.1} parent=5 // pred_check
        _
      $region10: #{resblock_forward.1} parent=5 // pred_check_branch
        %229 = sbr.rel (%p226) target = $region12
      $region11: #{resblock_forward.1} parent=5 // pred_region
        %s230 = ssub.s32 %s17, 1
        // Predicated region
        $region13: #{resblock_forward.1} parent=11 // pred_check
          %p231 = pneg %p64
        $region14: #{resblock_forward.1} parent=11 // pred_check_branch
          %233 = sbr.rel (%p231) target = $region16
        $region15: #{resblock_forward.1} parent=11 // pred_region
          _
        $region16: #{resblock_forward.1} parent=11 // pred_fallthru
          _
        // Predicated region
        $region17: #{resblock_forward.1} parent=11 // pred_check
          %p234 = pneg %p85
        $region18: #{resblock_forward.1} parent=11 // pred_check_branch
          %236 = sbr.rel (%p234) target = $region20
        $region19: #{resblock_forward.1} parent=11 // pred_region
          _
        $region20: #{resblock_forward.1} parent=11 // pred_fallthru
          _
        // Predicated region
        $region21: #{resblock_forward.1} parent=11 // pred_check
          %p237 = pneg %p106
        $region22: #{resblock_forward.1} parent=11 // pred_check_branch
          %239 = sbr.rel (%p237) target = $region24
        $region23: #{resblock_forward.1} parent=11 // pred_region
          _
        $region24: #{resblock_forward.1} parent=11 // pred_fallthru
          _
        // Predicated region
        $region25: #{resblock_forward.1} parent=11 // pred_check
          %p240 = pneg %p127
        $region26: #{resblock_forward.1} parent=11 // pred_check_branch
          %242 = sbr.rel (%p240) target = $region28
        $region27: #{resblock_forward.1} parent=11 // pred_region
          _
        $region28: #{resblock_forward.1} parent=11 // pred_fallthru
          _
        // Predicated region
        $region29: #{resblock_forward.1} parent=11 // pred_check
          %p243 = pneg %p148
        $region30: #{resblock_forward.1} parent=11 // pred_check_branch
          %245 = sbr.rel (%p243) target = $region32
        $region31: #{resblock_forward.1} parent=11 // pred_region
          _
        $region32: #{resblock_forward.1} parent=11 // pred_fallthru
          _
        // Predicated region
        $region33: #{resblock_forward.1} parent=11 // pred_check
          %p246 = pneg %p169
        $region34: #{resblock_forward.1} parent=11 // pred_check_branch
          %248 = sbr.rel (%p246) target = $region36
        $region35: #{resblock_forward.1} parent=11 // pred_region
          _
        $region36: #{resblock_forward.1} parent=11 // pred_fallthru
          _
        // Predicated region
        $region37: #{resblock_forward.1} parent=11 // pred_check
          %p249 = pneg %p190
        $region38: #{resblock_forward.1} parent=11 // pred_check_branch
          %251 = sbr.rel (%p249) target = $region40
        $region39: #{resblock_forward.1} parent=11 // pred_region
          _
        $region40: #{resblock_forward.1} parent=11 // pred_fallthru
          _
      $region12: #{resblock_forward.1} parent=5 // pred_fallthru
        _
      %p252 = scmp.lt.s32.totalorder %s17, 2
      // Predicated region
      $region41: #{resblock_forward.1} parent=5 // pred_check
        %p253 = pneg %p252
      $region42: #{resblock_forward.1} parent=5 // pred_check_branch
        %255 = sbr.rel (%p253) target = $region44
      $region43: #{resblock_forward.1} parent=5 // pred_region
        // Predicated region
        $region45: #{resblock_forward.1} parent=43 // pred_check
          %p256 = pneg %p37
        $region46: #{resblock_forward.1} parent=43 // pred_check_branch
          %258 = sbr.rel (%p256) target = $region48
        $region47: #{resblock_forward.1} parent=43 // pred_region
          %p259 = scmp.lt.s32.totalorder %s17, 1
          %s260 = scalar_select %p259, %s17, 1
          %s261 = smul.addr %s260, 54
          %s262 = smul.addr %s261, 4
          %s263 = scalar_lea.vmem %s0, %s262
        $region48: #{resblock_forward.1} parent=43 // pred_fallthru
          _
      $region44: #{resblock_forward.1} parent=5 // pred_fallthru
        _
      %p264 = scmp.le.s32.totalorder 1, %s17
      %p265 = scmp.lt.s32.totalorder %s17, 3
      %p266 = pnand %p264, %p265
      %p267 = pneg %p266
      // Predicated region
      $region49: #{resblock_forward.1} parent=5 // pred_check
        _
      $region50: #{resblock_forward.1} parent=5 // pred_check_branch
        %269 = sbr.rel (%p266) target = $region52
      $region51: #{resblock_forward.1} parent=5 // pred_region
        %s270 = ssub.s32 %s17, 1
        %p271 = scmp.lt.s32.totalorder %s22, 1
        %s272 = scalar_select %p271, %s22, 1
        %s273 = smul.addr %s272, 54
        %s274 = smul.addr %s273, 4
        %s275 = scalar_lea.vmem %s0, %s274
        %p276 = pneg %p43
        %p277 = pneg %p40
        %p278 = pneg %p64
        %p279 = pneg %p61
        %p280 = pneg %p85
        %p281 = pneg %p82
        %p282 = pneg %p106
        %p283 = pneg %p103
        %p284 = pneg %p127
        %p285 = pneg %p124
        %p286 = pneg %p148
        %p287 = pneg %p145
        %p288 = pneg %p169
        %p289 = pneg %p166
        %p290 = pneg %p190
        %p291 = pneg %p187
        %p292 = pneg %p216
        %p293 = pneg %p213
        %s294 = sand.u32 %s203, 1
        %s295 = scalar_lea.sflag [#allocation5], %s294
        %s296 = sand.u32 %s203, 1
        %s297 = smul.addr %s296, 256
        %s298 = scalar_lea.vmem [#allocation4], %s297
        %p299 = scmp.lt.s32.totalorder %s22, 1
        %s300 = scalar_select %p299, %s22, 1
        %s301 = smul.addr %s300, 54
        %s302 = smul.addr %s301, 4
        %s303 = scalar_lea.vmem %s0, %s302
        %s305 = scalar_lea.vmem %s303, 12
        %v306 = vld [vmem:[%s305] sm:$0xf]
        %v307 = vld [vmem:[%s305 + $0x4] sm:$0xf]
        %v308 = vld [vmem:[%s305 + $0x8] sm:$0x1]
        %v309 = vld [vmem:[%s305 + $0xc] sm:$0xf]
        %v310 = vld [vmem:[%s305 + $0x10] sm:$0xf]
        %v311 = vld [vmem:[%s305 + $0x14] sm:$0x1]
        %v312 = vld [vmem:[%s305 + $0x18] sm:$0xf]
        %v313 = vld [vmem:[%s305 + $0x1c] sm:$0xf]
        %v314 = vld [vmem:[%s305 + $0x20] sm:$0x1]
        %v315 = vld [vmem:[%s305 + $0x24] sm:$0xf]
        %v316 = vld [vmem:[%s305 + $0x28] sm:$0xf]
        %v317 = vld [vmem:[%s305 + $0x2c] sm:$0x1]
        %v318 = vld [vmem:[%s305 + $0x30] sm:$0xf]
        %v319 = vld [vmem:[%s305 + $0x34] sm:$0xf]
        %v320 = vld [vmem:[%s305 + $0x38] sm:$0x1]
        %v321 = vld [vmem:[%s305 + $0x3c] sm:$0xf]
        %v322 = vld [vmem:[%s305 + $0x40] sm:$0xf]
        %v323 = vld [vmem:[%s305 + $0x44] sm:$0x1]
        %v324 = vld [vmem:[%s305 + $0x48] sm:$0xf]
        %v325 = vld [vmem:[%s305 + $0x4c] sm:$0xf]
        %v326 = vld [vmem:[%s305 + $0x50] sm:$0x1]
        %v327 = vld [vmem:[%s305 + $0x54] sm:$0xf]
        %v328 = vld [vmem:[%s305 + $0x58] sm:$0xf]
        %v329 = vld [vmem:[%s305 + $0x5c] sm:$0x1]
        %v330 = vld [vmem:[%s305 + $0x60] sm:$0xf]
        %v331 = vld [vmem:[%s305 + $0x64] sm:$0xf]
        %v332 = vld [vmem:[%s305 + $0x68] sm:$0x1]
        %v333 = vld [vmem:[%s305 + $0x6c] sm:$0xf]
        %v334 = vld [vmem:[%s305 + $0x70] sm:$0xf]
        %v335 = vld [vmem:[%s305 + $0x74] sm:$0x1]
        %v336 = vld [vmem:[%s305 + $0x78] sm:$0xf]
        %v337 = vld [vmem:[%s305 + $0x7c] sm:$0xf]
        %v338 = vld [vmem:[%s305 + $0x80] sm:$0x1]
        %v339 = vld [vmem:[%s305 + $0x84] sm:$0xf]
        %v340 = vld [vmem:[%s305 + $0x88] sm:$0xf]
        %v341 = vld [vmem:[%s305 + $0x8c] sm:$0x1]
        %v342 = vld [vmem:[%s305 + $0x90] sm:$0xf]
        %v343 = vld [vmem:[%s305 + $0x94] sm:$0xf]
        %v344 = vld [vmem:[%s305 + $0x98] sm:$0x1]
        %v345 = vld [vmem:[%s305 + $0x9c] sm:$0xf]
        %v346 = vld [vmem:[%s305 + $0xa0] sm:$0xf]
        %v347 = vld [vmem:[%s305 + $0xa4] sm:$0x1]
        %v348 = vld [vmem:[%s305 + $0xa8] sm:$0xf]
        %v349 = vld [vmem:[%s305 + $0xac] sm:$0xf]
        %v350 = vld [vmem:[%s305 + $0xb0] sm:$0x1]
        %v351 = vld [vmem:[%s305 + $0xb4] sm:$0xf]
        %v352 = vld [vmem:[%s305 + $0xb8] sm:$0xf]
        %v353 = vld [vmem:[%s305 + $0xbc] sm:$0x1]
        %vm354 = vsmask.f32 3328
        %vm355 = vsmask.f32 7440
        %vm356 = vmor %vm354, %vm355
        %v358 = vshrl.u32 %v306, 16
        %v360 = vrot.slane %v358, 4
        %v361 = vshll.u32 %v306, 16
        %v363 = vrot.slane %v361, 5
        %v364 = vor.u32 %v360, %v363
        %v365 = vrot.slane %v364, 4
        %v367 = vshll.u32 %v307, 16
        %v369 = vrot.slane %v367, 5
        %v370 = vsel %vm356, %v365, %v369
        %v371 = vshrl.u32 %v307, 16
        %v373 = vrot.slane %v371, 4
        %v374 = vor.u32 %v373, %v369
        %v375 = vrot.slane %v374, 4
        %v377 = vshll.u32 %v308, 16
        %v379 = vrot.slane %v377, 5
        %v380 = vsel %vm356, %v375, %v379
        %v382 = vshrl.u32 %v309, 16
        %v384 = vrot.slane %v382, 4
        %v385 = vshll.u32 %v309, 16
        %v387 = vrot.slane %v385, 5
        %v388 = vor.u32 %v384, %v387
        %v389 = vrot.slane %v388, 4
        %v391 = vshll.u32 %v310, 16
        %v393 = vrot.slane %v391, 5
        %v394 = vsel %vm356, %v389, %v393
        %v395 = vshrl.u32 %v310, 16
        %v397 = vrot.slane %v395, 4
        %v398 = vor.u32 %v397, %v393
        %v399 = vrot.slane %v398, 4
        %v401 = vshll.u32 %v311, 16
        %v403 = vrot.slane %v401, 5
        %v404 = vsel %vm356, %v399, %v403
        %v406 = vshrl.u32 %v312, 16
        %v408 = vrot.slane %v406, 4
        %v409 = vshll.u32 %v312, 16
        %v411 = vrot.slane %v409, 5
        %v412 = vor.u32 %v408, %v411
        %v413 = vrot.slane %v412, 4
        %v415 = vshll.u32 %v313, 16
        %v417 = vrot.slane %v415, 5
        %v418 = vsel %vm356, %v413, %v417
        %v419 = vshrl.u32 %v313, 16
        %v421 = vrot.slane %v419, 4
        %v422 = vor.u32 %v421, %v417
        %v423 = vrot.slane %v422, 4
        %v425 = vshll.u32 %v314, 16
        %v427 = vrot.slane %v425, 5
        %v428 = vsel %vm356, %v423, %v427
        %v430 = vshrl.u32 %v315, 16
        %v432 = vrot.slane %v430, 4
        %v433 = vshll.u32 %v315, 16
        %v435 = vrot.slane %v433, 5
        %v436 = vor.u32 %v432, %v435
        %v437 = vrot.slane %v436, 4
        %v439 = vshll.u32 %v316, 16
        %v441 = vrot.slane %v439, 5
        %v442 = vsel %vm356, %v437, %v441
        %v443 = vshrl.u32 %v316, 16
        %v445 = vrot.slane %v443, 4
        %v446 = vor.u32 %v445, %v441
        %v447 = vrot.slane %v446, 4
        %v449 = vshll.u32 %v317, 16
        %v451 = vrot.slane %v449, 5
        %v452 = vsel %vm356, %v447, %v451
        %v454 = vshrl.u32 %v318, 16
        %v456 = vrot.slane %v454, 4
        %v457 = vshll.u32 %v318, 16
        %v459 = vrot.slane %v457, 5
        %v460 = vor.u32 %v456, %v459
        %v461 = vrot.slane %v460, 4
        %v463 = vshll.u32 %v319, 16
        %v465 = vrot.slane %v463, 5
        %v466 = vsel %vm356, %v461, %v465
        %v467 = vshrl.u32 %v319, 16
        %v469 = vrot.slane %v467, 4
        %v470 = vor.u32 %v469, %v465
        %v471 = vrot.slane %v470, 4
        %v473 = vshll.u32 %v320, 16
        %v475 = vrot.slane %v473, 5
        %v476 = vsel %vm356, %v471, %v475
        %v478 = vshrl.u32 %v321, 16
        %v480 = vrot.slane %v478, 4
        %v481 = vshll.u32 %v321, 16
        %v483 = vrot.slane %v481, 5
        %v484 = vor.u32 %v480, %v483
        %v485 = vrot.slane %v484, 4
        %v487 = vshll.u32 %v322, 16
        %v489 = vrot.slane %v487, 5
        %v490 = vsel %vm356, %v485, %v489
        %v491 = vshrl.u32 %v322, 16
        %v493 = vrot.slane %v491, 4
        %v494 = vor.u32 %v493, %v489
        %v495 = vrot.slane %v494, 4
        %v497 = vshll.u32 %v323, 16
        %v499 = vrot.slane %v497, 5
        %v500 = vsel %vm356, %v495, %v499
        %v502 = vshrl.u32 %v324, 16
        %v504 = vrot.slane %v502, 4
        %v505 = vshll.u32 %v324, 16
        %v507 = vrot.slane %v505, 5
        %v508 = vor.u32 %v504, %v507
        %v509 = vrot.slane %v508, 4
        %v511 = vshll.u32 %v325, 16
        %v513 = vrot.slane %v511, 5
        %v514 = vsel %vm356, %v509, %v513
        %v515 = vshrl.u32 %v325, 16
        %v517 = vrot.slane %v515, 4
        %v518 = vor.u32 %v517, %v513
        %v519 = vrot.slane %v518, 4
        %v521 = vshll.u32 %v326, 16
        %v523 = vrot.slane %v521, 5
        %v524 = vsel %vm356, %v519, %v523
        %v526 = vshrl.u32 %v327, 16
        %v528 = vrot.slane %v526, 4
        %v529 = vshll.u32 %v327, 16
        %v531 = vrot.slane %v529, 5
        %v532 = vor.u32 %v528, %v531
        %v533 = vrot.slane %v532, 4
        %v535 = vshll.u32 %v328, 16
        %v537 = vrot.slane %v535, 5
        %v538 = vsel %vm356, %v533, %v537
        %v539 = vshrl.u32 %v328, 16
        %v541 = vrot.slane %v539, 4
        %v542 = vor.u32 %v541, %v537
        %v543 = vrot.slane %v542, 4
        %v545 = vshll.u32 %v329, 16
        %v547 = vrot.slane %v545, 5
        %v548 = vsel %vm356, %v543, %v547
        %v550 = vshrl.u32 %v330, 16
        %v552 = vrot.slane %v550, 4
        %v553 = vshll.u32 %v330, 16
        %v555 = vrot.slane %v553, 5
        %v556 = vor.u32 %v552, %v555
        %v557 = vrot.slane %v556, 4
        %v559 = vshll.u32 %v331, 16
        %v561 = vrot.slane %v559, 5
        %v562 = vsel %vm356, %v557, %v561
        %v563 = vshrl.u32 %v331, 16
        %v565 = vrot.slane %v563, 4
        %v566 = vor.u32 %v565, %v561
        %v567 = vrot.slane %v566, 4
        %v569 = vshll.u32 %v332, 16
        %v571 = vrot.slane %v569, 5
        %v572 = vsel %vm356, %v567, %v571
        %v574 = vshrl.u32 %v333, 16
        %v576 = vrot.slane %v574, 4
        %v577 = vshll.u32 %v333, 16
        %v579 = vrot.slane %v577, 5
        %v580 = vor.u32 %v576, %v579
        %v581 = vrot.slane %v580, 4
        %v583 = vshll.u32 %v334, 16
        %v585 = vrot.slane %v583, 5
        %v586 = vsel %vm356, %v581, %v585
        %v587 = vshrl.u32 %v334, 16
        %v589 = vrot.slane %v587, 4
        %v590 = vor.u32 %v589, %v585
        %v591 = vrot.slane %v590, 4
        %v593 = vshll.u32 %v335, 16
        %v595 = vrot.slane %v593, 5
        %v596 = vsel %vm356, %v591, %v595
        %v598 = vshrl.u32 %v336, 16
        %v600 = vrot.slane %v598, 4
        %v601 = vshll.u32 %v336, 16
        %v603 = vrot.slane %v601, 5
        %v604 = vor.u32 %v600, %v603
        %v605 = vrot.slane %v604, 4
        %v607 = vshll.u32 %v337, 16
        %v609 = vrot.slane %v607, 5
        %v610 = vsel %vm356, %v605, %v609
        %v611 = vshrl.u32 %v337, 16
        %v613 = vrot.slane %v611, 4
        %v614 = vor.u32 %v613, %v609
        %v615 = vrot.slane %v614, 4
        %v617 = vshll.u32 %v338, 16
        %v619 = vrot.slane %v617, 5
        %v620 = vsel %vm356, %v615, %v619
        %v622 = vshrl.u32 %v339, 16
        %v624 = vrot.slane %v622, 4
        %v625 = vshll.u32 %v339, 16
        %v627 = vrot.slane %v625, 5
        %v628 = vor.u32 %v624, %v627
        %v629 = vrot.slane %v628, 4
        %v631 = vshll.u32 %v340, 16
        %v633 = vrot.slane %v631, 5
        %v634 = vsel %vm356, %v629, %v633
        %v635 = vshrl.u32 %v340, 16
        %v637 = vrot.slane %v635, 4
        %v638 = vor.u32 %v637, %v633
        %v639 = vrot.slane %v638, 4
        %v641 = vshll.u32 %v341, 16
        %v643 = vrot.slane %v641, 5
        %v644 = vsel %vm356, %v639, %v643
        %v646 = vshrl.u32 %v342, 16
        %v648 = vrot.slane %v646, 4
        %v649 = vshll.u32 %v342, 16
        %v651 = vrot.slane %v649, 5
        %v652 = vor.u32 %v648, %v651
        %v653 = vrot.slane %v652, 4
        %v655 = vshll.u32 %v343, 16
        %v657 = vrot.slane %v655, 5
        %v658 = vsel %vm356, %v653, %v657
        %v659 = vshrl.u32 %v343, 16
        %v661 = vrot.slane %v659, 4
        %v662 = vor.u32 %v661, %v657
        %v663 = vrot.slane %v662, 4
        %v665 = vshll.u32 %v344, 16
        %v667 = vrot.slane %v665, 5
        %v668 = vsel %vm356, %v663, %v667
        %v670 = vshrl.u32 %v345, 16
        %v672 = vrot.slane %v670, 4
        %v673 = vshll.u32 %v345, 16
        %v675 = vrot.slane %v673, 5
        %v676 = vor.u32 %v672, %v675
        %v677 = vrot.slane %v676, 4
        %v679 = vshll.u32 %v346, 16
        %v681 = vrot.slane %v679, 5
        %v682 = vsel %vm356, %v677, %v681
        %v683 = vshrl.u32 %v346, 16
        %v685 = vrot.slane %v683, 4
        %v686 = vor.u32 %v685, %v681
        %v687 = vrot.slane %v686, 4
        %v689 = vshll.u32 %v347, 16
        %v691 = vrot.slane %v689, 5
        %v692 = vsel %vm356, %v687, %v691
        %v694 = vshrl.u32 %v348, 16
        %v696 = vrot.slane %v694, 4
        %v697 = vshll.u32 %v348, 16
        %v699 = vrot.slane %v697, 5
        %v700 = vor.u32 %v696, %v699
        %v701 = vrot.slane %v700, 4
        %v703 = vshll.u32 %v349, 16
        %v705 = vrot.slane %v703, 5
        %v706 = vsel %vm356, %v701, %v705
        %v707 = vshrl.u32 %v349, 16
        %v709 = vrot.slane %v707, 4
        %v710 = vor.u32 %v709, %v705
        %v711 = vrot.slane %v710, 4
        %v713 = vshll.u32 %v350, 16
        %v715 = vrot.slane %v713, 5
        %v716 = vsel %vm356, %v711, %v715
        %v718 = vshrl.u32 %v351, 16
        %v720 = vrot.slane %v718, 4
        %v721 = vshll.u32 %v351, 16
        %v723 = vrot.slane %v721, 5
        %v724 = vor.u32 %v720, %v723
        %v725 = vrot.slane %v724, 4
        %v727 = vshll.u32 %v352, 16
        %v729 = vrot.slane %v727, 5
        %v730 = vsel %vm356, %v725, %v729
        %v731 = vshrl.u32 %v352, 16
        %v733 = vrot.slane %v731, 4
        %v734 = vor.u32 %v733, %v729
        %v735 = vrot.slane %v734, 4
        %v737 = vshll.u32 %v353, 16
        %v739 = vrot.slane %v737, 5
        %v740 = vsel %vm356, %v735, %v739
        %v773 = vld [vmem:[%s303] sm:$0xf]
        %v774 = vld [vmem:[%s303 + $0x4] sm:$0xf]
        %v775 = vld [vmem:[%s303 + $0xc] sm:$0xf]
        %v776 = vld [vmem:[%s303 + $0x10] sm:$0xf]
        %v777 = vld [vmem:[%s303 + $0x18] sm:$0xf]
        %v778 = vld [vmem:[%s303 + $0x1c] sm:$0xf]
        %v779 = vld [vmem:[%s303 + $0x24] sm:$0xf]
        %v780 = vld [vmem:[%s303 + $0x28] sm:$0xf]
        %v781 = vld [vmem:[%s303 + $0x30] sm:$0xf]
        %v782 = vld [vmem:[%s303 + $0x34] sm:$0xf]
        %v783 = vld [vmem:[%s303 + $0x3c] sm:$0xf]
        %v784 = vld [vmem:[%s303 + $0x40] sm:$0xf]
        %v785 = vld [vmem:[%s303 + $0x48] sm:$0xf]
        %v786 = vld [vmem:[%s303 + $0x4c] sm:$0xf]
        %v787 = vld [vmem:[%s303 + $0x54] sm:$0xf]
        %v788 = vld [vmem:[%s303 + $0x58] sm:$0xf]
        %v789 = vld [vmem:[%s303 + $0x60] sm:$0xf]
        %v790 = vld [vmem:[%s303 + $0x64] sm:$0xf]
        %v791 = vld [vmem:[%s303 + $0x6c] sm:$0xf]
        %v792 = vld [vmem:[%s303 + $0x70] sm:$0xf]
        %v793 = vld [vmem:[%s303 + $0x78] sm:$0xf]
        %v794 = vld [vmem:[%s303 + $0x7c] sm:$0xf]
        %v795 = vld [vmem:[%s303 + $0x84] sm:$0xf]
        %v796 = vld [vmem:[%s303 + $0x88] sm:$0xf]
        %v797 = vld [vmem:[%s303 + $0x90] sm:$0xf]
        %v798 = vld [vmem:[%s303 + $0x94] sm:$0xf]
        %v799 = vld [vmem:[%s303 + $0x9c] sm:$0xf]
        %v800 = vld [vmem:[%s303 + $0xa0] sm:$0xf]
        %v801 = vld [vmem:[%s303 + $0xa8] sm:$0xf]
        %v802 = vld [vmem:[%s303 + $0xac] sm:$0xf]
        %v803 = vld [vmem:[%s303 + $0xb4] sm:$0xf]
        %v804 = vld [vmem:[%s303 + $0xb8] sm:$0xf]
        %v805 = vld [vmem:[%s303 + $0x8] sm:$0x1]
        %v806 = vld [vmem:[%s303 + $0x14] sm:$0x1]
        %v807 = vld [vmem:[%s303 + $0x20] sm:$0x1]
        %v808 = vld [vmem:[%s303 + $0x2c] sm:$0x1]
        %v809 = vld [vmem:[%s303 + $0x38] sm:$0x1]
        %v810 = vld [vmem:[%s303 + $0x44] sm:$0x1]
        %v811 = vld [vmem:[%s303 + $0x50] sm:$0x1]
        %v812 = vld [vmem:[%s303 + $0x5c] sm:$0x1]
        %v813 = vld [vmem:[%s303 + $0x68] sm:$0x1]
        %v814 = vld [vmem:[%s303 + $0x74] sm:$0x1]
        %v815 = vld [vmem:[%s303 + $0x80] sm:$0x1]
        %v816 = vld [vmem:[%s303 + $0x8c] sm:$0x1]
        %v817 = vld [vmem:[%s303 + $0x98] sm:$0x1]
        %v818 = vld [vmem:[%s303 + $0xa4] sm:$0x1]
        %v819 = vld [vmem:[%s303 + $0xb0] sm:$0x1]
        %v820 = vld [vmem:[%s303 + $0xbc] sm:$0x1]
        %v822 = vshrl.u32 %v773, 16
        %v824 = vrot.slane %v822, 4
        %v825 = vshll.u32 %v773, 16
        %v827 = vrot.slane %v825, 5
        %v828 = vor.u32 %v824, %v827
        %v829 = vrot.slane %v828, 4
        %v831 = vshll.u32 %v774, 16
        %v833 = vrot.slane %v831, 5
        %v834 = vsel %vm356, %v829, %v833
        %v835 = vshrl.u32 %v774, 16
        %v837 = vrot.slane %v835, 4
        %v838 = vor.u32 %v837, %v833
        %v839 = vrot.slane %v838, 4
        %v841 = vshll.u32 %v805, 16
        %v843 = vrot.slane %v841, 5
        %v844 = vsel %vm356, %v839, %v843
        %v846 = vshrl.u32 %v775, 16
        %v848 = vrot.slane %v846, 4
        %v849 = vshll.u32 %v775, 16
        %v851 = vrot.slane %v849, 5
        %v852 = vor.u32 %v848, %v851
        %v853 = vrot.slane %v852, 4
        %v855 = vshll.u32 %v776, 16
        %v857 = vrot.slane %v855, 5
        %v858 = vsel %vm356, %v853, %v857
        %v859 = vshrl.u32 %v776, 16
        %v861 = vrot.slane %v859, 4
        %v862 = vor.u32 %v861, %v857
        %v863 = vrot.slane %v862, 4
        %v865 = vshll.u32 %v806, 16
        %v867 = vrot.slane %v865, 5
        %v868 = vsel %vm356, %v863, %v867
        %v870 = vshrl.u32 %v777, 16
        %v872 = vrot.slane %v870, 4
        %v873 = vshll.u32 %v777, 16
        %v875 = vrot.slane %v873, 5
        %v876 = vor.u32 %v872, %v875
        %v877 = vrot.slane %v876, 4
        %v879 = vshll.u32 %v778, 16
        %v881 = vrot.slane %v879, 5
        %v882 = vsel %vm356, %v877, %v881
        %v883 = vshrl.u32 %v778, 16
        %v885 = vrot.slane %v883, 4
        %v886 = vor.u32 %v885, %v881
        %v887 = vrot.slane %v886, 4
        %v889 = vshll.u32 %v807, 16
        %v891 = vrot.slane %v889, 5
        %v892 = vsel %vm356, %v887, %v891
        %v894 = vshrl.u32 %v779, 16
        %v896 = vrot.slane %v894, 4
        %v897 = vshll.u32 %v779, 16
        %v899 = vrot.slane %v897, 5
        %v900 = vor.u32 %v896, %v899
        %v901 = vrot.slane %v900, 4
        %v903 = vshll.u32 %v780, 16
        %v905 = vrot.slane %v903, 5
        %v906 = vsel %vm356, %v901, %v905
        %v907 = vshrl.u32 %v780, 16
        %v909 = vrot.slane %v907, 4
        %v910 = vor.u32 %v909, %v905
        %v911 = vrot.slane %v910, 4
        %v913 = vshll.u32 %v808, 16
        %v915 = vrot.slane %v913, 5
        %v916 = vsel %vm356, %v911, %v915
        %v918 = vshrl.u32 %v781, 16
        %v920 = vrot.slane %v918, 4
        %v921 = vshll.u32 %v781, 16
        %v923 = vrot.slane %v921, 5
        %v924 = vor.u32 %v920, %v923
        %v925 = vrot.slane %v924, 4
        %v927 = vshll.u32 %v782, 16
        %v929 = vrot.slane %v927, 5
        %v930 = vsel %vm356, %v925, %v929
        %v931 = vshrl.u32 %v782, 16
        %v933 = vrot.slane %v931, 4
        %v934 = vor.u32 %v933, %v929
        %v935 = vrot.slane %v934, 4
        %v937 = vshll.u32 %v809, 16
        %v939 = vrot.slane %v937, 5
        %v940 = vsel %vm356, %v935, %v939
        %v942 = vshrl.u32 %v783, 16
        %v944 = vrot.slane %v942, 4
        %v945 = vshll.u32 %v783, 16
        %v947 = vrot.slane %v945, 5
        %v948 = vor.u32 %v944, %v947
        %v949 = vrot.slane %v948, 4
        %v951 = vshll.u32 %v784, 16
        %v953 = vrot.slane %v951, 5
        %v954 = vsel %vm356, %v949, %v953
        %v955 = vshrl.u32 %v784, 16
        %v957 = vrot.slane %v955, 4
        %v958 = vor.u32 %v957, %v953
        %v959 = vrot.slane %v958, 4
        %v961 = vshll.u32 %v810, 16
        %v963 = vrot.slane %v961, 5
        %v964 = vsel %vm356, %v959, %v963
        %v966 = vshrl.u32 %v785, 16
        %v968 = vrot.slane %v966, 4
        %v969 = vshll.u32 %v785, 16
        %v971 = vrot.slane %v969, 5
        %v972 = vor.u32 %v968, %v971
        %v973 = vrot.slane %v972, 4
        %v975 = vshll.u32 %v786, 16
        %v977 = vrot.slane %v975, 5
        %v978 = vsel %vm356, %v973, %v977
        %v979 = vshrl.u32 %v786, 16
        %v981 = vrot.slane %v979, 4
        %v982 = vor.u32 %v981, %v977
        %v983 = vrot.slane %v982, 4
        %v985 = vshll.u32 %v811, 16
        %v987 = vrot.slane %v985, 5
        %v988 = vsel %vm356, %v983, %v987
        %v990 = vshrl.u32 %v787, 16
        %v992 = vrot.slane %v990, 4
        %v993 = vshll.u32 %v787, 16
        %v995 = vrot.slane %v993, 5
        %v996 = vor.u32 %v992, %v995
        %v997 = vrot.slane %v996, 4
        %v999 = vshll.u32 %v788, 16
        %v1001 = vrot.slane %v999, 5
        %v1002 = vsel %vm356, %v997, %v1001
        %v1003 = vshrl.u32 %v788, 16
        %v1005 = vrot.slane %v1003, 4
        %v1006 = vor.u32 %v1005, %v1001
        %v1007 = vrot.slane %v1006, 4
        %v1009 = vshll.u32 %v812, 16
        %v1011 = vrot.slane %v1009, 5
        %v1012 = vsel %vm356, %v1007, %v1011
        %v1014 = vshrl.u32 %v789, 16
        %v1016 = vrot.slane %v1014, 4
        %v1017 = vshll.u32 %v789, 16
        %v1019 = vrot.slane %v1017, 5
        %v1020 = vor.u32 %v1016, %v1019
        %v1021 = vrot.slane %v1020, 4
        %v1023 = vshll.u32 %v790, 16
        %v1025 = vrot.slane %v1023, 5
        %v1026 = vsel %vm356, %v1021, %v1025
        %v1027 = vshrl.u32 %v790, 16
        %v1029 = vrot.slane %v1027, 4
        %v1030 = vor.u32 %v1029, %v1025
        %v1031 = vrot.slane %v1030, 4
        %v1033 = vshll.u32 %v813, 16
        %v1035 = vrot.slane %v1033, 5
        %v1036 = vsel %vm356, %v1031, %v1035
        %v1038 = vshrl.u32 %v791, 16
        %v1040 = vrot.slane %v1038, 4
        %v1041 = vshll.u32 %v791, 16
        %v1043 = vrot.slane %v1041, 5
        %v1044 = vor.u32 %v1040, %v1043
        %v1045 = vrot.slane %v1044, 4
        %v1047 = vshll.u32 %v792, 16
        %v1049 = vrot.slane %v1047, 5
        %v1050 = vsel %vm356, %v1045, %v1049
        %v1051 = vshrl.u32 %v792, 16
        %v1053 = vrot.slane %v1051, 4
        %v1054 = vor.u32 %v1053, %v1049
        %v1055 = vrot.slane %v1054, 4
        %v1057 = vshll.u32 %v814, 16
        %v1059 = vrot.slane %v1057, 5
        %v1060 = vsel %vm356, %v1055, %v1059
        %v1062 = vshrl.u32 %v793, 16
        %v1064 = vrot.slane %v1062, 4
        %v1065 = vshll.u32 %v793, 16
        %v1067 = vrot.slane %v1065, 5
        %v1068 = vor.u32 %v1064, %v1067
        %v1069 = vrot.slane %v1068, 4
        %v1071 = vshll.u32 %v794, 16
        %v1073 = vrot.slane %v1071, 5
        %v1074 = vsel %vm356, %v1069, %v1073
        %v1075 = vshrl.u32 %v794, 16
        %v1077 = vrot.slane %v1075, 4
        %v1078 = vor.u32 %v1077, %v1073
        %v1079 = vrot.slane %v1078, 4
        %v1081 = vshll.u32 %v815, 16
        %v1083 = vrot.slane %v1081, 5
        %v1084 = vsel %vm356, %v1079, %v1083
        %v1086 = vshrl.u32 %v795, 16
        %v1088 = vrot.slane %v1086, 4
        %v1089 = vshll.u32 %v795, 16
        %v1091 = vrot.slane %v1089, 5
        %v1092 = vor.u32 %v1088, %v1091
        %v1093 = vrot.slane %v1092, 4
        %v1095 = vshll.u32 %v796, 16
        %v1097 = vrot.slane %v1095, 5
        %v1098 = vsel %vm356, %v1093, %v1097
        %v1099 = vshrl.u32 %v796, 16
        %v1101 = vrot.slane %v1099, 4
        %v1102 = vor.u32 %v1101, %v1097
        %v1103 = vrot.slane %v1102, 4
        %v1105 = vshll.u32 %v816, 16
        %v1107 = vrot.slane %v1105, 5
        %v1108 = vsel %vm356, %v1103, %v1107
        %v1110 = vshrl.u32 %v797, 16
        %v1112 = vrot.slane %v1110, 4
        %v1113 = vshll.u32 %v797, 16
        %v1115 = vrot.slane %v1113, 5
        %v1116 = vor.u32 %v1112, %v1115
        %v1117 = vrot.slane %v1116, 4
        %v1119 = vshll.u32 %v798, 16
        %v1121 = vrot.slane %v1119, 5
        %v1122 = vsel %vm356, %v1117, %v1121
        %v1123 = vshrl.u32 %v798, 16
        %v1125 = vrot.slane %v1123, 4
        %v1126 = vor.u32 %v1125, %v1121
        %v1127 = vrot.slane %v1126, 4
        %v1129 = vshll.u32 %v817, 16
        %v1131 = vrot.slane %v1129, 5
        %v1132 = vsel %vm356, %v1127, %v1131
        %v1134 = vshrl.u32 %v799, 16
        %v1136 = vrot.slane %v1134, 4
        %v1137 = vshll.u32 %v799, 16
        %v1139 = vrot.slane %v1137, 5
        %v1140 = vor.u32 %v1136, %v1139
        %v1141 = vrot.slane %v1140, 4
        %v1143 = vshll.u32 %v800, 16
        %v1145 = vrot.slane %v1143, 5
        %v1146 = vsel %vm356, %v1141, %v1145
        %v1147 = vshrl.u32 %v800, 16
        %v1149 = vrot.slane %v1147, 4
        %v1150 = vor.u32 %v1149, %v1145
        %v1151 = vrot.slane %v1150, 4
        %v1153 = vshll.u32 %v818, 16
        %v1155 = vrot.slane %v1153, 5
        %v1156 = vsel %vm356, %v1151, %v1155
        %v1158 = vshrl.u32 %v801, 16
        %v1160 = vrot.slane %v1158, 4
        %v1161 = vshll.u32 %v801, 16
        %v1163 = vrot.slane %v1161, 5
        %v1164 = vor.u32 %v1160, %v1163
        %v1165 = vrot.slane %v1164, 4
        %v1167 = vshll.u32 %v802, 16
        %v1169 = vrot.slane %v1167, 5
        %v1170 = vsel %vm356, %v1165, %v1169
        %v1171 = vshrl.u32 %v802, 16
        %v1173 = vrot.slane %v1171, 4
        %v1174 = vor.u32 %v1173, %v1169
        %v1175 = vrot.slane %v1174, 4
        %v1177 = vshll.u32 %v819, 16
        %v1179 = vrot.slane %v1177, 5
        %v1180 = vsel %vm356, %v1175, %v1179
        %v1182 = vshrl.u32 %v803, 16
        %v1184 = vrot.slane %v1182, 4
        %v1185 = vshll.u32 %v803, 16
        %v1187 = vrot.slane %v1185, 5
        %v1188 = vor.u32 %v1184, %v1187
        %v1189 = vrot.slane %v1188, 4
        %v1191 = vshll.u32 %v804, 16
        %v1193 = vrot.slane %v1191, 5
        %v1194 = vsel %vm356, %v1189, %v1193
        %v1195 = vshrl.u32 %v804, 16
        %v1197 = vrot.slane %v1195, 4
        %v1198 = vor.u32 %v1197, %v1193
        %v1199 = vrot.slane %v1198, 4
        %v1201 = vshll.u32 %v820, 16
        %v1203 = vrot.slane %v1201, 5
        %v1204 = vsel %vm356, %v1199, %v1203
        %v1205 = vld [vmem:[%s303] sm:$0xe]
        %v1206 = vld [vmem:[%s303 + $0xc] sm:$0xe]
        %v1207 = vld [vmem:[%s303 + $0x18] sm:$0xe]
        %v1208 = vld [vmem:[%s303 + $0x24] sm:$0xe]
        %v1209 = vld [vmem:[%s303 + $0x30] sm:$0xe]
        %v1210 = vld [vmem:[%s303 + $0x3c] sm:$0xe]
        %v1211 = vld [vmem:[%s303 + $0x48] sm:$0xe]
        %v1212 = vld [vmem:[%s303 + $0x54] sm:$0xe]
        %v1213 = vld [vmem:[%s303 + $0x60] sm:$0xe]
        %v1214 = vld [vmem:[%s303 + $0x6c] sm:$0xe]
        %v1215 = vld [vmem:[%s303 + $0x78] sm:$0xe]
        %v1216 = vld [vmem:[%s303 + $0x84] sm:$0xe]
        %v1217 = vld [vmem:[%s303 + $0x90] sm:$0xe]
        %v1218 = vld [vmem:[%s303 + $0x9c] sm:$0xe]
        %v1219 = vld [vmem:[%s303 + $0xa8] sm:$0xe]
        %v1220 = vld [vmem:[%s303 + $0xb4] sm:$0xe]
        %vm1269 = vcmask 1042432
        %vm1270 = vcmask 1046532
        %vm1271 = vmor %vm1269, %vm1270
        %v1272 = vrot.slane %v1205, 5
        %v1273 = vrot.slane %v1272, 4
        %v1274 = vrot.slane %v774, 5
        %v1275 = vsel %vm1271, %v1273, %v1274
        %v1276 = vrot.slane %v1274, 4
        %v1277 = vrot.slane %v805, 5
        %v1278 = vsel %vm1271, %v1276, %v1277
        %v1279 = vrot.slane %v1206, 5
        %v1280 = vrot.slane %v1279, 4
        %v1281 = vrot.slane %v776, 5
        %v1282 = vsel %vm1271, %v1280, %v1281
        %v1283 = vrot.slane %v1281, 4
        %v1284 = vrot.slane %v806, 5
        %v1285 = vsel %vm1271, %v1283, %v1284
        %v1286 = vrot.slane %v1207, 5
        %v1287 = vrot.slane %v1286, 4
        %v1288 = vrot.slane %v778, 5
        %v1289 = vsel %vm1271, %v1287, %v1288
        %v1290 = vrot.slane %v1288, 4
        %v1291 = vrot.slane %v807, 5
        %v1292 = vsel %vm1271, %v1290, %v1291
        %v1293 = vrot.slane %v1208, 5
        %v1294 = vrot.slane %v1293, 4
        %v1295 = vrot.slane %v780, 5
        %v1296 = vsel %vm1271, %v1294, %v1295
        %v1297 = vrot.slane %v1295, 4
        %v1298 = vrot.slane %v808, 5
        %v1299 = vsel %vm1271, %v1297, %v1298
        %v1300 = vrot.slane %v1209, 5
        %v1301 = vrot.slane %v1300, 4
        %v1302 = vrot.slane %v782, 5
        %v1303 = vsel %vm1271, %v1301, %v1302
        %v1304 = vrot.slane %v1302, 4
        %v1305 = vrot.slane %v809, 5
        %v1306 = vsel %vm1271, %v1304, %v1305
        %v1307 = vrot.slane %v1210, 5
        %v1308 = vrot.slane %v1307, 4
        %v1309 = vrot.slane %v784, 5
        %v1310 = vsel %vm1271, %v1308, %v1309
        %v1311 = vrot.slane %v1309, 4
        %v1312 = vrot.slane %v810, 5
        %v1313 = vsel %vm1271, %v1311, %v1312
        %v1314 = vrot.slane %v1211, 5
        %v1315 = vrot.slane %v1314, 4
        %v1316 = vrot.slane %v786, 5
        %v1317 = vsel %vm1271, %v1315, %v1316
        %v1318 = vrot.slane %v1316, 4
        %v1319 = vrot.slane %v811, 5
        %v1320 = vsel %vm1271, %v1318, %v1319
        %v1321 = vrot.slane %v1212, 5
        %v1322 = vrot.slane %v1321, 4
        %v1323 = vrot.slane %v788, 5
        %v1324 = vsel %vm1271, %v1322, %v1323
        %v1325 = vrot.slane %v1323, 4
        %v1326 = vrot.slane %v812, 5
        %v1327 = vsel %vm1271, %v1325, %v1326
        %v1328 = vrot.slane %v1213, 5
        %v1329 = vrot.slane %v1328, 4
        %v1330 = vrot.slane %v790, 5
        %v1331 = vsel %vm1271, %v1329, %v1330
        %v1332 = vrot.slane %v1330, 4
        %v1333 = vrot.slane %v813, 5
        %v1334 = vsel %vm1271, %v1332, %v1333
        %v1335 = vrot.slane %v1214, 5
        %v1336 = vrot.slane %v1335, 4
        %v1337 = vrot.slane %v792, 5
        %v1338 = vsel %vm1271, %v1336, %v1337
        %v1339 = vrot.slane %v1337, 4
        %v1340 = vrot.slane %v814, 5
        %v1341 = vsel %vm1271, %v1339, %v1340
        %v1342 = vrot.slane %v1215, 5
        %v1343 = vrot.slane %v1342, 4
        %v1344 = vrot.slane %v794, 5
        %v1345 = vsel %vm1271, %v1343, %v1344
        %v1346 = vrot.slane %v1344, 4
        %v1347 = vrot.slane %v815, 5
        %v1348 = vsel %vm1271, %v1346, %v1347
        %v1349 = vrot.slane %v1216, 5
        %v1350 = vrot.slane %v1349, 4
        %v1351 = vrot.slane %v796, 5
        %v1352 = vsel %vm1271, %v1350, %v1351
        %v1353 = vrot.slane %v1351, 4
        %v1354 = vrot.slane %v816, 5
        %v1355 = vsel %vm1271, %v1353, %v1354
        %v1356 = vrot.slane %v1217, 5
        %v1357 = vrot.slane %v1356, 4
        %v1358 = vrot.slane %v798, 5
        %v1359 = vsel %vm1271, %v1357, %v1358
        %v1360 = vrot.slane %v1358, 4
        %v1361 = vrot.slane %v817, 5
        %v1362 = vsel %vm1271, %v1360, %v1361
        %v1363 = vrot.slane %v1218, 5
        %v1364 = vrot.slane %v1363, 4
        %v1365 = vrot.slane %v800, 5
        %v1366 = vsel %vm1271, %v1364, %v1365
        %v1367 = vrot.slane %v1365, 4
        %v1368 = vrot.slane %v818, 5
        %v1369 = vsel %vm1271, %v1367, %v1368
        %v1370 = vrot.slane %v1219, 5
        %v1371 = vrot.slane %v1370, 4
        %v1372 = vrot.slane %v802, 5
        %v1373 = vsel %vm1271, %v1371, %v1372
        %v1374 = vrot.slane %v1372, 4
        %v1375 = vrot.slane %v819, 5
        %v1376 = vsel %vm1271, %v1374, %v1375
        %v1377 = vrot.slane %v1220, 5
        %v1378 = vrot.slane %v1377, 4
        %v1379 = vrot.slane %v804, 5
        %v1380 = vsel %vm1271, %v1378, %v1379
        %v1381 = vrot.slane %v1379, 4
        %v1382 = vrot.slane %v820, 5
        %v1383 = vsel %vm1271, %v1381, %v1382
        %v1384 = vld [vmem:[%s305] sm:$0xe]
        %v1385 = vld [vmem:[%s305 + $0xc] sm:$0xe]
        %v1386 = vld [vmem:[%s305 + $0x18] sm:$0xe]
        %v1387 = vld [vmem:[%s305 + $0x24] sm:$0xe]
        %v1388 = vld [vmem:[%s305 + $0x30] sm:$0xe]
        %v1389 = vld [vmem:[%s305 + $0x3c] sm:$0xe]
        %v1390 = vld [vmem:[%s305 + $0x48] sm:$0xe]
        %v1391 = vld [vmem:[%s305 + $0x54] sm:$0xe]
        %v1392 = vld [vmem:[%s305 + $0x60] sm:$0xe]
        %v1393 = vld [vmem:[%s305 + $0x6c] sm:$0xe]
        %v1394 = vld [vmem:[%s305 + $0x78] sm:$0xe]
        %v1395 = vld [vmem:[%s305 + $0x84] sm:$0xe]
        %v1396 = vld [vmem:[%s305 + $0x90] sm:$0xe]
        %v1397 = vld [vmem:[%s305 + $0x9c] sm:$0xe]
        %v1398 = vld [vmem:[%s305 + $0xa8] sm:$0xe]
        %v1399 = vld [vmem:[%s305 + $0xb4] sm:$0xe]
        %v1448 = vrot.slane %v1384, 5
        %v1449 = vrot.slane %v1448, 4
        %v1450 = vrot.slane %v307, 5
        %v1451 = vsel %vm1271, %v1449, %v1450
        %v1452 = vrot.slane %v1450, 4
        %v1453 = vrot.slane %v308, 5
        %v1454 = vsel %vm1271, %v1452, %v1453
        %v1455 = vrot.slane %v1385, 5
        %v1456 = vrot.slane %v1455, 4
        %v1457 = vrot.slane %v310, 5
        %v1458 = vsel %vm1271, %v1456, %v1457
        %v1459 = vrot.slane %v1457, 4
        %v1460 = vrot.slane %v311, 5
        %v1461 = vsel %vm1271, %v1459, %v1460
        %v1462 = vrot.slane %v1386, 5
        %v1463 = vrot.slane %v1462, 4
        %v1464 = vrot.slane %v313, 5
        %v1465 = vsel %vm1271, %v1463, %v1464
        %v1466 = vrot.slane %v1464, 4
        %v1467 = vrot.slane %v314, 5
        %v1468 = vsel %vm1271, %v1466, %v1467
        %v1469 = vrot.slane %v1387, 5
        %v1470 = vrot.slane %v1469, 4
        %v1471 = vrot.slane %v316, 5
        %v1472 = vsel %vm1271, %v1470, %v1471
        %v1473 = vrot.slane %v1471, 4
        %v1474 = vrot.slane %v317, 5
        %v1475 = vsel %vm1271, %v1473, %v1474
        %v1476 = vrot.slane %v1388, 5
        %v1477 = vrot.slane %v1476, 4
        %v1478 = vrot.slane %v319, 5
        %v1479 = vsel %vm1271, %v1477, %v1478
        %v1480 = vrot.slane %v1478, 4
        %v1481 = vrot.slane %v320, 5
        %v1482 = vsel %vm1271, %v1480, %v1481
        %v1483 = vrot.slane %v1389, 5
        %v1484 = vrot.slane %v1483, 4
        %v1485 = vrot.slane %v322, 5
        %v1486 = vsel %vm1271, %v1484, %v1485
        %v1487 = vrot.slane %v1485, 4
        %v1488 = vrot.slane %v323, 5
        %v1489 = vsel %vm1271, %v1487, %v1488
        %v1490 = vrot.slane %v1390, 5
        %v1491 = vrot.slane %v1490, 4
        %v1492 = vrot.slane %v325, 5
        %v1493 = vsel %vm1271, %v1491, %v1492
        %v1494 = vrot.slane %v1492, 4
        %v1495 = vrot.slane %v326, 5
        %v1496 = vsel %vm1271, %v1494, %v1495
        %v1497 = vrot.slane %v1391, 5
        %v1498 = vrot.slane %v1497, 4
        %v1499 = vrot.slane %v328, 5
        %v1500 = vsel %vm1271, %v1498, %v1499
        %v1501 = vrot.slane %v1499, 4
        %v1502 = vrot.slane %v329, 5
        %v1503 = vsel %vm1271, %v1501, %v1502
        %v1504 = vrot.slane %v1392, 5
        %v1505 = vrot.slane %v1504, 4
        %v1506 = vrot.slane %v331, 5
        %v1507 = vsel %vm1271, %v1505, %v1506
        %v1508 = vrot.slane %v1506, 4
        %v1509 = vrot.slane %v332, 5
        %v1510 = vsel %vm1271, %v1508, %v1509
        %v1511 = vrot.slane %v1393, 5
        %v1512 = vrot.slane %v1511, 4
        %v1513 = vrot.slane %v334, 5
        %v1514 = vsel %vm1271, %v1512, %v1513
        %v1515 = vrot.slane %v1513, 4
        %v1516 = vrot.slane %v335, 5
        %v1517 = vsel %vm1271, %v1515, %v1516
        %v1518 = vrot.slane %v1394, 5
        %v1519 = vrot.slane %v1518, 4
        %v1520 = vrot.slane %v337, 5
        %v1521 = vsel %vm1271, %v1519, %v1520
        %v1522 = vrot.slane %v1520, 4
        %v1523 = vrot.slane %v338, 5
        %v1524 = vsel %vm1271, %v1522, %v1523
        %v1525 = vrot.slane %v1395, 5
        %v1526 = vrot.slane %v1525, 4
        %v1527 = vrot.slane %v340, 5
        %v1528 = vsel %vm1271, %v1526, %v1527
        %v1529 = vrot.slane %v1527, 4
        %v1530 = vrot.slane %v341, 5
        %v1531 = vsel %vm1271, %v1529, %v1530
        %v1532 = vrot.slane %v1396, 5
        %v1533 = vrot.slane %v1532, 4
        %v1534 = vrot.slane %v343, 5
        %v1535 = vsel %vm1271, %v1533, %v1534
        %v1536 = vrot.slane %v1534, 4
        %v1537 = vrot.slane %v344, 5
        %v1538 = vsel %vm1271, %v1536, %v1537
        %v1539 = vrot.slane %v1397, 5
        %v1540 = vrot.slane %v1539, 4
        %v1541 = vrot.slane %v346, 5
        %v1542 = vsel %vm1271, %v1540, %v1541
        %v1543 = vrot.slane %v1541, 4
        %v1544 = vrot.slane %v347, 5
        %v1545 = vsel %vm1271, %v1543, %v1544
        %v1546 = vrot.slane %v1398, 5
        %v1547 = vrot.slane %v1546, 4
        %v1548 = vrot.slane %v349, 5
        %v1549 = vsel %vm1271, %v1547, %v1548
        %v1550 = vrot.slane %v1548, 4
        %v1551 = vrot.slane %v350, 5
        %v1552 = vsel %vm1271, %v1550, %v1551
        %v1553 = vrot.slane %v1399, 5
        %v1554 = vrot.slane %v1553, 4
        %v1555 = vrot.slane %v352, 5
        %v1556 = vsel %vm1271, %v1554, %v1555
        %v1557 = vrot.slane %v1555, 4
        %v1558 = vrot.slane %v353, 5
        %v1559 = vsel %vm1271, %v1557, %v1558
        %s1560 = scalar_lea.vmem %s303, 24
        %v1561 = vld [vmem:[%s1560] sm:$0xf]
        %v1562 = vld [vmem:[%s1560 + $0x4] sm:$0xf]
        %v1563 = vld [vmem:[%s1560 + $0xc] sm:$0xf]
        %v1564 = vld [vmem:[%s1560 + $0x10] sm:$0xf]
        %v1565 = vld [vmem:[%s1560 + $0x18] sm:$0xf]
        %v1566 = vld [vmem:[%s1560 + $0x1c] sm:$0xf]
        %v1567 = vld [vmem:[%s1560 + $0x24] sm:$0xf]
        %v1568 = vld [vmem:[%s1560 + $0x28] sm:$0xf]
        %v1569 = vld [vmem:[%s1560 + $0x30] sm:$0xf]
        %v1570 = vld [vmem:[%s1560 + $0x34] sm:$0xf]
        %v1571 = vld [vmem:[%s1560 + $0x3c] sm:$0xf]
        %v1572 = vld [vmem:[%s1560 + $0x40] sm:$0xf]
        %v1573 = vld [vmem:[%s1560 + $0x48] sm:$0xf]
        %v1574 = vld [vmem:[%s1560 + $0x4c] sm:$0xf]
        %v1575 = vld [vmem:[%s1560 + $0x54] sm:$0xf]
        %v1576 = vld [vmem:[%s1560 + $0x58] sm:$0xf]
        %v1577 = vld [vmem:[%s1560 + $0x60] sm:$0xf]
        %v1578 = vld [vmem:[%s1560 + $0x64] sm:$0xf]
        %v1579 = vld [vmem:[%s1560 + $0x6c] sm:$0xf]
        %v1580 = vld [vmem:[%s1560 + $0x70] sm:$0xf]
        %v1581 = vld [vmem:[%s1560 + $0x78] sm:$0xf]
        %v1582 = vld [vmem:[%s1560 + $0x7c] sm:$0xf]
        %v1583 = vld [vmem:[%s1560 + $0x84] sm:$0xf]
        %v1584 = vld [vmem:[%s1560 + $0x88] sm:$0xf]
        %v1585 = vld [vmem:[%s1560 + $0x90] sm:$0xf]
        %v1586 = vld [vmem:[%s1560 + $0x94] sm:$0xf]
        %v1587 = vld [vmem:[%s1560 + $0x9c] sm:$0xf]
        %v1588 = vld [vmem:[%s1560 + $0xa0] sm:$0xf]
        %v1589 = vld [vmem:[%s1560 + $0xa8] sm:$0xf]
        %v1590 = vld [vmem:[%s1560 + $0xac] sm:$0xf]
        %v1591 = vld [vmem:[%s1560 + $0xb4] sm:$0xf]
        %v1592 = vld [vmem:[%s1560 + $0xb8] sm:$0xf]
        %v1593 = vld [vmem:[%s1560 + $0x8] sm:$0x1]
        %v1594 = vld [vmem:[%s1560 + $0x14] sm:$0x1]
        %v1595 = vld [vmem:[%s1560 + $0x20] sm:$0x1]
        %v1596 = vld [vmem:[%s1560 + $0x2c] sm:$0x1]
        %v1597 = vld [vmem:[%s1560 + $0x38] sm:$0x1]
        %v1598 = vld [vmem:[%s1560 + $0x44] sm:$0x1]
        %v1599 = vld [vmem:[%s1560 + $0x50] sm:$0x1]
        %v1600 = vld [vmem:[%s1560 + $0x5c] sm:$0x1]
        %v1601 = vld [vmem:[%s1560 + $0x68] sm:$0x1]
        %v1602 = vld [vmem:[%s1560 + $0x74] sm:$0x1]
        %v1603 = vld [vmem:[%s1560 + $0x80] sm:$0x1]
        %v1604 = vld [vmem:[%s1560 + $0x8c] sm:$0x1]
        %v1605 = vld [vmem:[%s1560 + $0x98] sm:$0x1]
        %v1606 = vld [vmem:[%s1560 + $0xa4] sm:$0x1]
        %v1607 = vld [vmem:[%s1560 + $0xb0] sm:$0x1]
        %v1608 = vld [vmem:[%s1560 + $0xbc] sm:$0x1]
        %v1610 = vshrl.u32 %v1561, 16
        %v1612 = vrot.slane %v1610, 4
        %v1613 = vshll.u32 %v1561, 16
        %v1615 = vrot.slane %v1613, 5
        %v1616 = vor.u32 %v1612, %v1615
        %v1617 = vrot.slane %v1616, 4
        %v1619 = vshll.u32 %v1562, 16
        %v1621 = vrot.slane %v1619, 5
        %v1622 = vsel %vm356, %v1617, %v1621
        %v1623 = vshrl.u32 %v1562, 16
        %v1625 = vrot.slane %v1623, 4
        %v1626 = vor.u32 %v1625, %v1621
        %v1627 = vrot.slane %v1626, 4
        %v1629 = vshll.u32 %v1593, 16
        %v1631 = vrot.slane %v1629, 5
        %v1632 = vsel %vm356, %v1627, %v1631
        %v1634 = vshrl.u32 %v1563, 16
        %v1636 = vrot.slane %v1634, 4
        %v1637 = vshll.u32 %v1563, 16
        %v1639 = vrot.slane %v1637, 5
        %v1640 = vor.u32 %v1636, %v1639
        %v1641 = vrot.slane %v1640, 4
        %v1643 = vshll.u32 %v1564, 16
        %v1645 = vrot.slane %v1643, 5
        %v1646 = vsel %vm356, %v1641, %v1645
        %v1647 = vshrl.u32 %v1564, 16
        %v1649 = vrot.slane %v1647, 4
        %v1650 = vor.u32 %v1649, %v1645
        %v1651 = vrot.slane %v1650, 4
        %v1653 = vshll.u32 %v1594, 16
        %v1655 = vrot.slane %v1653, 5
        %v1656 = vsel %vm356, %v1651, %v1655
        %v1658 = vshrl.u32 %v1565, 16
        %v1660 = vrot.slane %v1658, 4
        %v1661 = vshll.u32 %v1565, 16
        %v1663 = vrot.slane %v1661, 5
        %v1664 = vor.u32 %v1660, %v1663
        %v1665 = vrot.slane %v1664, 4
        %v1667 = vshll.u32 %v1566, 16
        %v1669 = vrot.slane %v1667, 5
        %v1670 = vsel %vm356, %v1665, %v1669
        %v1671 = vshrl.u32 %v1566, 16
        %v1673 = vrot.slane %v1671, 4
        %v1674 = vor.u32 %v1673, %v1669
        %v1675 = vrot.slane %v1674, 4
        %v1677 = vshll.u32 %v1595, 16
        %v1679 = vrot.slane %v1677, 5
        %v1680 = vsel %vm356, %v1675, %v1679
        %v1682 = vshrl.u32 %v1567, 16
        %v1684 = vrot.slane %v1682, 4
        %v1685 = vshll.u32 %v1567, 16
        %v1687 = vrot.slane %v1685, 5
        %v1688 = vor.u32 %v1684, %v1687
        %v1689 = vrot.slane %v1688, 4
        %v1691 = vshll.u32 %v1568, 16
        %v1693 = vrot.slane %v1691, 5
        %v1694 = vsel %vm356, %v1689, %v1693
        %v1695 = vshrl.u32 %v1568, 16
        %v1697 = vrot.slane %v1695, 4
        %v1698 = vor.u32 %v1697, %v1693
        %v1699 = vrot.slane %v1698, 4
        %v1701 = vshll.u32 %v1596, 16
        %v1703 = vrot.slane %v1701, 5
        %v1704 = vsel %vm356, %v1699, %v1703
        %v1706 = vshrl.u32 %v1569, 16
        %v1708 = vrot.slane %v1706, 4
        %v1709 = vshll.u32 %v1569, 16
        %v1711 = vrot.slane %v1709, 5
        %v1712 = vor.u32 %v1708, %v1711
        %v1713 = vrot.slane %v1712, 4
        %v1715 = vshll.u32 %v1570, 16
        %v1717 = vrot.slane %v1715, 5
        %v1718 = vsel %vm356, %v1713, %v1717
        %v1719 = vshrl.u32 %v1570, 16
        %v1721 = vrot.slane %v1719, 4
        %v1722 = vor.u32 %v1721, %v1717
        %v1723 = vrot.slane %v1722, 4
        %v1725 = vshll.u32 %v1597, 16
        %v1727 = vrot.slane %v1725, 5
        %v1728 = vsel %vm356, %v1723, %v1727
        %v1730 = vshrl.u32 %v1571, 16
        %v1732 = vrot.slane %v1730, 4
        %v1733 = vshll.u32 %v1571, 16
        %v1735 = vrot.slane %v1733, 5
        %v1736 = vor.u32 %v1732, %v1735
        %v1737 = vrot.slane %v1736, 4
        %v1739 = vshll.u32 %v1572, 16
        %v1741 = vrot.slane %v1739, 5
        %v1742 = vsel %vm356, %v1737, %v1741
        %v1743 = vshrl.u32 %v1572, 16
        %v1745 = vrot.slane %v1743, 4
        %v1746 = vor.u32 %v1745, %v1741
        %v1747 = vrot.slane %v1746, 4
        %v1749 = vshll.u32 %v1598, 16
        %v1751 = vrot.slane %v1749, 5
        %v1752 = vsel %vm356, %v1747, %v1751
        %v1754 = vshrl.u32 %v1573, 16
        %v1756 = vrot.slane %v1754, 4
        %v1757 = vshll.u32 %v1573, 16
        %v1759 = vrot.slane %v1757, 5
        %v1760 = vor.u32 %v1756, %v1759
        %v1761 = vrot.slane %v1760, 4
        %v1763 = vshll.u32 %v1574, 16
        %v1765 = vrot.slane %v1763, 5
        %v1766 = vsel %vm356, %v1761, %v1765
        %v1767 = vshrl.u32 %v1574, 16
        %v1769 = vrot.slane %v1767, 4
        %v1770 = vor.u32 %v1769, %v1765
        %v1771 = vrot.slane %v1770, 4
        %v1773 = vshll.u32 %v1599, 16
        %v1775 = vrot.slane %v1773, 5
        %v1776 = vsel %vm356, %v1771, %v1775
        %v1778 = vshrl.u32 %v1575, 16
        %v1780 = vrot.slane %v1778, 4
        %v1781 = vshll.u32 %v1575, 16
        %v1783 = vrot.slane %v1781, 5
        %v1784 = vor.u32 %v1780, %v1783
        %v1785 = vrot.slane %v1784, 4
        %v1787 = vshll.u32 %v1576, 16
        %v1789 = vrot.slane %v1787, 5
        %v1790 = vsel %vm356, %v1785, %v1789
        %v1791 = vshrl.u32 %v1576, 16
        %v1793 = vrot.slane %v1791, 4
        %v1794 = vor.u32 %v1793, %v1789
        %v1795 = vrot.slane %v1794, 4
        %v1797 = vshll.u32 %v1600, 16
        %v1799 = vrot.slane %v1797, 5
        %v1800 = vsel %vm356, %v1795, %v1799
        %v1802 = vshrl.u32 %v1577, 16
        %v1804 = vrot.slane %v1802, 4
        %v1805 = vshll.u32 %v1577, 16
        %v1807 = vrot.slane %v1805, 5
        %v1808 = vor.u32 %v1804, %v1807
        %v1809 = vrot.slane %v1808, 4
        %v1811 = vshll.u32 %v1578, 16
        %v1813 = vrot.slane %v1811, 5
        %v1814 = vsel %vm356, %v1809, %v1813
        %v1815 = vshrl.u32 %v1578, 16
        %v1817 = vrot.slane %v1815, 4
        %v1818 = vor.u32 %v1817, %v1813
        %v1819 = vrot.slane %v1818, 4
        %v1821 = vshll.u32 %v1601, 16
        %v1823 = vrot.slane %v1821, 5
        %v1824 = vsel %vm356, %v1819, %v1823
        %v1826 = vshrl.u32 %v1579, 16
        %v1828 = vrot.slane %v1826, 4
        %v1829 = vshll.u32 %v1579, 16
        %v1831 = vrot.slane %v1829, 5
        %v1832 = vor.u32 %v1828, %v1831
        %v1833 = vrot.slane %v1832, 4
        %v1835 = vshll.u32 %v1580, 16
        %v1837 = vrot.slane %v1835, 5
        %v1838 = vsel %vm356, %v1833, %v1837
        %v1839 = vshrl.u32 %v1580, 16
        %v1841 = vrot.slane %v1839, 4
        %v1842 = vor.u32 %v1841, %v1837
        %v1843 = vrot.slane %v1842, 4
        %v1845 = vshll.u32 %v1602, 16
        %v1847 = vrot.slane %v1845, 5
        %v1848 = vsel %vm356, %v1843, %v1847
        %v1850 = vshrl.u32 %v1581, 16
        %v1852 = vrot.slane %v1850, 4
        %v1853 = vshll.u32 %v1581, 16
        %v1855 = vrot.slane %v1853, 5
        %v1856 = vor.u32 %v1852, %v1855
        %v1857 = vrot.slane %v1856, 4
        %v1859 = vshll.u32 %v1582, 16
        %v1861 = vrot.slane %v1859, 5
        %v1862 = vsel %vm356, %v1857, %v1861
        %v1863 = vshrl.u32 %v1582, 16
        %v1865 = vrot.slane %v1863, 4
        %v1866 = vor.u32 %v1865, %v1861
        %v1867 = vrot.slane %v1866, 4
        %v1869 = vshll.u32 %v1603, 16
        %v1871 = vrot.slane %v1869, 5
        %v1872 = vsel %vm356, %v1867, %v1871
        %v1874 = vshrl.u32 %v1583, 16
        %v1876 = vrot.slane %v1874, 4
        %v1877 = vshll.u32 %v1583, 16
        %v1879 = vrot.slane %v1877, 5
        %v1880 = vor.u32 %v1876, %v1879
        %v1881 = vrot.slane %v1880, 4
        %v1883 = vshll.u32 %v1584, 16
        %v1885 = vrot.slane %v1883, 5
        %v1886 = vsel %vm356, %v1881, %v1885
        %v1887 = vshrl.u32 %v1584, 16
        %v1889 = vrot.slane %v1887, 4
        %v1890 = vor.u32 %v1889, %v1885
        %v1891 = vrot.slane %v1890, 4
        %v1893 = vshll.u32 %v1604, 16
        %v1895 = vrot.slane %v1893, 5
        %v1896 = vsel %vm356, %v1891, %v1895
        %v1898 = vshrl.u32 %v1585, 16
        %v1900 = vrot.slane %v1898, 4
        %v1901 = vshll.u32 %v1585, 16
        %v1903 = vrot.slane %v1901, 5
        %v1904 = vor.u32 %v1900, %v1903
        %v1905 = vrot.slane %v1904, 4
        %v1907 = vshll.u32 %v1586, 16
        %v1909 = vrot.slane %v1907, 5
        %v1910 = vsel %vm356, %v1905, %v1909
        %v1911 = vshrl.u32 %v1586, 16
        %v1913 = vrot.slane %v1911, 4
        %v1914 = vor.u32 %v1913, %v1909
        %v1915 = vrot.slane %v1914, 4
        %v1917 = vshll.u32 %v1605, 16
        %v1919 = vrot.slane %v1917, 5
        %v1920 = vsel %vm356, %v1915, %v1919
        %v1922 = vshrl.u32 %v1587, 16
        %v1924 = vrot.slane %v1922, 4
        %v1925 = vshll.u32 %v1587, 16
        %v1927 = vrot.slane %v1925, 5
        %v1928 = vor.u32 %v1924, %v1927
        %v1929 = vrot.slane %v1928, 4
        %v1931 = vshll.u32 %v1588, 16
        %v1933 = vrot.slane %v1931, 5
        %v1934 = vsel %vm356, %v1929, %v1933
        %v1935 = vshrl.u32 %v1588, 16
        %v1937 = vrot.slane %v1935, 4
        %v1938 = vor.u32 %v1937, %v1933
        %v1939 = vrot.slane %v1938, 4
        %v1941 = vshll.u32 %v1606, 16
        %v1943 = vrot.slane %v1941, 5
        %v1944 = vsel %vm356, %v1939, %v1943
        %v1946 = vshrl.u32 %v1589, 16
        %v1948 = vrot.slane %v1946, 4
        %v1949 = vshll.u32 %v1589, 16
        %v1951 = vrot.slane %v1949, 5
        %v1952 = vor.u32 %v1948, %v1951
        %v1953 = vrot.slane %v1952, 4
        %v1955 = vshll.u32 %v1590, 16
        %v1957 = vrot.slane %v1955, 5
        %v1958 = vsel %vm356, %v1953, %v1957
        %v1959 = vshrl.u32 %v1590, 16
        %v1961 = vrot.slane %v1959, 4
        %v1962 = vor.u32 %v1961, %v1957
        %v1963 = vrot.slane %v1962, 4
        %v1965 = vshll.u32 %v1607, 16
        %v1967 = vrot.slane %v1965, 5
        %v1968 = vsel %vm356, %v1963, %v1967
        %v1970 = vshrl.u32 %v1591, 16
        %v1972 = vrot.slane %v1970, 4
        %v1973 = vshll.u32 %v1591, 16
        %v1975 = vrot.slane %v1973, 5
        %v1976 = vor.u32 %v1972, %v1975
        %v1977 = vrot.slane %v1976, 4
        %v1979 = vshll.u32 %v1592, 16
        %v1981 = vrot.slane %v1979, 5
        %v1982 = vsel %vm356, %v1977, %v1981
        %v1983 = vshrl.u32 %v1592, 16
        %v1985 = vrot.slane %v1983, 4
        %v1986 = vor.u32 %v1985, %v1981
        %v1987 = vrot.slane %v1986, 4
        %v1989 = vshll.u32 %v1608, 16
        %v1991 = vrot.slane %v1989, 5
        %v1992 = vsel %vm356, %v1987, %v1991
        %v1993 = vld [vmem:[%s1560] sm:$0xe]
        %v1994 = vld [vmem:[%s1560 + $0xc] sm:$0xe]
        %v1995 = vld [vmem:[%s1560 + $0x18] sm:$0xe]
        %v1996 = vld [vmem:[%s1560 + $0x24] sm:$0xe]
        %v1997 = vld [vmem:[%s1560 + $0x30] sm:$0xe]
        %v1998 = vld [vmem:[%s1560 + $0x3c] sm:$0xe]
        %v1999 = vld [vmem:[%s1560 + $0x48] sm:$0xe]
        %v2000 = vld [vmem:[%s1560 + $0x54] sm:$0xe]
        %v2001 = vld [vmem:[%s1560 + $0x60] sm:$0xe]
        %v2002 = vld [vmem:[%s1560 + $0x6c] sm:$0xe]
        %v2003 = vld [vmem:[%s1560 + $0x78] sm:$0xe]
        %v2004 = vld [vmem:[%s1560 + $0x84] sm:$0xe]
        %v2005 = vld [vmem:[%s1560 + $0x90] sm:$0xe]
        %v2006 = vld [vmem:[%s1560 + $0x9c] sm:$0xe]
        %v2007 = vld [vmem:[%s1560 + $0xa8] sm:$0xe]
        %v2008 = vld [vmem:[%s1560 + $0xb4] sm:$0xe]
        %v2057 = vrot.slane %v1993, 5
        %v2058 = vrot.slane %v2057, 4
        %v2059 = vrot.slane %v1562, 5
        %v2060 = vsel %vm1271, %v2058, %v2059
        %v2061 = vrot.slane %v2059, 4
        %v2062 = vrot.slane %v1593, 5
        %v2063 = vsel %vm1271, %v2061, %v2062
        %v2064 = vrot.slane %v1994, 5
        %v2065 = vrot.slane %v2064, 4
        %v2066 = vrot.slane %v1564, 5
        %v2067 = vsel %vm1271, %v2065, %v2066
        %v2068 = vrot.slane %v2066, 4
        %v2069 = vrot.slane %v1594, 5
        %v2070 = vsel %vm1271, %v2068, %v2069
        %v2071 = vrot.slane %v1995, 5
        %v2072 = vrot.slane %v2071, 4
        %v2073 = vrot.slane %v1566, 5
        %v2074 = vsel %vm1271, %v2072, %v2073
        %v2075 = vrot.slane %v2073, 4
        %v2076 = vrot.slane %v1595, 5
        %v2077 = vsel %vm1271, %v2075, %v2076
        %v2078 = vrot.slane %v1996, 5
        %v2079 = vrot.slane %v2078, 4
        %v2080 = vrot.slane %v1568, 5
        %v2081 = vsel %vm1271, %v2079, %v2080
        %v2082 = vrot.slane %v2080, 4
        %v2083 = vrot.slane %v1596, 5
        %v2084 = vsel %vm1271, %v2082, %v2083
        %v2085 = vrot.slane %v1997, 5
        %v2086 = vrot.slane %v2085, 4
        %v2087 = vrot.slane %v1570, 5
        %v2088 = vsel %vm1271, %v2086, %v2087
        %v2089 = vrot.slane %v2087, 4
        %v2090 = vrot.slane %v1597, 5
        %v2091 = vsel %vm1271, %v2089, %v2090
        %v2092 = vrot.slane %v1998, 5
        %v2093 = vrot.slane %v2092, 4
        %v2094 = vrot.slane %v1572, 5
        %v2095 = vsel %vm1271, %v2093, %v2094
        %v2096 = vrot.slane %v2094, 4
        %v2097 = vrot.slane %v1598, 5
        %v2098 = vsel %vm1271, %v2096, %v2097
        %v2099 = vrot.slane %v1999, 5
        %v2100 = vrot.slane %v2099, 4
        %v2101 = vrot.slane %v1574, 5
        %v2102 = vsel %vm1271, %v2100, %v2101
        %v2103 = vrot.slane %v2101, 4
        %v2104 = vrot.slane %v1599, 5
        %v2105 = vsel %vm1271, %v2103, %v2104
        %v2106 = vrot.slane %v2000, 5
        %v2107 = vrot.slane %v2106, 4
        %v2108 = vrot.slane %v1576, 5
        %v2109 = vsel %vm1271, %v2107, %v2108
        %v2110 = vrot.slane %v2108, 4
        %v2111 = vrot.slane %v1600, 5
        %v2112 = vsel %vm1271, %v2110, %v2111
        %v2113 = vrot.slane %v2001, 5
        %v2114 = vrot.slane %v2113, 4
        %v2115 = vrot.slane %v1578, 5
        %v2116 = vsel %vm1271, %v2114, %v2115
        %v2117 = vrot.slane %v2115, 4
        %v2118 = vrot.slane %v1601, 5
        %v2119 = vsel %vm1271, %v2117, %v2118
        %v2120 = vrot.slane %v2002, 5
        %v2121 = vrot.slane %v2120, 4
        %v2122 = vrot.slane %v1580, 5
        %v2123 = vsel %vm1271, %v2121, %v2122
        %v2124 = vrot.slane %v2122, 4
        %v2125 = vrot.slane %v1602, 5
        %v2126 = vsel %vm1271, %v2124, %v2125
        %v2127 = vrot.slane %v2003, 5
        %v2128 = vrot.slane %v2127, 4
        %v2129 = vrot.slane %v1582, 5
        %v2130 = vsel %vm1271, %v2128, %v2129
        %v2131 = vrot.slane %v2129, 4
        %v2132 = vrot.slane %v1603, 5
        %v2133 = vsel %vm1271, %v2131, %v2132
        %v2134 = vrot.slane %v2004, 5
        %v2135 = vrot.slane %v2134, 4
        %v2136 = vrot.slane %v1584, 5
        %v2137 = vsel %vm1271, %v2135, %v2136
        %v2138 = vrot.slane %v2136, 4
        %v2139 = vrot.slane %v1604, 5
        %v2140 = vsel %vm1271, %v2138, %v2139
        %v2141 = vrot.slane %v2005, 5
        %v2142 = vrot.slane %v2141, 4
        %v2143 = vrot.slane %v1586, 5
        %v2144 = vsel %vm1271, %v2142, %v2143
        %v2145 = vrot.slane %v2143, 4
        %v2146 = vrot.slane %v1605, 5
        %v2147 = vsel %vm1271, %v2145, %v2146
        %v2148 = vrot.slane %v2006, 5
        %v2149 = vrot.slane %v2148, 4
        %v2150 = vrot.slane %v1588, 5
        %v2151 = vsel %vm1271, %v2149, %v2150
        %v2152 = vrot.slane %v2150, 4
        %v2153 = vrot.slane %v1606, 5
        %v2154 = vsel %vm1271, %v2152, %v2153
        %v2155 = vrot.slane %v2007, 5
        %v2156 = vrot.slane %v2155, 4
        %v2157 = vrot.slane %v1590, 5
        %v2158 = vsel %vm1271, %v2156, %v2157
        %v2159 = vrot.slane %v2157, 4
        %v2160 = vrot.slane %v1607, 5
        %v2161 = vsel %vm1271, %v2159, %v2160
        %v2162 = vrot.slane %v2008, 5
        %v2163 = vrot.slane %v2162, 4
        %v2164 = vrot.slane %v1592, 5
        %v2165 = vsel %vm1271, %v2163, %v2164
        %v2166 = vrot.slane %v2164, 4
        %v2167 = vrot.slane %v1608, 5
        %v2168 = vsel %vm1271, %v2166, %v2167
        %v2185 = vunpack.c.l.b16 %v773
        %v2186 = vunpack.c.l.b16 %v774
        %v2187 = vunpack.c.l.b16 %v775
        %v2188 = vunpack.c.l.b16 %v776
        %v2189 = vunpack.c.l.b16 %v777
        %v2190 = vunpack.c.l.b16 %v778
        %v2191 = vunpack.c.l.b16 %v779
        %v2192 = vunpack.c.l.b16 %v780
        %v2193 = vunpack.c.l.b16 %v781
        %v2194 = vunpack.c.l.b16 %v782
        %v2195 = vunpack.c.l.b16 %v783
        %v2196 = vunpack.c.l.b16 %v784
        %v2197 = vunpack.c.l.b16 %v785
        %v2198 = vunpack.c.l.b16 %v786
        %v2199 = vunpack.c.l.b16 %v787
        %v2200 = vunpack.c.l.b16 %v788
        %v2201 = vunpack.c.l.b16 %v789
        %v2202 = vunpack.c.l.b16 %v790
        %v2203 = vunpack.c.l.b16 %v791
        %v2204 = vunpack.c.l.b16 %v792
        %v2205 = vunpack.c.l.b16 %v793
        %v2206 = vunpack.c.l.b16 %v794
        %v2207 = vunpack.c.l.b16 %v795
        %v2208 = vunpack.c.l.b16 %v796
        %v2209 = vunpack.c.l.b16 %v797
        %v2210 = vunpack.c.l.b16 %v798
        %v2211 = vunpack.c.l.b16 %v799
        %v2212 = vunpack.c.l.b16 %v800
        %v2213 = vunpack.c.l.b16 %v801
        %v2214 = vunpack.c.l.b16 %v802
        %v2215 = vunpack.c.l.b16 %v803
        %v2216 = vunpack.c.l.b16 %v804
        %v2217 = vpack.c.b16 %v2186, %v2185
        %v2218 = vpack.c.b16 %v2188, %v2187
        %v2219 = vpack.c.b16 %v2190, %v2189
        %v2220 = vpack.c.b16 %v2192, %v2191
        %v2221 = vpack.c.b16 %v2194, %v2193
        %v2222 = vpack.c.b16 %v2196, %v2195
        %v2223 = vpack.c.b16 %v2198, %v2197
        %v2224 = vpack.c.b16 %v2200, %v2199
        %v2225 = vpack.c.b16 %v2202, %v2201
        %v2226 = vpack.c.b16 %v2204, %v2203
        %v2227 = vpack.c.b16 %v2206, %v2205
        %v2228 = vpack.c.b16 %v2208, %v2207
        %v2229 = vpack.c.b16 %v2210, %v2209
        %v2230 = vpack.c.b16 %v2212, %v2211
        %v2231 = vpack.c.b16 %v2214, %v2213
        %v2232 = vpack.c.b16 %v2216, %v2215
        %v2233 = vunpack.c.l.b16 %v834
        %v2234 = vunpack.c.l.b16 %v844
        %v2235 = vunpack.c.l.b16 %v858
        %v2236 = vunpack.c.l.b16 %v868
        %v2237 = vunpack.c.l.b16 %v882
        %v2238 = vunpack.c.l.b16 %v892
        %v2239 = vunpack.c.l.b16 %v906
        %v2240 = vunpack.c.l.b16 %v916
        %v2241 = vunpack.c.l.b16 %v930
        %v2242 = vunpack.c.l.b16 %v940
        %v2243 = vunpack.c.l.b16 %v954
        %v2244 = vunpack.c.l.b16 %v964
        %v2245 = vunpack.c.l.b16 %v978
        %v2246 = vunpack.c.l.b16 %v988
        %v2247 = vunpack.c.l.b16 %v1002
        %v2248 = vunpack.c.l.b16 %v1012
        %v2249 = vunpack.c.l.b16 %v1026
        %v2250 = vunpack.c.l.b16 %v1036
        %v2251 = vunpack.c.l.b16 %v1050
        %v2252 = vunpack.c.l.b16 %v1060
        %v2253 = vunpack.c.l.b16 %v1074
        %v2254 = vunpack.c.l.b16 %v1084
        %v2255 = vunpack.c.l.b16 %v1098
        %v2256 = vunpack.c.l.b16 %v1108
        %v2257 = vunpack.c.l.b16 %v1122
        %v2258 = vunpack.c.l.b16 %v1132
        %v2259 = vunpack.c.l.b16 %v1146
        %v2260 = vunpack.c.l.b16 %v1156
        %v2261 = vunpack.c.l.b16 %v1170
        %v2262 = vunpack.c.l.b16 %v1180
        %v2263 = vunpack.c.l.b16 %v1194
        %v2264 = vunpack.c.l.b16 %v1204
        %v2265 = vpack.c.b16 %v2234, %v2233
        %v2266 = vpack.c.b16 %v2236, %v2235
        %v2267 = vpack.c.b16 %v2238, %v2237
        %v2268 = vpack.c.b16 %v2240, %v2239
        %v2269 = vpack.c.b16 %v2242, %v2241
        %v2270 = vpack.c.b16 %v2244, %v2243
        %v2271 = vpack.c.b16 %v2246, %v2245
        %v2272 = vpack.c.b16 %v2248, %v2247
        %v2273 = vpack.c.b16 %v2250, %v2249
        %v2274 = vpack.c.b16 %v2252, %v2251
        %v2275 = vpack.c.b16 %v2254, %v2253
        %v2276 = vpack.c.b16 %v2256, %v2255
        %v2277 = vpack.c.b16 %v2258, %v2257
        %v2278 = vpack.c.b16 %v2260, %v2259
        %v2279 = vpack.c.b16 %v2262, %v2261
        %v2280 = vpack.c.b16 %v2264, %v2263
        %2281 = vrot.lane.b32.xlu0 %v2265, 32
        %v2282 = vpop.permute.xlu0 %2281
        %2283 = vrot.lane.b32.xlu0 %v2266, 32
        %v2284 = vpop.permute.xlu0 %2283
        %2285 = vrot.lane.b32.xlu0 %v2267, 32
        %v2286 = vpop.permute.xlu0 %2285
        %2287 = vrot.lane.b32.xlu0 %v2268, 32
        %v2288 = vpop.permute.xlu0 %2287
        %2289 = vrot.lane.b32.xlu0 %v2269, 32
        %v2290 = vpop.permute.xlu0 %2289
        %2291 = vrot.lane.b32.xlu0 %v2270, 32
        %v2292 = vpop.permute.xlu0 %2291
        %2293 = vrot.lane.b32.xlu0 %v2271, 32
        %v2294 = vpop.permute.xlu0 %2293
        %2295 = vrot.lane.b32.xlu0 %v2272, 32
        %v2296 = vpop.permute.xlu0 %2295
        %2297 = vrot.lane.b32.xlu0 %v2273, 32
        %v2298 = vpop.permute.xlu0 %2297
        %2299 = vrot.lane.b32.xlu0 %v2274, 32
        %v2300 = vpop.permute.xlu0 %2299
        %2301 = vrot.lane.b32.xlu0 %v2275, 32
        %v2302 = vpop.permute.xlu0 %2301
        %2303 = vrot.lane.b32.xlu0 %v2276, 32
        %v2304 = vpop.permute.xlu0 %2303
        %2305 = vrot.lane.b32.xlu0 %v2277, 32
        %v2306 = vpop.permute.xlu0 %2305
        %2307 = vrot.lane.b32.xlu0 %v2278, 32
        %v2308 = vpop.permute.xlu0 %2307
        %2309 = vrot.lane.b32.xlu0 %v2279, 32
        %v2310 = vpop.permute.xlu0 %2309
        %2311 = vrot.lane.b32.xlu0 %v2280, 32
        %v2312 = vpop.permute.xlu0 %2311
        %v2313 = vunpack.c.l.b16 %v1275
        %v2314 = vunpack.c.l.b16 %v1278
        %v2315 = vunpack.c.l.b16 %v1282
        %v2316 = vunpack.c.l.b16 %v1285
        %v2317 = vunpack.c.l.b16 %v1289
        %v2318 = vunpack.c.l.b16 %v1292
        %v2319 = vunpack.c.l.b16 %v1296
        %v2320 = vunpack.c.l.b16 %v1299
        %v2321 = vunpack.c.l.b16 %v1303
        %v2322 = vunpack.c.l.b16 %v1306
        %v2323 = vunpack.c.l.b16 %v1310
        %v2324 = vunpack.c.l.b16 %v1313
        %v2325 = vunpack.c.l.b16 %v1317
        %v2326 = vunpack.c.l.b16 %v1320
        %v2327 = vunpack.c.l.b16 %v1324
        %v2328 = vunpack.c.l.b16 %v1327
        %v2329 = vunpack.c.l.b16 %v1331
        %v2330 = vunpack.c.l.b16 %v1334
        %v2331 = vunpack.c.l.b16 %v1338
        %v2332 = vunpack.c.l.b16 %v1341
        %v2333 = vunpack.c.l.b16 %v1345
        %v2334 = vunpack.c.l.b16 %v1348
        %v2335 = vunpack.c.l.b16 %v1352
        %v2336 = vunpack.c.l.b16 %v1355
        %v2337 = vunpack.c.l.b16 %v1359
        %v2338 = vunpack.c.l.b16 %v1362
        %v2339 = vunpack.c.l.b16 %v1366
        %v2340 = vunpack.c.l.b16 %v1369
        %v2341 = vunpack.c.l.b16 %v1373
        %v2342 = vunpack.c.l.b16 %v1376
        %v2343 = vunpack.c.l.b16 %v1380
        %v2344 = vunpack.c.l.b16 %v1383
        %v2345 = vpack.c.b16 %v2314, %v2313
        %v2346 = vpack.c.b16 %v2316, %v2315
        %v2347 = vpack.c.b16 %v2318, %v2317
        %v2348 = vpack.c.b16 %v2320, %v2319
        %v2349 = vpack.c.b16 %v2322, %v2321
        %v2350 = vpack.c.b16 %v2324, %v2323
        %v2351 = vpack.c.b16 %v2326, %v2325
        %v2352 = vpack.c.b16 %v2328, %v2327
        %v2353 = vpack.c.b16 %v2330, %v2329
        %v2354 = vpack.c.b16 %v2332, %v2331
        %v2355 = vpack.c.b16 %v2334, %v2333
        %v2356 = vpack.c.b16 %v2336, %v2335
        %v2357 = vpack.c.b16 %v2338, %v2337
        %v2358 = vpack.c.b16 %v2340, %v2339
        %v2359 = vpack.c.b16 %v2342, %v2341
        %v2360 = vpack.c.b16 %v2344, %v2343
        %2361 = vrot.lane.b32.xlu0 %v2345, 64
        %v2362 = vpop.permute.xlu0 %2361
        %2363 = vrot.lane.b32.xlu0 %v2346, 64
        %v2364 = vpop.permute.xlu0 %2363
        %2365 = vrot.lane.b32.xlu0 %v2347, 64
        %v2366 = vpop.permute.xlu0 %2365
        %2367 = vrot.lane.b32.xlu0 %v2348, 64
        %v2368 = vpop.permute.xlu0 %2367
        %2369 = vrot.lane.b32.xlu0 %v2349, 64
        %v2370 = vpop.permute.xlu0 %2369
        %2371 = vrot.lane.b32.xlu0 %v2350, 64
        %v2372 = vpop.permute.xlu0 %2371
        %2373 = vrot.lane.b32.xlu0 %v2351, 64
        %v2374 = vpop.permute.xlu0 %2373
        %2375 = vrot.lane.b32.xlu0 %v2352, 64
        %v2376 = vpop.permute.xlu0 %2375
        %2377 = vrot.lane.b32.xlu0 %v2353, 64
        %v2378 = vpop.permute.xlu0 %2377
        %2379 = vrot.lane.b32.xlu0 %v2354, 64
        %v2380 = vpop.permute.xlu0 %2379
        %2381 = vrot.lane.b32.xlu0 %v2355, 64
        %v2382 = vpop.permute.xlu0 %2381
        %2383 = vrot.lane.b32.xlu0 %v2356, 64
        %v2384 = vpop.permute.xlu0 %2383
        %2385 = vrot.lane.b32.xlu0 %v2357, 64
        %v2386 = vpop.permute.xlu0 %2385
        %2387 = vrot.lane.b32.xlu0 %v2358, 64
        %v2388 = vpop.permute.xlu0 %2387
        %2389 = vrot.lane.b32.xlu0 %v2359, 64
        %v2390 = vpop.permute.xlu0 %2389
        %2391 = vrot.lane.b32.xlu0 %v2360, 64
        %v2392 = vpop.permute.xlu0 %2391
        %v2409 = vunpack.c.l.b16 %v306
        %v2410 = vunpack.c.l.b16 %v307
        %v2411 = vunpack.c.l.b16 %v309
        %v2412 = vunpack.c.l.b16 %v310
        %v2413 = vunpack.c.l.b16 %v312
        %v2414 = vunpack.c.l.b16 %v313
        %v2415 = vunpack.c.l.b16 %v315
        %v2416 = vunpack.c.l.b16 %v316
        %v2417 = vunpack.c.l.b16 %v318
        %v2418 = vunpack.c.l.b16 %v319
        %v2419 = vunpack.c.l.b16 %v321
        %v2420 = vunpack.c.l.b16 %v322
        %v2421 = vunpack.c.l.b16 %v324
        %v2422 = vunpack.c.l.b16 %v325
        %v2423 = vunpack.c.l.b16 %v327
        %v2424 = vunpack.c.l.b16 %v328
        %v2425 = vunpack.c.l.b16 %v330
        %v2426 = vunpack.c.l.b16 %v331
        %v2427 = vunpack.c.l.b16 %v333
        %v2428 = vunpack.c.l.b16 %v334
        %v2429 = vunpack.c.l.b16 %v336
        %v2430 = vunpack.c.l.b16 %v337
        %v2431 = vunpack.c.l.b16 %v339
        %v2432 = vunpack.c.l.b16 %v340
        %v2433 = vunpack.c.l.b16 %v342
        %v2434 = vunpack.c.l.b16 %v343
        %v2435 = vunpack.c.l.b16 %v345
        %v2436 = vunpack.c.l.b16 %v346
        %v2437 = vunpack.c.l.b16 %v348
        %v2438 = vunpack.c.l.b16 %v349
        %v2439 = vunpack.c.l.b16 %v351
        %v2440 = vunpack.c.l.b16 %v352
        %v2441 = vpack.c.b16 %v2410, %v2409
        %v2442 = vpack.c.b16 %v2412, %v2411
        %v2443 = vpack.c.b16 %v2414, %v2413
        %v2444 = vpack.c.b16 %v2416, %v2415
        %v2445 = vpack.c.b16 %v2418, %v2417
        %v2446 = vpack.c.b16 %v2420, %v2419
        %v2447 = vpack.c.b16 %v2422, %v2421
        %v2448 = vpack.c.b16 %v2424, %v2423
        %v2449 = vpack.c.b16 %v2426, %v2425
        %v2450 = vpack.c.b16 %v2428, %v2427
        %v2451 = vpack.c.b16 %v2430, %v2429
        %v2452 = vpack.c.b16 %v2432, %v2431
        %v2453 = vpack.c.b16 %v2434, %v2433
        %v2454 = vpack.c.b16 %v2436, %v2435
        %v2455 = vpack.c.b16 %v2438, %v2437
        %v2456 = vpack.c.b16 %v2440, %v2439
        %2457 = vrot.lane.b32.xlu0 %v2441, 96
        %v2458 = vpop.permute.xlu0 %2457
        %2459 = vrot.lane.b32.xlu0 %v2442, 96
        %v2460 = vpop.permute.xlu0 %2459
        %2461 = vrot.lane.b32.xlu0 %v2443, 96
        %v2462 = vpop.permute.xlu0 %2461
        %2463 = vrot.lane.b32.xlu0 %v2444, 96
        %v2464 = vpop.permute.xlu0 %2463
        %2465 = vrot.lane.b32.xlu0 %v2445, 96
        %v2466 = vpop.permute.xlu0 %2465
        %2467 = vrot.lane.b32.xlu0 %v2446, 96
        %v2468 = vpop.permute.xlu0 %2467
        %2469 = vrot.lane.b32.xlu0 %v2447, 96
        %v2470 = vpop.permute.xlu0 %2469
        %2471 = vrot.lane.b32.xlu0 %v2448, 96
        %v2472 = vpop.permute.xlu0 %2471
        %2473 = vrot.lane.b32.xlu0 %v2449, 96
        %v2474 = vpop.permute.xlu0 %2473
        %2475 = vrot.lane.b32.xlu0 %v2450, 96
        %v2476 = vpop.permute.xlu0 %2475
        %2477 = vrot.lane.b32.xlu0 %v2451, 96
        %v2478 = vpop.permute.xlu0 %2477
        %2479 = vrot.lane.b32.xlu0 %v2452, 96
        %v2480 = vpop.permute.xlu0 %2479
        %2481 = vrot.lane.b32.xlu0 %v2453, 96
        %v2482 = vpop.permute.xlu0 %2481
        %2483 = vrot.lane.b32.xlu0 %v2454, 96
        %v2484 = vpop.permute.xlu0 %2483
        %2485 = vrot.lane.b32.xlu0 %v2455, 96
        %v2486 = vpop.permute.xlu0 %2485
        %2487 = vrot.lane.b32.xlu0 %v2456, 96
        %v2488 = vpop.permute.xlu0 %2487
        %v2489 = vunpack.c.l.b16 %v370
        %v2490 = vunpack.c.l.b16 %v380
        %v2491 = vunpack.c.l.b16 %v394
        %v2492 = vunpack.c.l.b16 %v404
        %v2493 = vunpack.c.l.b16 %v418
        %v2494 = vunpack.c.l.b16 %v428
        %v2495 = vunpack.c.l.b16 %v442
        %v2496 = vunpack.c.l.b16 %v452
        %v2497 = vunpack.c.l.b16 %v466
        %v2498 = vunpack.c.l.b16 %v476
        %v2499 = vunpack.c.l.b16 %v490
        %v2500 = vunpack.c.l.b16 %v500
        %v2501 = vunpack.c.l.b16 %v514
        %v2502 = vunpack.c.l.b16 %v524
        %v2503 = vunpack.c.l.b16 %v538
        %v2504 = vunpack.c.l.b16 %v548
        %v2505 = vunpack.c.l.b16 %v562
        %v2506 = vunpack.c.l.b16 %v572
        %v2507 = vunpack.c.l.b16 %v586
        %v2508 = vunpack.c.l.b16 %v596
        %v2509 = vunpack.c.l.b16 %v610
        %v2510 = vunpack.c.l.b16 %v620
        %v2511 = vunpack.c.l.b16 %v634
        %v2512 = vunpack.c.l.b16 %v644
        %v2513 = vunpack.c.l.b16 %v658
        %v2514 = vunpack.c.l.b16 %v668
        %v2515 = vunpack.c.l.b16 %v682
        %v2516 = vunpack.c.l.b16 %v692
        %v2517 = vunpack.c.l.b16 %v706
        %v2518 = vunpack.c.l.b16 %v716
        %v2519 = vunpack.c.l.b16 %v730
        %v2520 = vunpack.c.l.b16 %v740
        %v2521 = vpack.c.b16 %v2490, %v2489
        %v2522 = vpack.c.b16 %v2492, %v2491
        %v2523 = vpack.c.b16 %v2494, %v2493
        %v2524 = vpack.c.b16 %v2496, %v2495
        %v2525 = vpack.c.b16 %v2498, %v2497
        %v2526 = vpack.c.b16 %v2500, %v2499
        %v2527 = vpack.c.b16 %v2502, %v2501
        %v2528 = vpack.c.b16 %v2504, %v2503
        %v2529 = vpack.c.b16 %v2506, %v2505
        %v2530 = vpack.c.b16 %v2508, %v2507
        %v2531 = vpack.c.b16 %v2510, %v2509
        %v2532 = vpack.c.b16 %v2512, %v2511
        %v2533 = vpack.c.b16 %v2514, %v2513
        %v2534 = vpack.c.b16 %v2516, %v2515
        %v2535 = vpack.c.b16 %v2518, %v2517
        %v2536 = vpack.c.b16 %v2520, %v2519
        %v2537 = vunpack.c.l.b16 %v1451
        %v2538 = vunpack.c.l.b16 %v1454
        %v2539 = vunpack.c.l.b16 %v1458
        %v2540 = vunpack.c.l.b16 %v1461
        %v2541 = vunpack.c.l.b16 %v1465
        %v2542 = vunpack.c.l.b16 %v1468
        %v2543 = vunpack.c.l.b16 %v1472
        %v2544 = vunpack.c.l.b16 %v1475
        %v2545 = vunpack.c.l.b16 %v1479
        %v2546 = vunpack.c.l.b16 %v1482
        %v2547 = vunpack.c.l.b16 %v1486
        %v2548 = vunpack.c.l.b16 %v1489
        %v2549 = vunpack.c.l.b16 %v1493
        %v2550 = vunpack.c.l.b16 %v1496
        %v2551 = vunpack.c.l.b16 %v1500
        %v2552 = vunpack.c.l.b16 %v1503
        %v2553 = vunpack.c.l.b16 %v1507
        %v2554 = vunpack.c.l.b16 %v1510
        %v2555 = vunpack.c.l.b16 %v1514
        %v2556 = vunpack.c.l.b16 %v1517
        %v2557 = vunpack.c.l.b16 %v1521
        %v2558 = vunpack.c.l.b16 %v1524
        %v2559 = vunpack.c.l.b16 %v1528
        %v2560 = vunpack.c.l.b16 %v1531
        %v2561 = vunpack.c.l.b16 %v1535
        %v2562 = vunpack.c.l.b16 %v1538
        %v2563 = vunpack.c.l.b16 %v1542
        %v2564 = vunpack.c.l.b16 %v1545
        %v2565 = vunpack.c.l.b16 %v1549
        %v2566 = vunpack.c.l.b16 %v1552
        %v2567 = vunpack.c.l.b16 %v1556
        %v2568 = vunpack.c.l.b16 %v1559
        %v2569 = vpack.c.b16 %v2538, %v2537
        %v2570 = vpack.c.b16 %v2540, %v2539
        %v2571 = vpack.c.b16 %v2542, %v2541
        %v2572 = vpack.c.b16 %v2544, %v2543
        %v2573 = vpack.c.b16 %v2546, %v2545
        %v2574 = vpack.c.b16 %v2548, %v2547
        %v2575 = vpack.c.b16 %v2550, %v2549
        %v2576 = vpack.c.b16 %v2552, %v2551
        %v2577 = vpack.c.b16 %v2554, %v2553
        %v2578 = vpack.c.b16 %v2556, %v2555
        %v2579 = vpack.c.b16 %v2558, %v2557
        %v2580 = vpack.c.b16 %v2560, %v2559
        %v2581 = vpack.c.b16 %v2562, %v2561
        %v2582 = vpack.c.b16 %v2564, %v2563
        %v2583 = vpack.c.b16 %v2566, %v2565
        %v2584 = vpack.c.b16 %v2568, %v2567
        %2585 = vrot.lane.b32.xlu0 %v2569, 32
        %v2586 = vpop.permute.xlu0 %2585
        %2587 = vrot.lane.b32.xlu0 %v2570, 32
        %v2588 = vpop.permute.xlu0 %2587
        %2589 = vrot.lane.b32.xlu0 %v2571, 32
        %v2590 = vpop.permute.xlu0 %2589
        %2591 = vrot.lane.b32.xlu0 %v2572, 32
        %v2592 = vpop.permute.xlu0 %2591
        %2593 = vrot.lane.b32.xlu0 %v2573, 32
        %v2594 = vpop.permute.xlu0 %2593
        %2595 = vrot.lane.b32.xlu0 %v2574, 32
        %v2596 = vpop.permute.xlu0 %2595
        %2597 = vrot.lane.b32.xlu0 %v2575, 32
        %v2598 = vpop.permute.xlu0 %2597
        %2599 = vrot.lane.b32.xlu0 %v2576, 32
        %v2600 = vpop.permute.xlu0 %2599
        %2601 = vrot.lane.b32.xlu0 %v2577, 32
        %v2602 = vpop.permute.xlu0 %2601
        %2603 = vrot.lane.b32.xlu0 %v2578, 32
        %v2604 = vpop.permute.xlu0 %2603
        %2605 = vrot.lane.b32.xlu0 %v2579, 32
        %v2606 = vpop.permute.xlu0 %2605
        %2607 = vrot.lane.b32.xlu0 %v2580, 32
        %v2608 = vpop.permute.xlu0 %2607
        %2609 = vrot.lane.b32.xlu0 %v2581, 32
        %v2610 = vpop.permute.xlu0 %2609
        %2611 = vrot.lane.b32.xlu0 %v2582, 32
        %v2612 = vpop.permute.xlu0 %2611
        %2613 = vrot.lane.b32.xlu0 %v2583, 32
        %v2614 = vpop.permute.xlu0 %2613
        %2615 = vrot.lane.b32.xlu0 %v2584, 32
        %v2616 = vpop.permute.xlu0 %2615
        %v2633 = vunpack.c.l.b16 %v1561
        %v2634 = vunpack.c.l.b16 %v1562
        %v2635 = vunpack.c.l.b16 %v1563
        %v2636 = vunpack.c.l.b16 %v1564
        %v2637 = vunpack.c.l.b16 %v1565
        %v2638 = vunpack.c.l.b16 %v1566
        %v2639 = vunpack.c.l.b16 %v1567
        %v2640 = vunpack.c.l.b16 %v1568
        %v2641 = vunpack.c.l.b16 %v1569
        %v2642 = vunpack.c.l.b16 %v1570
        %v2643 = vunpack.c.l.b16 %v1571
        %v2644 = vunpack.c.l.b16 %v1572
        %v2645 = vunpack.c.l.b16 %v1573
        %v2646 = vunpack.c.l.b16 %v1574
        %v2647 = vunpack.c.l.b16 %v1575
        %v2648 = vunpack.c.l.b16 %v1576
        %v2649 = vunpack.c.l.b16 %v1577
        %v2650 = vunpack.c.l.b16 %v1578
        %v2651 = vunpack.c.l.b16 %v1579
        %v2652 = vunpack.c.l.b16 %v1580
        %v2653 = vunpack.c.l.b16 %v1581
        %v2654 = vunpack.c.l.b16 %v1582
        %v2655 = vunpack.c.l.b16 %v1583
        %v2656 = vunpack.c.l.b16 %v1584
        %v2657 = vunpack.c.l.b16 %v1585
        %v2658 = vunpack.c.l.b16 %v1586
        %v2659 = vunpack.c.l.b16 %v1587
        %v2660 = vunpack.c.l.b16 %v1588
        %v2661 = vunpack.c.l.b16 %v1589
        %v2662 = vunpack.c.l.b16 %v1590
        %v2663 = vunpack.c.l.b16 %v1591
        %v2664 = vunpack.c.l.b16 %v1592
        %v2665 = vpack.c.b16 %v2634, %v2633
        %v2666 = vpack.c.b16 %v2636, %v2635
        %v2667 = vpack.c.b16 %v2638, %v2637
        %v2668 = vpack.c.b16 %v2640, %v2639
        %v2669 = vpack.c.b16 %v2642, %v2641
        %v2670 = vpack.c.b16 %v2644, %v2643
        %v2671 = vpack.c.b16 %v2646, %v2645
        %v2672 = vpack.c.b16 %v2648, %v2647
        %v2673 = vpack.c.b16 %v2650, %v2649
        %v2674 = vpack.c.b16 %v2652, %v2651
        %v2675 = vpack.c.b16 %v2654, %v2653
        %v2676 = vpack.c.b16 %v2656, %v2655
        %v2677 = vpack.c.b16 %v2658, %v2657
        %v2678 = vpack.c.b16 %v2660, %v2659
        %v2679 = vpack.c.b16 %v2662, %v2661
        %v2680 = vpack.c.b16 %v2664, %v2663
        %2681 = vrot.lane.b32.xlu0 %v2665, 64
        %v2682 = vpop.permute.xlu0 %2681
        %2683 = vrot.lane.b32.xlu0 %v2666, 64
        %v2684 = vpop.permute.xlu0 %2683
        %2685 = vrot.lane.b32.xlu0 %v2667, 64
        %v2686 = vpop.permute.xlu0 %2685
        %2687 = vrot.lane.b32.xlu0 %v2668, 64
        %v2688 = vpop.permute.xlu0 %2687
        %2689 = vrot.lane.b32.xlu0 %v2669, 64
        %v2690 = vpop.permute.xlu0 %2689
        %2691 = vrot.lane.b32.xlu0 %v2670, 64
        %v2692 = vpop.permute.xlu0 %2691
        %2693 = vrot.lane.b32.xlu0 %v2671, 64
        %v2694 = vpop.permute.xlu0 %2693
        %2695 = vrot.lane.b32.xlu0 %v2672, 64
        %v2696 = vpop.permute.xlu0 %2695
        %2697 = vrot.lane.b32.xlu0 %v2673, 64
        %v2698 = vpop.permute.xlu0 %2697
        %2699 = vrot.lane.b32.xlu0 %v2674, 64
        %v2700 = vpop.permute.xlu0 %2699
        %2701 = vrot.lane.b32.xlu0 %v2675, 64
        %v2702 = vpop.permute.xlu0 %2701
        %2703 = vrot.lane.b32.xlu0 %v2676, 64
        %v2704 = vpop.permute.xlu0 %2703
        %2705 = vrot.lane.b32.xlu0 %v2677, 64
        %v2706 = vpop.permute.xlu0 %2705
        %2707 = vrot.lane.b32.xlu0 %v2678, 64
        %v2708 = vpop.permute.xlu0 %2707
        %2709 = vrot.lane.b32.xlu0 %v2679, 64
        %v2710 = vpop.permute.xlu0 %2709
        %2711 = vrot.lane.b32.xlu0 %v2680, 64
        %v2712 = vpop.permute.xlu0 %2711
        %v2713 = vunpack.c.l.b16 %v1622
        %v2714 = vunpack.c.l.b16 %v1632
        %v2715 = vunpack.c.l.b16 %v1646
        %v2716 = vunpack.c.l.b16 %v1656
        %v2717 = vunpack.c.l.b16 %v1670
        %v2718 = vunpack.c.l.b16 %v1680
        %v2719 = vunpack.c.l.b16 %v1694
        %v2720 = vunpack.c.l.b16 %v1704
        %v2721 = vunpack.c.l.b16 %v1718
        %v2722 = vunpack.c.l.b16 %v1728
        %v2723 = vunpack.c.l.b16 %v1742
        %v2724 = vunpack.c.l.b16 %v1752
        %v2725 = vunpack.c.l.b16 %v1766
        %v2726 = vunpack.c.l.b16 %v1776
        %v2727 = vunpack.c.l.b16 %v1790
        %v2728 = vunpack.c.l.b16 %v1800
        %v2729 = vunpack.c.l.b16 %v1814
        %v2730 = vunpack.c.l.b16 %v1824
        %v2731 = vunpack.c.l.b16 %v1838
        %v2732 = vunpack.c.l.b16 %v1848
        %v2733 = vunpack.c.l.b16 %v1862
        %v2734 = vunpack.c.l.b16 %v1872
        %v2735 = vunpack.c.l.b16 %v1886
        %v2736 = vunpack.c.l.b16 %v1896
        %v2737 = vunpack.c.l.b16 %v1910
        %v2738 = vunpack.c.l.b16 %v1920
        %v2739 = vunpack.c.l.b16 %v1934
        %v2740 = vunpack.c.l.b16 %v1944
        %v2741 = vunpack.c.l.b16 %v1958
        %v2742 = vunpack.c.l.b16 %v1968
        %v2743 = vunpack.c.l.b16 %v1982
        %v2744 = vunpack.c.l.b16 %v1992
        %v2745 = vpack.c.b16 %v2714, %v2713
        %v2746 = vpack.c.b16 %v2716, %v2715
        %v2747 = vpack.c.b16 %v2718, %v2717
        %v2748 = vpack.c.b16 %v2720, %v2719
        %v2749 = vpack.c.b16 %v2722, %v2721
        %v2750 = vpack.c.b16 %v2724, %v2723
        %v2751 = vpack.c.b16 %v2726, %v2725
        %v2752 = vpack.c.b16 %v2728, %v2727
        %v2753 = vpack.c.b16 %v2730, %v2729
        %v2754 = vpack.c.b16 %v2732, %v2731
        %v2755 = vpack.c.b16 %v2734, %v2733
        %v2756 = vpack.c.b16 %v2736, %v2735
        %v2757 = vpack.c.b16 %v2738, %v2737
        %v2758 = vpack.c.b16 %v2740, %v2739
        %v2759 = vpack.c.b16 %v2742, %v2741
        %v2760 = vpack.c.b16 %v2744, %v2743
        %2761 = vrot.lane.b32.xlu0 %v2745, 96
        %v2762 = vpop.permute.xlu0 %2761
        %2763 = vrot.lane.b32.xlu0 %v2746, 96
        %v2764 = vpop.permute.xlu0 %2763
        %2765 = vrot.lane.b32.xlu0 %v2747, 96
        %v2766 = vpop.permute.xlu0 %2765
        %2767 = vrot.lane.b32.xlu0 %v2748, 96
        %v2768 = vpop.permute.xlu0 %2767
        %2769 = vrot.lane.b32.xlu0 %v2749, 96
        %v2770 = vpop.permute.xlu0 %2769
        %2771 = vrot.lane.b32.xlu0 %v2750, 96
        %v2772 = vpop.permute.xlu0 %2771
        %2773 = vrot.lane.b32.xlu0 %v2751, 96
        %v2774 = vpop.permute.xlu0 %2773
        %2775 = vrot.lane.b32.xlu0 %v2752, 96
        %v2776 = vpop.permute.xlu0 %2775
        %2777 = vrot.lane.b32.xlu0 %v2753, 96
        %v2778 = vpop.permute.xlu0 %2777
        %2779 = vrot.lane.b32.xlu0 %v2754, 96
        %v2780 = vpop.permute.xlu0 %2779
        %2781 = vrot.lane.b32.xlu0 %v2755, 96
        %v2782 = vpop.permute.xlu0 %2781
        %2783 = vrot.lane.b32.xlu0 %v2756, 96
        %v2784 = vpop.permute.xlu0 %2783
        %2785 = vrot.lane.b32.xlu0 %v2757, 96
        %v2786 = vpop.permute.xlu0 %2785
        %2787 = vrot.lane.b32.xlu0 %v2758, 96
        %v2788 = vpop.permute.xlu0 %2787
        %2789 = vrot.lane.b32.xlu0 %v2759, 96
        %v2790 = vpop.permute.xlu0 %2789
        %2791 = vrot.lane.b32.xlu0 %v2760, 96
        %v2792 = vpop.permute.xlu0 %2791
        %v2793 = vunpack.c.l.b16 %v2060
        %v2794 = vunpack.c.l.b16 %v2063
        %v2795 = vunpack.c.l.b16 %v2067
        %v2796 = vunpack.c.l.b16 %v2070
        %v2797 = vunpack.c.l.b16 %v2074
        %v2798 = vunpack.c.l.b16 %v2077
        %v2799 = vunpack.c.l.b16 %v2081
        %v2800 = vunpack.c.l.b16 %v2084
        %v2801 = vunpack.c.l.b16 %v2088
        %v2802 = vunpack.c.l.b16 %v2091
        %v2803 = vunpack.c.l.b16 %v2095
        %v2804 = vunpack.c.l.b16 %v2098
        %v2805 = vunpack.c.l.b16 %v2102
        %v2806 = vunpack.c.l.b16 %v2105
        %v2807 = vunpack.c.l.b16 %v2109
        %v2808 = vunpack.c.l.b16 %v2112
        %v2809 = vunpack.c.l.b16 %v2116
        %v2810 = vunpack.c.l.b16 %v2119
        %v2811 = vunpack.c.l.b16 %v2123
        %v2812 = vunpack.c.l.b16 %v2126
        %v2813 = vunpack.c.l.b16 %v2130
        %v2814 = vunpack.c.l.b16 %v2133
        %v2815 = vunpack.c.l.b16 %v2137
        %v2816 = vunpack.c.l.b16 %v2140
        %v2817 = vunpack.c.l.b16 %v2144
        %v2818 = vunpack.c.l.b16 %v2147
        %v2819 = vunpack.c.l.b16 %v2151
        %v2820 = vunpack.c.l.b16 %v2154
        %v2821 = vunpack.c.l.b16 %v2158
        %v2822 = vunpack.c.l.b16 %v2161
        %v2823 = vunpack.c.l.b16 %v2165
        %v2824 = vunpack.c.l.b16 %v2168
        %v2825 = vpack.c.b16 %v2794, %v2793
        %v2826 = vpack.c.b16 %v2796, %v2795
        %v2827 = vpack.c.b16 %v2798, %v2797
        %v2828 = vpack.c.b16 %v2800, %v2799
        %v2829 = vpack.c.b16 %v2802, %v2801
        %v2830 = vpack.c.b16 %v2804, %v2803
        %v2831 = vpack.c.b16 %v2806, %v2805
        %v2832 = vpack.c.b16 %v2808, %v2807
        %v2833 = vpack.c.b16 %v2810, %v2809
        %v2834 = vpack.c.b16 %v2812, %v2811
        %v2835 = vpack.c.b16 %v2814, %v2813
        %v2836 = vpack.c.b16 %v2816, %v2815
        %v2837 = vpack.c.b16 %v2818, %v2817
        %v2838 = vpack.c.b16 %v2820, %v2819
        %v2839 = vpack.c.b16 %v2822, %v2821
        %v2840 = vpack.c.b16 %v2824, %v2823
        %vm2841 = vcmask 261120
        %v2844 = vsel %vm2841, %v2217, %v2282
        %v2847 = vsel %vm2841, %v2218, %v2284
        %v2850 = vsel %vm2841, %v2219, %v2286
        %v2853 = vsel %vm2841, %v2220, %v2288
        %v2856 = vsel %vm2841, %v2221, %v2290
        %v2859 = vsel %vm2841, %v2222, %v2292
        %v2862 = vsel %vm2841, %v2223, %v2294
        %v2865 = vsel %vm2841, %v2224, %v2296
        %v2868 = vsel %vm2841, %v2225, %v2298
        %v2871 = vsel %vm2841, %v2226, %v2300
        %v2874 = vsel %vm2841, %v2227, %v2302
        %v2877 = vsel %vm2841, %v2228, %v2304
        %v2880 = vsel %vm2841, %v2229, %v2306
        %v2883 = vsel %vm2841, %v2230, %v2308
        %v2886 = vsel %vm2841, %v2231, %v2310
        %v2889 = vsel %vm2841, %v2232, %v2312
        %vm2890 = vcmask 523264
        %v2892 = vsel %vm2890, %v2844, %v2362
        %v2894 = vsel %vm2890, %v2847, %v2364
        %v2896 = vsel %vm2890, %v2850, %v2366
        %v2898 = vsel %vm2890, %v2853, %v2368
        %v2900 = vsel %vm2890, %v2856, %v2370
        %v2902 = vsel %vm2890, %v2859, %v2372
        %v2904 = vsel %vm2890, %v2862, %v2374
        %v2906 = vsel %vm2890, %v2865, %v2376
        %v2908 = vsel %vm2890, %v2868, %v2378
        %v2910 = vsel %vm2890, %v2871, %v2380
        %v2912 = vsel %vm2890, %v2874, %v2382
        %v2914 = vsel %vm2890, %v2877, %v2384
        %v2916 = vsel %vm2890, %v2880, %v2386
        %v2918 = vsel %vm2890, %v2883, %v2388
        %v2920 = vsel %vm2890, %v2886, %v2390
        %v2922 = vsel %vm2890, %v2889, %v2392
        %vm2923 = vcmask 785408
        %v2925 = vsel %vm2923, %v2892, %v2458
        %v2928 = vsel %vm2923, %v2894, %v2460
        %v2931 = vsel %vm2923, %v2896, %v2462
        %v2934 = vsel %vm2923, %v2898, %v2464
        %v2937 = vsel %vm2923, %v2900, %v2466
        %v2940 = vsel %vm2923, %v2902, %v2468
        %v2943 = vsel %vm2923, %v2904, %v2470
        %v2946 = vsel %vm2923, %v2906, %v2472
        %v2949 = vsel %vm2923, %v2908, %v2474
        %v2952 = vsel %vm2923, %v2910, %v2476
        %v2955 = vsel %vm2923, %v2912, %v2478
        %v2958 = vsel %vm2923, %v2914, %v2480
        %v2961 = vsel %vm2923, %v2916, %v2482
        %v2964 = vsel %vm2923, %v2918, %v2484
        %v2967 = vsel %vm2923, %v2920, %v2486
        %v2970 = vsel %vm2923, %v2922, %v2488
        %v2974 = vsel %vm2841, %v2521, %v2586
        %v2977 = vsel %vm2841, %v2522, %v2588
        %v2980 = vsel %vm2841, %v2523, %v2590
        %v2983 = vsel %vm2841, %v2524, %v2592
        %v2986 = vsel %vm2841, %v2525, %v2594
        %v2989 = vsel %vm2841, %v2526, %v2596
        %v2992 = vsel %vm2841, %v2527, %v2598
        %v2995 = vsel %vm2841, %v2528, %v2600
        %v2998 = vsel %vm2841, %v2529, %v2602
        %v3001 = vsel %vm2841, %v2530, %v2604
        %v3004 = vsel %vm2841, %v2531, %v2606
        %v3007 = vsel %vm2841, %v2532, %v2608
        %v3010 = vsel %vm2841, %v2533, %v2610
        %v3013 = vsel %vm2841, %v2534, %v2612
        %v3016 = vsel %vm2841, %v2535, %v2614
        %v3019 = vsel %vm2841, %v2536, %v2616
        %v3021 = vsel %vm2890, %v2974, %v2682
        %v3023 = vsel %vm2890, %v2977, %v2684
        %v3025 = vsel %vm2890, %v2980, %v2686
        %v3027 = vsel %vm2890, %v2983, %v2688
        %v3029 = vsel %vm2890, %v2986, %v2690
        %v3031 = vsel %vm2890, %v2989, %v2692
        %v3033 = vsel %vm2890, %v2992, %v2694
        %v3035 = vsel %vm2890, %v2995, %v2696
        %v3037 = vsel %vm2890, %v2998, %v2698
        %v3039 = vsel %vm2890, %v3001, %v2700
        %v3041 = vsel %vm2890, %v3004, %v2702
        %v3043 = vsel %vm2890, %v3007, %v2704
        %v3045 = vsel %vm2890, %v3010, %v2706
        %v3047 = vsel %vm2890, %v3013, %v2708
        %v3049 = vsel %vm2890, %v3016, %v2710
        %v3051 = vsel %vm2890, %v3019, %v2712
        %v3053 = vsel %vm2923, %v3021, %v2762
        %v3056 = vsel %vm2923, %v3023, %v2764
        %v3059 = vsel %vm2923, %v3025, %v2766
        %v3062 = vsel %vm2923, %v3027, %v2768
        %v3065 = vsel %vm2923, %v3029, %v2770
        %v3068 = vsel %vm2923, %v3031, %v2772
        %v3071 = vsel %vm2923, %v3033, %v2774
        %v3074 = vsel %vm2923, %v3035, %v2776
        %v3077 = vsel %vm2923, %v3037, %v2778
        %v3080 = vsel %vm2923, %v3039, %v2780
        %v3083 = vsel %vm2923, %v3041, %v2782
        %v3086 = vsel %vm2923, %v3043, %v2784
        %v3089 = vsel %vm2923, %v3045, %v2786
        %v3092 = vsel %vm2923, %v3047, %v2788
        %v3095 = vsel %vm2923, %v3049, %v2790
        %v3098 = vsel %vm2923, %v3051, %v2792
        %v3100 = vld [vmem:[%s1] sm:$0xf]
        %v3101 = vld [vmem:[%s1 + $0x4] sm:$0xf]
        %v3102 = vld [vmem:[%s1 + $0x8] sm:$0xf]
        %v3103 = vld [vmem:[%s1 + $0xc] sm:$0xf]
        %v3104 = vld [vmem:[%s1 + $0x10] sm:$0xf]
        %v3105 = vld [vmem:[%s1 + $0x14] sm:$0xf]
        %v3106 = vld [vmem:[%s1 + $0x18] sm:$0xf]
        %v3107 = vld [vmem:[%s1 + $0x1c] sm:$0xf]
        %v3108 = vld [vmem:[%s1 + $0x20] sm:$0xf]
        %v3109 = vld [vmem:[%s1 + $0x24] sm:$0xf]
        %v3110 = vld [vmem:[%s1 + $0x28] sm:$0xf]
        %v3111 = vld [vmem:[%s1 + $0x2c] sm:$0xf]
        %v3112 = vld [vmem:[%s1 + $0x30] sm:$0xf]
        %v3113 = vld [vmem:[%s1 + $0x34] sm:$0xf]
        %v3114 = vld [vmem:[%s1 + $0x38] sm:$0xf]
        %v3115 = vld [vmem:[%s1 + $0x3c] sm:$0xf]
        %v3116 = vld [vmem:[%s1 + $0x40] sm:$0xf]
        %v3117 = vld [vmem:[%s1 + $0x44] sm:$0xf]
        %v3118 = vld [vmem:[%s1 + $0x48] sm:$0xf]
        %v3119 = vld [vmem:[%s1 + $0x4c] sm:$0xf]
        %v3120 = vld [vmem:[%s1 + $0x50] sm:$0xf]
        %v3121 = vld [vmem:[%s1 + $0x54] sm:$0xf]
        %v3122 = vld [vmem:[%s1 + $0x58] sm:$0xf]
        %v3123 = vld [vmem:[%s1 + $0x5c] sm:$0xf]
        %v3124 = vld [vmem:[%s1 + $0x60] sm:$0xf]
        %v3125 = vld [vmem:[%s1 + $0x64] sm:$0xf]
        %v3126 = vld [vmem:[%s1 + $0x68] sm:$0xf]
        %v3127 = vld [vmem:[%s1 + $0x6c] sm:$0xf]
        %v3128 = vld [vmem:[%s1 + $0x70] sm:$0xf]
        %v3129 = vld [vmem:[%s1 + $0x74] sm:$0xf]
        %v3130 = vld [vmem:[%s1 + $0x78] sm:$0xf]
        %v3131 = vld [vmem:[%s1 + $0x7c] sm:$0xf]
        %v3132 = vld [vmem:[%s1 + $0x80] sm:$0xf]
        %v3133 = vld [vmem:[%s1 + $0x84] sm:$0xf]
        %v3134 = vld [vmem:[%s1 + $0x88] sm:$0xf]
        %v3135 = vld [vmem:[%s1 + $0x8c] sm:$0xf]
        %v3136 = vld [vmem:[%s2] sm:$0x1]
        %v3138 = vlaneseq
        %v3139 = vshrl.u32 %v3138, 7
        %v3140 = vsub.s32 0, %v3139
        %v3141 = vrot.slane %v3136, %v3140
        %v3179 = vunpack.c.l.b16 %v3100
        %v3180 = vunpack.c.l.b16 %v3101
        %v3181 = vunpack.c.l.b16 %v3102
        %v3182 = vunpack.c.l.b16 %v3103
        %v3183 = vunpack.c.l.b16 %v3104
        %v3184 = vunpack.c.l.b16 %v3105
        %v3185 = vunpack.c.l.b16 %v3106
        %v3186 = vunpack.c.l.b16 %v3107
        %v3187 = vunpack.c.l.b16 %v3108
        %v3188 = vunpack.c.l.b16 %v3109
        %v3189 = vunpack.c.l.b16 %v3110
        %v3190 = vunpack.c.l.b16 %v3111
        %v3191 = vunpack.c.l.b16 %v3112
        %v3192 = vunpack.c.l.b16 %v3113
        %v3193 = vunpack.c.l.b16 %v3114
        %v3194 = vunpack.c.l.b16 %v3115
        %v3195 = vunpack.c.l.b16 %v3116
        %v3196 = vunpack.c.l.b16 %v3117
        %v3197 = vunpack.c.l.b16 %v3118
        %v3198 = vunpack.c.l.b16 %v3119
        %v3199 = vunpack.c.l.b16 %v3120
        %v3200 = vunpack.c.l.b16 %v3121
        %v3201 = vunpack.c.l.b16 %v3122
        %v3202 = vunpack.c.l.b16 %v3123
        %v3203 = vunpack.c.l.b16 %v3124
        %v3204 = vunpack.c.l.b16 %v3125
        %v3205 = vunpack.c.l.b16 %v3126
        %v3206 = vunpack.c.l.b16 %v3127
        %v3207 = vunpack.c.l.b16 %v3128
        %v3208 = vunpack.c.l.b16 %v3129
        %v3209 = vunpack.c.l.b16 %v3130
        %v3210 = vunpack.c.l.b16 %v3131
        %v3211 = vunpack.c.l.b16 %v3132
        %v3212 = vunpack.c.l.b16 %v3133
        %v3213 = vunpack.c.l.b16 %v3134
        %v3214 = vunpack.c.l.b16 %v3135
        %v3215 = vpack.c.b16 %v3180, %v3179
        %v3216 = vpack.c.b16 %v3182, %v3181
        %v3217 = vpack.c.b16 %v3184, %v3183
        %v3218 = vpack.c.b16 %v3186, %v3185
        %v3219 = vpack.c.b16 %v3188, %v3187
        %v3220 = vpack.c.b16 %v3190, %v3189
        %v3221 = vpack.c.b16 %v3192, %v3191
        %v3222 = vpack.c.b16 %v3194, %v3193
        %v3223 = vpack.c.b16 %v3196, %v3195
        %v3224 = vpack.c.b16 %v3198, %v3197
        %v3225 = vpack.c.b16 %v3200, %v3199
        %v3226 = vpack.c.b16 %v3202, %v3201
        %v3227 = vpack.c.b16 %v3204, %v3203
        %v3228 = vpack.c.b16 %v3206, %v3205
        %v3229 = vpack.c.b16 %v3208, %v3207
        %v3230 = vpack.c.b16 %v3210, %v3209
        %v3231 = vpack.c.b16 %v3212, %v3211
        %v3232 = vpack.c.b16 %v3214, %v3213
        %v3252 = vsel %vm2841, %v2825, 0
        %v3255 = vsel %vm2841, %v2826, 0
        %v3258 = vsel %vm2841, %v2827, 0
        %v3261 = vsel %vm2841, %v2828, 0
        %v3264 = vsel %vm2841, %v2829, 0
        %v3267 = vsel %vm2841, %v2830, 0
        %v3270 = vsel %vm2841, %v2831, 0
        %v3273 = vsel %vm2841, %v2832, 0
        %v3276 = vsel %vm2841, %v2833, 0
        %v3279 = vsel %vm2841, %v2834, 0
        %v3282 = vsel %vm2841, %v2835, 0
        %v3285 = vsel %vm2841, %v2836, 0
        %v3288 = vsel %vm2841, %v2837, 0
        %v3291 = vsel %vm2841, %v2838, 0
        %v3294 = vsel %vm2841, %v2839, 0
        %v3297 = vsel %vm2841, %v2840, 0
        %3299 = vmatprep.subr.bf16.mxu0 0
        %3300 = vmatpush1.bf16.msra.mxu0 %v3215
        %3301 = vmatprep.subr.bf16.mxu0 0
        %3302 = vmatpush1.bf16.msra.mxu0 %v3216
        %3303 = vmatprep.subr.bf16.mxu0 0
        %3304 = vmatpush1.bf16.msra.mxu0 %v3217
        %3305 = vmatprep.subr.bf16.mxu0 0
        %3306 = vmatpush1.bf16.msra.mxu0 %v3218
        %3307 = vmatprep.subr.bf16.mxu0 0
        %3308 = vmatpush1.bf16.msra.mxu0 %v3219
        %3309 = vmatprep.subr.bf16.mxu0 0
        %3310 = vmatpush1.bf16.msra.mxu0 %v3220
        %3311 = vmatprep.subr.bf16.mxu0 0
        %3312 = vmatpush1.bf16.msra.mxu0 %v3221
        %3313 = vmatprep.subr.bf16.mxu0 0
        %3314 = vmatpush1.bf16.msra.mxu0 %v3222
        %3315 = vmatprep.subr.bf16.mxu0 0
        %3316 = vmatpush1.bf16.msra.mxu0 %v3223
        %3317 = vmatprep.subr.bf16.mxu0 0
        %3318 = vmatpush1.bf16.msra.mxu0 %v3224
        %3319 = vmatprep.subr.bf16.mxu0 0
        %3320 = vmatpush1.bf16.msra.mxu0 %v3225
        %3321 = vmatprep.subr.bf16.mxu0 0
        %3322 = vmatpush1.bf16.msra.mxu0 %v3226
        %3323 = vmatprep.subr.bf16.mxu0 0
        %3324 = vmatpush1.bf16.msra.mxu0 %v3227
        %3325 = vmatprep.subr.bf16.mxu0 0
        %3326 = vmatpush1.bf16.msra.mxu0 %v3228
        %3327 = vmatprep.subr.bf16.mxu0 0
        %3328 = vmatpush1.bf16.msra.mxu0 %v3229
        %3329 = vmatprep.subr.bf16.mxu0 0
        %3330 = vmatpush1.bf16.msra.mxu0 %v3230
        %3331 = vmatprep.mubr.bf16.mxu0 %v3053
        %3332 = vmatmul.mubr.bf16.gmra.mrb[0].mxu0 %v2925
        %v3333 = vpop.f32.mrb[0].mxu0
        %v3334 = vadd.f32 %v3141, %v3333
        %v3335 = vpop.f32.mrb[0].mxu0
        %v3336 = vpop.f32.mrb[0].mxu0
        %v3337 = vadd.f32 %v3141, %v3336
        %v3338 = vpop.f32.mrb[0].mxu0
        %3339 = vmatprep.mubr.bf16.mxu0 %v3056
        %3340 = vmatmul.mubr.bf16.gmra.mrb[0].mxu0 %v2928
        %v3341 = vpop.f32.mrb[0].mxu0
        %v3342 = vadd.f32 %v3141, %v3341
        %v3343 = vpop.f32.mrb[0].mxu0
        %v3344 = vpop.f32.mrb[0].mxu0
        %v3345 = vadd.f32 %v3141, %v3344
        %v3346 = vpop.f32.mrb[0].mxu0
        %3347 = vmatprep.mubr.bf16.mxu0 %v3059
        %3348 = vmatmul.mubr.bf16.gmra.mrb[0].mxu0 %v2931
        %v3349 = vpop.f32.mrb[0].mxu0
        %v3350 = vadd.f32 %v3141, %v3349
        %v3351 = vpop.f32.mrb[0].mxu0
        %v3352 = vpop.f32.mrb[0].mxu0
        %v3353 = vadd.f32 %v3141, %v3352
        %v3354 = vpop.f32.mrb[0].mxu0
        %3355 = vmatprep.mubr.bf16.mxu0 %v3062
        %3356 = vmatmul.mubr.bf16.gmra.mrb[0].mxu0 %v2934
        %v3357 = vpop.f32.mrb[0].mxu0
        %v3358 = vadd.f32 %v3141, %v3357
        %v3359 = vpop.f32.mrb[0].mxu0
        %v3360 = vpop.f32.mrb[0].mxu0
        %v3361 = vadd.f32 %v3141, %v3360
        %v3362 = vpop.f32.mrb[0].mxu0
        %3363 = vmatprep.mubr.bf16.mxu0 %v3065
        %3364 = vmatmul.mubr.bf16.gmra.mrb[0].mxu0 %v2937
        %v3365 = vpop.f32.mrb[0].mxu0
        %v3366 = vadd.f32 %v3141, %v3365
        %v3367 = vpop.f32.mrb[0].mxu0
        %v3368 = vpop.f32.mrb[0].mxu0
        %v3369 = vadd.f32 %v3141, %v3368
        %v3370 = vpop.f32.mrb[0].mxu0
        %3371 = vmatprep.mubr.bf16.mxu0 %v3068
        %3372 = vmatmul.mubr.bf16.gmra.mrb[0].mxu0 %v2940
        %v3373 = vpop.f32.mrb[0].mxu0
        %v3374 = vadd.f32 %v3141, %v3373
        %v3375 = vpop.f32.mrb[0].mxu0
        %v3376 = vpop.f32.mrb[0].mxu0
        %v3377 = vadd.f32 %v3141, %v3376
        %v3378 = vpop.f32.mrb[0].mxu0
        %3379 = vmatprep.mubr.bf16.mxu0 %v3071
        %3380 = vmatmul.mubr.bf16.gmra.mrb[0].mxu0 %v2943
        %v3381 = vpop.f32.mrb[0].mxu0
        %v3382 = vadd.f32 %v3141, %v3381
        %v3383 = vpop.f32.mrb[0].mxu0
        %v3384 = vpop.f32.mrb[0].mxu0
        %v3385 = vadd.f32 %v3141, %v3384
        %v3386 = vpop.f32.mrb[0].mxu0
        %3387 = vmatprep.mubr.bf16.mxu0 %v3074
        %3388 = vmatmul.mubr.bf16.gmra.mrb[0].mxu0 %v2946
        %v3389 = vpop.f32.mrb[0].mxu0
        %v3390 = vadd.f32 %v3141, %v3389
        %v3391 = vpop.f32.mrb[0].mxu0
        %v3392 = vpop.f32.mrb[0].mxu0
        %v3393 = vadd.f32 %v3141, %v3392
        %v3394 = vpop.f32.mrb[0].mxu0
        %3395 = vmatprep.mubr.bf16.mxu0 %v3077
        %3396 = vmatmul.mubr.bf16.gmra.mrb[0].mxu0 %v2949
        %v3397 = vpop.f32.mrb[0].mxu0
        %v3398 = vadd.f32 %v3141, %v3397
        %v3399 = vpop.f32.mrb[0].mxu0
        %v3400 = vpop.f32.mrb[0].mxu0
        %v3401 = vadd.f32 %v3141, %v3400
        %v3402 = vpop.f32.mrb[0].mxu0
        %3403 = vmatprep.mubr.bf16.mxu0 %v3080
        %3404 = vmatmul.mubr.bf16.gmra.mrb[0].mxu0 %v2952
        %v3405 = vpop.f32.mrb[0].mxu0
        %v3406 = vadd.f32 %v3141, %v3405
        %v3407 = vpop.f32.mrb[0].mxu0
        %v3408 = vpop.f32.mrb[0].mxu0
        %v3409 = vadd.f32 %v3141, %v3408
        %v3410 = vpop.f32.mrb[0].mxu0
        %3411 = vmatprep.mubr.bf16.mxu0 %v3083
        %3412 = vmatmul.mubr.bf16.gmra.mrb[0].mxu0 %v2955
        %v3413 = vpop.f32.mrb[0].mxu0
        %v3414 = vadd.f32 %v3141, %v3413
        %v3415 = vpop.f32.mrb[0].mxu0
        %v3416 = vpop.f32.mrb[0].mxu0
        %v3417 = vadd.f32 %v3141, %v3416
        %v3418 = vpop.f32.mrb[0].mxu0
        %3419 = vmatprep.mubr.bf16.mxu0 %v3086
        %3420 = vmatmul.mubr.bf16.gmra.mrb[0].mxu0 %v2958
        %v3421 = vpop.f32.mrb[0].mxu0
        %v3422 = vadd.f32 %v3141, %v3421
        %v3423 = vpop.f32.mrb[0].mxu0
        %v3424 = vpop.f32.mrb[0].mxu0
        %v3425 = vadd.f32 %v3141, %v3424
        %v3426 = vpop.f32.mrb[0].mxu0
        %3427 = vmatprep.mubr.bf16.mxu0 %v3089
        %3428 = vmatmul.mubr.bf16.gmra.mrb[0].mxu0 %v2961
        %v3429 = vpop.f32.mrb[0].mxu0
        %v3430 = vadd.f32 %v3141, %v3429
        %v3431 = vpop.f32.mrb[0].mxu0
        %v3432 = vpop.f32.mrb[0].mxu0
        %v3433 = vadd.f32 %v3141, %v3432
        %v3434 = vpop.f32.mrb[0].mxu0
        %3435 = vmatprep.mubr.bf16.mxu0 %v3092
        %3436 = vmatmul.mubr.bf16.gmra.mrb[0].mxu0 %v2964
        %v3437 = vpop.f32.mrb[0].mxu0
        %v3438 = vadd.f32 %v3141, %v3437
        %v3439 = vpop.f32.mrb[0].mxu0
        %v3440 = vpop.f32.mrb[0].mxu0
        %v3441 = vadd.f32 %v3141, %v3440
        %v3442 = vpop.f32.mrb[0].mxu0
        %3443 = vmatprep.mubr.bf16.mxu0 %v3095
        %3444 = vmatmul.mubr.bf16.gmra.mrb[0].mxu0 %v2967
        %v3445 = vpop.f32.mrb[0].mxu0
        %v3446 = vadd.f32 %v3141, %v3445
        %v3447 = vpop.f32.mrb[0].mxu0
        %v3448 = vpop.f32.mrb[0].mxu0
        %v3449 = vadd.f32 %v3141, %v3448
        %v3450 = vpop.f32.mrb[0].mxu0
        %3451 = vmatprep.mubr.bf16.mxu0 %v3098
        %3452 = vmatmul.mubr.bf16.gmra.mrb[0].mxu0 %v2970
        %v3453 = vpop.f32.mrb[0].mxu0
        %v3454 = vadd.f32 %v3141, %v3453
        %v3455 = vpop.f32.mrb[0].mxu0
        %v3456 = vpop.f32.mrb[0].mxu0
        %v3457 = vadd.f32 %v3141, %v3456
        %v3458 = vpop.f32.mrb[0].mxu0
        %3459 = vdwg.mxu0
        %3460 = vmatprep.subr.bf16.mxu0 0
        %3461 = vmatpush1.bf16.msra.mxu0 %v3231
        %3462 = vmatprep.subr.bf16.mxu0 0
        %3463 = vmatpush1.bf16.msra.mxu0 %v3232
        %3464 = vmatprep.subr.bf16.mxu0 0
        %3465 = vmatpush1.bf16.msra.mxu0 0
        %3466 = vmatprep.subr.bf16.mxu0 0
        %3467 = vmatpush1.bf16.msra.mxu0 0
        %3468 = vmatprep.subr.bf16.mxu0 0
        %3469 = vmatpush1.bf16.msra.mxu0 0
        %3470 = vmatprep.subr.bf16.mxu0 0
        %3471 = vmatpush1.bf16.msra.mxu0 0
        %3472 = vmatprep.subr.bf16.mxu0 0
        %3473 = vmatpush1.bf16.msra.mxu0 0
        %3474 = vmatprep.subr.bf16.mxu0 0
        %3475 = vmatpush1.bf16.msra.mxu0 0
        %3476 = vmatprep.subr.bf16.mxu0 0
        %3477 = vmatpush1.bf16.msra.mxu0 0
        %3478 = vmatprep.subr.bf16.mxu0 0
        %3479 = vmatpush1.bf16.msra.mxu0 0
        %3480 = vmatprep.subr.bf16.mxu0 0
        %3481 = vmatpush1.bf16.msra.mxu0 0
        %3482 = vmatprep.subr.bf16.mxu0 0
        %3483 = vmatpush1.bf16.msra.mxu0 0
        %3484 = vmatprep.subr.bf16.mxu0 0
        %3485 = vmatpush1.bf16.msra.mxu0 0
        %3486 = vmatprep.subr.bf16.mxu0 0
        %3487 = vmatpush1.bf16.msra.mxu0 0
        %3488 = vmatprep.subr.bf16.mxu0 0
        %3489 = vmatpush1.bf16.msra.mxu0 0
        %3490 = vmatprep.subr.bf16.mxu0 0
        %3491 = vmatpush1.bf16.msra.mxu0 0
        %3492 = vmatprep.mubr.bf16.mxu0 0
        %3493 = vmatmul.mubr.bf16.gmra.mrb[0].mxu0 %v3252
        %v3494 = vpop.f32.mrb[0].mxu0
        %v3495 = vadd.f32 %v3334, %v3494
        %v3496 = vpop.f32.mrb[0].mxu0
        %v3497 = vpop.f32.mrb[0].mxu0
        %v3498 = vadd.f32 %v3337, %v3497
        %v3499 = vpop.f32.mrb[0].mxu0
        %3500 = vmatprep.mubr.bf16.mxu0 0
        %3501 = vmatmul.mubr.bf16.gmra.mrb[0].mxu0 %v3255
        %v3502 = vpop.f32.mrb[0].mxu0
        %v3503 = vadd.f32 %v3342, %v3502
        %v3504 = vpop.f32.mrb[0].mxu0
        %v3505 = vpop.f32.mrb[0].mxu0
        %v3506 = vadd.f32 %v3345, %v3505
        %v3507 = vpop.f32.mrb[0].mxu0
        %3508 = vmatprep.mubr.bf16.mxu0 0
        %3509 = vmatmul.mubr.bf16.gmra.mrb[0].mxu0 %v3258
        %v3510 = vpop.f32.mrb[0].mxu0
        %v3511 = vadd.f32 %v3350, %v3510
        %v3512 = vpop.f32.mrb[0].mxu0
        %v3513 = vpop.f32.mrb[0].mxu0
        %v3514 = vadd.f32 %v3353, %v3513
        %v3515 = vpop.f32.mrb[0].mxu0
        %3516 = vmatprep.mubr.bf16.mxu0 0
        %3517 = vmatmul.mubr.bf16.gmra.mrb[0].mxu0 %v3261
        %v3518 = vpop.f32.mrb[0].mxu0
        %v3519 = vadd.f32 %v3358, %v3518
        %v3520 = vpop.f32.mrb[0].mxu0
        %v3521 = vpop.f32.mrb[0].mxu0
        %v3522 = vadd.f32 %v3361, %v3521
        %v3523 = vpop.f32.mrb[0].mxu0
        %3524 = vmatprep.mubr.bf16.mxu0 0
        %3525 = vmatmul.mubr.bf16.gmra.mrb[0].mxu0 %v3264
        %v3526 = vpop.f32.mrb[0].mxu0
        %v3527 = vadd.f32 %v3366, %v3526
        %v3528 = vpop.f32.mrb[0].mxu0
        %v3529 = vpop.f32.mrb[0].mxu0
        %v3530 = vadd.f32 %v3369, %v3529
        %v3531 = vpop.f32.mrb[0].mxu0
        %3532 = vmatprep.mubr.bf16.mxu0 0
        %3533 = vmatmul.mubr.bf16.gmra.mrb[0].mxu0 %v3267
        %v3534 = vpop.f32.mrb[0].mxu0
        %v3535 = vadd.f32 %v3374, %v3534
        %v3536 = vpop.f32.mrb[0].mxu0
        %v3537 = vpop.f32.mrb[0].mxu0
        %v3538 = vadd.f32 %v3377, %v3537
        %v3539 = vpop.f32.mrb[0].mxu0
        %3540 = vmatprep.mubr.bf16.mxu0 0
        %3541 = vmatmul.mubr.bf16.gmra.mrb[0].mxu0 %v3270
        %v3542 = vpop.f32.mrb[0].mxu0
        %v3543 = vadd.f32 %v3382, %v3542
        %v3544 = vpop.f32.mrb[0].mxu0
        %v3545 = vpop.f32.mrb[0].mxu0
        %v3546 = vadd.f32 %v3385, %v3545
        %v3547 = vpop.f32.mrb[0].mxu0
        %3548 = vmatprep.mubr.bf16.mxu0 0
        %3549 = vmatmul.mubr.bf16.gmra.mrb[0].mxu0 %v3273
        %v3550 = vpop.f32.mrb[0].mxu0
        %v3551 = vadd.f32 %v3390, %v3550
        %v3552 = vpop.f32.mrb[0].mxu0
        %v3553 = vpop.f32.mrb[0].mxu0
        %v3554 = vadd.f32 %v3393, %v3553
        %v3555 = vpop.f32.mrb[0].mxu0
        %3556 = vmatprep.mubr.bf16.mxu0 0
        %3557 = vmatmul.mubr.bf16.gmra.mrb[0].mxu0 %v3276
        %v3558 = vpop.f32.mrb[0].mxu0
        %v3559 = vadd.f32 %v3398, %v3558
        %v3560 = vpop.f32.mrb[0].mxu0
        %v3561 = vpop.f32.mrb[0].mxu0
        %v3562 = vadd.f32 %v3401, %v3561
        %v3563 = vpop.f32.mrb[0].mxu0
        %3564 = vmatprep.mubr.bf16.mxu0 0
        %3565 = vmatmul.mubr.bf16.gmra.mrb[0].mxu0 %v3279
        %v3566 = vpop.f32.mrb[0].mxu0
        %v3567 = vadd.f32 %v3406, %v3566
        %v3568 = vpop.f32.mrb[0].mxu0
        %v3569 = vpop.f32.mrb[0].mxu0
        %v3570 = vadd.f32 %v3409, %v3569
        %v3571 = vpop.f32.mrb[0].mxu0
        %3572 = vmatprep.mubr.bf16.mxu0 0
        %3573 = vmatmul.mubr.bf16.gmra.mrb[0].mxu0 %v3282
        %v3574 = vpop.f32.mrb[0].mxu0
        %v3575 = vadd.f32 %v3414, %v3574
        %v3576 = vpop.f32.mrb[0].mxu0
        %v3577 = vpop.f32.mrb[0].mxu0
        %v3578 = vadd.f32 %v3417, %v3577
        %v3579 = vpop.f32.mrb[0].mxu0
        %3580 = vmatprep.mubr.bf16.mxu0 0
        %3581 = vmatmul.mubr.bf16.gmra.mrb[0].mxu0 %v3285
        %v3582 = vpop.f32.mrb[0].mxu0
        %v3583 = vadd.f32 %v3422, %v3582
        %v3584 = vpop.f32.mrb[0].mxu0
        %v3585 = vpop.f32.mrb[0].mxu0
        %v3586 = vadd.f32 %v3425, %v3585
        %v3587 = vpop.f32.mrb[0].mxu0
        %3588 = vmatprep.mubr.bf16.mxu0 0
        %3589 = vmatmul.mubr.bf16.gmra.mrb[0].mxu0 %v3288
        %v3590 = vpop.f32.mrb[0].mxu0
        %v3591 = vadd.f32 %v3430, %v3590
        %v3592 = vpop.f32.mrb[0].mxu0
        %v3593 = vpop.f32.mrb[0].mxu0
        %v3594 = vadd.f32 %v3433, %v3593
        %v3595 = vpop.f32.mrb[0].mxu0
        %3596 = vmatprep.mubr.bf16.mxu0 0
        %3597 = vmatmul.mubr.bf16.gmra.mrb[0].mxu0 %v3291
        %v3598 = vpop.f32.mrb[0].mxu0
        %v3599 = vadd.f32 %v3438, %v3598
        %v3600 = vpop.f32.mrb[0].mxu0
        %v3601 = vpop.f32.mrb[0].mxu0
        %v3602 = vadd.f32 %v3441, %v3601
        %v3603 = vpop.f32.mrb[0].mxu0
        %3604 = vmatprep.mubr.bf16.mxu0 0
        %3605 = vmatmul.mubr.bf16.gmra.mrb[0].mxu0 %v3294
        %v3606 = vpop.f32.mrb[0].mxu0
        %v3607 = vadd.f32 %v3446, %v3606
        %v3608 = vpop.f32.mrb[0].mxu0
        %v3609 = vpop.f32.mrb[0].mxu0
        %v3610 = vadd.f32 %v3449, %v3609
        %v3611 = vpop.f32.mrb[0].mxu0
        %3612 = vmatprep.mubr.bf16.mxu0 0
        %3613 = vmatmul.mubr.bf16.gmra.mrb[0].mxu0 %v3297
        %v3614 = vpop.f32.mrb[0].mxu0
        %v3615 = vadd.f32 %v3454, %v3614
        %v3616 = vpop.f32.mrb[0].mxu0
        %v3617 = vpop.f32.mrb[0].mxu0
        %v3618 = vadd.f32 %v3457, %v3617
        %v3619 = vpop.f32.mrb[0].mxu0
        %3620 = vdwg.mxu0
        %v3621 = vmax.f32 %v3495, 0.0
        %v3622 = vmax.f32 %v3498, 0.0
        %v3623 = vmax.f32 %v3503, 0.0
        %v3624 = vmax.f32 %v3506, 0.0
        %v3625 = vmax.f32 %v3511, 0.0
        %v3626 = vmax.f32 %v3514, 0.0
        %v3627 = vmax.f32 %v3519, 0.0
        %v3628 = vmax.f32 %v3522, 0.0
        %v3629 = vmax.f32 %v3527, 0.0
        %v3630 = vmax.f32 %v3530, 0.0
        %v3631 = vmax.f32 %v3535, 0.0
        %v3632 = vmax.f32 %v3538, 0.0
        %v3633 = vmax.f32 %v3543, 0.0
        %v3634 = vmax.f32 %v3546, 0.0
        %v3635 = vmax.f32 %v3551, 0.0
        %v3636 = vmax.f32 %v3554, 0.0
        %v3637 = vmax.f32 %v3559, 0.0
        %v3638 = vmax.f32 %v3562, 0.0
        %v3639 = vmax.f32 %v3567, 0.0
        %v3640 = vmax.f32 %v3570, 0.0
        %v3641 = vmax.f32 %v3575, 0.0
        %v3642 = vmax.f32 %v3578, 0.0
        %v3643 = vmax.f32 %v3583, 0.0
        %v3644 = vmax.f32 %v3586, 0.0
        %v3645 = vmax.f32 %v3591, 0.0
        %v3646 = vmax.f32 %v3594, 0.0
        %v3647 = vmax.f32 %v3599, 0.0
        %v3648 = vmax.f32 %v3602, 0.0
        %v3649 = vmax.f32 %v3607, 0.0
        %v3650 = vmax.f32 %v3610, 0.0
        %v3651 = vmax.f32 %v3615, 0.0
        %v3652 = vmax.f32 %v3618, 0.0
        %v3653 = vld [vmem:[%s3] sm:$0x1]
        %v3654 = vmin.f32 %v3495, 0.0
        %v3655 = vmin.f32 %v3498, 0.0
        %v3656 = vmin.f32 %v3503, 0.0
        %v3657 = vmin.f32 %v3506, 0.0
        %v3658 = vmin.f32 %v3511, 0.0
        %v3659 = vmin.f32 %v3514, 0.0
        %v3660 = vmin.f32 %v3519, 0.0
        %v3661 = vmin.f32 %v3522, 0.0
        %v3662 = vmin.f32 %v3527, 0.0
        %v3663 = vmin.f32 %v3530, 0.0
        %v3664 = vmin.f32 %v3535, 0.0
        %v3665 = vmin.f32 %v3538, 0.0
        %v3666 = vmin.f32 %v3543, 0.0
        %v3667 = vmin.f32 %v3546, 0.0
        %v3668 = vmin.f32 %v3551, 0.0
        %v3669 = vmin.f32 %v3554, 0.0
        %v3670 = vmin.f32 %v3559, 0.0
        %v3671 = vmin.f32 %v3562, 0.0
        %v3672 = vmin.f32 %v3567, 0.0
        %v3673 = vmin.f32 %v3570, 0.0
        %v3674 = vmin.f32 %v3575, 0.0
        %v3675 = vmin.f32 %v3578, 0.0
        %v3676 = vmin.f32 %v3583, 0.0
        %v3677 = vmin.f32 %v3586, 0.0
        %v3678 = vmin.f32 %v3591, 0.0
        %v3679 = vmin.f32 %v3594, 0.0
        %v3680 = vmin.f32 %v3599, 0.0
        %v3681 = vmin.f32 %v3602, 0.0
        %v3682 = vmin.f32 %v3607, 0.0
        %v3683 = vmin.f32 %v3610, 0.0
        %v3684 = vmin.f32 %v3615, 0.0
        %v3685 = vmin.f32 %v3618, 0.0
        %v3687 = vlaneseq
        %v3688 = vshrl.u32 %v3687, 7
        %v3689 = vsub.s32 0, %v3688
        %v3690 = vrot.slane %v3653, %v3689
        %v3692 = vmul.f32 %v3690, %v3654
        %v3693 = vmul.f32 %v3690, %v3655
        %v3694 = vmul.f32 %v3690, %v3656
        %v3695 = vmul.f32 %v3690, %v3657
        %v3696 = vmul.f32 %v3690, %v3658
        %v3697 = vmul.f32 %v3690, %v3659
        %v3698 = vmul.f32 %v3690, %v3660
        %v3699 = vmul.f32 %v3690, %v3661
        %v3700 = vmul.f32 %v3690, %v3662
        %v3701 = vmul.f32 %v3690, %v3663
        %v3702 = vmul.f32 %v3690, %v3664
        %v3703 = vmul.f32 %v3690, %v3665
        %v3704 = vmul.f32 %v3690, %v3666
        %v3705 = vmul.f32 %v3690, %v3667
        %v3706 = vmul.f32 %v3690, %v3668
        %v3707 = vmul.f32 %v3690, %v3669
        %v3708 = vmul.f32 %v3690, %v3670
        %v3709 = vmul.f32 %v3690, %v3671
        %v3710 = vmul.f32 %v3690, %v3672
        %v3711 = vmul.f32 %v3690, %v3673
        %v3712 = vmul.f32 %v3690, %v3674
        %v3713 = vmul.f32 %v3690, %v3675
        %v3714 = vmul.f32 %v3690, %v3676
        %v3715 = vmul.f32 %v3690, %v3677
        %v3716 = vmul.f32 %v3690, %v3678
        %v3717 = vmul.f32 %v3690, %v3679
        %v3718 = vmul.f32 %v3690, %v3680
        %v3719 = vmul.f32 %v3690, %v3681
        %v3720 = vmul.f32 %v3690, %v3682
        %v3721 = vmul.f32 %v3690, %v3683
        %v3722 = vmul.f32 %v3690, %v3684
        %v3723 = vmul.f32 %v3690, %v3685
        %v3724 = vadd.f32 %v3621, %v3692
        %v3725 = vadd.f32 %v3622, %v3693
        %v3726 = vadd.f32 %v3623, %v3694
        %v3727 = vadd.f32 %v3624, %v3695
        %v3728 = vadd.f32 %v3625, %v3696
        %v3729 = vadd.f32 %v3626, %v3697
        %v3730 = vadd.f32 %v3627, %v3698
        %v3731 = vadd.f32 %v3628, %v3699
        %v3732 = vadd.f32 %v3629, %v3700
        %v3733 = vadd.f32 %v3630, %v3701
        %v3734 = vadd.f32 %v3631, %v3702
        %v3735 = vadd.f32 %v3632, %v3703
        %v3736 = vadd.f32 %v3633, %v3704
        %v3737 = vadd.f32 %v3634, %v3705
        %v3738 = vadd.f32 %v3635, %v3706
        %v3739 = vadd.f32 %v3636, %v3707
        %v3740 = vadd.f32 %v3637, %v3708
        %v3741 = vadd.f32 %v3638, %v3709
        %v3742 = vadd.f32 %v3639, %v3710
        %v3743 = vadd.f32 %v3640, %v3711
        %v3744 = vadd.f32 %v3641, %v3712
        %v3745 = vadd.f32 %v3642, %v3713
        %v3746 = vadd.f32 %v3643, %v3714
        %v3747 = vadd.f32 %v3644, %v3715
        %v3748 = vadd.f32 %v3645, %v3716
        %v3749 = vadd.f32 %v3646, %v3717
        %v3750 = vadd.f32 %v3647, %v3718
        %v3751 = vadd.f32 %v3648, %v3719
        %v3752 = vadd.f32 %v3649, %v3720
        %v3753 = vadd.f32 %v3650, %v3721
        %v3754 = vadd.f32 %v3651, %v3722
        %v3755 = vadd.f32 %v3652, %v3723
        %vm3756 = vcmask 519168
        %3757 = vst.msk [vmem:[#allocation2] sm:$0xf] %vm3756, 0
        %3758 = vst.msk [vmem:[#allocation2 + $0x4] sm:$0xf] %vm3756, 0
        %vm3759 = vcmask 516096
        %3760 = vst.msk [vmem:[#allocation2 + $0x8] sm:$0x1] %vm3759, 0
        %3761 = vst.msk [vmem:[#allocation2 + $0xc] sm:$0xf] %vm3756, 0
        %3762 = vst.msk [vmem:[#allocation2 + $0x10] sm:$0xf] %vm3756, 0
        %3763 = vst.msk [vmem:[#allocation2 + $0x14] sm:$0x1] %vm3759, 0
        %3764 = vst.msk [vmem:[#allocation2 + $0x18] sm:$0xf] %vm3756, 0
        %3765 = vst.msk [vmem:[#allocation2 + $0x1c] sm:$0xf] %vm3756, 0
        %3766 = vst.msk [vmem:[#allocation2 + $0x20] sm:$0x1] %vm3759, 0
        %3767 = vst.msk [vmem:[#allocation2 + $0x24] sm:$0xf] %vm3756, 0
        %3768 = vst.msk [vmem:[#allocation2 + $0x28] sm:$0xf] %vm3756, 0
        %3769 = vst.msk [vmem:[#allocation2 + $0x2c] sm:$0x1] %vm3759, 0
        %3770 = vst.msk [vmem:[#allocation2 + $0x30] sm:$0xf] %vm3756, 0
        %3771 = vst.msk [vmem:[#allocation2 + $0x34] sm:$0xf] %vm3756, 0
        %3772 = vst.msk [vmem:[#allocation2 + $0x38] sm:$0x1] %vm3759, 0
        %3773 = vst.msk [vmem:[#allocation2 + $0x3c] sm:$0xf] %vm3756, 0
        %3774 = vst.msk [vmem:[#allocation2 + $0x40] sm:$0xf] %vm3756, 0
        %3775 = vst.msk [vmem:[#allocation2 + $0x44] sm:$0x1] %vm3759, 0
        %3776 = vst.msk [vmem:[#allocation2 + $0x48] sm:$0xf] %vm3756, 0
        %3777 = vst.msk [vmem:[#allocation2 + $0x4c] sm:$0xf] %vm3756, 0
        %3778 = vst.msk [vmem:[#allocation2 + $0x50] sm:$0x1] %vm3759, 0
        %3779 = vst.msk [vmem:[#allocation2 + $0x54] sm:$0xf] %vm3756, 0
        %3780 = vst.msk [vmem:[#allocation2 + $0x58] sm:$0xf] %vm3756, 0
        %3781 = vst.msk [vmem:[#allocation2 + $0x5c] sm:$0x1] %vm3759, 0
        %3782 = vst.msk [vmem:[#allocation2 + $0x60] sm:$0xf] %vm3756, 0
        %3783 = vst.msk [vmem:[#allocation2 + $0x64] sm:$0xf] %vm3756, 0
        %3784 = vst.msk [vmem:[#allocation2 + $0x68] sm:$0x1] %vm3759, 0
        %3785 = vst.msk [vmem:[#allocation2 + $0x6c] sm:$0xf] %vm3756, 0
        %3786 = vst.msk [vmem:[#allocation2 + $0x70] sm:$0xf] %vm3756, 0
        %3787 = vst.msk [vmem:[#allocation2 + $0x74] sm:$0x1] %vm3759, 0
        %3788 = vst.msk [vmem:[#allocation2 + $0x78] sm:$0xf] %vm3756, 0
        %3789 = vst.msk [vmem:[#allocation2 + $0x7c] sm:$0xf] %vm3756, 0
        %3790 = vst.msk [vmem:[#allocation2 + $0x80] sm:$0x1] %vm3759, 0
        %3791 = vst.msk [vmem:[#allocation2 + $0x84] sm:$0xf] %vm3756, 0
        %3792 = vst.msk [vmem:[#allocation2 + $0x88] sm:$0xf] %vm3756, 0
        %3793 = vst.msk [vmem:[#allocation2 + $0x8c] sm:$0x1] %vm3759, 0
        %3794 = vst.msk [vmem:[#allocation2 + $0x90] sm:$0xf] %vm3756, 0
        %3795 = vst.msk [vmem:[#allocation2 + $0x94] sm:$0xf] %vm3756, 0
        %3796 = vst.msk [vmem:[#allocation2 + $0x98] sm:$0x1] %vm3759, 0
        %3797 = vst.msk [vmem:[#allocation2 + $0x9c] sm:$0xf] %vm3756, 0
        %3798 = vst.msk [vmem:[#allocation2 + $0xa0] sm:$0xf] %vm3756, 0
        %3799 = vst.msk [vmem:[#allocation2 + $0xa4] sm:$0x1] %vm3759, 0
        %3800 = vst.msk [vmem:[#allocation2 + $0xa8] sm:$0xf] %vm3756, 0
        %3801 = vst.msk [vmem:[#allocation2 + $0xac] sm:$0xf] %vm3756, 0
        %3802 = vst.msk [vmem:[#allocation2 + $0xb0] sm:$0x1] %vm3759, 0
        %3803 = vst.msk [vmem:[#allocation2 + $0xb4] sm:$0xf] %vm3756, 0
        %3804 = vst.msk [vmem:[#allocation2 + $0xb8] sm:$0xf] %vm3756, 0
        %3805 = vst.msk [vmem:[#allocation2 + $0xbc] sm:$0x1] %vm3759, 0
        %3806 = vst.msk [vmem:[#allocation2 + $0xc0] sm:$0xf] %vm3756, 0
        %3807 = vst.msk [vmem:[#allocation2 + $0xc4] sm:$0xf] %vm3756, 0
        %3808 = vst.msk [vmem:[#allocation2 + $0xc8] sm:$0x1] %vm3759, 0
        %3809 = vst.msk [vmem:[#allocation2 + $0xcc] sm:$0xf] %vm3756, 0
        %3810 = vst.msk [vmem:[#allocation2 + $0xd0] sm:$0xf] %vm3756, 0
        %3811 = vst.msk [vmem:[#allocation2 + $0xd4] sm:$0x1] %vm3759, 0
        %v3812 = vpack.c.bf16 %v3725, %v3724
        %v3813 = vpack.c.bf16 %v3727, %v3726
        %v3814 = vpack.c.bf16 %v3729, %v3728
        %v3815 = vpack.c.bf16 %v3731, %v3730
        %v3816 = vpack.c.bf16 %v3733, %v3732
        %v3817 = vpack.c.bf16 %v3735, %v3734
        %v3818 = vpack.c.bf16 %v3737, %v3736
        %v3819 = vpack.c.bf16 %v3739, %v3738
        %v3820 = vpack.c.bf16 %v3741, %v3740
        %v3821 = vpack.c.bf16 %v3743, %v3742
        %v3822 = vpack.c.bf16 %v3745, %v3744
        %v3823 = vpack.c.bf16 %v3747, %v3746
        %v3824 = vpack.c.bf16 %v3749, %v3748
        %v3825 = vpack.c.bf16 %v3751, %v3750
        %v3826 = vpack.c.bf16 %v3753, %v3752
        %v3827 = vpack.c.bf16 %v3755, %v3754
        %v3844 = vunpack.c.l.b16 %v3812
        %v3845 = vunpack.c.h.b16 %v3812
        %v3846 = vunpack.c.l.b16 %v3813
        %v3847 = vunpack.c.h.b16 %v3813
        %v3848 = vunpack.c.l.b16 %v3814
        %v3849 = vunpack.c.h.b16 %v3814
        %v3850 = vunpack.c.l.b16 %v3815
        %v3851 = vunpack.c.h.b16 %v3815
        %v3852 = vunpack.c.l.b16 %v3816
        %v3853 = vunpack.c.h.b16 %v3816
        %v3854 = vunpack.c.l.b16 %v3817
        %v3855 = vunpack.c.h.b16 %v3817
        %v3856 = vunpack.c.l.b16 %v3818
        %v3857 = vunpack.c.h.b16 %v3818
        %v3858 = vunpack.c.l.b16 %v3819
        %v3859 = vunpack.c.h.b16 %v3819
        %v3860 = vunpack.c.l.b16 %v3820
        %v3861 = vunpack.c.h.b16 %v3820
        %v3862 = vunpack.c.l.b16 %v3821
        %v3863 = vunpack.c.h.b16 %v3821
        %v3864 = vunpack.c.l.b16 %v3822
        %v3865 = vunpack.c.h.b16 %v3822
        %v3866 = vunpack.c.l.b16 %v3823
        %v3867 = vunpack.c.h.b16 %v3823
        %v3868 = vunpack.c.l.b16 %v3824
        %v3869 = vunpack.c.h.b16 %v3824
        %v3870 = vunpack.c.l.b16 %v3825
        %v3871 = vunpack.c.h.b16 %v3825
        %v3872 = vunpack.c.l.b16 %v3826
        %v3873 = vunpack.c.h.b16 %v3826
        %v3874 = vunpack.c.l.b16 %v3827
        %v3875 = vunpack.c.h.b16 %v3827
        %v3876 = vpack.c.b16 %v3844, %v3844
        %v3877 = vpack.c.b16 %v3845, %v3845
        %v3878 = vpack.c.b16 %v3846, %v3846
        %v3879 = vpack.c.b16 %v3847, %v3847
        %v3880 = vpack.c.b16 %v3848, %v3848
        %v3881 = vpack.c.b16 %v3849, %v3849
        %v3882 = vpack.c.b16 %v3850, %v3850
        %v3883 = vpack.c.b16 %v3851, %v3851
        %v3884 = vpack.c.b16 %v3852, %v3852
        %v3885 = vpack.c.b16 %v3853, %v3853
        %v3886 = vpack.c.b16 %v3854, %v3854
        %v3887 = vpack.c.b16 %v3855, %v3855
        %v3888 = vpack.c.b16 %v3856, %v3856
        %v3889 = vpack.c.b16 %v3857, %v3857
        %v3890 = vpack.c.b16 %v3858, %v3858
        %v3891 = vpack.c.b16 %v3859, %v3859
        %v3892 = vpack.c.b16 %v3860, %v3860
        %v3893 = vpack.c.b16 %v3861, %v3861
        %v3894 = vpack.c.b16 %v3862, %v3862
        %v3895 = vpack.c.b16 %v3863, %v3863
        %v3896 = vpack.c.b16 %v3864, %v3864
        %v3897 = vpack.c.b16 %v3865, %v3865
        %v3898 = vpack.c.b16 %v3866, %v3866
        %v3899 = vpack.c.b16 %v3867, %v3867
        %v3900 = vpack.c.b16 %v3868, %v3868
        %v3901 = vpack.c.b16 %v3869, %v3869
        %v3902 = vpack.c.b16 %v3870, %v3870
        %v3903 = vpack.c.b16 %v3871, %v3871
        %v3904 = vpack.c.b16 %v3872, %v3872
        %v3905 = vpack.c.b16 %v3873, %v3873
        %v3906 = vpack.c.b16 %v3874, %v3874
        %v3907 = vpack.c.b16 %v3875, %v3875
        %vm3908 = vsmask.f32 256
        %vm3909 = vsmask.f32 4368
        %vm3910 = vmor %vm3908, %vm3909
        %v3912 = vshrl.u32 %v3876, 16
        %v3914 = vrot.slane %v3912, 7
        %v3915 = vshll.u32 %v3876, 16
        %v3917 = vor.u32 %v3914, %v3915
        %v3918 = vrot.slane %v3914, 4
        %v3920 = vshrl.u32 %v3877, 16
        %v3922 = vrot.slane %v3920, 7
        %v3923 = vshll.u32 %v3877, 16
        %v3925 = vor.u32 %v3922, %v3923
        %v3926 = vsel %vm3910, %v3918, %v3925
        %v3927 = vrot.slane %v3922, 4
        %v3929 = vshrl.u32 %v3878, 16
        %v3931 = vrot.slane %v3929, 7
        %v3932 = vshll.u32 %v3878, 16
        %v3934 = vor.u32 %v3931, %v3932
        %v3935 = vrot.slane %v3931, 4
        %v3937 = vshrl.u32 %v3879, 16
        %v3939 = vrot.slane %v3937, 7
        %v3940 = vshll.u32 %v3879, 16
        %v3942 = vor.u32 %v3939, %v3940
        %v3943 = vsel %vm3910, %v3935, %v3942
        %v3944 = vrot.slane %v3939, 4
        %v3946 = vshrl.u32 %v3880, 16
        %v3948 = vrot.slane %v3946, 7
        %v3949 = vshll.u32 %v3880, 16
        %v3951 = vor.u32 %v3948, %v3949
        %v3952 = vrot.slane %v3948, 4
        %v3954 = vshrl.u32 %v3881, 16
        %v3956 = vrot.slane %v3954, 7
        %v3957 = vshll.u32 %v3881, 16
        %v3959 = vor.u32 %v3956, %v3957
        %v3960 = vsel %vm3910, %v3952, %v3959
        %v3961 = vrot.slane %v3956, 4
        %v3963 = vshrl.u32 %v3882, 16
        %v3965 = vrot.slane %v3963, 7
        %v3966 = vshll.u32 %v3882, 16
        %v3968 = vor.u32 %v3965, %v3966
        %v3969 = vrot.slane %v3965, 4
        %v3971 = vshrl.u32 %v3883, 16
        %v3973 = vrot.slane %v3971, 7
        %v3974 = vshll.u32 %v3883, 16
        %v3976 = vor.u32 %v3973, %v3974
        %v3977 = vsel %vm3910, %v3969, %v3976
        %v3978 = vrot.slane %v3973, 4
        %v3980 = vshrl.u32 %v3884, 16
        %v3982 = vrot.slane %v3980, 7
        %v3983 = vshll.u32 %v3884, 16
        %v3985 = vor.u32 %v3982, %v3983
        %v3986 = vrot.slane %v3982, 4
        %v3988 = vshrl.u32 %v3885, 16
        %v3990 = vrot.slane %v3988, 7
        %v3991 = vshll.u32 %v3885, 16
        %v3993 = vor.u32 %v3990, %v3991
        %v3994 = vsel %vm3910, %v3986, %v3993
        %v3995 = vrot.slane %v3990, 4
        %v3997 = vshrl.u32 %v3886, 16
        %v3999 = vrot.slane %v3997, 7
        %v4000 = vshll.u32 %v3886, 16
        %v4002 = vor.u32 %v3999, %v4000
        %v4003 = vrot.slane %v3999, 4
        %v4005 = vshrl.u32 %v3887, 16
        %v4007 = vrot.slane %v4005, 7
        %v4008 = vshll.u32 %v3887, 16
        %v4010 = vor.u32 %v4007, %v4008
        %v4011 = vsel %vm3910, %v4003, %v4010
        %v4012 = vrot.slane %v4007, 4
        %v4014 = vshrl.u32 %v3888, 16
        %v4016 = vrot.slane %v4014, 7
        %v4017 = vshll.u32 %v3888, 16
        %v4019 = vor.u32 %v4016, %v4017
        %v4020 = vrot.slane %v4016, 4
        %v4022 = vshrl.u32 %v3889, 16
        %v4024 = vrot.slane %v4022, 7
        %v4025 = vshll.u32 %v3889, 16
        %v4027 = vor.u32 %v4024, %v4025
        %v4028 = vsel %vm3910, %v4020, %v4027
        %v4029 = vrot.slane %v4024, 4
        %v4031 = vshrl.u32 %v3890, 16
        %v4033 = vrot.slane %v4031, 7
        %v4034 = vshll.u32 %v3890, 16
        %v4036 = vor.u32 %v4033, %v4034
        %v4037 = vrot.slane %v4033, 4
        %v4039 = vshrl.u32 %v3891, 16
        %v4041 = vrot.slane %v4039, 7
        %v4042 = vshll.u32 %v3891, 16
        %v4044 = vor.u32 %v4041, %v4042
        %v4045 = vsel %vm3910, %v4037, %v4044
        %v4046 = vrot.slane %v4041, 4
        %v4048 = vshrl.u32 %v3892, 16
        %v4050 = vrot.slane %v4048, 7
        %v4051 = vshll.u32 %v3892, 16
        %v4053 = vor.u32 %v4050, %v4051
        %v4054 = vrot.slane %v4050, 4
        %v4056 = vshrl.u32 %v3893, 16
        %v4058 = vrot.slane %v4056, 7
        %v4059 = vshll.u32 %v3893, 16
        %v4061 = vor.u32 %v4058, %v4059
        %v4062 = vsel %vm3910, %v4054, %v4061
        %v4063 = vrot.slane %v4058, 4
        %v4065 = vshrl.u32 %v3894, 16
        %v4067 = vrot.slane %v4065, 7
        %v4068 = vshll.u32 %v3894, 16
        %v4070 = vor.u32 %v4067, %v4068
        %v4071 = vrot.slane %v4067, 4
        %v4073 = vshrl.u32 %v3895, 16
        %v4075 = vrot.slane %v4073, 7
        %v4076 = vshll.u32 %v3895, 16
        %v4078 = vor.u32 %v4075, %v4076
        %v4079 = vsel %vm3910, %v4071, %v4078
        %v4080 = vrot.slane %v4075, 4
        %v4082 = vshrl.u32 %v3896, 16
        %v4084 = vrot.slane %v4082, 7
        %v4085 = vshll.u32 %v3896, 16
        %v4087 = vor.u32 %v4084, %v4085
        %v4088 = vrot.slane %v4084, 4
        %v4090 = vshrl.u32 %v3897, 16
        %v4092 = vrot.slane %v4090, 7
        %v4093 = vshll.u32 %v3897, 16
        %v4095 = vor.u32 %v4092, %v4093
        %v4096 = vsel %vm3910, %v4088, %v4095
        %v4097 = vrot.slane %v4092, 4
        %v4099 = vshrl.u32 %v3898, 16
        %v4101 = vrot.slane %v4099, 7
        %v4102 = vshll.u32 %v3898, 16
        %v4104 = vor.u32 %v4101, %v4102
        %v4105 = vrot.slane %v4101, 4
        %v4107 = vshrl.u32 %v3899, 16
        %v4109 = vrot.slane %v4107, 7
        %v4110 = vshll.u32 %v3899, 16
        %v4112 = vor.u32 %v4109, %v4110
        %v4113 = vsel %vm3910, %v4105, %v4112
        %v4114 = vrot.slane %v4109, 4
        %v4116 = vshrl.u32 %v3900, 16
        %v4118 = vrot.slane %v4116, 7
        %v4119 = vshll.u32 %v3900, 16
        %v4121 = vor.u32 %v4118, %v4119
        %v4122 = vrot.slane %v4118, 4
        %v4124 = vshrl.u32 %v3901, 16
        %v4126 = vrot.slane %v4124, 7
        %v4127 = vshll.u32 %v3901, 16
        %v4129 = vor.u32 %v4126, %v4127
        %v4130 = vsel %vm3910, %v4122, %v4129
        %v4131 = vrot.slane %v4126, 4
        %v4133 = vshrl.u32 %v3902, 16
        %v4135 = vrot.slane %v4133, 7
        %v4136 = vshll.u32 %v3902, 16
        %v4138 = vor.u32 %v4135, %v4136
        %v4139 = vrot.slane %v4135, 4
        %v4141 = vshrl.u32 %v3903, 16
        %v4143 = vrot.slane %v4141, 7
        %v4144 = vshll.u32 %v3903, 16
        %v4146 = vor.u32 %v4143, %v4144
        %v4147 = vsel %vm3910, %v4139, %v4146
        %v4148 = vrot.slane %v4143, 4
        %v4150 = vshrl.u32 %v3904, 16
        %v4152 = vrot.slane %v4150, 7
        %v4153 = vshll.u32 %v3904, 16
        %v4155 = vor.u32 %v4152, %v4153
        %v4156 = vrot.slane %v4152, 4
        %v4158 = vshrl.u32 %v3905, 16
        %v4160 = vrot.slane %v4158, 7
        %v4161 = vshll.u32 %v3905, 16
        %v4163 = vor.u32 %v4160, %v4161
        %v4164 = vsel %vm3910, %v4156, %v4163
        %v4165 = vrot.slane %v4160, 4
        %v4167 = vshrl.u32 %v3906, 16
        %v4169 = vrot.slane %v4167, 7
        %v4170 = vshll.u32 %v3906, 16
        %v4172 = vor.u32 %v4169, %v4170
        %v4173 = vrot.slane %v4169, 4
        %v4175 = vshrl.u32 %v3907, 16
        %v4177 = vrot.slane %v4175, 7
        %v4178 = vshll.u32 %v3907, 16
        %v4180 = vor.u32 %v4177, %v4178
        %v4181 = vsel %vm3910, %v4173, %v4180
        %v4182 = vrot.slane %v4177, 4
        %s4231 = scalar_lea.vmem [#allocation2], 12
        %vm4232 = vcmask 519168
        %vm4233 = vsmask.f32 7938
        %vm4234 = vmand %vm4232, %vm4233
        %v4235 = vld [vmem:[%s4231] sm:$0xf]
        %v4236 = vsel %vm4234, %v3917, %v4235
        %4237 = vst [vmem:[%s4231] sm:$0xf] %v4236
        %4238 = vst.msk [vmem:[%s4231 + $0x4] sm:$0xf] %vm3756, %v3926
        %vm4239 = vcmask 516096
        %vm4240 = vmand %vm4239, %vm3908
        %v4241 = vld [vmem:[%s4231 + $0x8] sm:$0x1]
        %v4242 = vsel %vm4240, %v3927, %v4241
        %4243 = vst [vmem:[%s4231 + $0x8] sm:$0x1] %v4242
        %v4244 = vld [vmem:[%s4231 + $0xc] sm:$0xf]
        %v4245 = vsel %vm4234, %v3934, %v4244
        %4246 = vst [vmem:[%s4231 + $0xc] sm:$0xf] %v4245
        %4247 = vst.msk [vmem:[%s4231 + $0x10] sm:$0xf] %vm3756, %v3943
        %v4248 = vld [vmem:[%s4231 + $0x14] sm:$0x1]
        %v4249 = vsel %vm4240, %v3944, %v4248
        %4250 = vst [vmem:[%s4231 + $0x14] sm:$0x1] %v4249
        %v4251 = vld [vmem:[%s4231 + $0x18] sm:$0xf]
        %v4252 = vsel %vm4234, %v3951, %v4251
        %4253 = vst [vmem:[%s4231 + $0x18] sm:$0xf] %v4252
        %4254 = vst.msk [vmem:[%s4231 + $0x1c] sm:$0xf] %vm3756, %v3960
        %v4255 = vld [vmem:[%s4231 + $0x20] sm:$0x1]
        %v4256 = vsel %vm4240, %v3961, %v4255
        %4257 = vst [vmem:[%s4231 + $0x20] sm:$0x1] %v4256
        %v4258 = vld [vmem:[%s4231 + $0x24] sm:$0xf]
        %v4259 = vsel %vm4234, %v3968, %v4258
        %4260 = vst [vmem:[%s4231 + $0x24] sm:$0xf] %v4259
        %4261 = vst.msk [vmem:[%s4231 + $0x28] sm:$0xf] %vm3756, %v3977
        %v4262 = vld [vmem:[%s4231 + $0x2c] sm:$0x1]
        %v4263 = vsel %vm4240, %v3978, %v4262
        %4264 = vst [vmem:[%s4231 + $0x2c] sm:$0x1] %v4263
        %v4265 = vld [vmem:[%s4231 + $0x30] sm:$0xf]
        %v4266 = vsel %vm4234, %v3985, %v4265
        %4267 = vst [vmem:[%s4231 + $0x30] sm:$0xf] %v4266
        %4268 = vst.msk [vmem:[%s4231 + $0x34] sm:$0xf] %vm3756, %v3994
        %v4269 = vld [vmem:[%s4231 + $0x38] sm:$0x1]
        %v4270 = vsel %vm4240, %v3995, %v4269
        %4271 = vst [vmem:[%s4231 + $0x38] sm:$0x1] %v4270
        %v4272 = vld [vmem:[%s4231 + $0x3c] sm:$0xf]
        %v4273 = vsel %vm4234, %v4002, %v4272
        %4274 = vst [vmem:[%s4231 + $0x3c] sm:$0xf] %v4273
        %4275 = vst.msk [vmem:[%s4231 + $0x40] sm:$0xf] %vm3756, %v4011
        %v4276 = vld [vmem:[%s4231 + $0x44] sm:$0x1]
        %v4277 = vsel %vm4240, %v4012, %v4276
        %4278 = vst [vmem:[%s4231 + $0x44] sm:$0x1] %v4277
        %v4279 = vld [vmem:[%s4231 + $0x48] sm:$0xf]
        %v4280 = vsel %vm4234, %v4019, %v4279
        %4281 = vst [vmem:[%s4231 + $0x48] sm:$0xf] %v4280
        %4282 = vst.msk [vmem:[%s4231 + $0x4c] sm:$0xf] %vm3756, %v4028
        %v4283 = vld [vmem:[%s4231 + $0x50] sm:$0x1]
        %v4284 = vsel %vm4240, %v4029, %v4283
        %4285 = vst [vmem:[%s4231 + $0x50] sm:$0x1] %v4284
        %v4286 = vld [vmem:[%s4231 + $0x54] sm:$0xf]
        %v4287 = vsel %vm4234, %v4036, %v4286
        %4288 = vst [vmem:[%s4231 + $0x54] sm:$0xf] %v4287
        %4289 = vst.msk [vmem:[%s4231 + $0x58] sm:$0xf] %vm3756, %v4045
        %v4290 = vld [vmem:[%s4231 + $0x5c] sm:$0x1]
        %v4291 = vsel %vm4240, %v4046, %v4290
        %4292 = vst [vmem:[%s4231 + $0x5c] sm:$0x1] %v4291
        %v4293 = vld [vmem:[%s4231 + $0x60] sm:$0xf]
        %v4294 = vsel %vm4234, %v4053, %v4293
        %4295 = vst [vmem:[%s4231 + $0x60] sm:$0xf] %v4294
        %4296 = vst.msk [vmem:[%s4231 + $0x64] sm:$0xf] %vm3756, %v4062
        %v4297 = vld [vmem:[%s4231 + $0x68] sm:$0x1]
        %v4298 = vsel %vm4240, %v4063, %v4297
        %4299 = vst [vmem:[%s4231 + $0x68] sm:$0x1] %v4298
        %v4300 = vld [vmem:[%s4231 + $0x6c] sm:$0xf]
        %v4301 = vsel %vm4234, %v4070, %v4300
        %4302 = vst [vmem:[%s4231 + $0x6c] sm:$0xf] %v4301
        %4303 = vst.msk [vmem:[%s4231 + $0x70] sm:$0xf] %vm3756, %v4079
        %v4304 = vld [vmem:[%s4231 + $0x74] sm:$0x1]
        %v4305 = vsel %vm4240, %v4080, %v4304
        %4306 = vst [vmem:[%s4231 + $0x74] sm:$0x1] %v4305
        %v4307 = vld [vmem:[%s4231 + $0x78] sm:$0xf]
        %v4308 = vsel %vm4234, %v4087, %v4307
        %4309 = vst [vmem:[%s4231 + $0x78] sm:$0xf] %v4308
        %4310 = vst.msk [vmem:[%s4231 + $0x7c] sm:$0xf] %vm3756, %v4096
        %v4311 = vld [vmem:[%s4231 + $0x80] sm:$0x1]
        %v4312 = vsel %vm4240, %v4097, %v4311
        %4313 = vst [vmem:[%s4231 + $0x80] sm:$0x1] %v4312
        %v4314 = vld [vmem:[%s4231 + $0x84] sm:$0xf]
        %v4315 = vsel %vm4234, %v4104, %v4314
        %4316 = vst [vmem:[%s4231 + $0x84] sm:$0xf] %v4315
        %4317 = vst.msk [vmem:[%s4231 + $0x88] sm:$0xf] %vm3756, %v4113
        %v4318 = vld [vmem:[%s4231 + $0x8c] sm:$0x1]
        %v4319 = vsel %vm4240, %v4114, %v4318
        %4320 = vst [vmem:[%s4231 + $0x8c] sm:$0x1] %v4319
        %v4321 = vld [vmem:[%s4231 + $0x90] sm:$0xf]
        %v4322 = vsel %vm4234, %v4121, %v4321
        %4323 = vst [vmem:[%s4231 + $0x90] sm:$0xf] %v4322
        %4324 = vst.msk [vmem:[%s4231 + $0x94] sm:$0xf] %vm3756, %v4130
        %v4325 = vld [vmem:[%s4231 + $0x98] sm:$0x1]
        %v4326 = vsel %vm4240, %v4131, %v4325
        %4327 = vst [vmem:[%s4231 + $0x98] sm:$0x1] %v4326
        %v4328 = vld [vmem:[%s4231 + $0x9c] sm:$0xf]
        %v4329 = vsel %vm4234, %v4138, %v4328
        %4330 = vst [vmem:[%s4231 + $0x9c] sm:$0xf] %v4329
        %4331 = vst.msk [vmem:[%s4231 + $0xa0] sm:$0xf] %vm3756, %v4147
        %v4332 = vld [vmem:[%s4231 + $0xa4] sm:$0x1]
        %v4333 = vsel %vm4240, %v4148, %v4332
        %4334 = vst [vmem:[%s4231 + $0xa4] sm:$0x1] %v4333
        %v4335 = vld [vmem:[%s4231 + $0xa8] sm:$0xf]
        %v4336 = vsel %vm4234, %v4155, %v4335
        %4337 = vst [vmem:[%s4231 + $0xa8] sm:$0xf] %v4336
        %4338 = vst.msk [vmem:[%s4231 + $0xac] sm:$0xf] %vm3756, %v4164
        %v4339 = vld [vmem:[%s4231 + $0xb0] sm:$0x1]
        %v4340 = vsel %vm4240, %v4165, %v4339
        %4341 = vst [vmem:[%s4231 + $0xb0] sm:$0x1] %v4340
        %v4342 = vld [vmem:[%s4231 + $0xb4] sm:$0xf]
        %v4343 = vsel %vm4234, %v4172, %v4342
        %4344 = vst [vmem:[%s4231 + $0xb4] sm:$0xf] %v4343
        %4345 = vst.msk [vmem:[%s4231 + $0xb8] sm:$0xf] %vm3756, %v4181
        %v4346 = vld [vmem:[%s4231 + $0xbc] sm:$0x1]
        %v4347 = vsel %vm4240, %v4182, %v4346
        %4348 = vst [vmem:[%s4231 + $0xbc] sm:$0x1] %v4347
        %v4349 = vld [vmem:[#allocation2] sm:$0xf]
        %v4350 = vld [vmem:[#allocation2 + $0x4] sm:$0xf]
        %v4351 = vld [vmem:[#allocation2 + $0xc] sm:$0xf]
        %v4352 = vld [vmem:[#allocation2 + $0x10] sm:$0xf]
        %v4353 = vld [vmem:[#allocation2 + $0x18] sm:$0xf]
        %v4354 = vld [vmem:[#allocation2 + $0x1c] sm:$0xf]
        %v4355 = vld [vmem:[#allocation2 + $0x24] sm:$0xf]
        %v4356 = vld [vmem:[#allocation2 + $0x28] sm:$0xf]
        %v4357 = vld [vmem:[#allocation2 + $0x30] sm:$0xf]
        %v4358 = vld [vmem:[#allocation2 + $0x34] sm:$0xf]
        %v4359 = vld [vmem:[#allocation2 + $0x3c] sm:$0xf]
        %v4360 = vld [vmem:[#allocation2 + $0x40] sm:$0xf]
        %v4361 = vld [vmem:[#allocation2 + $0x48] sm:$0xf]
        %v4362 = vld [vmem:[#allocation2 + $0x4c] sm:$0xf]
        %v4363 = vld [vmem:[#allocation2 + $0x54] sm:$0xf]
        %v4364 = vld [vmem:[#allocation2 + $0x58] sm:$0xf]
        %v4365 = vld [vmem:[#allocation2 + $0x60] sm:$0xf]
        %v4366 = vld [vmem:[#allocation2 + $0x64] sm:$0xf]
        %v4367 = vld [vmem:[#allocation2 + $0x6c] sm:$0xf]
        %v4368 = vld [vmem:[#allocation2 + $0x70] sm:$0xf]
        %v4369 = vld [vmem:[#allocation2 + $0x78] sm:$0xf]
        %v4370 = vld [vmem:[#allocation2 + $0x7c] sm:$0xf]
        %v4371 = vld [vmem:[#allocation2 + $0x84] sm:$0xf]
        %v4372 = vld [vmem:[#allocation2 + $0x88] sm:$0xf]
        %v4373 = vld [vmem:[#allocation2 + $0x90] sm:$0xf]
        %v4374 = vld [vmem:[#allocation2 + $0x94] sm:$0xf]
        %v4375 = vld [vmem:[#allocation2 + $0x9c] sm:$0xf]
        %v4376 = vld [vmem:[#allocation2 + $0xa0] sm:$0xf]
        %v4377 = vld [vmem:[#allocation2 + $0xa8] sm:$0xf]
        %v4378 = vld [vmem:[#allocation2 + $0xac] sm:$0xf]
        %v4379 = vld [vmem:[#allocation2 + $0xb4] sm:$0xf]
        %v4380 = vld [vmem:[#allocation2 + $0xb8] sm:$0xf]
        %v4381 = vld [vmem:[#allocation2 + $0x8] sm:$0x1]
        %v4382 = vld [vmem:[#allocation2 + $0x14] sm:$0x1]
        %v4383 = vld [vmem:[#allocation2 + $0x20] sm:$0x1]
        %v4384 = vld [vmem:[#allocation2 + $0x2c] sm:$0x1]
        %v4385 = vld [vmem:[#allocation2 + $0x38] sm:$0x1]
        %v4386 = vld [vmem:[#allocation2 + $0x44] sm:$0x1]
        %v4387 = vld [vmem:[#allocation2 + $0x50] sm:$0x1]
        %v4388 = vld [vmem:[#allocation2 + $0x5c] sm:$0x1]
        %v4389 = vld [vmem:[#allocation2 + $0x68] sm:$0x1]
        %v4390 = vld [vmem:[#allocation2 + $0x74] sm:$0x1]
        %v4391 = vld [vmem:[#allocation2 + $0x80] sm:$0x1]
        %v4392 = vld [vmem:[#allocation2 + $0x8c] sm:$0x1]
        %v4393 = vld [vmem:[#allocation2 + $0x98] sm:$0x1]
        %v4394 = vld [vmem:[#allocation2 + $0xa4] sm:$0x1]
        %v4395 = vld [vmem:[#allocation2 + $0xb0] sm:$0x1]
        %v4396 = vld [vmem:[#allocation2 + $0xbc] sm:$0x1]
        %v4398 = vshrl.u32 %v4349, 16
        %v4400 = vrot.slane %v4398, 4
        %v4401 = vshll.u32 %v4349, 16
        %v4403 = vrot.slane %v4401, 5
        %v4404 = vor.u32 %v4400, %v4403
        %v4405 = vrot.slane %v4404, 4
        %v4407 = vshll.u32 %v4350, 16
        %v4409 = vrot.slane %v4407, 5
        %v4410 = vsel %vm356, %v4405, %v4409
        %v4411 = vshrl.u32 %v4350, 16
        %v4413 = vrot.slane %v4411, 4
        %v4414 = vor.u32 %v4413, %v4409
        %v4415 = vrot.slane %v4414, 4
        %v4417 = vshll.u32 %v4381, 16
        %v4419 = vrot.slane %v4417, 5
        %v4420 = vsel %vm356, %v4415, %v4419
        %v4422 = vshrl.u32 %v4351, 16
        %v4424 = vrot.slane %v4422, 4
        %v4425 = vshll.u32 %v4351, 16
        %v4427 = vrot.slane %v4425, 5
        %v4428 = vor.u32 %v4424, %v4427
        %v4429 = vrot.slane %v4428, 4
        %v4431 = vshll.u32 %v4352, 16
        %v4433 = vrot.slane %v4431, 5
        %v4434 = vsel %vm356, %v4429, %v4433
        %v4435 = vshrl.u32 %v4352, 16
        %v4437 = vrot.slane %v4435, 4
        %v4438 = vor.u32 %v4437, %v4433
        %v4439 = vrot.slane %v4438, 4
        %v4441 = vshll.u32 %v4382, 16
        %v4443 = vrot.slane %v4441, 5
        %v4444 = vsel %vm356, %v4439, %v4443
        %v4446 = vshrl.u32 %v4353, 16
        %v4448 = vrot.slane %v4446, 4
        %v4449 = vshll.u32 %v4353, 16
        %v4451 = vrot.slane %v4449, 5
        %v4452 = vor.u32 %v4448, %v4451
        %v4453 = vrot.slane %v4452, 4
        %v4455 = vshll.u32 %v4354, 16
        %v4457 = vrot.slane %v4455, 5
        %v4458 = vsel %vm356, %v4453, %v4457
        %v4459 = vshrl.u32 %v4354, 16
        %v4461 = vrot.slane %v4459, 4
        %v4462 = vor.u32 %v4461, %v4457
        %v4463 = vrot.slane %v4462, 4
        %v4465 = vshll.u32 %v4383, 16
        %v4467 = vrot.slane %v4465, 5
        %v4468 = vsel %vm356, %v4463, %v4467
        %v4470 = vshrl.u32 %v4355, 16
        %v4472 = vrot.slane %v4470, 4
        %v4473 = vshll.u32 %v4355, 16
        %v4475 = vrot.slane %v4473, 5
        %v4476 = vor.u32 %v4472, %v4475
        %v4477 = vrot.slane %v4476, 4
        %v4479 = vshll.u32 %v4356, 16
        %v4481 = vrot.slane %v4479, 5
        %v4482 = vsel %vm356, %v4477, %v4481
        %v4483 = vshrl.u32 %v4356, 16
        %v4485 = vrot.slane %v4483, 4
        %v4486 = vor.u32 %v4485, %v4481
        %v4487 = vrot.slane %v4486, 4
        %v4489 = vshll.u32 %v4384, 16
        %v4491 = vrot.slane %v4489, 5
        %v4492 = vsel %vm356, %v4487, %v4491
        %v4494 = vshrl.u32 %v4357, 16
        %v4496 = vrot.slane %v4494, 4
        %v4497 = vshll.u32 %v4357, 16
        %v4499 = vrot.slane %v4497, 5
        %v4500 = vor.u32 %v4496, %v4499
        %v4501 = vrot.slane %v4500, 4
        %v4503 = vshll.u32 %v4358, 16
        %v4505 = vrot.slane %v4503, 5
        %v4506 = vsel %vm356, %v4501, %v4505
        %v4507 = vshrl.u32 %v4358, 16
        %v4509 = vrot.slane %v4507, 4
        %v4510 = vor.u32 %v4509, %v4505
        %v4511 = vrot.slane %v4510, 4
        %v4513 = vshll.u32 %v4385, 16
        %v4515 = vrot.slane %v4513, 5
        %v4516 = vsel %vm356, %v4511, %v4515
        %v4518 = vshrl.u32 %v4359, 16
        %v4520 = vrot.slane %v4518, 4
        %v4521 = vshll.u32 %v4359, 16
        %v4523 = vrot.slane %v4521, 5
        %v4524 = vor.u32 %v4520, %v4523
        %v4525 = vrot.slane %v4524, 4
        %v4527 = vshll.u32 %v4360, 16
        %v4529 = vrot.slane %v4527, 5
        %v4530 = vsel %vm356, %v4525, %v4529
        %v4531 = vshrl.u32 %v4360, 16
        %v4533 = vrot.slane %v4531, 4
        %v4534 = vor.u32 %v4533, %v4529
        %v4535 = vrot.slane %v4534, 4
        %v4537 = vshll.u32 %v4386, 16
        %v4539 = vrot.slane %v4537, 5
        %v4540 = vsel %vm356, %v4535, %v4539
        %v4542 = vshrl.u32 %v4361, 16
        %v4544 = vrot.slane %v4542, 4
        %v4545 = vshll.u32 %v4361, 16
        %v4547 = vrot.slane %v4545, 5
        %v4548 = vor.u32 %v4544, %v4547
        %v4549 = vrot.slane %v4548, 4
        %v4551 = vshll.u32 %v4362, 16
        %v4553 = vrot.slane %v4551, 5
        %v4554 = vsel %vm356, %v4549, %v4553
        %v4555 = vshrl.u32 %v4362, 16
        %v4557 = vrot.slane %v4555, 4
        %v4558 = vor.u32 %v4557, %v4553
        %v4559 = vrot.slane %v4558, 4
        %v4561 = vshll.u32 %v4387, 16
        %v4563 = vrot.slane %v4561, 5
        %v4564 = vsel %vm356, %v4559, %v4563
        %v4566 = vshrl.u32 %v4363, 16
        %v4568 = vrot.slane %v4566, 4
        %v4569 = vshll.u32 %v4363, 16
        %v4571 = vrot.slane %v4569, 5
        %v4572 = vor.u32 %v4568, %v4571
        %v4573 = vrot.slane %v4572, 4
        %v4575 = vshll.u32 %v4364, 16
        %v4577 = vrot.slane %v4575, 5
        %v4578 = vsel %vm356, %v4573, %v4577
        %v4579 = vshrl.u32 %v4364, 16
        %v4581 = vrot.slane %v4579, 4
        %v4582 = vor.u32 %v4581, %v4577
        %v4583 = vrot.slane %v4582, 4
        %v4585 = vshll.u32 %v4388, 16
        %v4587 = vrot.slane %v4585, 5
        %v4588 = vsel %vm356, %v4583, %v4587
        %v4590 = vshrl.u32 %v4365, 16
        %v4592 = vrot.slane %v4590, 4
        %v4593 = vshll.u32 %v4365, 16
        %v4595 = vrot.slane %v4593, 5
        %v4596 = vor.u32 %v4592, %v4595
        %v4597 = vrot.slane %v4596, 4
        %v4599 = vshll.u32 %v4366, 16
        %v4601 = vrot.slane %v4599, 5
        %v4602 = vsel %vm356, %v4597, %v4601
        %v4603 = vshrl.u32 %v4366, 16
        %v4605 = vrot.slane %v4603, 4
        %v4606 = vor.u32 %v4605, %v4601
        %v4607 = vrot.slane %v4606, 4
        %v4609 = vshll.u32 %v4389, 16
        %v4611 = vrot.slane %v4609, 5
        %v4612 = vsel %vm356, %v4607, %v4611
        %v4614 = vshrl.u32 %v4367, 16
        %v4616 = vrot.slane %v4614, 4
        %v4617 = vshll.u32 %v4367, 16
        %v4619 = vrot.slane %v4617, 5
        %v4620 = vor.u32 %v4616, %v4619
        %v4621 = vrot.slane %v4620, 4
        %v4623 = vshll.u32 %v4368, 16
        %v4625 = vrot.slane %v4623, 5
        %v4626 = vsel %vm356, %v4621, %v4625
        %v4627 = vshrl.u32 %v4368, 16
        %v4629 = vrot.slane %v4627, 4
        %v4630 = vor.u32 %v4629, %v4625
        %v4631 = vrot.slane %v4630, 4
        %v4633 = vshll.u32 %v4390, 16
        %v4635 = vrot.slane %v4633, 5
        %v4636 = vsel %vm356, %v4631, %v4635
        %v4638 = vshrl.u32 %v4369, 16
        %v4640 = vrot.slane %v4638, 4
        %v4641 = vshll.u32 %v4369, 16
        %v4643 = vrot.slane %v4641, 5
        %v4644 = vor.u32 %v4640, %v4643
        %v4645 = vrot.slane %v4644, 4
        %v4647 = vshll.u32 %v4370, 16
        %v4649 = vrot.slane %v4647, 5
        %v4650 = vsel %vm356, %v4645, %v4649
        %v4651 = vshrl.u32 %v4370, 16
        %v4653 = vrot.slane %v4651, 4
        %v4654 = vor.u32 %v4653, %v4649
        %v4655 = vrot.slane %v4654, 4
        %v4657 = vshll.u32 %v4391, 16
        %v4659 = vrot.slane %v4657, 5
        %v4660 = vsel %vm356, %v4655, %v4659
        %v4662 = vshrl.u32 %v4371, 16
        %v4664 = vrot.slane %v4662, 4
        %v4665 = vshll.u32 %v4371, 16
        %v4667 = vrot.slane %v4665, 5
        %v4668 = vor.u32 %v4664, %v4667
        %v4669 = vrot.slane %v4668, 4
        %v4671 = vshll.u32 %v4372, 16
        %v4673 = vrot.slane %v4671, 5
        %v4674 = vsel %vm356, %v4669, %v4673
        %v4675 = vshrl.u32 %v4372, 16
        %v4677 = vrot.slane %v4675, 4
        %v4678 = vor.u32 %v4677, %v4673
        %v4679 = vrot.slane %v4678, 4
        %v4681 = vshll.u32 %v4392, 16
        %v4683 = vrot.slane %v4681, 5
        %v4684 = vsel %vm356, %v4679, %v4683
        %v4686 = vshrl.u32 %v4373, 16
        %v4688 = vrot.slane %v4686, 4
        %v4689 = vshll.u32 %v4373, 16
        %v4691 = vrot.slane %v4689, 5
        %v4692 = vor.u32 %v4688, %v4691
        %v4693 = vrot.slane %v4692, 4
        %v4695 = vshll.u32 %v4374, 16
        %v4697 = vrot.slane %v4695, 5
        %v4698 = vsel %vm356, %v4693, %v4697
        %v4699 = vshrl.u32 %v4374, 16
        %v4701 = vrot.slane %v4699, 4
        %v4702 = vor.u32 %v4701, %v4697
        %v4703 = vrot.slane %v4702, 4
        %v4705 = vshll.u32 %v4393, 16
        %v4707 = vrot.slane %v4705, 5
        %v4708 = vsel %vm356, %v4703, %v4707
        %v4710 = vshrl.u32 %v4375, 16
        %v4712 = vrot.slane %v4710, 4
        %v4713 = vshll.u32 %v4375, 16
        %v4715 = vrot.slane %v4713, 5
        %v4716 = vor.u32 %v4712, %v4715
        %v4717 = vrot.slane %v4716, 4
        %v4719 = vshll.u32 %v4376, 16
        %v4721 = vrot.slane %v4719, 5
        %v4722 = vsel %vm356, %v4717, %v4721
        %v4723 = vshrl.u32 %v4376, 16
        %v4725 = vrot.slane %v4723, 4
        %v4726 = vor.u32 %v4725, %v4721
        %v4727 = vrot.slane %v4726, 4
        %v4729 = vshll.u32 %v4394, 16
        %v4731 = vrot.slane %v4729, 5
        %v4732 = vsel %vm356, %v4727, %v4731
        %v4734 = vshrl.u32 %v4377, 16
        %v4736 = vrot.slane %v4734, 4
        %v4737 = vshll.u32 %v4377, 16
        %v4739 = vrot.slane %v4737, 5
        %v4740 = vor.u32 %v4736, %v4739
        %v4741 = vrot.slane %v4740, 4
        %v4743 = vshll.u32 %v4378, 16
        %v4745 = vrot.slane %v4743, 5
        %v4746 = vsel %vm356, %v4741, %v4745
        %v4747 = vshrl.u32 %v4378, 16
        %v4749 = vrot.slane %v4747, 4
        %v4750 = vor.u32 %v4749, %v4745
        %v4751 = vrot.slane %v4750, 4
        %v4753 = vshll.u32 %v4395, 16
        %v4755 = vrot.slane %v4753, 5
        %v4756 = vsel %vm356, %v4751, %v4755
        %v4758 = vshrl.u32 %v4379, 16
        %v4760 = vrot.slane %v4758, 4
        %v4761 = vshll.u32 %v4379, 16
        %v4763 = vrot.slane %v4761, 5
        %v4764 = vor.u32 %v4760, %v4763
        %v4765 = vrot.slane %v4764, 4
        %v4767 = vshll.u32 %v4380, 16
        %v4769 = vrot.slane %v4767, 5
        %v4770 = vsel %vm356, %v4765, %v4769
        %v4771 = vshrl.u32 %v4380, 16
        %v4773 = vrot.slane %v4771, 4
        %v4774 = vor.u32 %v4773, %v4769
        %v4775 = vrot.slane %v4774, 4
        %v4777 = vshll.u32 %v4396, 16
        %v4779 = vrot.slane %v4777, 5
        %v4780 = vsel %vm356, %v4775, %v4779
        %v4781 = vld [vmem:[#allocation2] sm:$0xe]
        %v4782 = vld [vmem:[#allocation2 + $0xc] sm:$0xe]
        %v4783 = vld [vmem:[#allocation2 + $0x18] sm:$0xe]
        %v4784 = vld [vmem:[#allocation2 + $0x24] sm:$0xe]
        %v4785 = vld [vmem:[#allocation2 + $0x30] sm:$0xe]
        %v4786 = vld [vmem:[#allocation2 + $0x3c] sm:$0xe]
        %v4787 = vld [vmem:[#allocation2 + $0x48] sm:$0xe]
        %v4788 = vld [vmem:[#allocation2 + $0x54] sm:$0xe]
        %v4789 = vld [vmem:[#allocation2 + $0x60] sm:$0xe]
        %v4790 = vld [vmem:[#allocation2 + $0x6c] sm:$0xe]
        %v4791 = vld [vmem:[#allocation2 + $0x78] sm:$0xe]
        %v4792 = vld [vmem:[#allocation2 + $0x84] sm:$0xe]
        %v4793 = vld [vmem:[#allocation2 + $0x90] sm:$0xe]
        %v4794 = vld [vmem:[#allocation2 + $0x9c] sm:$0xe]
        %v4795 = vld [vmem:[#allocation2 + $0xa8] sm:$0xe]
        %v4796 = vld [vmem:[#allocation2 + $0xb4] sm:$0xe]
        %v4845 = vrot.slane %v4781, 5
        %v4846 = vrot.slane %v4845, 4
        %v4847 = vrot.slane %v4350, 5
        %v4848 = vsel %vm1271, %v4846, %v4847
        %v4849 = vrot.slane %v4847, 4
        %v4850 = vrot.slane %v4381, 5
        %v4851 = vsel %vm1271, %v4849, %v4850
        %v4852 = vrot.slane %v4782, 5
        %v4853 = vrot.slane %v4852, 4
        %v4854 = vrot.slane %v4352, 5
        %v4855 = vsel %vm1271, %v4853, %v4854
        %v4856 = vrot.slane %v4854, 4
        %v4857 = vrot.slane %v4382, 5
        %v4858 = vsel %vm1271, %v4856, %v4857
        %v4859 = vrot.slane %v4783, 5
        %v4860 = vrot.slane %v4859, 4
        %v4861 = vrot.slane %v4354, 5
        %v4862 = vsel %vm1271, %v4860, %v4861
        %v4863 = vrot.slane %v4861, 4
        %v4864 = vrot.slane %v4383, 5
        %v4865 = vsel %vm1271, %v4863, %v4864
        %v4866 = vrot.slane %v4784, 5
        %v4867 = vrot.slane %v4866, 4
        %v4868 = vrot.slane %v4356, 5
        %v4869 = vsel %vm1271, %v4867, %v4868
        %v4870 = vrot.slane %v4868, 4
        %v4871 = vrot.slane %v4384, 5
        %v4872 = vsel %vm1271, %v4870, %v4871
        %v4873 = vrot.slane %v4785, 5
        %v4874 = vrot.slane %v4873, 4
        %v4875 = vrot.slane %v4358, 5
        %v4876 = vsel %vm1271, %v4874, %v4875
        %v4877 = vrot.slane %v4875, 4
        %v4878 = vrot.slane %v4385, 5
        %v4879 = vsel %vm1271, %v4877, %v4878
        %v4880 = vrot.slane %v4786, 5
        %v4881 = vrot.slane %v4880, 4
        %v4882 = vrot.slane %v4360, 5
        %v4883 = vsel %vm1271, %v4881, %v4882
        %v4884 = vrot.slane %v4882, 4
        %v4885 = vrot.slane %v4386, 5
        %v4886 = vsel %vm1271, %v4884, %v4885
        %v4887 = vrot.slane %v4787, 5
        %v4888 = vrot.slane %v4887, 4
        %v4889 = vrot.slane %v4362, 5
        %v4890 = vsel %vm1271, %v4888, %v4889
        %v4891 = vrot.slane %v4889, 4
        %v4892 = vrot.slane %v4387, 5
        %v4893 = vsel %vm1271, %v4891, %v4892
        %v4894 = vrot.slane %v4788, 5
        %v4895 = vrot.slane %v4894, 4
        %v4896 = vrot.slane %v4364, 5
        %v4897 = vsel %vm1271, %v4895, %v4896
        %v4898 = vrot.slane %v4896, 4
        %v4899 = vrot.slane %v4388, 5
        %v4900 = vsel %vm1271, %v4898, %v4899
        %v4901 = vrot.slane %v4789, 5
        %v4902 = vrot.slane %v4901, 4
        %v4903 = vrot.slane %v4366, 5
        %v4904 = vsel %vm1271, %v4902, %v4903
        %v4905 = vrot.slane %v4903, 4
        %v4906 = vrot.slane %v4389, 5
        %v4907 = vsel %vm1271, %v4905, %v4906
        %v4908 = vrot.slane %v4790, 5
        %v4909 = vrot.slane %v4908, 4
        %v4910 = vrot.slane %v4368, 5
        %v4911 = vsel %vm1271, %v4909, %v4910
        %v4912 = vrot.slane %v4910, 4
        %v4913 = vrot.slane %v4390, 5
        %v4914 = vsel %vm1271, %v4912, %v4913
        %v4915 = vrot.slane %v4791, 5
        %v4916 = vrot.slane %v4915, 4
        %v4917 = vrot.slane %v4370, 5
        %v4918 = vsel %vm1271, %v4916, %v4917
        %v4919 = vrot.slane %v4917, 4
        %v4920 = vrot.slane %v4391, 5
        %v4921 = vsel %vm1271, %v4919, %v4920
        %v4922 = vrot.slane %v4792, 5
        %v4923 = vrot.slane %v4922, 4
        %v4924 = vrot.slane %v4372, 5
        %v4925 = vsel %vm1271, %v4923, %v4924
        %v4926 = vrot.slane %v4924, 4
        %v4927 = vrot.slane %v4392, 5
        %v4928 = vsel %vm1271, %v4926, %v4927
        %v4929 = vrot.slane %v4793, 5
        %v4930 = vrot.slane %v4929, 4
        %v4931 = vrot.slane %v4374, 5
        %v4932 = vsel %vm1271, %v4930, %v4931
        %v4933 = vrot.slane %v4931, 4
        %v4934 = vrot.slane %v4393, 5
        %v4935 = vsel %vm1271, %v4933, %v4934
        %v4936 = vrot.slane %v4794, 5
        %v4937 = vrot.slane %v4936, 4
        %v4938 = vrot.slane %v4376, 5
        %v4939 = vsel %vm1271, %v4937, %v4938
        %v4940 = vrot.slane %v4938, 4
        %v4941 = vrot.slane %v4394, 5
        %v4942 = vsel %vm1271, %v4940, %v4941
        %v4943 = vrot.slane %v4795, 5
        %v4944 = vrot.slane %v4943, 4
        %v4945 = vrot.slane %v4378, 5
        %v4946 = vsel %vm1271, %v4944, %v4945
        %v4947 = vrot.slane %v4945, 4
        %v4948 = vrot.slane %v4395, 5
        %v4949 = vsel %vm1271, %v4947, %v4948
        %v4950 = vrot.slane %v4796, 5
        %v4951 = vrot.slane %v4950, 4
        %v4952 = vrot.slane %v4380, 5
        %v4953 = vsel %vm1271, %v4951, %v4952
        %v4954 = vrot.slane %v4952, 4
        %v4955 = vrot.slane %v4396, 5
        %v4956 = vsel %vm1271, %v4954, %v4955
        %v4957 = vld [vmem:[%s4231] sm:$0xf]
        %v4958 = vld [vmem:[%s4231 + $0x4] sm:$0xf]
        %v4959 = vld [vmem:[%s4231 + $0xc] sm:$0xf]
        %v4960 = vld [vmem:[%s4231 + $0x10] sm:$0xf]
        %v4961 = vld [vmem:[%s4231 + $0x18] sm:$0xf]
        %v4962 = vld [vmem:[%s4231 + $0x1c] sm:$0xf]
        %v4963 = vld [vmem:[%s4231 + $0x24] sm:$0xf]
        %v4964 = vld [vmem:[%s4231 + $0x28] sm:$0xf]
        %v4965 = vld [vmem:[%s4231 + $0x30] sm:$0xf]
        %v4966 = vld [vmem:[%s4231 + $0x34] sm:$0xf]
        %v4967 = vld [vmem:[%s4231 + $0x3c] sm:$0xf]
        %v4968 = vld [vmem:[%s4231 + $0x40] sm:$0xf]
        %v4969 = vld [vmem:[%s4231 + $0x48] sm:$0xf]
        %v4970 = vld [vmem:[%s4231 + $0x4c] sm:$0xf]
        %v4971 = vld [vmem:[%s4231 + $0x54] sm:$0xf]
        %v4972 = vld [vmem:[%s4231 + $0x58] sm:$0xf]
        %v4973 = vld [vmem:[%s4231 + $0x60] sm:$0xf]
        %v4974 = vld [vmem:[%s4231 + $0x64] sm:$0xf]
        %v4975 = vld [vmem:[%s4231 + $0x6c] sm:$0xf]
        %v4976 = vld [vmem:[%s4231 + $0x70] sm:$0xf]
        %v4977 = vld [vmem:[%s4231 + $0x78] sm:$0xf]
        %v4978 = vld [vmem:[%s4231 + $0x7c] sm:$0xf]
        %v4979 = vld [vmem:[%s4231 + $0x84] sm:$0xf]
        %v4980 = vld [vmem:[%s4231 + $0x88] sm:$0xf]
        %v4981 = vld [vmem:[%s4231 + $0x90] sm:$0xf]
        %v4982 = vld [vmem:[%s4231 + $0x94] sm:$0xf]
        %v4983 = vld [vmem:[%s4231 + $0x9c] sm:$0xf]
        %v4984 = vld [vmem:[%s4231 + $0xa0] sm:$0xf]
        %v4985 = vld [vmem:[%s4231 + $0xa8] sm:$0xf]
        %v4986 = vld [vmem:[%s4231 + $0xac] sm:$0xf]
        %v4987 = vld [vmem:[%s4231 + $0xb4] sm:$0xf]
        %v4988 = vld [vmem:[%s4231 + $0xb8] sm:$0xf]
        %v4989 = vld [vmem:[%s4231 + $0x8] sm:$0x1]
        %v4990 = vld [vmem:[%s4231 + $0x14] sm:$0x1]
        %v4991 = vld [vmem:[%s4231 + $0x20] sm:$0x1]
        %v4992 = vld [vmem:[%s4231 + $0x2c] sm:$0x1]
        %v4993 = vld [vmem:[%s4231 + $0x38] sm:$0x1]
        %v4994 = vld [vmem:[%s4231 + $0x44] sm:$0x1]
        %v4995 = vld [vmem:[%s4231 + $0x50] sm:$0x1]
        %v4996 = vld [vmem:[%s4231 + $0x5c] sm:$0x1]
        %v4997 = vld [vmem:[%s4231 + $0x68] sm:$0x1]
        %v4998 = vld [vmem:[%s4231 + $0x74] sm:$0x1]
        %v4999 = vld [vmem:[%s4231 + $0x80] sm:$0x1]
        %v5000 = vld [vmem:[%s4231 + $0x8c] sm:$0x1]
        %v5001 = vld [vmem:[%s4231 + $0x98] sm:$0x1]
        %v5002 = vld [vmem:[%s4231 + $0xa4] sm:$0x1]
        %v5003 = vld [vmem:[%s4231 + $0xb0] sm:$0x1]
        %v5004 = vld [vmem:[%s4231 + $0xbc] sm:$0x1]
        %v5006 = vshrl.u32 %v4957, 16
        %v5008 = vrot.slane %v5006, 4
        %v5009 = vshll.u32 %v4957, 16
        %v5011 = vrot.slane %v5009, 5
        %v5012 = vor.u32 %v5008, %v5011
        %v5013 = vrot.slane %v5012, 4
        %v5015 = vshll.u32 %v4958, 16
        %v5017 = vrot.slane %v5015, 5
        %v5018 = vsel %vm356, %v5013, %v5017
        %v5019 = vshrl.u32 %v4958, 16
        %v5021 = vrot.slane %v5019, 4
        %v5022 = vor.u32 %v5021, %v5017
        %v5023 = vrot.slane %v5022, 4
        %v5025 = vshll.u32 %v4989, 16
        %v5027 = vrot.slane %v5025, 5
        %v5028 = vsel %vm356, %v5023, %v5027
        %v5030 = vshrl.u32 %v4959, 16
        %v5032 = vrot.slane %v5030, 4
        %v5033 = vshll.u32 %v4959, 16
        %v5035 = vrot.slane %v5033, 5
        %v5036 = vor.u32 %v5032, %v5035
        %v5037 = vrot.slane %v5036, 4
        %v5039 = vshll.u32 %v4960, 16
        %v5041 = vrot.slane %v5039, 5
        %v5042 = vsel %vm356, %v5037, %v5041
        %v5043 = vshrl.u32 %v4960, 16
        %v5045 = vrot.slane %v5043, 4
        %v5046 = vor.u32 %v5045, %v5041
        %v5047 = vrot.slane %v5046, 4
        %v5049 = vshll.u32 %v4990, 16
        %v5051 = vrot.slane %v5049, 5
        %v5052 = vsel %vm356, %v5047, %v5051
        %v5054 = vshrl.u32 %v4961, 16
        %v5056 = vrot.slane %v5054, 4
        %v5057 = vshll.u32 %v4961, 16
        %v5059 = vrot.slane %v5057, 5
        %v5060 = vor.u32 %v5056, %v5059
        %v5061 = vrot.slane %v5060, 4
        %v5063 = vshll.u32 %v4962, 16
        %v5065 = vrot.slane %v5063, 5
        %v5066 = vsel %vm356, %v5061, %v5065
        %v5067 = vshrl.u32 %v4962, 16
        %v5069 = vrot.slane %v5067, 4
        %v5070 = vor.u32 %v5069, %v5065
        %v5071 = vrot.slane %v5070, 4
        %v5073 = vshll.u32 %v4991, 16
        %v5075 = vrot.slane %v5073, 5
        %v5076 = vsel %vm356, %v5071, %v5075
        %v5078 = vshrl.u32 %v4963, 16
        %v5080 = vrot.slane %v5078, 4
        %v5081 = vshll.u32 %v4963, 16
        %v5083 = vrot.slane %v5081, 5
        %v5084 = vor.u32 %v5080, %v5083
        %v5085 = vrot.slane %v5084, 4
        %v5087 = vshll.u32 %v4964, 16
        %v5089 = vrot.slane %v5087, 5
        %v5090 = vsel %vm356, %v5085, %v5089
        %v5091 = vshrl.u32 %v4964, 16
        %v5093 = vrot.slane %v5091, 4
        %v5094 = vor.u32 %v5093, %v5089
        %v5095 = vrot.slane %v5094, 4
        %v5097 = vshll.u32 %v4992, 16
        %v5099 = vrot.slane %v5097, 5
        %v5100 = vsel %vm356, %v5095, %v5099
        %v5102 = vshrl.u32 %v4965, 16
        %v5104 = vrot.slane %v5102, 4
        %v5105 = vshll.u32 %v4965, 16
        %v5107 = vrot.slane %v5105, 5
        %v5108 = vor.u32 %v5104, %v5107
        %v5109 = vrot.slane %v5108, 4
        %v5111 = vshll.u32 %v4966, 16
        %v5113 = vrot.slane %v5111, 5
        %v5114 = vsel %vm356, %v5109, %v5113
        %v5115 = vshrl.u32 %v4966, 16
        %v5117 = vrot.slane %v5115, 4
        %v5118 = vor.u32 %v5117, %v5113
        %v5119 = vrot.slane %v5118, 4
        %v5121 = vshll.u32 %v4993, 16
        %v5123 = vrot.slane %v5121, 5
        %v5124 = vsel %vm356, %v5119, %v5123
        %v5126 = vshrl.u32 %v4967, 16
        %v5128 = vrot.slane %v5126, 4
        %v5129 = vshll.u32 %v4967, 16
        %v5131 = vrot.slane %v5129, 5
        %v5132 = vor.u32 %v5128, %v5131
        %v5133 = vrot.slane %v5132, 4
        %v5135 = vshll.u32 %v4968, 16
        %v5137 = vrot.slane %v5135, 5
        %v5138 = vsel %vm356, %v5133, %v5137
        %v5139 = vshrl.u32 %v4968, 16
        %v5141 = vrot.slane %v5139, 4
        %v5142 = vor.u32 %v5141, %v5137
        %v5143 = vrot.slane %v5142, 4
        %v5145 = vshll.u32 %v4994, 16
        %v5147 = vrot.slane %v5145, 5
        %v5148 = vsel %vm356, %v5143, %v5147
        %v5150 = vshrl.u32 %v4969, 16
        %v5152 = vrot.slane %v5150, 4
        %v5153 = vshll.u32 %v4969, 16
        %v5155 = vrot.slane %v5153, 5
        %v5156 = vor.u32 %v5152, %v5155
        %v5157 = vrot.slane %v5156, 4
        %v5159 = vshll.u32 %v4970, 16
        %v5161 = vrot.slane %v5159, 5
        %v5162 = vsel %vm356, %v5157, %v5161
        %v5163 = vshrl.u32 %v4970, 16
        %v5165 = vrot.slane %v5163, 4
        %v5166 = vor.u32 %v5165, %v5161
        %v5167 = vrot.slane %v5166, 4
        %v5169 = vshll.u32 %v4995, 16
        %v5171 = vrot.slane %v5169, 5
        %v5172 = vsel %vm356, %v5167, %v5171
        %v5174 = vshrl.u32 %v4971, 16
        %v5176 = vrot.slane %v5174, 4
        %v5177 = vshll.u32 %v4971, 16
        %v5179 = vrot.slane %v5177, 5
        %v5180 = vor.u32 %v5176, %v5179
        %v5181 = vrot.slane %v5180, 4
        %v5183 = vshll.u32 %v4972, 16
        %v5185 = vrot.slane %v5183, 5
        %v5186 = vsel %vm356, %v5181, %v5185
        %v5187 = vshrl.u32 %v4972, 16
        %v5189 = vrot.slane %v5187, 4
        %v5190 = vor.u32 %v5189, %v5185
        %v5191 = vrot.slane %v5190, 4
        %v5193 = vshll.u32 %v4996, 16
        %v5195 = vrot.slane %v5193, 5
        %v5196 = vsel %vm356, %v5191, %v5195
        %v5198 = vshrl.u32 %v4973, 16
        %v5200 = vrot.slane %v5198, 4
        %v5201 = vshll.u32 %v4973, 16
        %v5203 = vrot.slane %v5201, 5
        %v5204 = vor.u32 %v5200, %v5203
        %v5205 = vrot.slane %v5204, 4
        %v5207 = vshll.u32 %v4974, 16
        %v5209 = vrot.slane %v5207, 5
        %v5210 = vsel %vm356, %v5205, %v5209
        %v5211 = vshrl.u32 %v4974, 16
        %v5213 = vrot.slane %v5211, 4
        %v5214 = vor.u32 %v5213, %v5209
        %v5215 = vrot.slane %v5214, 4
        %v5217 = vshll.u32 %v4997, 16
        %v5219 = vrot.slane %v5217, 5
        %v5220 = vsel %vm356, %v5215, %v5219
        %v5222 = vshrl.u32 %v4975, 16
        %v5224 = vrot.slane %v5222, 4
        %v5225 = vshll.u32 %v4975, 16
        %v5227 = vrot.slane %v5225, 5
        %v5228 = vor.u32 %v5224, %v5227
        %v5229 = vrot.slane %v5228, 4
        %v5231 = vshll.u32 %v4976, 16
        %v5233 = vrot.slane %v5231, 5
        %v5234 = vsel %vm356, %v5229, %v5233
        %v5235 = vshrl.u32 %v4976, 16
        %v5237 = vrot.slane %v5235, 4
        %v5238 = vor.u32 %v5237, %v5233
        %v5239 = vrot.slane %v5238, 4
        %v5241 = vshll.u32 %v4998, 16
        %v5243 = vrot.slane %v5241, 5
        %v5244 = vsel %vm356, %v5239, %v5243
        %v5246 = vshrl.u32 %v4977, 16
        %v5248 = vrot.slane %v5246, 4
        %v5249 = vshll.u32 %v4977, 16
        %v5251 = vrot.slane %v5249, 5
        %v5252 = vor.u32 %v5248, %v5251
        %v5253 = vrot.slane %v5252, 4
        %v5255 = vshll.u32 %v4978, 16
        %v5257 = vrot.slane %v5255, 5
        %v5258 = vsel %vm356, %v5253, %v5257
        %v5259 = vshrl.u32 %v4978, 16
        %v5261 = vrot.slane %v5259, 4
        %v5262 = vor.u32 %v5261, %v5257
        %v5263 = vrot.slane %v5262, 4
        %v5265 = vshll.u32 %v4999, 16
        %v5267 = vrot.slane %v5265, 5
        %v5268 = vsel %vm356, %v5263, %v5267
        %v5270 = vshrl.u32 %v4979, 16
        %v5272 = vrot.slane %v5270, 4
        %v5273 = vshll.u32 %v4979, 16
        %v5275 = vrot.slane %v5273, 5
        %v5276 = vor.u32 %v5272, %v5275
        %v5277 = vrot.slane %v5276, 4
        %v5279 = vshll.u32 %v4980, 16
        %v5281 = vrot.slane %v5279, 5
        %v5282 = vsel %vm356, %v5277, %v5281
        %v5283 = vshrl.u32 %v4980, 16
        %v5285 = vrot.slane %v5283, 4
        %v5286 = vor.u32 %v5285, %v5281
        %v5287 = vrot.slane %v5286, 4
        %v5289 = vshll.u32 %v5000, 16
        %v5291 = vrot.slane %v5289, 5
        %v5292 = vsel %vm356, %v5287, %v5291
        %v5294 = vshrl.u32 %v4981, 16
        %v5296 = vrot.slane %v5294, 4
        %v5297 = vshll.u32 %v4981, 16
        %v5299 = vrot.slane %v5297, 5
        %v5300 = vor.u32 %v5296, %v5299
        %v5301 = vrot.slane %v5300, 4
        %v5303 = vshll.u32 %v4982, 16
        %v5305 = vrot.slane %v5303, 5
        %v5306 = vsel %vm356, %v5301, %v5305
        %v5307 = vshrl.u32 %v4982, 16
        %v5309 = vrot.slane %v5307, 4
        %v5310 = vor.u32 %v5309, %v5305
        %v5311 = vrot.slane %v5310, 4
        %v5313 = vshll.u32 %v5001, 16
        %v5315 = vrot.slane %v5313, 5
        %v5316 = vsel %vm356, %v5311, %v5315
        %v5318 = vshrl.u32 %v4983, 16
        %v5320 = vrot.slane %v5318, 4
        %v5321 = vshll.u32 %v4983, 16
        %v5323 = vrot.slane %v5321, 5
        %v5324 = vor.u32 %v5320, %v5323
        %v5325 = vrot.slane %v5324, 4
        %v5327 = vshll.u32 %v4984, 16
        %v5329 = vrot.slane %v5327, 5
        %v5330 = vsel %vm356, %v5325, %v5329
        %v5331 = vshrl.u32 %v4984, 16
        %v5333 = vrot.slane %v5331, 4
        %v5334 = vor.u32 %v5333, %v5329
        %v5335 = vrot.slane %v5334, 4
        %v5337 = vshll.u32 %v5002, 16
        %v5339 = vrot.slane %v5337, 5
        %v5340 = vsel %vm356, %v5335, %v5339
        %v5342 = vshrl.u32 %v4985, 16
        %v5344 = vrot.slane %v5342, 4
        %v5345 = vshll.u32 %v4985, 16
        %v5347 = vrot.slane %v5345, 5
        %v5348 = vor.u32 %v5344, %v5347
        %v5349 = vrot.slane %v5348, 4
        %v5351 = vshll.u32 %v4986, 16
        %v5353 = vrot.slane %v5351, 5
        %v5354 = vsel %vm356, %v5349, %v5353
        %v5355 = vshrl.u32 %v4986, 16
        %v5357 = vrot.slane %v5355, 4
        %v5358 = vor.u32 %v5357, %v5353
        %v5359 = vrot.slane %v5358, 4
        %v5361 = vshll.u32 %v5003, 16
        %v5363 = vrot.slane %v5361, 5
        %v5364 = vsel %vm356, %v5359, %v5363
        %v5366 = vshrl.u32 %v4987, 16
        %v5368 = vrot.slane %v5366, 4
        %v5369 = vshll.u32 %v4987, 16
        %v5371 = vrot.slane %v5369, 5
        %v5372 = vor.u32 %v5368, %v5371
        %v5373 = vrot.slane %v5372, 4
        %v5375 = vshll.u32 %v4988, 16
        %v5377 = vrot.slane %v5375, 5
        %v5378 = vsel %vm356, %v5373, %v5377
        %v5379 = vshrl.u32 %v4988, 16
        %v5381 = vrot.slane %v5379, 4
        %v5382 = vor.u32 %v5381, %v5377
        %v5383 = vrot.slane %v5382, 4
        %v5385 = vshll.u32 %v5004, 16
        %v5387 = vrot.slane %v5385, 5
        %v5388 = vsel %vm356, %v5383, %v5387
        %v5389 = vld [vmem:[%s4231] sm:$0xe]
        %v5390 = vld [vmem:[%s4231 + $0xc] sm:$0xe]
        %v5391 = vld [vmem:[%s4231 + $0x18] sm:$0xe]
        %v5392 = vld [vmem:[%s4231 + $0x24] sm:$0xe]
        %v5393 = vld [vmem:[%s4231 + $0x30] sm:$0xe]
        %v5394 = vld [vmem:[%s4231 + $0x3c] sm:$0xe]
        %v5395 = vld [vmem:[%s4231 + $0x48] sm:$0xe]
        %v5396 = vld [vmem:[%s4231 + $0x54] sm:$0xe]
        %v5397 = vld [vmem:[%s4231 + $0x60] sm:$0xe]
        %v5398 = vld [vmem:[%s4231 + $0x6c] sm:$0xe]
        %v5399 = vld [vmem:[%s4231 + $0x78] sm:$0xe]
        %v5400 = vld [vmem:[%s4231 + $0x84] sm:$0xe]
        %v5401 = vld [vmem:[%s4231 + $0x90] sm:$0xe]
        %v5402 = vld [vmem:[%s4231 + $0x9c] sm:$0xe]
        %v5403 = vld [vmem:[%s4231 + $0xa8] sm:$0xe]
        %v5404 = vld [vmem:[%s4231 + $0xb4] sm:$0xe]
        %v5453 = vrot.slane %v5389, 5
        %v5454 = vrot.slane %v5453, 4
        %v5455 = vrot.slane %v4958, 5
        %v5456 = vsel %vm1271, %v5454, %v5455
        %v5457 = vrot.slane %v5455, 4
        %v5458 = vrot.slane %v4989, 5
        %v5459 = vsel %vm1271, %v5457, %v5458
        %v5460 = vrot.slane %v5390, 5
        %v5461 = vrot.slane %v5460, 4
        %v5462 = vrot.slane %v4960, 5
        %v5463 = vsel %vm1271, %v5461, %v5462
        %v5464 = vrot.slane %v5462, 4
        %v5465 = vrot.slane %v4990, 5
        %v5466 = vsel %vm1271, %v5464, %v5465
        %v5467 = vrot.slane %v5391, 5
        %v5468 = vrot.slane %v5467, 4
        %v5469 = vrot.slane %v4962, 5
        %v5470 = vsel %vm1271, %v5468, %v5469
        %v5471 = vrot.slane %v5469, 4
        %v5472 = vrot.slane %v4991, 5
        %v5473 = vsel %vm1271, %v5471, %v5472
        %v5474 = vrot.slane %v5392, 5
        %v5475 = vrot.slane %v5474, 4
        %v5476 = vrot.slane %v4964, 5
        %v5477 = vsel %vm1271, %v5475, %v5476
        %v5478 = vrot.slane %v5476, 4
        %v5479 = vrot.slane %v4992, 5
        %v5480 = vsel %vm1271, %v5478, %v5479
        %v5481 = vrot.slane %v5393, 5
        %v5482 = vrot.slane %v5481, 4
        %v5483 = vrot.slane %v4966, 5
        %v5484 = vsel %vm1271, %v5482, %v5483
        %v5485 = vrot.slane %v5483, 4
        %v5486 = vrot.slane %v4993, 5
        %v5487 = vsel %vm1271, %v5485, %v5486
        %v5488 = vrot.slane %v5394, 5
        %v5489 = vrot.slane %v5488, 4
        %v5490 = vrot.slane %v4968, 5
        %v5491 = vsel %vm1271, %v5489, %v5490
        %v5492 = vrot.slane %v5490, 4
        %v5493 = vrot.slane %v4994, 5
        %v5494 = vsel %vm1271, %v5492, %v5493
        %v5495 = vrot.slane %v5395, 5
        %v5496 = vrot.slane %v5495, 4
        %v5497 = vrot.slane %v4970, 5
        %v5498 = vsel %vm1271, %v5496, %v5497
        %v5499 = vrot.slane %v5497, 4
        %v5500 = vrot.slane %v4995, 5
        %v5501 = vsel %vm1271, %v5499, %v5500
        %v5502 = vrot.slane %v5396, 5
        %v5503 = vrot.slane %v5502, 4
        %v5504 = vrot.slane %v4972, 5
        %v5505 = vsel %vm1271, %v5503, %v5504
        %v5506 = vrot.slane %v5504, 4
        %v5507 = vrot.slane %v4996, 5
        %v5508 = vsel %vm1271, %v5506, %v5507
        %v5509 = vrot.slane %v5397, 5
        %v5510 = vrot.slane %v5509, 4
        %v5511 = vrot.slane %v4974, 5
        %v5512 = vsel %vm1271, %v5510, %v5511
        %v5513 = vrot.slane %v5511, 4
        %v5514 = vrot.slane %v4997, 5
        %v5515 = vsel %vm1271, %v5513, %v5514
        %v5516 = vrot.slane %v5398, 5
        %v5517 = vrot.slane %v5516, 4
        %v5518 = vrot.slane %v4976, 5
        %v5519 = vsel %vm1271, %v5517, %v5518
        %v5520 = vrot.slane %v5518, 4
        %v5521 = vrot.slane %v4998, 5
        %v5522 = vsel %vm1271, %v5520, %v5521
        %v5523 = vrot.slane %v5399, 5
        %v5524 = vrot.slane %v5523, 4
        %v5525 = vrot.slane %v4978, 5
        %v5526 = vsel %vm1271, %v5524, %v5525
        %v5527 = vrot.slane %v5525, 4
        %v5528 = vrot.slane %v4999, 5
        %v5529 = vsel %vm1271, %v5527, %v5528
        %v5530 = vrot.slane %v5400, 5
        %v5531 = vrot.slane %v5530, 4
        %v5532 = vrot.slane %v4980, 5
        %v5533 = vsel %vm1271, %v5531, %v5532
        %v5534 = vrot.slane %v5532, 4
        %v5535 = vrot.slane %v5000, 5
        %v5536 = vsel %vm1271, %v5534, %v5535
        %v5537 = vrot.slane %v5401, 5
        %v5538 = vrot.slane %v5537, 4
        %v5539 = vrot.slane %v4982, 5
        %v5540 = vsel %vm1271, %v5538, %v5539
        %v5541 = vrot.slane %v5539, 4
        %v5542 = vrot.slane %v5001, 5
        %v5543 = vsel %vm1271, %v5541, %v5542
        %v5544 = vrot.slane %v5402, 5
        %v5545 = vrot.slane %v5544, 4
        %v5546 = vrot.slane %v4984, 5
        %v5547 = vsel %vm1271, %v5545, %v5546
        %v5548 = vrot.slane %v5546, 4
        %v5549 = vrot.slane %v5002, 5
        %v5550 = vsel %vm1271, %v5548, %v5549
        %v5551 = vrot.slane %v5403, 5
        %v5552 = vrot.slane %v5551, 4
        %v5553 = vrot.slane %v4986, 5
        %v5554 = vsel %vm1271, %v5552, %v5553
        %v5555 = vrot.slane %v5553, 4
        %v5556 = vrot.slane %v5003, 5
        %v5557 = vsel %vm1271, %v5555, %v5556
        %v5558 = vrot.slane %v5404, 5
        %v5559 = vrot.slane %v5558, 4
        %v5560 = vrot.slane %v4988, 5
        %v5561 = vsel %vm1271, %v5559, %v5560
        %v5562 = vrot.slane %v5560, 4
        %v5563 = vrot.slane %v5004, 5
        %v5564 = vsel %vm1271, %v5562, %v5563
        %s5565 = scalar_lea.vmem [#allocation2], 24
        %v5566 = vld [vmem:[%s5565] sm:$0xf]
        %v5567 = vld [vmem:[%s5565 + $0x4] sm:$0xf]
        %v5568 = vld [vmem:[%s5565 + $0xc] sm:$0xf]
        %v5569 = vld [vmem:[%s5565 + $0x10] sm:$0xf]
        %v5570 = vld [vmem:[%s5565 + $0x18] sm:$0xf]
        %v5571 = vld [vmem:[%s5565 + $0x1c] sm:$0xf]
        %v5572 = vld [vmem:[%s5565 + $0x24] sm:$0xf]
        %v5573 = vld [vmem:[%s5565 + $0x28] sm:$0xf]
        %v5574 = vld [vmem:[%s5565 + $0x30] sm:$0xf]
        %v5575 = vld [vmem:[%s5565 + $0x34] sm:$0xf]
        %v5576 = vld [vmem:[%s5565 + $0x3c] sm:$0xf]
        %v5577 = vld [vmem:[%s5565 + $0x40] sm:$0xf]
        %v5578 = vld [vmem:[%s5565 + $0x48] sm:$0xf]
        %v5579 = vld [vmem:[%s5565 + $0x4c] sm:$0xf]
        %v5580 = vld [vmem:[%s5565 + $0x54] sm:$0xf]
        %v5581 = vld [vmem:[%s5565 + $0x58] sm:$0xf]
        %v5582 = vld [vmem:[%s5565 + $0x60] sm:$0xf]
        %v5583 = vld [vmem:[%s5565 + $0x64] sm:$0xf]
        %v5584 = vld [vmem:[%s5565 + $0x6c] sm:$0xf]
        %v5585 = vld [vmem:[%s5565 + $0x70] sm:$0xf]
        %v5586 = vld [vmem:[%s5565 + $0x78] sm:$0xf]
        %v5587 = vld [vmem:[%s5565 + $0x7c] sm:$0xf]
        %v5588 = vld [vmem:[%s5565 + $0x84] sm:$0xf]
        %v5589 = vld [vmem:[%s5565 + $0x88] sm:$0xf]
        %v5590 = vld [vmem:[%s5565 + $0x90] sm:$0xf]
        %v5591 = vld [vmem:[%s5565 + $0x94] sm:$0xf]
        %v5592 = vld [vmem:[%s5565 + $0x9c] sm:$0xf]
        %v5593 = vld [vmem:[%s5565 + $0xa0] sm:$0xf]
        %v5594 = vld [vmem:[%s5565 + $0xa8] sm:$0xf]
        %v5595 = vld [vmem:[%s5565 + $0xac] sm:$0xf]
        %v5596 = vld [vmem:[%s5565 + $0xb4] sm:$0xf]
        %v5597 = vld [vmem:[%s5565 + $0xb8] sm:$0xf]
        %v5598 = vld [vmem:[%s5565 + $0x8] sm:$0x1]
        %v5599 = vld [vmem:[%s5565 + $0x14] sm:$0x1]
        %v5600 = vld [vmem:[%s5565 + $0x20] sm:$0x1]
        %v5601 = vld [vmem:[%s5565 + $0x2c] sm:$0x1]
        %v5602 = vld [vmem:[%s5565 + $0x38] sm:$0x1]
        %v5603 = vld [vmem:[%s5565 + $0x44] sm:$0x1]
        %v5604 = vld [vmem:[%s5565 + $0x50] sm:$0x1]
        %v5605 = vld [vmem:[%s5565 + $0x5c] sm:$0x1]
        %v5606 = vld [vmem:[%s5565 + $0x68] sm:$0x1]
        %v5607 = vld [vmem:[%s5565 + $0x74] sm:$0x1]
        %v5608 = vld [vmem:[%s5565 + $0x80] sm:$0x1]
        %v5609 = vld [vmem:[%s5565 + $0x8c] sm:$0x1]
        %v5610 = vld [vmem:[%s5565 + $0x98] sm:$0x1]
        %v5611 = vld [vmem:[%s5565 + $0xa4] sm:$0x1]
        %v5612 = vld [vmem:[%s5565 + $0xb0] sm:$0x1]
        %v5613 = vld [vmem:[%s5565 + $0xbc] sm:$0x1]
        %v5615 = vshrl.u32 %v5566, 16
        %v5617 = vrot.slane %v5615, 4
        %v5618 = vshll.u32 %v5566, 16
        %v5620 = vrot.slane %v5618, 5
        %v5621 = vor.u32 %v5617, %v5620
        %v5622 = vrot.slane %v5621, 4
        %v5624 = vshll.u32 %v5567, 16
        %v5626 = vrot.slane %v5624, 5
        %v5627 = vsel %vm356, %v5622, %v5626
        %v5628 = vshrl.u32 %v5567, 16
        %v5630 = vrot.slane %v5628, 4
        %v5631 = vor.u32 %v5630, %v5626
        %v5632 = vrot.slane %v5631, 4
        %v5634 = vshll.u32 %v5598, 16
        %v5636 = vrot.slane %v5634, 5
        %v5637 = vsel %vm356, %v5632, %v5636
        %v5639 = vshrl.u32 %v5568, 16
        %v5641 = vrot.slane %v5639, 4
        %v5642 = vshll.u32 %v5568, 16
        %v5644 = vrot.slane %v5642, 5
        %v5645 = vor.u32 %v5641, %v5644
        %v5646 = vrot.slane %v5645, 4
        %v5648 = vshll.u32 %v5569, 16
        %v5650 = vrot.slane %v5648, 5
        %v5651 = vsel %vm356, %v5646, %v5650
        %v5652 = vshrl.u32 %v5569, 16
        %v5654 = vrot.slane %v5652, 4
        %v5655 = vor.u32 %v5654, %v5650
        %v5656 = vrot.slane %v5655, 4
        %v5658 = vshll.u32 %v5599, 16
        %v5660 = vrot.slane %v5658, 5
        %v5661 = vsel %vm356, %v5656, %v5660
        %v5663 = vshrl.u32 %v5570, 16
        %v5665 = vrot.slane %v5663, 4
        %v5666 = vshll.u32 %v5570, 16
        %v5668 = vrot.slane %v5666, 5
        %v5669 = vor.u32 %v5665, %v5668
        %v5670 = vrot.slane %v5669, 4
        %v5672 = vshll.u32 %v5571, 16
        %v5674 = vrot.slane %v5672, 5
        %v5675 = vsel %vm356, %v5670, %v5674
        %v5676 = vshrl.u32 %v5571, 16
        %v5678 = vrot.slane %v5676, 4
        %v5679 = vor.u32 %v5678, %v5674
        %v5680 = vrot.slane %v5679, 4
        %v5682 = vshll.u32 %v5600, 16
        %v5684 = vrot.slane %v5682, 5
        %v5685 = vsel %vm356, %v5680, %v5684
        %v5687 = vshrl.u32 %v5572, 16
        %v5689 = vrot.slane %v5687, 4
        %v5690 = vshll.u32 %v5572, 16
        %v5692 = vrot.slane %v5690, 5
        %v5693 = vor.u32 %v5689, %v5692
        %v5694 = vrot.slane %v5693, 4
        %v5696 = vshll.u32 %v5573, 16
        %v5698 = vrot.slane %v5696, 5
        %v5699 = vsel %vm356, %v5694, %v5698
        %v5700 = vshrl.u32 %v5573, 16
        %v5702 = vrot.slane %v5700, 4
        %v5703 = vor.u32 %v5702, %v5698
        %v5704 = vrot.slane %v5703, 4
        %v5706 = vshll.u32 %v5601, 16
        %v5708 = vrot.slane %v5706, 5
        %v5709 = vsel %vm356, %v5704, %v5708
        %v5711 = vshrl.u32 %v5574, 16
        %v5713 = vrot.slane %v5711, 4
        %v5714 = vshll.u32 %v5574, 16
        %v5716 = vrot.slane %v5714, 5
        %v5717 = vor.u32 %v5713, %v5716
        %v5718 = vrot.slane %v5717, 4
        %v5720 = vshll.u32 %v5575, 16
        %v5722 = vrot.slane %v5720, 5
        %v5723 = vsel %vm356, %v5718, %v5722
        %v5724 = vshrl.u32 %v5575, 16
        %v5726 = vrot.slane %v5724, 4
        %v5727 = vor.u32 %v5726, %v5722
        %v5728 = vrot.slane %v5727, 4
        %v5730 = vshll.u32 %v5602, 16
        %v5732 = vrot.slane %v5730, 5
        %v5733 = vsel %vm356, %v5728, %v5732
        %v5735 = vshrl.u32 %v5576, 16
        %v5737 = vrot.slane %v5735, 4
        %v5738 = vshll.u32 %v5576, 16
        %v5740 = vrot.slane %v5738, 5
        %v5741 = vor.u32 %v5737, %v5740
        %v5742 = vrot.slane %v5741, 4
        %v5744 = vshll.u32 %v5577, 16
        %v5746 = vrot.slane %v5744, 5
        %v5747 = vsel %vm356, %v5742, %v5746
        %v5748 = vshrl.u32 %v5577, 16
        %v5750 = vrot.slane %v5748, 4
        %v5751 = vor.u32 %v5750, %v5746
        %v5752 = vrot.slane %v5751, 4
        %v5754 = vshll.u32 %v5603, 16
        %v5756 = vrot.slane %v5754, 5
        %v5757 = vsel %vm356, %v5752, %v5756
        %v5759 = vshrl.u32 %v5578, 16
        %v5761 = vrot.slane %v5759, 4
        %v5762 = vshll.u32 %v5578, 16
        %v5764 = vrot.slane %v5762, 5
        %v5765 = vor.u32 %v5761, %v5764
        %v5766 = vrot.slane %v5765, 4
        %v5768 = vshll.u32 %v5579, 16
        %v5770 = vrot.slane %v5768, 5
        %v5771 = vsel %vm356, %v5766, %v5770
        %v5772 = vshrl.u32 %v5579, 16
        %v5774 = vrot.slane %v5772, 4
        %v5775 = vor.u32 %v5774, %v5770
        %v5776 = vrot.slane %v5775, 4
        %v5778 = vshll.u32 %v5604, 16
        %v5780 = vrot.slane %v5778, 5
        %v5781 = vsel %vm356, %v5776, %v5780
        %v5783 = vshrl.u32 %v5580, 16
        %v5785 = vrot.slane %v5783, 4
        %v5786 = vshll.u32 %v5580, 16
        %v5788 = vrot.slane %v5786, 5
        %v5789 = vor.u32 %v5785, %v5788
        %v5790 = vrot.slane %v5789, 4
        %v5792 = vshll.u32 %v5581, 16
        %v5794 = vrot.slane %v5792, 5
        %v5795 = vsel %vm356, %v5790, %v5794
        %v5796 = vshrl.u32 %v5581, 16
        %v5798 = vrot.slane %v5796, 4
        %v5799 = vor.u32 %v5798, %v5794
        %v5800 = vrot.slane %v5799, 4
        %v5802 = vshll.u32 %v5605, 16
        %v5804 = vrot.slane %v5802, 5
        %v5805 = vsel %vm356, %v5800, %v5804
        %v5807 = vshrl.u32 %v5582, 16
        %v5809 = vrot.slane %v5807, 4
        %v5810 = vshll.u32 %v5582, 16
        %v5812 = vrot.slane %v5810, 5
        %v5813 = vor.u32 %v5809, %v5812
        %v5814 = vrot.slane %v5813, 4
        %v5816 = vshll.u32 %v5583, 16
        %v5818 = vrot.slane %v5816, 5
        %v5819 = vsel %vm356, %v5814, %v5818
        %v5820 = vshrl.u32 %v5583, 16
        %v5822 = vrot.slane %v5820, 4
        %v5823 = vor.u32 %v5822, %v5818
        %v5824 = vrot.slane %v5823, 4
        %v5826 = vshll.u32 %v5606, 16
        %v5828 = vrot.slane %v5826, 5
        %v5829 = vsel %vm356, %v5824, %v5828
        %v5831 = vshrl.u32 %v5584, 16
        %v5833 = vrot.slane %v5831, 4
        %v5834 = vshll.u32 %v5584, 16
        %v5836 = vrot.slane %v5834, 5
        %v5837 = vor.u32 %v5833, %v5836
        %v5838 = vrot.slane %v5837, 4
        %v5840 = vshll.u32 %v5585, 16
        %v5842 = vrot.slane %v5840, 5
        %v5843 = vsel %vm356, %v5838, %v5842
        %v5844 = vshrl.u32 %v5585, 16
        %v5846 = vrot.slane %v5844, 4
        %v5847 = vor.u32 %v5846, %v5842
        %v5848 = vrot.slane %v5847, 4
        %v5850 = vshll.u32 %v5607, 16
        %v5852 = vrot.slane %v5850, 5
        %v5853 = vsel %vm356, %v5848, %v5852
        %v5855 = vshrl.u32 %v5586, 16
        %v5857 = vrot.slane %v5855, 4
        %v5858 = vshll.u32 %v5586, 16
        %v5860 = vrot.slane %v5858, 5
        %v5861 = vor.u32 %v5857, %v5860
        %v5862 = vrot.slane %v5861, 4
        %v5864 = vshll.u32 %v5587, 16
        %v5866 = vrot.slane %v5864, 5
        %v5867 = vsel %vm356, %v5862, %v5866
        %v5868 = vshrl.u32 %v5587, 16
        %v5870 = vrot.slane %v5868, 4
        %v5871 = vor.u32 %v5870, %v5866
        %v5872 = vrot.slane %v5871, 4
        %v5874 = vshll.u32 %v5608, 16
        %v5876 = vrot.slane %v5874, 5
        %v5877 = vsel %vm356, %v5872, %v5876
        %v5879 = vshrl.u32 %v5588, 16
        %v5881 = vrot.slane %v5879, 4
        %v5882 = vshll.u32 %v5588, 16
        %v5884 = vrot.slane %v5882, 5
        %v5885 = vor.u32 %v5881, %v5884
        %v5886 = vrot.slane %v5885, 4
        %v5888 = vshll.u32 %v5589, 16
        %v5890 = vrot.slane %v5888, 5
        %v5891 = vsel %vm356, %v5886, %v5890
        %v5892 = vshrl.u32 %v5589, 16
        %v5894 = vrot.slane %v5892, 4
        %v5895 = vor.u32 %v5894, %v5890
        %v5896 = vrot.slane %v5895, 4
        %v5898 = vshll.u32 %v5609, 16
        %v5900 = vrot.slane %v5898, 5
        %v5901 = vsel %vm356, %v5896, %v5900
        %v5903 = vshrl.u32 %v5590, 16
        %v5905 = vrot.slane %v5903, 4
        %v5906 = vshll.u32 %v5590, 16
        %v5908 = vrot.slane %v5906, 5
        %v5909 = vor.u32 %v5905, %v5908
        %v5910 = vrot.slane %v5909, 4
        %v5912 = vshll.u32 %v5591, 16
        %v5914 = vrot.slane %v5912, 5
        %v5915 = vsel %vm356, %v5910, %v5914
        %v5916 = vshrl.u32 %v5591, 16
        %v5918 = vrot.slane %v5916, 4
        %v5919 = vor.u32 %v5918, %v5914
        %v5920 = vrot.slane %v5919, 4
        %v5922 = vshll.u32 %v5610, 16
        %v5924 = vrot.slane %v5922, 5
        %v5925 = vsel %vm356, %v5920, %v5924
        %v5927 = vshrl.u32 %v5592, 16
        %v5929 = vrot.slane %v5927, 4
        %v5930 = vshll.u32 %v5592, 16
        %v5932 = vrot.slane %v5930, 5
        %v5933 = vor.u32 %v5929, %v5932
        %v5934 = vrot.slane %v5933, 4
        %v5936 = vshll.u32 %v5593, 16
        %v5938 = vrot.slane %v5936, 5
        %v5939 = vsel %vm356, %v5934, %v5938
        %v5940 = vshrl.u32 %v5593, 16
        %v5942 = vrot.slane %v5940, 4
        %v5943 = vor.u32 %v5942, %v5938
        %v5944 = vrot.slane %v5943, 4
        %v5946 = vshll.u32 %v5611, 16
        %v5948 = vrot.slane %v5946, 5
        %v5949 = vsel %vm356, %v5944, %v5948
        %v5951 = vshrl.u32 %v5594, 16
        %v5953 = vrot.slane %v5951, 4
        %v5954 = vshll.u32 %v5594, 16
        %v5956 = vrot.slane %v5954, 5
        %v5957 = vor.u32 %v5953, %v5956
        %v5958 = vrot.slane %v5957, 4
        %v5960 = vshll.u32 %v5595, 16
        %v5962 = vrot.slane %v5960, 5
        %v5963 = vsel %vm356, %v5958, %v5962
        %v5964 = vshrl.u32 %v5595, 16
        %v5966 = vrot.slane %v5964, 4
        %v5967 = vor.u32 %v5966, %v5962
        %v5968 = vrot.slane %v5967, 4
        %v5970 = vshll.u32 %v5612, 16
        %v5972 = vrot.slane %v5970, 5
        %v5973 = vsel %vm356, %v5968, %v5972
        %v5975 = vshrl.u32 %v5596, 16
        %v5977 = vrot.slane %v5975, 4
        %v5978 = vshll.u32 %v5596, 16
        %v5980 = vrot.slane %v5978, 5
        %v5981 = vor.u32 %v5977, %v5980
        %v5982 = vrot.slane %v5981, 4
        %v5984 = vshll.u32 %v5597, 16
        %v5986 = vrot.slane %v5984, 5
        %v5987 = vsel %vm356, %v5982, %v5986
        %v5988 = vshrl.u32 %v5597, 16
        %v5990 = vrot.slane %v5988, 4
        %v5991 = vor.u32 %v5990, %v5986
        %v5992 = vrot.slane %v5991, 4
        %v5994 = vshll.u32 %v5613, 16
        %v5996 = vrot.slane %v5994, 5
        %v5997 = vsel %vm356, %v5992, %v5996
        %v5998 = vld [vmem:[%s5565] sm:$0xe]
        %v5999 = vld [vmem:[%s5565 + $0xc] sm:$0xe]
        %v6000 = vld [vmem:[%s5565 + $0x18] sm:$0xe]
        %v6001 = vld [vmem:[%s5565 + $0x24] sm:$0xe]
        %v6002 = vld [vmem:[%s5565 + $0x30] sm:$0xe]
        %v6003 = vld [vmem:[%s5565 + $0x3c] sm:$0xe]
        %v6004 = vld [vmem:[%s5565 + $0x48] sm:$0xe]
        %v6005 = vld [vmem:[%s5565 + $0x54] sm:$0xe]
        %v6006 = vld [vmem:[%s5565 + $0x60] sm:$0xe]
        %v6007 = vld [vmem:[%s5565 + $0x6c] sm:$0xe]
        %v6008 = vld [vmem:[%s5565 + $0x78] sm:$0xe]
        %v6009 = vld [vmem:[%s5565 + $0x84] sm:$0xe]
        %v6010 = vld [vmem:[%s5565 + $0x90] sm:$0xe]
        %v6011 = vld [vmem:[%s5565 + $0x9c] sm:$0xe]
        %v6012 = vld [vmem:[%s5565 + $0xa8] sm:$0xe]
        %v6013 = vld [vmem:[%s5565 + $0xb4] sm:$0xe]
        %v6062 = vrot.slane %v5998, 5
        %v6063 = vrot.slane %v6062, 4
        %v6064 = vrot.slane %v5567, 5
        %v6065 = vsel %vm1271, %v6063, %v6064
        %v6066 = vrot.slane %v6064, 4
        %v6067 = vrot.slane %v5598, 5
        %v6068 = vsel %vm1271, %v6066, %v6067
        %v6069 = vrot.slane %v5999, 5
        %v6070 = vrot.slane %v6069, 4
        %v6071 = vrot.slane %v5569, 5
        %v6072 = vsel %vm1271, %v6070, %v6071
        %v6073 = vrot.slane %v6071, 4
        %v6074 = vrot.slane %v5599, 5
        %v6075 = vsel %vm1271, %v6073, %v6074
        %v6076 = vrot.slane %v6000, 5
        %v6077 = vrot.slane %v6076, 4
        %v6078 = vrot.slane %v5571, 5
        %v6079 = vsel %vm1271, %v6077, %v6078
        %v6080 = vrot.slane %v6078, 4
        %v6081 = vrot.slane %v5600, 5
        %v6082 = vsel %vm1271, %v6080, %v6081
        %v6083 = vrot.slane %v6001, 5
        %v6084 = vrot.slane %v6083, 4
        %v6085 = vrot.slane %v5573, 5
        %v6086 = vsel %vm1271, %v6084, %v6085
        %v6087 = vrot.slane %v6085, 4
        %v6088 = vrot.slane %v5601, 5
        %v6089 = vsel %vm1271, %v6087, %v6088
        %v6090 = vrot.slane %v6002, 5
        %v6091 = vrot.slane %v6090, 4
        %v6092 = vrot.slane %v5575, 5
        %v6093 = vsel %vm1271, %v6091, %v6092
        %v6094 = vrot.slane %v6092, 4
        %v6095 = vrot.slane %v5602, 5
        %v6096 = vsel %vm1271, %v6094, %v6095
        %v6097 = vrot.slane %v6003, 5
        %v6098 = vrot.slane %v6097, 4
        %v6099 = vrot.slane %v5577, 5
        %v6100 = vsel %vm1271, %v6098, %v6099
        %v6101 = vrot.slane %v6099, 4
        %v6102 = vrot.slane %v5603, 5
        %v6103 = vsel %vm1271, %v6101, %v6102
        %v6104 = vrot.slane %v6004, 5
        %v6105 = vrot.slane %v6104, 4
        %v6106 = vrot.slane %v5579, 5
        %v6107 = vsel %vm1271, %v6105, %v6106
        %v6108 = vrot.slane %v6106, 4
        %v6109 = vrot.slane %v5604, 5
        %v6110 = vsel %vm1271, %v6108, %v6109
        %v6111 = vrot.slane %v6005, 5
        %v6112 = vrot.slane %v6111, 4
        %v6113 = vrot.slane %v5581, 5
        %v6114 = vsel %vm1271, %v6112, %v6113
        %v6115 = vrot.slane %v6113, 4
        %v6116 = vrot.slane %v5605, 5
        %v6117 = vsel %vm1271, %v6115, %v6116
        %v6118 = vrot.slane %v6006, 5
        %v6119 = vrot.slane %v6118, 4
        %v6120 = vrot.slane %v5583, 5
        %v6121 = vsel %vm1271, %v6119, %v6120
        %v6122 = vrot.slane %v6120, 4
        %v6123 = vrot.slane %v5606, 5
        %v6124 = vsel %vm1271, %v6122, %v6123
        %v6125 = vrot.slane %v6007, 5
        %v6126 = vrot.slane %v6125, 4
        %v6127 = vrot.slane %v5585, 5
        %v6128 = vsel %vm1271, %v6126, %v6127
        %v6129 = vrot.slane %v6127, 4
        %v6130 = vrot.slane %v5607, 5
        %v6131 = vsel %vm1271, %v6129, %v6130
        %v6132 = vrot.slane %v6008, 5
        %v6133 = vrot.slane %v6132, 4
        %v6134 = vrot.slane %v5587, 5
        %v6135 = vsel %vm1271, %v6133, %v6134
        %v6136 = vrot.slane %v6134, 4
        %v6137 = vrot.slane %v5608, 5
        %v6138 = vsel %vm1271, %v6136, %v6137
        %v6139 = vrot.slane %v6009, 5
        %v6140 = vrot.slane %v6139, 4
        %v6141 = vrot.slane %v5589, 5
        %v6142 = vsel %vm1271, %v6140, %v6141
        %v6143 = vrot.slane %v6141, 4
        %v6144 = vrot.slane %v5609, 5
        %v6145 = vsel %vm1271, %v6143, %v6144
        %v6146 = vrot.slane %v6010, 5
        %v6147 = vrot.slane %v6146, 4
        %v6148 = vrot.slane %v5591, 5
        %v6149 = vsel %vm1271, %v6147, %v6148
        %v6150 = vrot.slane %v6148, 4
        %v6151 = vrot.slane %v5610, 5
        %v6152 = vsel %vm1271, %v6150, %v6151
        %v6153 = vrot.slane %v6011, 5
        %v6154 = vrot.slane %v6153, 4
        %v6155 = vrot.slane %v5593, 5
        %v6156 = vsel %vm1271, %v6154, %v6155
        %v6157 = vrot.slane %v6155, 4
        %v6158 = vrot.slane %v5611, 5
        %v6159 = vsel %vm1271, %v6157, %v6158
        %v6160 = vrot.slane %v6012, 5
        %v6161 = vrot.slane %v6160, 4
        %v6162 = vrot.slane %v5595, 5
        %v6163 = vsel %vm1271, %v6161, %v6162
        %v6164 = vrot.slane %v6162, 4
        %v6165 = vrot.slane %v5612, 5
        %v6166 = vsel %vm1271, %v6164, %v6165
        %v6167 = vrot.slane %v6013, 5
        %v6168 = vrot.slane %v6167, 4
        %v6169 = vrot.slane %v5597, 5
        %v6170 = vsel %vm1271, %v6168, %v6169
        %v6171 = vrot.slane %v6169, 4
        %v6172 = vrot.slane %v5613, 5
        %v6173 = vsel %vm1271, %v6171, %v6172
        %v6190 = vunpack.c.l.b16 %v4349
        %v6191 = vunpack.c.l.b16 %v4350
        %v6192 = vunpack.c.l.b16 %v4351
        %v6193 = vunpack.c.l.b16 %v4352
        %v6194 = vunpack.c.l.b16 %v4353
        %v6195 = vunpack.c.l.b16 %v4354
        %v6196 = vunpack.c.l.b16 %v4355
        %v6197 = vunpack.c.l.b16 %v4356
        %v6198 = vunpack.c.l.b16 %v4357
        %v6199 = vunpack.c.l.b16 %v4358
        %v6200 = vunpack.c.l.b16 %v4359
        %v6201 = vunpack.c.l.b16 %v4360
        %v6202 = vunpack.c.l.b16 %v4361
        %v6203 = vunpack.c.l.b16 %v4362
        %v6204 = vunpack.c.l.b16 %v4363
        %v6205 = vunpack.c.l.b16 %v4364
        %v6206 = vunpack.c.l.b16 %v4365
        %v6207 = vunpack.c.l.b16 %v4366
        %v6208 = vunpack.c.l.b16 %v4367
        %v6209 = vunpack.c.l.b16 %v4368
        %v6210 = vunpack.c.l.b16 %v4369
        %v6211 = vunpack.c.l.b16 %v4370
        %v6212 = vunpack.c.l.b16 %v4371
        %v6213 = vunpack.c.l.b16 %v4372
        %v6214 = vunpack.c.l.b16 %v4373
        %v6215 = vunpack.c.l.b16 %v4374
        %v6216 = vunpack.c.l.b16 %v4375
        %v6217 = vunpack.c.l.b16 %v4376
        %v6218 = vunpack.c.l.b16 %v4377
        %v6219 = vunpack.c.l.b16 %v4378
        %v6220 = vunpack.c.l.b16 %v4379
        %v6221 = vunpack.c.l.b16 %v4380
        %v6222 = vpack.c.b16 %v6191, %v6190
        %v6223 = vpack.c.b16 %v6193, %v6192
        %v6224 = vpack.c.b16 %v6195, %v6194
        %v6225 = vpack.c.b16 %v6197, %v6196
        %v6226 = vpack.c.b16 %v6199, %v6198
        %v6227 = vpack.c.b16 %v6201, %v6200
        %v6228 = vpack.c.b16 %v6203, %v6202
        %v6229 = vpack.c.b16 %v6205, %v6204
        %v6230 = vpack.c.b16 %v6207, %v6206
        %v6231 = vpack.c.b16 %v6209, %v6208
        %v6232 = vpack.c.b16 %v6211, %v6210
        %v6233 = vpack.c.b16 %v6213, %v6212
        %v6234 = vpack.c.b16 %v6215, %v6214
        %v6235 = vpack.c.b16 %v6217, %v6216
        %v6236 = vpack.c.b16 %v6219, %v6218
        %v6237 = vpack.c.b16 %v6221, %v6220
        %v6238 = vunpack.c.l.b16 %v4410
        %v6239 = vunpack.c.l.b16 %v4420
        %v6240 = vunpack.c.l.b16 %v4434
        %v6241 = vunpack.c.l.b16 %v4444
        %v6242 = vunpack.c.l.b16 %v4458
        %v6243 = vunpack.c.l.b16 %v4468
        %v6244 = vunpack.c.l.b16 %v4482
        %v6245 = vunpack.c.l.b16 %v4492
        %v6246 = vunpack.c.l.b16 %v4506
        %v6247 = vunpack.c.l.b16 %v4516
        %v6248 = vunpack.c.l.b16 %v4530
        %v6249 = vunpack.c.l.b16 %v4540
        %v6250 = vunpack.c.l.b16 %v4554
        %v6251 = vunpack.c.l.b16 %v4564
        %v6252 = vunpack.c.l.b16 %v4578
        %v6253 = vunpack.c.l.b16 %v4588
        %v6254 = vunpack.c.l.b16 %v4602
        %v6255 = vunpack.c.l.b16 %v4612
        %v6256 = vunpack.c.l.b16 %v4626
        %v6257 = vunpack.c.l.b16 %v4636
        %v6258 = vunpack.c.l.b16 %v4650
        %v6259 = vunpack.c.l.b16 %v4660
        %v6260 = vunpack.c.l.b16 %v4674
        %v6261 = vunpack.c.l.b16 %v4684
        %v6262 = vunpack.c.l.b16 %v4698
        %v6263 = vunpack.c.l.b16 %v4708
        %v6264 = vunpack.c.l.b16 %v4722
        %v6265 = vunpack.c.l.b16 %v4732
        %v6266 = vunpack.c.l.b16 %v4746
        %v6267 = vunpack.c.l.b16 %v4756
        %v6268 = vunpack.c.l.b16 %v4770
        %v6269 = vunpack.c.l.b16 %v4780
        %v6270 = vpack.c.b16 %v6239, %v6238
        %v6271 = vpack.c.b16 %v6241, %v6240
        %v6272 = vpack.c.b16 %v6243, %v6242
        %v6273 = vpack.c.b16 %v6245, %v6244
        %v6274 = vpack.c.b16 %v6247, %v6246
        %v6275 = vpack.c.b16 %v6249, %v6248
        %v6276 = vpack.c.b16 %v6251, %v6250
        %v6277 = vpack.c.b16 %v6253, %v6252
        %v6278 = vpack.c.b16 %v6255, %v6254
        %v6279 = vpack.c.b16 %v6257, %v6256
        %v6280 = vpack.c.b16 %v6259, %v6258
        %v6281 = vpack.c.b16 %v6261, %v6260
        %v6282 = vpack.c.b16 %v6263, %v6262
        %v6283 = vpack.c.b16 %v6265, %v6264
        %v6284 = vpack.c.b16 %v6267, %v6266
        %v6285 = vpack.c.b16 %v6269, %v6268
        %6286 = vrot.lane.b32.xlu0 %v6270, 64
        %v6287 = vpop.permute.xlu0 %6286
        %6288 = vrot.lane.b32.xlu0 %v6271, 64
        %v6289 = vpop.permute.xlu0 %6288
        %6290 = vrot.lane.b32.xlu0 %v6272, 64
        %v6291 = vpop.permute.xlu0 %6290
        %6292 = vrot.lane.b32.xlu0 %v6273, 64
        %v6293 = vpop.permute.xlu0 %6292
        %6294 = vrot.lane.b32.xlu0 %v6274, 64
        %v6295 = vpop.permute.xlu0 %6294
        %6296 = vrot.lane.b32.xlu0 %v6275, 64
        %v6297 = vpop.permute.xlu0 %6296
        %6298 = vrot.lane.b32.xlu0 %v6276, 64
        %v6299 = vpop.permute.xlu0 %6298
        %6300 = vrot.lane.b32.xlu0 %v6277, 64
        %v6301 = vpop.permute.xlu0 %6300
        %6302 = vrot.lane.b32.xlu0 %v6278, 64
        %v6303 = vpop.permute.xlu0 %6302
        %6304 = vrot.lane.b32.xlu0 %v6279, 64
        %v6305 = vpop.permute.xlu0 %6304
        %6306 = vrot.lane.b32.xlu0 %v6280, 64
        %v6307 = vpop.permute.xlu0 %6306
        %6308 = vrot.lane.b32.xlu0 %v6281, 64
        %v6309 = vpop.permute.xlu0 %6308
        %6310 = vrot.lane.b32.xlu0 %v6282, 64
        %v6311 = vpop.permute.xlu0 %6310
        %6312 = vrot.lane.b32.xlu0 %v6283, 64
        %v6313 = vpop.permute.xlu0 %6312
        %6314 = vrot.lane.b32.xlu0 %v6284, 64
        %v6315 = vpop.permute.xlu0 %6314
        %6316 = vrot.lane.b32.xlu0 %v6285, 64
        %v6317 = vpop.permute.xlu0 %6316
        %v6318 = vunpack.c.l.b16 %v4848
        %v6319 = vunpack.c.l.b16 %v4851
        %v6320 = vunpack.c.l.b16 %v4855
        %v6321 = vunpack.c.l.b16 %v4858
        %v6322 = vunpack.c.l.b16 %v4862
        %v6323 = vunpack.c.l.b16 %v4865
        %v6324 = vunpack.c.l.b16 %v4869
        %v6325 = vunpack.c.l.b16 %v4872
        %v6326 = vunpack.c.l.b16 %v4876
        %v6327 = vunpack.c.l.b16 %v4879
        %v6328 = vunpack.c.l.b16 %v4883
        %v6329 = vunpack.c.l.b16 %v4886
        %v6330 = vunpack.c.l.b16 %v4890
        %v6331 = vunpack.c.l.b16 %v4893
        %v6332 = vunpack.c.l.b16 %v4897
        %v6333 = vunpack.c.l.b16 %v4900
        %v6334 = vunpack.c.l.b16 %v4904
        %v6335 = vunpack.c.l.b16 %v4907
        %v6336 = vunpack.c.l.b16 %v4911
        %v6337 = vunpack.c.l.b16 %v4914
        %v6338 = vunpack.c.l.b16 %v4918
        %v6339 = vunpack.c.l.b16 %v4921
        %v6340 = vunpack.c.l.b16 %v4925
        %v6341 = vunpack.c.l.b16 %v4928
        %v6342 = vunpack.c.l.b16 %v4932
        %v6343 = vunpack.c.l.b16 %v4935
        %v6344 = vunpack.c.l.b16 %v4939
        %v6345 = vunpack.c.l.b16 %v4942
        %v6346 = vunpack.c.l.b16 %v4946
        %v6347 = vunpack.c.l.b16 %v4949
        %v6348 = vunpack.c.l.b16 %v4953
        %v6349 = vunpack.c.l.b16 %v4956
        %v6350 = vpack.c.b16 %v6319, %v6318
        %v6351 = vpack.c.b16 %v6321, %v6320
        %v6352 = vpack.c.b16 %v6323, %v6322
        %v6353 = vpack.c.b16 %v6325, %v6324
        %v6354 = vpack.c.b16 %v6327, %v6326
        %v6355 = vpack.c.b16 %v6329, %v6328
        %v6356 = vpack.c.b16 %v6331, %v6330
        %v6357 = vpack.c.b16 %v6333, %v6332
        %v6358 = vpack.c.b16 %v6335, %v6334
        %v6359 = vpack.c.b16 %v6337, %v6336
        %v6360 = vpack.c.b16 %v6339, %v6338
        %v6361 = vpack.c.b16 %v6341, %v6340
        %v6362 = vpack.c.b16 %v6343, %v6342
        %v6363 = vpack.c.b16 %v6345, %v6344
        %v6364 = vpack.c.b16 %v6347, %v6346
        %v6365 = vpack.c.b16 %v6349, %v6348
        %v6382 = vunpack.c.l.b16 %v4957
        %v6383 = vunpack.c.l.b16 %v4958
        %v6384 = vunpack.c.l.b16 %v4959
        %v6385 = vunpack.c.l.b16 %v4960
        %v6386 = vunpack.c.l.b16 %v4961
        %v6387 = vunpack.c.l.b16 %v4962
        %v6388 = vunpack.c.l.b16 %v4963
        %v6389 = vunpack.c.l.b16 %v4964
        %v6390 = vunpack.c.l.b16 %v4965
        %v6391 = vunpack.c.l.b16 %v4966
        %v6392 = vunpack.c.l.b16 %v4967
        %v6393 = vunpack.c.l.b16 %v4968
        %v6394 = vunpack.c.l.b16 %v4969
        %v6395 = vunpack.c.l.b16 %v4970
        %v6396 = vunpack.c.l.b16 %v4971
        %v6397 = vunpack.c.l.b16 %v4972
        %v6398 = vunpack.c.l.b16 %v4973
        %v6399 = vunpack.c.l.b16 %v4974
        %v6400 = vunpack.c.l.b16 %v4975
        %v6401 = vunpack.c.l.b16 %v4976
        %v6402 = vunpack.c.l.b16 %v4977
        %v6403 = vunpack.c.l.b16 %v4978
        %v6404 = vunpack.c.l.b16 %v4979
        %v6405 = vunpack.c.l.b16 %v4980
        %v6406 = vunpack.c.l.b16 %v4981
        %v6407 = vunpack.c.l.b16 %v4982
        %v6408 = vunpack.c.l.b16 %v4983
        %v6409 = vunpack.c.l.b16 %v4984
        %v6410 = vunpack.c.l.b16 %v4985
        %v6411 = vunpack.c.l.b16 %v4986
        %v6412 = vunpack.c.l.b16 %v4987
        %v6413 = vunpack.c.l.b16 %v4988
        %v6414 = vpack.c.b16 %v6383, %v6382
        %v6415 = vpack.c.b16 %v6385, %v6384
        %v6416 = vpack.c.b16 %v6387, %v6386
        %v6417 = vpack.c.b16 %v6389, %v6388
        %v6418 = vpack.c.b16 %v6391, %v6390
        %v6419 = vpack.c.b16 %v6393, %v6392
        %v6420 = vpack.c.b16 %v6395, %v6394
        %v6421 = vpack.c.b16 %v6397, %v6396
        %v6422 = vpack.c.b16 %v6399, %v6398
        %v6423 = vpack.c.b16 %v6401, %v6400
        %v6424 = vpack.c.b16 %v6403, %v6402
        %v6425 = vpack.c.b16 %v6405, %v6404
        %v6426 = vpack.c.b16 %v6407, %v6406
        %v6427 = vpack.c.b16 %v6409, %v6408
        %v6428 = vpack.c.b16 %v6411, %v6410
        %v6429 = vpack.c.b16 %v6413, %v6412
        %6430 = vrot.lane.b32.xlu0 %v6414, 64
        %v6431 = vpop.permute.xlu0 %6430
        %6432 = vrot.lane.b32.xlu0 %v6415, 64
        %v6433 = vpop.permute.xlu0 %6432
        %6434 = vrot.lane.b32.xlu0 %v6416, 64
        %v6435 = vpop.permute.xlu0 %6434
        %6436 = vrot.lane.b32.xlu0 %v6417, 64
        %v6437 = vpop.permute.xlu0 %6436
        %6438 = vrot.lane.b32.xlu0 %v6418, 64
        %v6439 = vpop.permute.xlu0 %6438
        %6440 = vrot.lane.b32.xlu0 %v6419, 64
        %v6441 = vpop.permute.xlu0 %6440
        %6442 = vrot.lane.b32.xlu0 %v6420, 64
        %v6443 = vpop.permute.xlu0 %6442
        %6444 = vrot.lane.b32.xlu0 %v6421, 64
        %v6445 = vpop.permute.xlu0 %6444
        %6446 = vrot.lane.b32.xlu0 %v6422, 64
        %v6447 = vpop.permute.xlu0 %6446
        %6448 = vrot.lane.b32.xlu0 %v6423, 64
        %v6449 = vpop.permute.xlu0 %6448
        %6450 = vrot.lane.b32.xlu0 %v6424, 64
        %v6451 = vpop.permute.xlu0 %6450
        %6452 = vrot.lane.b32.xlu0 %v6425, 64
        %v6453 = vpop.permute.xlu0 %6452
        %6454 = vrot.lane.b32.xlu0 %v6426, 64
        %v6455 = vpop.permute.xlu0 %6454
        %6456 = vrot.lane.b32.xlu0 %v6427, 64
        %v6457 = vpop.permute.xlu0 %6456
        %6458 = vrot.lane.b32.xlu0 %v6428, 64
        %v6459 = vpop.permute.xlu0 %6458
        %6460 = vrot.lane.b32.xlu0 %v6429, 64
        %v6461 = vpop.permute.xlu0 %6460
        %v6462 = vunpack.c.l.b16 %v5018
        %v6463 = vunpack.c.l.b16 %v5028
        %v6464 = vunpack.c.l.b16 %v5042
        %v6465 = vunpack.c.l.b16 %v5052
        %v6466 = vunpack.c.l.b16 %v5066
        %v6467 = vunpack.c.l.b16 %v5076
        %v6468 = vunpack.c.l.b16 %v5090
        %v6469 = vunpack.c.l.b16 %v5100
        %v6470 = vunpack.c.l.b16 %v5114
        %v6471 = vunpack.c.l.b16 %v5124
        %v6472 = vunpack.c.l.b16 %v5138
        %v6473 = vunpack.c.l.b16 %v5148
        %v6474 = vunpack.c.l.b16 %v5162
        %v6475 = vunpack.c.l.b16 %v5172
        %v6476 = vunpack.c.l.b16 %v5186
        %v6477 = vunpack.c.l.b16 %v5196
        %v6478 = vunpack.c.l.b16 %v5210
        %v6479 = vunpack.c.l.b16 %v5220
        %v6480 = vunpack.c.l.b16 %v5234
        %v6481 = vunpack.c.l.b16 %v5244
        %v6482 = vunpack.c.l.b16 %v5258
        %v6483 = vunpack.c.l.b16 %v5268
        %v6484 = vunpack.c.l.b16 %v5282
        %v6485 = vunpack.c.l.b16 %v5292
        %v6486 = vunpack.c.l.b16 %v5306
        %v6487 = vunpack.c.l.b16 %v5316
        %v6488 = vunpack.c.l.b16 %v5330
        %v6489 = vunpack.c.l.b16 %v5340
        %v6490 = vunpack.c.l.b16 %v5354
        %v6491 = vunpack.c.l.b16 %v5364
        %v6492 = vunpack.c.l.b16 %v5378
        %v6493 = vunpack.c.l.b16 %v5388
        %v6494 = vpack.c.b16 %v6463, %v6462
        %v6495 = vpack.c.b16 %v6465, %v6464
        %v6496 = vpack.c.b16 %v6467, %v6466
        %v6497 = vpack.c.b16 %v6469, %v6468
        %v6498 = vpack.c.b16 %v6471, %v6470
        %v6499 = vpack.c.b16 %v6473, %v6472
        %v6500 = vpack.c.b16 %v6475, %v6474
        %v6501 = vpack.c.b16 %v6477, %v6476
        %v6502 = vpack.c.b16 %v6479, %v6478
        %v6503 = vpack.c.b16 %v6481, %v6480
        %v6504 = vpack.c.b16 %v6483, %v6482
        %v6505 = vpack.c.b16 %v6485, %v6484
        %v6506 = vpack.c.b16 %v6487, %v6486
        %v6507 = vpack.c.b16 %v6489, %v6488
        %v6508 = vpack.c.b16 %v6491, %v6490
        %v6509 = vpack.c.b16 %v6493, %v6492
        %v6510 = vunpack.c.l.b16 %v5456
        %v6511 = vunpack.c.l.b16 %v5459
        %v6512 = vunpack.c.l.b16 %v5463
        %v6513 = vunpack.c.l.b16 %v5466
        %v6514 = vunpack.c.l.b16 %v5470
        %v6515 = vunpack.c.l.b16 %v5473
        %v6516 = vunpack.c.l.b16 %v5477
        %v6517 = vunpack.c.l.b16 %v5480
        %v6518 = vunpack.c.l.b16 %v5484
        %v6519 = vunpack.c.l.b16 %v5487
        %v6520 = vunpack.c.l.b16 %v5491
        %v6521 = vunpack.c.l.b16 %v5494
        %v6522 = vunpack.c.l.b16 %v5498
        %v6523 = vunpack.c.l.b16 %v5501
        %v6524 = vunpack.c.l.b16 %v5505
        %v6525 = vunpack.c.l.b16 %v5508
        %v6526 = vunpack.c.l.b16 %v5512
        %v6527 = vunpack.c.l.b16 %v5515
        %v6528 = vunpack.c.l.b16 %v5519
        %v6529 = vunpack.c.l.b16 %v5522
        %v6530 = vunpack.c.l.b16 %v5526
        %v6531 = vunpack.c.l.b16 %v5529
        %v6532 = vunpack.c.l.b16 %v5533
        %v6533 = vunpack.c.l.b16 %v5536
        %v6534 = vunpack.c.l.b16 %v5540
        %v6535 = vunpack.c.l.b16 %v5543
        %v6536 = vunpack.c.l.b16 %v5547
        %v6537 = vunpack.c.l.b16 %v5550
        %v6538 = vunpack.c.l.b16 %v5554
        %v6539 = vunpack.c.l.b16 %v5557
        %v6540 = vunpack.c.l.b16 %v5561
        %v6541 = vunpack.c.l.b16 %v5564
        %v6542 = vpack.c.b16 %v6511, %v6510
        %v6543 = vpack.c.b16 %v6513, %v6512
        %v6544 = vpack.c.b16 %v6515, %v6514
        %v6545 = vpack.c.b16 %v6517, %v6516
        %v6546 = vpack.c.b16 %v6519, %v6518
        %v6547 = vpack.c.b16 %v6521, %v6520
        %v6548 = vpack.c.b16 %v6523, %v6522
        %v6549 = vpack.c.b16 %v6525, %v6524
        %v6550 = vpack.c.b16 %v6527, %v6526
        %v6551 = vpack.c.b16 %v6529, %v6528
        %v6552 = vpack.c.b16 %v6531, %v6530
        %v6553 = vpack.c.b16 %v6533, %v6532
        %v6554 = vpack.c.b16 %v6535, %v6534
        %v6555 = vpack.c.b16 %v6537, %v6536
        %v6556 = vpack.c.b16 %v6539, %v6538
        %v6557 = vpack.c.b16 %v6541, %v6540
        %6558 = vrot.lane.b32.xlu0 %v6542, 64
        %v6559 = vpop.permute.xlu0 %6558
        %6560 = vrot.lane.b32.xlu0 %v6543, 64
        %v6561 = vpop.permute.xlu0 %6560
        %6562 = vrot.lane.b32.xlu0 %v6544, 64
        %v6563 = vpop.permute.xlu0 %6562
        %6564 = vrot.lane.b32.xlu0 %v6545, 64
        %v6565 = vpop.permute.xlu0 %6564
        %6566 = vrot.lane.b32.xlu0 %v6546, 64
        %v6567 = vpop.permute.xlu0 %6566
        %6568 = vrot.lane.b32.xlu0 %v6547, 64
        %v6569 = vpop.permute.xlu0 %6568
        %6570 = vrot.lane.b32.xlu0 %v6548, 64
        %v6571 = vpop.permute.xlu0 %6570
        %6572 = vrot.lane.b32.xlu0 %v6549, 64
        %v6573 = vpop.permute.xlu0 %6572
        %6574 = vrot.lane.b32.xlu0 %v6550, 64
        %v6575 = vpop.permute.xlu0 %6574
        %6576 = vrot.lane.b32.xlu0 %v6551, 64
        %v6577 = vpop.permute.xlu0 %6576
        %6578 = vrot.lane.b32.xlu0 %v6552, 64
        %v6579 = vpop.permute.xlu0 %6578
        %6580 = vrot.lane.b32.xlu0 %v6553, 64
        %v6581 = vpop.permute.xlu0 %6580
        %6582 = vrot.lane.b32.xlu0 %v6554, 64
        %v6583 = vpop.permute.xlu0 %6582
        %6584 = vrot.lane.b32.xlu0 %v6555, 64
        %v6585 = vpop.permute.xlu0 %6584
        %6586 = vrot.lane.b32.xlu0 %v6556, 64
        %v6587 = vpop.permute.xlu0 %6586
        %6588 = vrot.lane.b32.xlu0 %v6557, 64
        %v6589 = vpop.permute.xlu0 %6588
        %v6606 = vunpack.c.l.b16 %v5566
        %v6607 = vunpack.c.l.b16 %v5567
        %v6608 = vunpack.c.l.b16 %v5568
        %v6609 = vunpack.c.l.b16 %v5569
        %v6610 = vunpack.c.l.b16 %v5570
        %v6611 = vunpack.c.l.b16 %v5571
        %v6612 = vunpack.c.l.b16 %v5572
        %v6613 = vunpack.c.l.b16 %v5573
        %v6614 = vunpack.c.l.b16 %v5574
        %v6615 = vunpack.c.l.b16 %v5575
        %v6616 = vunpack.c.l.b16 %v5576
        %v6617 = vunpack.c.l.b16 %v5577
        %v6618 = vunpack.c.l.b16 %v5578
        %v6619 = vunpack.c.l.b16 %v5579
        %v6620 = vunpack.c.l.b16 %v5580
        %v6621 = vunpack.c.l.b16 %v5581
        %v6622 = vunpack.c.l.b16 %v5582
        %v6623 = vunpack.c.l.b16 %v5583
        %v6624 = vunpack.c.l.b16 %v5584
        %v6625 = vunpack.c.l.b16 %v5585
        %v6626 = vunpack.c.l.b16 %v5586
        %v6627 = vunpack.c.l.b16 %v5587
        %v6628 = vunpack.c.l.b16 %v5588
        %v6629 = vunpack.c.l.b16 %v5589
        %v6630 = vunpack.c.l.b16 %v5590
        %v6631 = vunpack.c.l.b16 %v5591
        %v6632 = vunpack.c.l.b16 %v5592
        %v6633 = vunpack.c.l.b16 %v5593
        %v6634 = vunpack.c.l.b16 %v5594
        %v6635 = vunpack.c.l.b16 %v5595
        %v6636 = vunpack.c.l.b16 %v5596
        %v6637 = vunpack.c.l.b16 %v5597
        %v6638 = vpack.c.b16 %v6607, %v6606
        %v6639 = vpack.c.b16 %v6609, %v6608
        %v6640 = vpack.c.b16 %v6611, %v6610
        %v6641 = vpack.c.b16 %v6613, %v6612
        %v6642 = vpack.c.b16 %v6615, %v6614
        %v6643 = vpack.c.b16 %v6617, %v6616
        %v6644 = vpack.c.b16 %v6619, %v6618
        %v6645 = vpack.c.b16 %v6621, %v6620
        %v6646 = vpack.c.b16 %v6623, %v6622
        %v6647 = vpack.c.b16 %v6625, %v6624
        %v6648 = vpack.c.b16 %v6627, %v6626
        %v6649 = vpack.c.b16 %v6629, %v6628
        %v6650 = vpack.c.b16 %v6631, %v6630
        %v6651 = vpack.c.b16 %v6633, %v6632
        %v6652 = vpack.c.b16 %v6635, %v6634
        %v6653 = vpack.c.b16 %v6637, %v6636
        %v6654 = vunpack.c.l.b16 %v5627
        %v6655 = vunpack.c.l.b16 %v5637
        %v6656 = vunpack.c.l.b16 %v5651
        %v6657 = vunpack.c.l.b16 %v5661
        %v6658 = vunpack.c.l.b16 %v5675
        %v6659 = vunpack.c.l.b16 %v5685
        %v6660 = vunpack.c.l.b16 %v5699
        %v6661 = vunpack.c.l.b16 %v5709
        %v6662 = vunpack.c.l.b16 %v5723
        %v6663 = vunpack.c.l.b16 %v5733
        %v6664 = vunpack.c.l.b16 %v5747
        %v6665 = vunpack.c.l.b16 %v5757
        %v6666 = vunpack.c.l.b16 %v5771
        %v6667 = vunpack.c.l.b16 %v5781
        %v6668 = vunpack.c.l.b16 %v5795
        %v6669 = vunpack.c.l.b16 %v5805
        %v6670 = vunpack.c.l.b16 %v5819
        %v6671 = vunpack.c.l.b16 %v5829
        %v6672 = vunpack.c.l.b16 %v5843
        %v6673 = vunpack.c.l.b16 %v5853
        %v6674 = vunpack.c.l.b16 %v5867
        %v6675 = vunpack.c.l.b16 %v5877
        %v6676 = vunpack.c.l.b16 %v5891
        %v6677 = vunpack.c.l.b16 %v5901
        %v6678 = vunpack.c.l.b16 %v5915
        %v6679 = vunpack.c.l.b16 %v5925
        %v6680 = vunpack.c.l.b16 %v5939
        %v6681 = vunpack.c.l.b16 %v5949
        %v6682 = vunpack.c.l.b16 %v5963
        %v6683 = vunpack.c.l.b16 %v5973
        %v6684 = vunpack.c.l.b16 %v5987
        %v6685 = vunpack.c.l.b16 %v5997
        %v6686 = vpack.c.b16 %v6655, %v6654
        %v6687 = vpack.c.b16 %v6657, %v6656
        %v6688 = vpack.c.b16 %v6659, %v6658
        %v6689 = vpack.c.b16 %v6661, %v6660
        %v6690 = vpack.c.b16 %v6663, %v6662
        %v6691 = vpack.c.b16 %v6665, %v6664
        %v6692 = vpack.c.b16 %v6667, %v6666
        %v6693 = vpack.c.b16 %v6669, %v6668
        %v6694 = vpack.c.b16 %v6671, %v6670
        %v6695 = vpack.c.b16 %v6673, %v6672
        %v6696 = vpack.c.b16 %v6675, %v6674
        %v6697 = vpack.c.b16 %v6677, %v6676
        %v6698 = vpack.c.b16 %v6679, %v6678
        %v6699 = vpack.c.b16 %v6681, %v6680
        %v6700 = vpack.c.b16 %v6683, %v6682
        %v6701 = vpack.c.b16 %v6685, %v6684
        %6702 = vrot.lane.b32.xlu0 %v6686, 64
        %v6703 = vpop.permute.xlu0 %6702
        %6704 = vrot.lane.b32.xlu0 %v6687, 64
        %v6705 = vpop.permute.xlu0 %6704
        %6706 = vrot.lane.b32.xlu0 %v6688, 64
        %v6707 = vpop.permute.xlu0 %6706
        %6708 = vrot.lane.b32.xlu0 %v6689, 64
        %v6709 = vpop.permute.xlu0 %6708
        %6710 = vrot.lane.b32.xlu0 %v6690, 64
        %v6711 = vpop.permute.xlu0 %6710
        %6712 = vrot.lane.b32.xlu0 %v6691, 64
        %v6713 = vpop.permute.xlu0 %6712
        %6714 = vrot.lane.b32.xlu0 %v6692, 64
        %v6715 = vpop.permute.xlu0 %6714
        %6716 = vrot.lane.b32.xlu0 %v6693, 64
        %v6717 = vpop.permute.xlu0 %6716
        %6718 = vrot.lane.b32.xlu0 %v6694, 64
        %v6719 = vpop.permute.xlu0 %6718
        %6720 = vrot.lane.b32.xlu0 %v6695, 64
        %v6721 = vpop.permute.xlu0 %6720
        %6722 = vrot.lane.b32.xlu0 %v6696, 64
        %v6723 = vpop.permute.xlu0 %6722
        %6724 = vrot.lane.b32.xlu0 %v6697, 64
        %v6725 = vpop.permute.xlu0 %6724
        %6726 = vrot.lane.b32.xlu0 %v6698, 64
        %v6727 = vpop.permute.xlu0 %6726
        %6728 = vrot.lane.b32.xlu0 %v6699, 64
        %v6729 = vpop.permute.xlu0 %6728
        %6730 = vrot.lane.b32.xlu0 %v6700, 64
        %v6731 = vpop.permute.xlu0 %6730
        %6732 = vrot.lane.b32.xlu0 %v6701, 64
        %v6733 = vpop.permute.xlu0 %6732
        %v6734 = vunpack.c.l.b16 %v6065
        %v6735 = vunpack.c.l.b16 %v6068
        %v6736 = vunpack.c.l.b16 %v6072
        %v6737 = vunpack.c.l.b16 %v6075
        %v6738 = vunpack.c.l.b16 %v6079
        %v6739 = vunpack.c.l.b16 %v6082
        %v6740 = vunpack.c.l.b16 %v6086
        %v6741 = vunpack.c.l.b16 %v6089
        %v6742 = vunpack.c.l.b16 %v6093
        %v6743 = vunpack.c.l.b16 %v6096
        %v6744 = vunpack.c.l.b16 %v6100
        %v6745 = vunpack.c.l.b16 %v6103
        %v6746 = vunpack.c.l.b16 %v6107
        %v6747 = vunpack.c.l.b16 %v6110
        %v6748 = vunpack.c.l.b16 %v6114
        %v6749 = vunpack.c.l.b16 %v6117
        %v6750 = vunpack.c.l.b16 %v6121
        %v6751 = vunpack.c.l.b16 %v6124
        %v6752 = vunpack.c.l.b16 %v6128
        %v6753 = vunpack.c.l.b16 %v6131
        %v6754 = vunpack.c.l.b16 %v6135
        %v6755 = vunpack.c.l.b16 %v6138
        %v6756 = vunpack.c.l.b16 %v6142
        %v6757 = vunpack.c.l.b16 %v6145
        %v6758 = vunpack.c.l.b16 %v6149
        %v6759 = vunpack.c.l.b16 %v6152
        %v6760 = vunpack.c.l.b16 %v6156
        %v6761 = vunpack.c.l.b16 %v6159
        %v6762 = vunpack.c.l.b16 %v6163
        %v6763 = vunpack.c.l.b16 %v6166
        %v6764 = vunpack.c.l.b16 %v6170
        %v6765 = vunpack.c.l.b16 %v6173
        %v6766 = vpack.c.b16 %v6735, %v6734
        %v6767 = vpack.c.b16 %v6737, %v6736
        %v6768 = vpack.c.b16 %v6739, %v6738
        %v6769 = vpack.c.b16 %v6741, %v6740
        %v6770 = vpack.c.b16 %v6743, %v6742
        %v6771 = vpack.c.b16 %v6745, %v6744
        %v6772 = vpack.c.b16 %v6747, %v6746
        %v6773 = vpack.c.b16 %v6749, %v6748
        %v6774 = vpack.c.b16 %v6751, %v6750
        %v6775 = vpack.c.b16 %v6753, %v6752
        %v6776 = vpack.c.b16 %v6755, %v6754
        %v6777 = vpack.c.b16 %v6757, %v6756
        %v6778 = vpack.c.b16 %v6759, %v6758
        %v6779 = vpack.c.b16 %v6761, %v6760
        %v6780 = vpack.c.b16 %v6763, %v6762
        %v6781 = vpack.c.b16 %v6765, %v6764
        %v6784 = vsel %vm2890, %v6222, %v6287
        %v6788 = vsel %vm2890, %v6223, %v6289
        %v6792 = vsel %vm2890, %v6224, %v6291
        %v6796 = vsel %vm2890, %v6225, %v6293
        %v6800 = vsel %vm2890, %v6226, %v6295
        %v6804 = vsel %vm2890, %v6227, %v6297
        %v6808 = vsel %vm2890, %v6228, %v6299
        %v6812 = vsel %vm2890, %v6229, %v6301
        %v6816 = vsel %vm2890, %v6230, %v6303
        %v6820 = vsel %vm2890, %v6231, %v6305
        %v6824 = vsel %vm2890, %v6232, %v6307
        %v6828 = vsel %vm2890, %v6233, %v6309
        %v6832 = vsel %vm2890, %v6234, %v6311
        %v6836 = vsel %vm2890, %v6235, %v6313
        %v6840 = vsel %vm2890, %v6236, %v6315
        %v6844 = vsel %vm2890, %v6237, %v6317
        %v6848 = vsel %vm2890, %v6350, %v6431
        %v6852 = vsel %vm2890, %v6351, %v6433
        %v6856 = vsel %vm2890, %v6352, %v6435
        %v6860 = vsel %vm2890, %v6353, %v6437
        %v6864 = vsel %vm2890, %v6354, %v6439
        %v6868 = vsel %vm2890, %v6355, %v6441
        %v6872 = vsel %vm2890, %v6356, %v6443
        %v6876 = vsel %vm2890, %v6357, %v6445
        %v6880 = vsel %vm2890, %v6358, %v6447
        %v6884 = vsel %vm2890, %v6359, %v6449
        %v6888 = vsel %vm2890, %v6360, %v6451
        %v6892 = vsel %vm2890, %v6361, %v6453
        %v6896 = vsel %vm2890, %v6362, %v6455
        %v6900 = vsel %vm2890, %v6363, %v6457
        %v6904 = vsel %vm2890, %v6364, %v6459
        %v6908 = vsel %vm2890, %v6365, %v6461
        %v6912 = vsel %vm2890, %v6494, %v6559
        %v6916 = vsel %vm2890, %v6495, %v6561
        %v6920 = vsel %vm2890, %v6496, %v6563
        %v6924 = vsel %vm2890, %v6497, %v6565
        %v6928 = vsel %vm2890, %v6498, %v6567
        %v6932 = vsel %vm2890, %v6499, %v6569
        %v6936 = vsel %vm2890, %v6500, %v6571
        %v6940 = vsel %vm2890, %v6501, %v6573
        %v6944 = vsel %vm2890, %v6502, %v6575
        %v6948 = vsel %vm2890, %v6503, %v6577
        %v6952 = vsel %vm2890, %v6504, %v6579
        %v6956 = vsel %vm2890, %v6505, %v6581
        %v6960 = vsel %vm2890, %v6506, %v6583
        %v6964 = vsel %vm2890, %v6507, %v6585
        %v6968 = vsel %vm2890, %v6508, %v6587
        %v6972 = vsel %vm2890, %v6509, %v6589
        %v6976 = vsel %vm2890, %v6638, %v6703
        %v6980 = vsel %vm2890, %v6639, %v6705
        %v6984 = vsel %vm2890, %v6640, %v6707
        %v6988 = vsel %vm2890, %v6641, %v6709
        %v6992 = vsel %vm2890, %v6642, %v6711
        %v6996 = vsel %vm2890, %v6643, %v6713
        %v7000 = vsel %vm2890, %v6644, %v6715
        %v7004 = vsel %vm2890, %v6645, %v6717
        %v7008 = vsel %vm2890, %v6646, %v6719
        %v7012 = vsel %vm2890, %v6647, %v6721
        %v7016 = vsel %vm2890, %v6648, %v6723
        %v7020 = vsel %vm2890, %v6649, %v6725
        %v7024 = vsel %vm2890, %v6650, %v6727
        %v7028 = vsel %vm2890, %v6651, %v6729
        %v7032 = vsel %vm2890, %v6652, %v6731
        %v7036 = vsel %vm2890, %v6653, %v6733
        %v7038 = vld [vmem:[%s4] sm:$0xf]
        %v7039 = vld [vmem:[%s4 + $0x4] sm:$0xf]
        %v7040 = vld [vmem:[%s4 + $0x8] sm:$0xf]
        %v7041 = vld [vmem:[%s4 + $0xc] sm:$0xf]
        %v7042 = vld [vmem:[%s4 + $0x10] sm:$0xf]
        %v7043 = vld [vmem:[%s4 + $0x14] sm:$0xf]
        %v7044 = vld [vmem:[%s4 + $0x18] sm:$0xf]
        %v7045 = vld [vmem:[%s4 + $0x1c] sm:$0xf]
        %v7046 = vld [vmem:[%s4 + $0x20] sm:$0xf]
        %v7047 = vld [vmem:[%s4 + $0x24] sm:$0xf]
        %v7048 = vld [vmem:[%s4 + $0x28] sm:$0xf]
        %v7049 = vld [vmem:[%s4 + $0x2c] sm:$0xf]
        %v7050 = vld [vmem:[%s4 + $0x30] sm:$0xf]
        %v7051 = vld [vmem:[%s4 + $0x34] sm:$0xf]
        %v7052 = vld [vmem:[%s4 + $0x38] sm:$0xf]
        %v7053 = vld [vmem:[%s4 + $0x3c] sm:$0xf]
        %v7054 = vld [vmem:[%s4 + $0x40] sm:$0xf]
        %v7055 = vld [vmem:[%s4 + $0x44] sm:$0xf]
        %v7056 = vld [vmem:[%s4 + $0x48] sm:$0xf]
        %v7057 = vld [vmem:[%s4 + $0x4c] sm:$0xf]
        %v7058 = vld [vmem:[%s4 + $0x50] sm:$0xf]
        %v7059 = vld [vmem:[%s4 + $0x54] sm:$0xf]
        %v7060 = vld [vmem:[%s4 + $0x58] sm:$0xf]
        %v7061 = vld [vmem:[%s4 + $0x5c] sm:$0xf]
        %v7062 = vld [vmem:[%s4 + $0x60] sm:$0xf]
        %v7063 = vld [vmem:[%s4 + $0x64] sm:$0xf]
        %v7064 = vld [vmem:[%s4 + $0x68] sm:$0xf]
        %v7065 = vld [vmem:[%s4 + $0x6c] sm:$0xf]
        %v7066 = vld [vmem:[%s4 + $0x70] sm:$0xf]
        %v7067 = vld [vmem:[%s4 + $0x74] sm:$0xf]
        %v7068 = vld [vmem:[%s4 + $0x78] sm:$0xf]
        %v7069 = vld [vmem:[%s4 + $0x7c] sm:$0xf]
        %v7070 = vld [vmem:[%s4 + $0x80] sm:$0xf]
        %v7071 = vld [vmem:[%s4 + $0x84] sm:$0xf]
        %v7072 = vld [vmem:[%s4 + $0x88] sm:$0xf]
        %v7073 = vld [vmem:[%s4 + $0x8c] sm:$0xf]
        %v7074 = vld [vmem:[%s4 + $0x90] sm:$0xf]
        %v7075 = vld [vmem:[%s4 + $0x94] sm:$0xf]
        %v7076 = vld [vmem:[%s4 + $0x98] sm:$0xf]
        %v7077 = vld [vmem:[%s4 + $0x9c] sm:$0xf]
        %v7078 = vld [vmem:[%s4 + $0xa0] sm:$0xf]
        %v7079 = vld [vmem:[%s4 + $0xa4] sm:$0xf]
        %v7080 = vld [vmem:[%s4 + $0xa8] sm:$0xf]
        %v7081 = vld [vmem:[%s4 + $0xac] sm:$0xf]
        %v7082 = vld [vmem:[%s4 + $0xb0] sm:$0xf]
        %v7083 = vld [vmem:[%s4 + $0xb4] sm:$0xf]
        %v7084 = vld [vmem:[%s4 + $0xb8] sm:$0xf]
        %v7085 = vld [vmem:[%s4 + $0xbc] sm:$0xf]
        %v7086 = vld [vmem:[%s4 + $0xc0] sm:$0xf]
        %v7087 = vld [vmem:[%s4 + $0xc4] sm:$0xf]
        %v7088 = vld [vmem:[%s4 + $0xc8] sm:$0xf]
        %v7089 = vld [vmem:[%s4 + $0xcc] sm:$0xf]
        %v7090 = vld [vmem:[%s4 + $0xd0] sm:$0xf]
        %v7091 = vld [vmem:[%s4 + $0xd4] sm:$0xf]
        %v7092 = vld [vmem:[%s4 + $0xd8] sm:$0xf]
        %v7093 = vld [vmem:[%s4 + $0xdc] sm:$0xf]
        %v7094 = vld [vmem:[%s4 + $0xe0] sm:$0xf]
        %v7095 = vld [vmem:[%s4 + $0xe4] sm:$0xf]
        %v7096 = vld [vmem:[%s4 + $0xe8] sm:$0xf]
        %v7097 = vld [vmem:[%s4 + $0xec] sm:$0xf]
        %v7098 = vld [vmem:[%s4 + $0xf0] sm:$0xf]
        %v7099 = vld [vmem:[%s4 + $0xf4] sm:$0xf]
        %v7100 = vld [vmem:[%s4 + $0xf8] sm:$0xf]
        %v7101 = vld [vmem:[%s4 + $0xfc] sm:$0xf]
        %v7102 = vld [vmem:[%s4 + $0x100] sm:$0xf]
        %v7103 = vld [vmem:[%s4 + $0x104] sm:$0xf]
        %v7104 = vld [vmem:[%s4 + $0x108] sm:$0xf]
        %v7105 = vld [vmem:[%s4 + $0x10c] sm:$0xf]
        %v7106 = vld [vmem:[%s4 + $0x110] sm:$0xf]
        %v7107 = vld [vmem:[%s4 + $0x114] sm:$0xf]
        %v7108 = vld [vmem:[%s4 + $0x118] sm:$0xf]
        %v7109 = vld [vmem:[%s4 + $0x11c] sm:$0xf]
        %v7110 = vld [vmem:[%s5] sm:$0x1]
        %v7112 = vlaneseq
        %v7113 = vshrl.u32 %v7112, 7
        %v7114 = vsub.s32 0, %v7113
        %v7115 = vrot.slane %v7110, %v7114
        %v7189 = vunpack.c.l.b16 %v7038
        %v7190 = vunpack.c.l.b16 %v7039
        %v7191 = vunpack.c.l.b16 %v7040
        %v7192 = vunpack.c.l.b16 %v7041
        %v7193 = vunpack.c.l.b16 %v7042
        %v7194 = vunpack.c.l.b16 %v7043
        %v7195 = vunpack.c.l.b16 %v7044
        %v7196 = vunpack.c.l.b16 %v7045
        %v7197 = vunpack.c.l.b16 %v7046
        %v7198 = vunpack.c.l.b16 %v7047
        %v7199 = vunpack.c.l.b16 %v7048
        %v7200 = vunpack.c.l.b16 %v7049
        %v7201 = vunpack.c.l.b16 %v7050
        %v7202 = vunpack.c.l.b16 %v7051
        %v7203 = vunpack.c.l.b16 %v7052
        %v7204 = vunpack.c.l.b16 %v7053
        %v7205 = vunpack.c.l.b16 %v7054
        %v7206 = vunpack.c.l.b16 %v7055
        %v7207 = vunpack.c.l.b16 %v7056
        %v7208 = vunpack.c.l.b16 %v7057
        %v7209 = vunpack.c.l.b16 %v7058
        %v7210 = vunpack.c.l.b16 %v7059
        %v7211 = vunpack.c.l.b16 %v7060
        %v7212 = vunpack.c.l.b16 %v7061
        %v7213 = vunpack.c.l.b16 %v7062
        %v7214 = vunpack.c.l.b16 %v7063
        %v7215 = vunpack.c.l.b16 %v7064
        %v7216 = vunpack.c.l.b16 %v7065
        %v7217 = vunpack.c.l.b16 %v7066
        %v7218 = vunpack.c.l.b16 %v7067
        %v7219 = vunpack.c.l.b16 %v7068
        %v7220 = vunpack.c.l.b16 %v7069
        %v7221 = vunpack.c.l.b16 %v7070
        %v7222 = vunpack.c.l.b16 %v7071
        %v7223 = vunpack.c.l.b16 %v7072
        %v7224 = vunpack.c.l.b16 %v7073
        %v7225 = vunpack.c.l.b16 %v7074
        %v7226 = vunpack.c.l.b16 %v7075
        %v7227 = vunpack.c.l.b16 %v7076
        %v7228 = vunpack.c.l.b16 %v7077
        %v7229 = vunpack.c.l.b16 %v7078
        %v7230 = vunpack.c.l.b16 %v7079
        %v7231 = vunpack.c.l.b16 %v7080
        %v7232 = vunpack.c.l.b16 %v7081
        %v7233 = vunpack.c.l.b16 %v7082
        %v7234 = vunpack.c.l.b16 %v7083
        %v7235 = vunpack.c.l.b16 %v7084
        %v7236 = vunpack.c.l.b16 %v7085
        %v7237 = vunpack.c.l.b16 %v7086
        %v7238 = vunpack.c.l.b16 %v7087
        %v7239 = vunpack.c.l.b16 %v7088
        %v7240 = vunpack.c.l.b16 %v7089
        %v7241 = vunpack.c.l.b16 %v7090
        %v7242 = vunpack.c.l.b16 %v7091
        %v7243 = vunpack.c.l.b16 %v7092
        %v7244 = vunpack.c.l.b16 %v7093
        %v7245 = vunpack.c.l.b16 %v7094
        %v7246 = vunpack.c.l.b16 %v7095
        %v7247 = vunpack.c.l.b16 %v7096
        %v7248 = vunpack.c.l.b16 %v7097
        %v7249 = vunpack.c.l.b16 %v7098
        %v7250 = vunpack.c.l.b16 %v7099
        %v7251 = vunpack.c.l.b16 %v7100
        %v7252 = vunpack.c.l.b16 %v7101
        %v7253 = vunpack.c.l.b16 %v7102
        %v7254 = vunpack.c.l.b16 %v7103
        %v7255 = vunpack.c.l.b16 %v7104
        %v7256 = vunpack.c.l.b16 %v7105
        %v7257 = vunpack.c.l.b16 %v7106
        %v7258 = vunpack.c.l.b16 %v7107
        %v7259 = vunpack.c.l.b16 %v7108
        %v7260 = vunpack.c.l.b16 %v7109
        %v7261 = vpack.c.b16 %v7190, %v7189
        %v7262 = vpack.c.b16 %v7192, %v7191
        %v7263 = vpack.c.b16 %v7194, %v7193
        %v7264 = vpack.c.b16 %v7196, %v7195
        %v7265 = vpack.c.b16 %v7198, %v7197
        %v7266 = vpack.c.b16 %v7200, %v7199
        %v7267 = vpack.c.b16 %v7202, %v7201
        %v7268 = vpack.c.b16 %v7204, %v7203
        %v7269 = vpack.c.b16 %v7206, %v7205
        %v7270 = vpack.c.b16 %v7208, %v7207
        %v7271 = vpack.c.b16 %v7210, %v7209
        %v7272 = vpack.c.b16 %v7212, %v7211
        %v7273 = vpack.c.b16 %v7214, %v7213
        %v7274 = vpack.c.b16 %v7216, %v7215
        %v7275 = vpack.c.b16 %v7218, %v7217
        %v7276 = vpack.c.b16 %v7220, %v7219
        %v7277 = vpack.c.b16 %v7222, %v7221
        %v7278 = vpack.c.b16 %v7224, %v7223
        %v7279 = vpack.c.b16 %v7226, %v7225
        %v7280 = vpack.c.b16 %v7228, %v7227
        %v7281 = vpack.c.b16 %v7230, %v7229
        %v7282 = vpack.c.b16 %v7232, %v7231
        %v7283 = vpack.c.b16 %v7234, %v7233
        %v7284 = vpack.c.b16 %v7236, %v7235
        %v7285 = vpack.c.b16 %v7238, %v7237
        %v7286 = vpack.c.b16 %v7240, %v7239
        %v7287 = vpack.c.b16 %v7242, %v7241
        %v7288 = vpack.c.b16 %v7244, %v7243
        %v7289 = vpack.c.b16 %v7246, %v7245
        %v7290 = vpack.c.b16 %v7248, %v7247
        %v7291 = vpack.c.b16 %v7250, %v7249
        %v7292 = vpack.c.b16 %v7252, %v7251
        %v7293 = vpack.c.b16 %v7254, %v7253
        %v7294 = vpack.c.b16 %v7256, %v7255
        %v7295 = vpack.c.b16 %v7258, %v7257
        %v7296 = vpack.c.b16 %v7260, %v7259
        %v7334 = vsel %vm2890, %v6766, 0
        %v7337 = vsel %vm2890, %v6767, 0
        %v7340 = vsel %vm2890, %v6768, 0
        %v7343 = vsel %vm2890, %v6769, 0
        %v7346 = vsel %vm2890, %v6770, 0
        %v7349 = vsel %vm2890, %v6771, 0
        %v7352 = vsel %vm2890, %v6772, 0
        %v7355 = vsel %vm2890, %v6773, 0
        %v7358 = vsel %vm2890, %v6774, 0
        %v7361 = vsel %vm2890, %v6775, 0
        %v7364 = vsel %vm2890, %v6776, 0
        %v7367 = vsel %vm2890, %v6777, 0
        %v7370 = vsel %vm2890, %v6778, 0
        %v7373 = vsel %vm2890, %v6779, 0
        %v7376 = vsel %vm2890, %v6780, 0
        %v7379 = vsel %vm2890, %v6781, 0
        %7381 = vmatprep.subr.bf16.mxu0 0
        %7382 = vmatpush1.bf16.msra.mxu0 %v7261
        %7383 = vmatprep.subr.bf16.mxu0 0
        %7384 = vmatpush1.bf16.msra.mxu0 %v7262
        %7385 = vmatprep.subr.bf16.mxu0 0
        %7386 = vmatpush1.bf16.msra.mxu0 %v7263
        %7387 = vmatprep.subr.bf16.mxu0 0
        %7388 = vmatpush1.bf16.msra.mxu0 %v7264
        %7389 = vmatprep.subr.bf16.mxu0 0
        %7390 = vmatpush1.bf16.msra.mxu0 %v7265
        %7391 = vmatprep.subr.bf16.mxu0 0
        %7392 = vmatpush1.bf16.msra.mxu0 %v7266
        %7393 = vmatprep.subr.bf16.mxu0 0
        %7394 = vmatpush1.bf16.msra.mxu0 %v7267
        %7395 = vmatprep.subr.bf16.mxu0 0
        %7396 = vmatpush1.bf16.msra.mxu0 %v7268
        %7397 = vmatprep.subr.bf16.mxu0 0
        %7398 = vmatpush1.bf16.msra.mxu0 %v7269
        %7399 = vmatprep.subr.bf16.mxu0 0
        %7400 = vmatpush1.bf16.msra.mxu0 %v7270
        %7401 = vmatprep.subr.bf16.mxu0 0
        %7402 = vmatpush1.bf16.msra.mxu0 %v7271
        %7403 = vmatprep.subr.bf16.mxu0 0
        %7404 = vmatpush1.bf16.msra.mxu0 %v7272
        %7405 = vmatprep.subr.bf16.mxu0 0
        %7406 = vmatpush1.bf16.msra.mxu0 %v7273
        %7407 = vmatprep.subr.bf16.mxu0 0
        %7408 = vmatpush1.bf16.msra.mxu0 %v7274
        %7409 = vmatprep.subr.bf16.mxu0 0
        %7410 = vmatpush1.bf16.msra.mxu0 %v7275
        %7411 = vmatprep.subr.bf16.mxu0 0
        %7412 = vmatpush1.bf16.msra.mxu0 %v7276
        %7413 = vmatprep.mubr.bf16.mxu0 %v6848
        %7414 = vmatmul.mubr.bf16.gmra.mrb[0].mxu0 %v6784
        %v7415 = vpop.f32.mrb[0].mxu0
        %v7416 = vadd.f32 %v7115, %v7415
        %v7417 = vpop.f32.mrb[0].mxu0
        %v7418 = vpop.f32.mrb[0].mxu0
        %v7419 = vadd.f32 %v7115, %v7418
        %v7420 = vpop.f32.mrb[0].mxu0
        %7421 = vmatprep.mubr.bf16.mxu0 %v6852
        %7422 = vmatmul.mubr.bf16.gmra.mrb[0].mxu0 %v6788
        %v7423 = vpop.f32.mrb[0].mxu0
        %v7424 = vadd.f32 %v7115, %v7423
        %v7425 = vpop.f32.mrb[0].mxu0
        %v7426 = vpop.f32.mrb[0].mxu0
        %v7427 = vadd.f32 %v7115, %v7426
        %v7428 = vpop.f32.mrb[0].mxu0
        %7429 = vmatprep.mubr.bf16.mxu0 %v6856
        %7430 = vmatmul.mubr.bf16.gmra.mrb[0].mxu0 %v6792
        %v7431 = vpop.f32.mrb[0].mxu0
        %v7432 = vadd.f32 %v7115, %v7431
        %v7433 = vpop.f32.mrb[0].mxu0
        %v7434 = vpop.f32.mrb[0].mxu0
        %v7435 = vadd.f32 %v7115, %v7434
        %v7436 = vpop.f32.mrb[0].mxu0
        %7437 = vmatprep.mubr.bf16.mxu0 %v6860
        %7438 = vmatmul.mubr.bf16.gmra.mrb[0].mxu0 %v6796
        %v7439 = vpop.f32.mrb[0].mxu0
        %v7440 = vadd.f32 %v7115, %v7439
        %v7441 = vpop.f32.mrb[0].mxu0
        %v7442 = vpop.f32.mrb[0].mxu0
        %v7443 = vadd.f32 %v7115, %v7442
        %v7444 = vpop.f32.mrb[0].mxu0
        %7445 = vmatprep.mubr.bf16.mxu0 %v6864
        %7446 = vmatmul.mubr.bf16.gmra.mrb[0].mxu0 %v6800
        %v7447 = vpop.f32.mrb[0].mxu0
        %v7448 = vadd.f32 %v7115, %v7447
        %v7449 = vpop.f32.mrb[0].mxu0
        %v7450 = vpop.f32.mrb[0].mxu0
        %v7451 = vadd.f32 %v7115, %v7450
        %v7452 = vpop.f32.mrb[0].mxu0
        %7453 = vmatprep.mubr.bf16.mxu0 %v6868
        %7454 = vmatmul.mubr.bf16.gmra.mrb[0].mxu0 %v6804
        %v7455 = vpop.f32.mrb[0].mxu0
        %v7456 = vadd.f32 %v7115, %v7455
        %v7457 = vpop.f32.mrb[0].mxu0
        %v7458 = vpop.f32.mrb[0].mxu0
        %v7459 = vadd.f32 %v7115, %v7458
        %v7460 = vpop.f32.mrb[0].mxu0
        %7461 = vmatprep.mubr.bf16.mxu0 %v6872
        %7462 = vmatmul.mubr.bf16.gmra.mrb[0].mxu0 %v6808
        %v7463 = vpop.f32.mrb[0].mxu0
        %v7464 = vadd.f32 %v7115, %v7463
        %v7465 = vpop.f32.mrb[0].mxu0
        %v7466 = vpop.f32.mrb[0].mxu0
        %v7467 = vadd.f32 %v7115, %v7466
        %v7468 = vpop.f32.mrb[0].mxu0
        %7469 = vmatprep.mubr.bf16.mxu0 %v6876
        %7470 = vmatmul.mubr.bf16.gmra.mrb[0].mxu0 %v6812
        %v7471 = vpop.f32.mrb[0].mxu0
        %v7472 = vadd.f32 %v7115, %v7471
        %v7473 = vpop.f32.mrb[0].mxu0
        %v7474 = vpop.f32.mrb[0].mxu0
        %v7475 = vadd.f32 %v7115, %v7474
        %v7476 = vpop.f32.mrb[0].mxu0
        %7477 = vmatprep.mubr.bf16.mxu0 %v6880
        %7478 = vmatmul.mubr.bf16.gmra.mrb[0].mxu0 %v6816
        %v7479 = vpop.f32.mrb[0].mxu0
        %v7480 = vadd.f32 %v7115, %v7479
        %v7481 = vpop.f32.mrb[0].mxu0
        %v7482 = vpop.f32.mrb[0].mxu0
        %v7483 = vadd.f32 %v7115, %v7482
        %v7484 = vpop.f32.mrb[0].mxu0
        %7485 = vmatprep.mubr.bf16.mxu0 %v6884
        %7486 = vmatmul.mubr.bf16.gmra.mrb[0].mxu0 %v6820
        %v7487 = vpop.f32.mrb[0].mxu0
        %v7488 = vadd.f32 %v7115, %v7487
        %v7489 = vpop.f32.mrb[0].mxu0
        %v7490 = vpop.f32.mrb[0].mxu0
        %v7491 = vadd.f32 %v7115, %v7490
        %v7492 = vpop.f32.mrb[0].mxu0
        %7493 = vmatprep.mubr.bf16.mxu0 %v6888
        %7494 = vmatmul.mubr.bf16.gmra.mrb[0].mxu0 %v6824
        %v7495 = vpop.f32.mrb[0].mxu0
        %v7496 = vadd.f32 %v7115, %v7495
        %v7497 = vpop.f32.mrb[0].mxu0
        %v7498 = vpop.f32.mrb[0].mxu0
        %v7499 = vadd.f32 %v7115, %v7498
        %v7500 = vpop.f32.mrb[0].mxu0
        %7501 = vmatprep.mubr.bf16.mxu0 %v6892
        %7502 = vmatmul.mubr.bf16.gmra.mrb[0].mxu0 %v6828
        %v7503 = vpop.f32.mrb[0].mxu0
        %v7504 = vadd.f32 %v7115, %v7503
        %v7505 = vpop.f32.mrb[0].mxu0
        %v7506 = vpop.f32.mrb[0].mxu0
        %v7507 = vadd.f32 %v7115, %v7506
        %v7508 = vpop.f32.mrb[0].mxu0
        %7509 = vmatprep.mubr.bf16.mxu0 %v6896
        %7510 = vmatmul.mubr.bf16.gmra.mrb[0].mxu0 %v6832
        %v7511 = vpop.f32.mrb[0].mxu0
        %v7512 = vadd.f32 %v7115, %v7511
        %v7513 = vpop.f32.mrb[0].mxu0
        %v7514 = vpop.f32.mrb[0].mxu0
        %v7515 = vadd.f32 %v7115, %v7514
        %v7516 = vpop.f32.mrb[0].mxu0
        %7517 = vmatprep.mubr.bf16.mxu0 %v6900
        %7518 = vmatmul.mubr.bf16.gmra.mrb[0].mxu0 %v6836
        %v7519 = vpop.f32.mrb[0].mxu0
        %v7520 = vadd.f32 %v7115, %v7519
        %v7521 = vpop.f32.mrb[0].mxu0
        %v7522 = vpop.f32.mrb[0].mxu0
        %v7523 = vadd.f32 %v7115, %v7522
        %v7524 = vpop.f32.mrb[0].mxu0
        %7525 = vmatprep.mubr.bf16.mxu0 %v6904
        %7526 = vmatmul.mubr.bf16.gmra.mrb[0].mxu0 %v6840
        %v7527 = vpop.f32.mrb[0].mxu0
        %v7528 = vadd.f32 %v7115, %v7527
        %v7529 = vpop.f32.mrb[0].mxu0
        %v7530 = vpop.f32.mrb[0].mxu0
        %v7531 = vadd.f32 %v7115, %v7530
        %v7532 = vpop.f32.mrb[0].mxu0
        %7533 = vmatprep.mubr.bf16.mxu0 %v6908
        %7534 = vmatmul.mubr.bf16.gmra.mrb[0].mxu0 %v6844
        %v7535 = vpop.f32.mrb[0].mxu0
        %v7536 = vadd.f32 %v7115, %v7535
        %v7537 = vpop.f32.mrb[0].mxu0
        %v7538 = vpop.f32.mrb[0].mxu0
        %v7539 = vadd.f32 %v7115, %v7538
        %v7540 = vpop.f32.mrb[0].mxu0
        %7541 = vdwg.mxu0
        %7542 = vmatprep.subr.bf16.mxu0 0
        %7543 = vmatpush1.bf16.msra.mxu0 %v7277
        %7544 = vmatprep.subr.bf16.mxu0 0
        %7545 = vmatpush1.bf16.msra.mxu0 %v7278
        %7546 = vmatprep.subr.bf16.mxu0 0
        %7547 = vmatpush1.bf16.msra.mxu0 %v7279
        %7548 = vmatprep.subr.bf16.mxu0 0
        %7549 = vmatpush1.bf16.msra.mxu0 %v7280
        %7550 = vmatprep.subr.bf16.mxu0 0
        %7551 = vmatpush1.bf16.msra.mxu0 %v7281
        %7552 = vmatprep.subr.bf16.mxu0 0
        %7553 = vmatpush1.bf16.msra.mxu0 %v7282
        %7554 = vmatprep.subr.bf16.mxu0 0
        %7555 = vmatpush1.bf16.msra.mxu0 %v7283
        %7556 = vmatprep.subr.bf16.mxu0 0
        %7557 = vmatpush1.bf16.msra.mxu0 %v7284
        %7558 = vmatprep.subr.bf16.mxu0 0
        %7559 = vmatpush1.bf16.msra.mxu0 %v7285
        %7560 = vmatprep.subr.bf16.mxu0 0
        %7561 = vmatpush1.bf16.msra.mxu0 %v7286
        %7562 = vmatprep.subr.bf16.mxu0 0
        %7563 = vmatpush1.bf16.msra.mxu0 %v7287
        %7564 = vmatprep.subr.bf16.mxu0 0
        %7565 = vmatpush1.bf16.msra.mxu0 %v7288
        %7566 = vmatprep.subr.bf16.mxu0 0
        %7567 = vmatpush1.bf16.msra.mxu0 %v7289
        %7568 = vmatprep.subr.bf16.mxu0 0
        %7569 = vmatpush1.bf16.msra.mxu0 %v7290
        %7570 = vmatprep.subr.bf16.mxu0 0
        %7571 = vmatpush1.bf16.msra.mxu0 %v7291
        %7572 = vmatprep.subr.bf16.mxu0 0
        %7573 = vmatpush1.bf16.msra.mxu0 %v7292
        %7574 = vmatprep.mubr.bf16.mxu0 %v6976
        %7575 = vmatmul.mubr.bf16.gmra.mrb[0].mxu0 %v6912
        %v7576 = vpop.f32.mrb[0].mxu0
        %v7577 = vadd.f32 %v7416, %v7576
        %v7578 = vpop.f32.mrb[0].mxu0
        %v7579 = vpop.f32.mrb[0].mxu0
        %v7580 = vadd.f32 %v7419, %v7579
        %v7581 = vpop.f32.mrb[0].mxu0
        %7582 = vmatprep.mubr.bf16.mxu0 %v6980
        %7583 = vmatmul.mubr.bf16.gmra.mrb[0].mxu0 %v6916
        %v7584 = vpop.f32.mrb[0].mxu0
        %v7585 = vadd.f32 %v7424, %v7584
        %v7586 = vpop.f32.mrb[0].mxu0
        %v7587 = vpop.f32.mrb[0].mxu0
        %v7588 = vadd.f32 %v7427, %v7587
        %v7589 = vpop.f32.mrb[0].mxu0
        %7590 = vmatprep.mubr.bf16.mxu0 %v6984
        %7591 = vmatmul.mubr.bf16.gmra.mrb[0].mxu0 %v6920
        %v7592 = vpop.f32.mrb[0].mxu0
        %v7593 = vadd.f32 %v7432, %v7592
        %v7594 = vpop.f32.mrb[0].mxu0
        %v7595 = vpop.f32.mrb[0].mxu0
        %v7596 = vadd.f32 %v7435, %v7595
        %v7597 = vpop.f32.mrb[0].mxu0
        %7598 = vmatprep.mubr.bf16.mxu0 %v6988
        %7599 = vmatmul.mubr.bf16.gmra.mrb[0].mxu0 %v6924
        %v7600 = vpop.f32.mrb[0].mxu0
        %v7601 = vadd.f32 %v7440, %v7600
        %v7602 = vpop.f32.mrb[0].mxu0
        %v7603 = vpop.f32.mrb[0].mxu0
        %v7604 = vadd.f32 %v7443, %v7603
        %v7605 = vpop.f32.mrb[0].mxu0
        %7606 = vmatprep.mubr.bf16.mxu0 %v6992
        %7607 = vmatmul.mubr.bf16.gmra.mrb[0].mxu0 %v6928
        %v7608 = vpop.f32.mrb[0].mxu0
        %v7609 = vadd.f32 %v7448, %v7608
        %v7610 = vpop.f32.mrb[0].mxu0
        %v7611 = vpop.f32.mrb[0].mxu0
        %v7612 = vadd.f32 %v7451, %v7611
        %v7613 = vpop.f32.mrb[0].mxu0
        %7614 = vmatprep.mubr.bf16.mxu0 %v6996
        %7615 = vmatmul.mubr.bf16.gmra.mrb[0].mxu0 %v6932
        %v7616 = vpop.f32.mrb[0].mxu0
        %v7617 = vadd.f32 %v7456, %v7616
        %v7618 = vpop.f32.mrb[0].mxu0
        %v7619 = vpop.f32.mrb[0].mxu0
        %v7620 = vadd.f32 %v7459, %v7619
        %v7621 = vpop.f32.mrb[0].mxu0
        %7622 = vmatprep.mubr.bf16.mxu0 %v7000
        %7623 = vmatmul.mubr.bf16.gmra.mrb[0].mxu0 %v6936
        %v7624 = vpop.f32.mrb[0].mxu0
        %v7625 = vadd.f32 %v7464, %v7624
        %v7626 = vpop.f32.mrb[0].mxu0
        %v7627 = vpop.f32.mrb[0].mxu0
        %v7628 = vadd.f32 %v7467, %v7627
        %v7629 = vpop.f32.mrb[0].mxu0
        %7630 = vmatprep.mubr.bf16.mxu0 %v7004
        %7631 = vmatmul.mubr.bf16.gmra.mrb[0].mxu0 %v6940
        %v7632 = vpop.f32.mrb[0].mxu0
        %v7633 = vadd.f32 %v7472, %v7632
        %v7634 = vpop.f32.mrb[0].mxu0
        %v7635 = vpop.f32.mrb[0].mxu0
        %v7636 = vadd.f32 %v7475, %v7635
        %v7637 = vpop.f32.mrb[0].mxu0
        %7638 = vmatprep.mubr.bf16.mxu0 %v7008
        %7639 = vmatmul.mubr.bf16.gmra.mrb[0].mxu0 %v6944
        %v7640 = vpop.f32.mrb[0].mxu0
        %v7641 = vadd.f32 %v7480, %v7640
        %v7642 = vpop.f32.mrb[0].mxu0
        %v7643 = vpop.f32.mrb[0].mxu0
        %v7644 = vadd.f32 %v7483, %v7643
        %v7645 = vpop.f32.mrb[0].mxu0
        %7646 = vmatprep.mubr.bf16.mxu0 %v7012
        %7647 = vmatmul.mubr.bf16.gmra.mrb[0].mxu0 %v6948
        %v7648 = vpop.f32.mrb[0].mxu0
        %v7649 = vadd.f32 %v7488, %v7648
        %v7650 = vpop.f32.mrb[0].mxu0
        %v7651 = vpop.f32.mrb[0].mxu0
        %v7652 = vadd.f32 %v7491, %v7651
        %v7653 = vpop.f32.mrb[0].mxu0
        %7654 = vmatprep.mubr.bf16.mxu0 %v7016
        %7655 = vmatmul.mubr.bf16.gmra.mrb[0].mxu0 %v6952
        %v7656 = vpop.f32.mrb[0].mxu0
        %v7657 = vadd.f32 %v7496, %v7656
        %v7658 = vpop.f32.mrb[0].mxu0
        %v7659 = vpop.f32.mrb[0].mxu0
        %v7660 = vadd.f32 %v7499, %v7659
        %v7661 = vpop.f32.mrb[0].mxu0
        %7662 = vmatprep.mubr.bf16.mxu0 %v7020
        %7663 = vmatmul.mubr.bf16.gmra.mrb[0].mxu0 %v6956
        %v7664 = vpop.f32.mrb[0].mxu0
        %v7665 = vadd.f32 %v7504, %v7664
        %v7666 = vpop.f32.mrb[0].mxu0
        %v7667 = vpop.f32.mrb[0].mxu0
        %v7668 = vadd.f32 %v7507, %v7667
        %v7669 = vpop.f32.mrb[0].mxu0
        %7670 = vmatprep.mubr.bf16.mxu0 %v7024
        %7671 = vmatmul.mubr.bf16.gmra.mrb[0].mxu0 %v6960
        %v7672 = vpop.f32.mrb[0].mxu0
        %v7673 = vadd.f32 %v7512, %v7672
        %v7674 = vpop.f32.mrb[0].mxu0
        %v7675 = vpop.f32.mrb[0].mxu0
        %v7676 = vadd.f32 %v7515, %v7675
        %v7677 = vpop.f32.mrb[0].mxu0
        %7678 = vmatprep.mubr.bf16.mxu0 %v7028
        %7679 = vmatmul.mubr.bf16.gmra.mrb[0].mxu0 %v6964
        %v7680 = vpop.f32.mrb[0].mxu0
        %v7681 = vadd.f32 %v7520, %v7680
        %v7682 = vpop.f32.mrb[0].mxu0
        %v7683 = vpop.f32.mrb[0].mxu0
        %v7684 = vadd.f32 %v7523, %v7683
        %v7685 = vpop.f32.mrb[0].mxu0
        %7686 = vmatprep.mubr.bf16.mxu0 %v7032
        %7687 = vmatmul.mubr.bf16.gmra.mrb[0].mxu0 %v6968
        %v7688 = vpop.f32.mrb[0].mxu0
        %v7689 = vadd.f32 %v7528, %v7688
        %v7690 = vpop.f32.mrb[0].mxu0
        %v7691 = vpop.f32.mrb[0].mxu0
        %v7692 = vadd.f32 %v7531, %v7691
        %v7693 = vpop.f32.mrb[0].mxu0
        %7694 = vmatprep.mubr.bf16.mxu0 %v7036
        %7695 = vmatmul.mubr.bf16.gmra.mrb[0].mxu0 %v6972
        %v7696 = vpop.f32.mrb[0].mxu0
        %v7697 = vadd.f32 %v7536, %v7696
        %v7698 = vpop.f32.mrb[0].mxu0
        %v7699 = vpop.f32.mrb[0].mxu0
        %v7700 = vadd.f32 %v7539, %v7699
        %v7701 = vpop.f32.mrb[0].mxu0
        %7702 = vdwg.mxu0
        %7703 = vmatprep.subr.bf16.mxu0 0
        %7704 = vmatpush1.bf16.msra.mxu0 %v7293
        %7705 = vmatprep.subr.bf16.mxu0 0
        %7706 = vmatpush1.bf16.msra.mxu0 %v7294
        %7707 = vmatprep.subr.bf16.mxu0 0
        %7708 = vmatpush1.bf16.msra.mxu0 %v7295
        %7709 = vmatprep.subr.bf16.mxu0 0
        %7710 = vmatpush1.bf16.msra.mxu0 %v7296
        %7711 = vmatprep.subr.bf16.mxu0 0
        %7712 = vmatpush1.bf16.msra.mxu0 0
        %7713 = vmatprep.subr.bf16.mxu0 0
        %7714 = vmatpush1.bf16.msra.mxu0 0
        %7715 = vmatprep.subr.bf16.mxu0 0
        %7716 = vmatpush1.bf16.msra.mxu0 0
        %7717 = vmatprep.subr.bf16.mxu0 0
        %7718 = vmatpush1.bf16.msra.mxu0 0
        %7719 = vmatprep.subr.bf16.mxu0 0
        %7720 = vmatpush1.bf16.msra.mxu0 0
        %7721 = vmatprep.subr.bf16.mxu0 0
        %7722 = vmatpush1.bf16.msra.mxu0 0
        %7723 = vmatprep.subr.bf16.mxu0 0
        %7724 = vmatpush1.bf16.msra.mxu0 0
        %7725 = vmatprep.subr.bf16.mxu0 0
        %7726 = vmatpush1.bf16.msra.mxu0 0
        %7727 = vmatprep.subr.bf16.mxu0 0
        %7728 = vmatpush1.bf16.msra.mxu0 0
        %7729 = vmatprep.subr.bf16.mxu0 0
        %7730 = vmatpush1.bf16.msra.mxu0 0
        %7731 = vmatprep.subr.bf16.mxu0 0
        %7732 = vmatpush1.bf16.msra.mxu0 0
        %7733 = vmatprep.subr.bf16.mxu0 0
        %7734 = vmatpush1.bf16.msra.mxu0 0
        %7735 = vmatprep.mubr.bf16.mxu0 0
        %7736 = vmatmul.mubr.bf16.gmra.mrb[0].mxu0 %v7334
        %v7737 = vpop.f32.mrb[0].mxu0
        %v7738 = vadd.f32 %v7577, %v7737
        %v7739 = vpop.f32.mrb[0].mxu0
        %v7740 = vpop.f32.mrb[0].mxu0
        %v7741 = vadd.f32 %v7580, %v7740
        %v7742 = vpop.f32.mrb[0].mxu0
        %7743 = vmatprep.mubr.bf16.mxu0 0
        %7744 = vmatmul.mubr.bf16.gmra.mrb[0].mxu0 %v7337
        %v7745 = vpop.f32.mrb[0].mxu0
        %v7746 = vadd.f32 %v7585, %v7745
        %v7747 = vpop.f32.mrb[0].mxu0
        %v7748 = vpop.f32.mrb[0].mxu0
        %v7749 = vadd.f32 %v7588, %v7748
        %v7750 = vpop.f32.mrb[0].mxu0
        %7751 = vmatprep.mubr.bf16.mxu0 0
        %7752 = vmatmul.mubr.bf16.gmra.mrb[0].mxu0 %v7340
        %v7753 = vpop.f32.mrb[0].mxu0
        %v7754 = vadd.f32 %v7593, %v7753
        %v7755 = vpop.f32.mrb[0].mxu0
        %v7756 = vpop.f32.mrb[0].mxu0
        %v7757 = vadd.f32 %v7596, %v7756
        %v7758 = vpop.f32.mrb[0].mxu0
        %7759 = vmatprep.mubr.bf16.mxu0 0
        %7760 = vmatmul.mubr.bf16.gmra.mrb[0].mxu0 %v7343
        %v7761 = vpop.f32.mrb[0].mxu0
        %v7762 = vadd.f32 %v7601, %v7761
        %v7763 = vpop.f32.mrb[0].mxu0
        %v7764 = vpop.f32.mrb[0].mxu0
        %v7765 = vadd.f32 %v7604, %v7764
        %v7766 = vpop.f32.mrb[0].mxu0
        %7767 = vmatprep.mubr.bf16.mxu0 0
        %7768 = vmatmul.mubr.bf16.gmra.mrb[0].mxu0 %v7346
        %v7769 = vpop.f32.mrb[0].mxu0
        %v7770 = vadd.f32 %v7609, %v7769
        %v7771 = vpop.f32.mrb[0].mxu0
        %v7772 = vpop.f32.mrb[0].mxu0
        %v7773 = vadd.f32 %v7612, %v7772
        %v7774 = vpop.f32.mrb[0].mxu0
        %7775 = vmatprep.mubr.bf16.mxu0 0
        %7776 = vmatmul.mubr.bf16.gmra.mrb[0].mxu0 %v7349
        %v7777 = vpop.f32.mrb[0].mxu0
        %v7778 = vadd.f32 %v7617, %v7777
        %v7779 = vpop.f32.mrb[0].mxu0
        %v7780 = vpop.f32.mrb[0].mxu0
        %v7781 = vadd.f32 %v7620, %v7780
        %v7782 = vpop.f32.mrb[0].mxu0
        %7783 = vmatprep.mubr.bf16.mxu0 0
        %7784 = vmatmul.mubr.bf16.gmra.mrb[0].mxu0 %v7352
        %v7785 = vpop.f32.mrb[0].mxu0
        %v7786 = vadd.f32 %v7625, %v7785
        %v7787 = vpop.f32.mrb[0].mxu0
        %v7788 = vpop.f32.mrb[0].mxu0
        %v7789 = vadd.f32 %v7628, %v7788
        %v7790 = vpop.f32.mrb[0].mxu0
        %7791 = vmatprep.mubr.bf16.mxu0 0
        %7792 = vmatmul.mubr.bf16.gmra.mrb[0].mxu0 %v7355
        %v7793 = vpop.f32.mrb[0].mxu0
        %v7794 = vadd.f32 %v7633, %v7793
        %v7795 = vpop.f32.mrb[0].mxu0
        %v7796 = vpop.f32.mrb[0].mxu0
        %v7797 = vadd.f32 %v7636, %v7796
        %v7798 = vpop.f32.mrb[0].mxu0
        %7799 = vmatprep.mubr.bf16.mxu0 0
        %7800 = vmatmul.mubr.bf16.gmra.mrb[0].mxu0 %v7358
        %v7801 = vpop.f32.mrb[0].mxu0
        %v7802 = vadd.f32 %v7641, %v7801
        %v7803 = vpop.f32.mrb[0].mxu0
        %v7804 = vpop.f32.mrb[0].mxu0
        %v7805 = vadd.f32 %v7644, %v7804
        %v7806 = vpop.f32.mrb[0].mxu0
        %7807 = vmatprep.mubr.bf16.mxu0 0
        %7808 = vmatmul.mubr.bf16.gmra.mrb[0].mxu0 %v7361
        %v7809 = vpop.f32.mrb[0].mxu0
        %v7810 = vadd.f32 %v7649, %v7809
        %v7811 = vpop.f32.mrb[0].mxu0
        %v7812 = vpop.f32.mrb[0].mxu0
        %v7813 = vadd.f32 %v7652, %v7812
        %v7814 = vpop.f32.mrb[0].mxu0
        %7815 = vmatprep.mubr.bf16.mxu0 0
        %7816 = vmatmul.mubr.bf16.gmra.mrb[0].mxu0 %v7364
        %v7817 = vpop.f32.mrb[0].mxu0
        %v7818 = vadd.f32 %v7657, %v7817
        %v7819 = vpop.f32.mrb[0].mxu0
        %v7820 = vpop.f32.mrb[0].mxu0
        %v7821 = vadd.f32 %v7660, %v7820
        %v7822 = vpop.f32.mrb[0].mxu0
        %7823 = vmatprep.mubr.bf16.mxu0 0
        %7824 = vmatmul.mubr.bf16.gmra.mrb[0].mxu0 %v7367
        %v7825 = vpop.f32.mrb[0].mxu0
        %v7826 = vadd.f32 %v7665, %v7825
        %v7827 = vpop.f32.mrb[0].mxu0
        %v7828 = vpop.f32.mrb[0].mxu0
        %v7829 = vadd.f32 %v7668, %v7828
        %v7830 = vpop.f32.mrb[0].mxu0
        %7831 = vmatprep.mubr.bf16.mxu0 0
        %7832 = vmatmul.mubr.bf16.gmra.mrb[0].mxu0 %v7370
        %v7833 = vpop.f32.mrb[0].mxu0
        %v7834 = vadd.f32 %v7673, %v7833
        %v7835 = vpop.f32.mrb[0].mxu0
        %v7836 = vpop.f32.mrb[0].mxu0
        %v7837 = vadd.f32 %v7676, %v7836
        %v7838 = vpop.f32.mrb[0].mxu0
        %7839 = vmatprep.mubr.bf16.mxu0 0
        %7840 = vmatmul.mubr.bf16.gmra.mrb[0].mxu0 %v7373
        %v7841 = vpop.f32.mrb[0].mxu0
        %v7842 = vadd.f32 %v7681, %v7841
        %v7843 = vpop.f32.mrb[0].mxu0
        %v7844 = vpop.f32.mrb[0].mxu0
        %v7845 = vadd.f32 %v7684, %v7844
        %v7846 = vpop.f32.mrb[0].mxu0
        %7847 = vmatprep.mubr.bf16.mxu0 0
        %7848 = vmatmul.mubr.bf16.gmra.mrb[0].mxu0 %v7376
        %v7849 = vpop.f32.mrb[0].mxu0
        %v7850 = vadd.f32 %v7689, %v7849
        %v7851 = vpop.f32.mrb[0].mxu0
        %v7852 = vpop.f32.mrb[0].mxu0
        %v7853 = vadd.f32 %v7692, %v7852
        %v7854 = vpop.f32.mrb[0].mxu0
        %7855 = vmatprep.mubr.bf16.mxu0 0
        %7856 = vmatmul.mubr.bf16.gmra.mrb[0].mxu0 %v7379
        %v7857 = vpop.f32.mrb[0].mxu0
        %v7858 = vadd.f32 %v7697, %v7857
        %v7859 = vpop.f32.mrb[0].mxu0
        %v7860 = vpop.f32.mrb[0].mxu0
        %v7861 = vadd.f32 %v7700, %v7860
        %v7862 = vpop.f32.mrb[0].mxu0
        %7863 = vdwg.mxu0
        %vm7864 = vcmask 191488
        %7865 = vst.msk [vmem:[#allocation3] sm:$0xf] %vm7864, 0
        %7866 = vst.msk [vmem:[#allocation3 + $0x4] sm:$0xf] %vm7864, 0
        %vm7867 = vcmask 188416
        %7868 = vst.msk [vmem:[#allocation3 + $0x8] sm:$0x1] %vm7867, 0
        %7869 = vst.msk [vmem:[#allocation3 + $0xc] sm:$0xf] %vm7864, 0
        %7870 = vst.msk [vmem:[#allocation3 + $0x10] sm:$0xf] %vm7864, 0
        %7871 = vst.msk [vmem:[#allocation3 + $0x14] sm:$0x1] %vm7867, 0
        %7872 = vst.msk [vmem:[#allocation3 + $0x18] sm:$0xf] %vm7864, 0
        %7873 = vst.msk [vmem:[#allocation3 + $0x1c] sm:$0xf] %vm7864, 0
        %7874 = vst.msk [vmem:[#allocation3 + $0x20] sm:$0x1] %vm7867, 0
        %7875 = vst.msk [vmem:[#allocation3 + $0x24] sm:$0xf] %vm7864, 0
        %7876 = vst.msk [vmem:[#allocation3 + $0x28] sm:$0xf] %vm7864, 0
        %7877 = vst.msk [vmem:[#allocation3 + $0x2c] sm:$0x1] %vm7867, 0
        %7878 = vst.msk [vmem:[#allocation3 + $0x30] sm:$0xf] %vm7864, 0
        %7879 = vst.msk [vmem:[#allocation3 + $0x34] sm:$0xf] %vm7864, 0
        %7880 = vst.msk [vmem:[#allocation3 + $0x38] sm:$0x1] %vm7867, 0
        %7881 = vst.msk [vmem:[#allocation3 + $0x3c] sm:$0xf] %vm7864, 0
        %7882 = vst.msk [vmem:[#allocation3 + $0x40] sm:$0xf] %vm7864, 0
        %7883 = vst.msk [vmem:[#allocation3 + $0x44] sm:$0x1] %vm7867, 0
        %7884 = vst.msk [vmem:[#allocation3 + $0x48] sm:$0xf] %vm7864, 0
        %7885 = vst.msk [vmem:[#allocation3 + $0x4c] sm:$0xf] %vm7864, 0
        %7886 = vst.msk [vmem:[#allocation3 + $0x50] sm:$0x1] %vm7867, 0
        %7887 = vst.msk [vmem:[#allocation3 + $0x54] sm:$0xf] %vm7864, 0
        %7888 = vst.msk [vmem:[#allocation3 + $0x58] sm:$0xf] %vm7864, 0
        %7889 = vst.msk [vmem:[#allocation3 + $0x5c] sm:$0x1] %vm7867, 0
        %7890 = vst.msk [vmem:[#allocation3 + $0x60] sm:$0xf] %vm7864, 0
        %7891 = vst.msk [vmem:[#allocation3 + $0x64] sm:$0xf] %vm7864, 0
        %7892 = vst.msk [vmem:[#allocation3 + $0x68] sm:$0x1] %vm7867, 0
        %7893 = vst.msk [vmem:[#allocation3 + $0x6c] sm:$0xf] %vm7864, 0
        %7894 = vst.msk [vmem:[#allocation3 + $0x70] sm:$0xf] %vm7864, 0
        %7895 = vst.msk [vmem:[#allocation3 + $0x74] sm:$0x1] %vm7867, 0
        %7896 = vst.msk [vmem:[#allocation3 + $0x78] sm:$0xf] %vm7864, 0
        %7897 = vst.msk [vmem:[#allocation3 + $0x7c] sm:$0xf] %vm7864, 0
        %7898 = vst.msk [vmem:[#allocation3 + $0x80] sm:$0x1] %vm7867, 0
        %7899 = vst.msk [vmem:[#allocation3 + $0x84] sm:$0xf] %vm7864, 0
        %7900 = vst.msk [vmem:[#allocation3 + $0x88] sm:$0xf] %vm7864, 0
        %7901 = vst.msk [vmem:[#allocation3 + $0x8c] sm:$0x1] %vm7867, 0
        %7902 = vst.msk [vmem:[#allocation3 + $0x90] sm:$0xf] %vm7864, 0
        %7903 = vst.msk [vmem:[#allocation3 + $0x94] sm:$0xf] %vm7864, 0
        %7904 = vst.msk [vmem:[#allocation3 + $0x98] sm:$0x1] %vm7867, 0
        %7905 = vst.msk [vmem:[#allocation3 + $0x9c] sm:$0xf] %vm7864, 0
        %7906 = vst.msk [vmem:[#allocation3 + $0xa0] sm:$0xf] %vm7864, 0
        %7907 = vst.msk [vmem:[#allocation3 + $0xa4] sm:$0x1] %vm7867, 0
        %7908 = vst.msk [vmem:[#allocation3 + $0xa8] sm:$0xf] %vm7864, 0
        %7909 = vst.msk [vmem:[#allocation3 + $0xac] sm:$0xf] %vm7864, 0
        %7910 = vst.msk [vmem:[#allocation3 + $0xb0] sm:$0x1] %vm7867, 0
        %7911 = vst.msk [vmem:[#allocation3 + $0xb4] sm:$0xf] %vm7864, 0
        %7912 = vst.msk [vmem:[#allocation3 + $0xb8] sm:$0xf] %vm7864, 0
        %7913 = vst.msk [vmem:[#allocation3 + $0xbc] sm:$0x1] %vm7867, 0
        %7914 = vst.msk [vmem:[#allocation3 + $0xc0] sm:$0xf] %vm7864, 0
        %7915 = vst.msk [vmem:[#allocation3 + $0xc4] sm:$0xf] %vm7864, 0
        %7916 = vst.msk [vmem:[#allocation3 + $0xc8] sm:$0x1] %vm7867, 0
        %7917 = vst.msk [vmem:[#allocation3 + $0xcc] sm:$0xf] %vm7864, 0
        %7918 = vst.msk [vmem:[#allocation3 + $0xd0] sm:$0xf] %vm7864, 0
        %7919 = vst.msk [vmem:[#allocation3 + $0xd4] sm:$0x1] %vm7867, 0
        %v7920 = vpack.c.bf16 %v7741, %v7738
        %v7921 = vpack.c.bf16 %v7749, %v7746
        %v7922 = vpack.c.bf16 %v7757, %v7754
        %v7923 = vpack.c.bf16 %v7765, %v7762
        %v7924 = vpack.c.bf16 %v7773, %v7770
        %v7925 = vpack.c.bf16 %v7781, %v7778
        %v7926 = vpack.c.bf16 %v7789, %v7786
        %v7927 = vpack.c.bf16 %v7797, %v7794
        %v7928 = vpack.c.bf16 %v7805, %v7802
        %v7929 = vpack.c.bf16 %v7813, %v7810
        %v7930 = vpack.c.bf16 %v7821, %v7818
        %v7931 = vpack.c.bf16 %v7829, %v7826
        %v7932 = vpack.c.bf16 %v7837, %v7834
        %v7933 = vpack.c.bf16 %v7845, %v7842
        %v7934 = vpack.c.bf16 %v7853, %v7850
        %v7935 = vpack.c.bf16 %v7861, %v7858
        %v7952 = vunpack.c.l.b16 %v7920
        %v7953 = vunpack.c.h.b16 %v7920
        %v7954 = vunpack.c.l.b16 %v7921
        %v7955 = vunpack.c.h.b16 %v7921
        %v7956 = vunpack.c.l.b16 %v7922
        %v7957 = vunpack.c.h.b16 %v7922
        %v7958 = vunpack.c.l.b16 %v7923
        %v7959 = vunpack.c.h.b16 %v7923
        %v7960 = vunpack.c.l.b16 %v7924
        %v7961 = vunpack.c.h.b16 %v7924
        %v7962 = vunpack.c.l.b16 %v7925
        %v7963 = vunpack.c.h.b16 %v7925
        %v7964 = vunpack.c.l.b16 %v7926
        %v7965 = vunpack.c.h.b16 %v7926
        %v7966 = vunpack.c.l.b16 %v7927
        %v7967 = vunpack.c.h.b16 %v7927
        %v7968 = vunpack.c.l.b16 %v7928
        %v7969 = vunpack.c.h.b16 %v7928
        %v7970 = vunpack.c.l.b16 %v7929
        %v7971 = vunpack.c.h.b16 %v7929
        %v7972 = vunpack.c.l.b16 %v7930
        %v7973 = vunpack.c.h.b16 %v7930
        %v7974 = vunpack.c.l.b16 %v7931
        %v7975 = vunpack.c.h.b16 %v7931
        %v7976 = vunpack.c.l.b16 %v7932
        %v7977 = vunpack.c.h.b16 %v7932
        %v7978 = vunpack.c.l.b16 %v7933
        %v7979 = vunpack.c.h.b16 %v7933
        %v7980 = vunpack.c.l.b16 %v7934
        %v7981 = vunpack.c.h.b16 %v7934
        %v7982 = vunpack.c.l.b16 %v7935
        %v7983 = vunpack.c.h.b16 %v7935
        %v7984 = vpack.c.b16 %v7952, %v7952
        %v7985 = vpack.c.b16 %v7953, %v7953
        %v7986 = vpack.c.b16 %v7954, %v7954
        %v7987 = vpack.c.b16 %v7955, %v7955
        %v7988 = vpack.c.b16 %v7956, %v7956
        %v7989 = vpack.c.b16 %v7957, %v7957
        %v7990 = vpack.c.b16 %v7958, %v7958
        %v7991 = vpack.c.b16 %v7959, %v7959
        %v7992 = vpack.c.b16 %v7960, %v7960
        %v7993 = vpack.c.b16 %v7961, %v7961
        %v7994 = vpack.c.b16 %v7962, %v7962
        %v7995 = vpack.c.b16 %v7963, %v7963
        %v7996 = vpack.c.b16 %v7964, %v7964
        %v7997 = vpack.c.b16 %v7965, %v7965
        %v7998 = vpack.c.b16 %v7966, %v7966
        %v7999 = vpack.c.b16 %v7967, %v7967
        %v8000 = vpack.c.b16 %v7968, %v7968
        %v8001 = vpack.c.b16 %v7969, %v7969
        %v8002 = vpack.c.b16 %v7970, %v7970
        %v8003 = vpack.c.b16 %v7971, %v7971
        %v8004 = vpack.c.b16 %v7972, %v7972
        %v8005 = vpack.c.b16 %v7973, %v7973
        %v8006 = vpack.c.b16 %v7974, %v7974
        %v8007 = vpack.c.b16 %v7975, %v7975
        %v8008 = vpack.c.b16 %v7976, %v7976
        %v8009 = vpack.c.b16 %v7977, %v7977
        %v8010 = vpack.c.b16 %v7978, %v7978
        %v8011 = vpack.c.b16 %v7979, %v7979
        %v8012 = vpack.c.b16 %v7980, %v7980
        %v8013 = vpack.c.b16 %v7981, %v7981
        %v8014 = vpack.c.b16 %v7982, %v7982
        %v8015 = vpack.c.b16 %v7983, %v7983
        %v8017 = vshrl.u32 %v7984, 16
        %v8019 = vrot.slane %v8017, 7
        %v8020 = vshll.u32 %v7984, 16
        %v8022 = vor.u32 %v8019, %v8020
        %v8023 = vrot.slane %v8019, 4
        %v8025 = vshrl.u32 %v7985, 16
        %v8027 = vrot.slane %v8025, 7
        %v8028 = vshll.u32 %v7985, 16
        %v8030 = vor.u32 %v8027, %v8028
        %v8031 = vsel %vm3910, %v8023, %v8030
        %v8032 = vrot.slane %v8027, 4
        %v8034 = vshrl.u32 %v7986, 16
        %v8036 = vrot.slane %v8034, 7
        %v8037 = vshll.u32 %v7986, 16
        %v8039 = vor.u32 %v8036, %v8037
        %v8040 = vrot.slane %v8036, 4
        %v8042 = vshrl.u32 %v7987, 16
        %v8044 = vrot.slane %v8042, 7
        %v8045 = vshll.u32 %v7987, 16
        %v8047 = vor.u32 %v8044, %v8045
        %v8048 = vsel %vm3910, %v8040, %v8047
        %v8049 = vrot.slane %v8044, 4
        %v8051 = vshrl.u32 %v7988, 16
        %v8053 = vrot.slane %v8051, 7
        %v8054 = vshll.u32 %v7988, 16
        %v8056 = vor.u32 %v8053, %v8054
        %v8057 = vrot.slane %v8053, 4
        %v8059 = vshrl.u32 %v7989, 16
        %v8061 = vrot.slane %v8059, 7
        %v8062 = vshll.u32 %v7989, 16
        %v8064 = vor.u32 %v8061, %v8062
        %v8065 = vsel %vm3910, %v8057, %v8064
        %v8066 = vrot.slane %v8061, 4
        %v8068 = vshrl.u32 %v7990, 16
        %v8070 = vrot.slane %v8068, 7
        %v8071 = vshll.u32 %v7990, 16
        %v8073 = vor.u32 %v8070, %v8071
        %v8074 = vrot.slane %v8070, 4
        %v8076 = vshrl.u32 %v7991, 16
        %v8078 = vrot.slane %v8076, 7
        %v8079 = vshll.u32 %v7991, 16
        %v8081 = vor.u32 %v8078, %v8079
        %v8082 = vsel %vm3910, %v8074, %v8081
        %v8083 = vrot.slane %v8078, 4
        %v8085 = vshrl.u32 %v7992, 16
        %v8087 = vrot.slane %v8085, 7
        %v8088 = vshll.u32 %v7992, 16
        %v8090 = vor.u32 %v8087, %v8088
        %v8091 = vrot.slane %v8087, 4
        %v8093 = vshrl.u32 %v7993, 16
        %v8095 = vrot.slane %v8093, 7
        %v8096 = vshll.u32 %v7993, 16
        %v8098 = vor.u32 %v8095, %v8096
        %v8099 = vsel %vm3910, %v8091, %v8098
        %v8100 = vrot.slane %v8095, 4
        %v8102 = vshrl.u32 %v7994, 16
        %v8104 = vrot.slane %v8102, 7
        %v8105 = vshll.u32 %v7994, 16
        %v8107 = vor.u32 %v8104, %v8105
        %v8108 = vrot.slane %v8104, 4
        %v8110 = vshrl.u32 %v7995, 16
        %v8112 = vrot.slane %v8110, 7
        %v8113 = vshll.u32 %v7995, 16
        %v8115 = vor.u32 %v8112, %v8113
        %v8116 = vsel %vm3910, %v8108, %v8115
        %v8117 = vrot.slane %v8112, 4
        %v8119 = vshrl.u32 %v7996, 16
        %v8121 = vrot.slane %v8119, 7
        %v8122 = vshll.u32 %v7996, 16
        %v8124 = vor.u32 %v8121, %v8122
        %v8125 = vrot.slane %v8121, 4
        %v8127 = vshrl.u32 %v7997, 16
        %v8129 = vrot.slane %v8127, 7
        %v8130 = vshll.u32 %v7997, 16
        %v8132 = vor.u32 %v8129, %v8130
        %v8133 = vsel %vm3910, %v8125, %v8132
        %v8134 = vrot.slane %v8129, 4
        %v8136 = vshrl.u32 %v7998, 16
        %v8138 = vrot.slane %v8136, 7
        %v8139 = vshll.u32 %v7998, 16
        %v8141 = vor.u32 %v8138, %v8139
        %v8142 = vrot.slane %v8138, 4
        %v8144 = vshrl.u32 %v7999, 16
        %v8146 = vrot.slane %v8144, 7
        %v8147 = vshll.u32 %v7999, 16
        %v8149 = vor.u32 %v8146, %v8147
        %v8150 = vsel %vm3910, %v8142, %v8149
        %v8151 = vrot.slane %v8146, 4
        %v8153 = vshrl.u32 %v8000, 16
        %v8155 = vrot.slane %v8153, 7
        %v8156 = vshll.u32 %v8000, 16
        %v8158 = vor.u32 %v8155, %v8156
        %v8159 = vrot.slane %v8155, 4
        %v8161 = vshrl.u32 %v8001, 16
        %v8163 = vrot.slane %v8161, 7
        %v8164 = vshll.u32 %v8001, 16
        %v8166 = vor.u32 %v8163, %v8164
        %v8167 = vsel %vm3910, %v8159, %v8166
        %v8168 = vrot.slane %v8163, 4
        %v8170 = vshrl.u32 %v8002, 16
        %v8172 = vrot.slane %v8170, 7
        %v8173 = vshll.u32 %v8002, 16
        %v8175 = vor.u32 %v8172, %v8173
        %v8176 = vrot.slane %v8172, 4
        %v8178 = vshrl.u32 %v8003, 16
        %v8180 = vrot.slane %v8178, 7
        %v8181 = vshll.u32 %v8003, 16
        %v8183 = vor.u32 %v8180, %v8181
        %v8184 = vsel %vm3910, %v8176, %v8183
        %v8185 = vrot.slane %v8180, 4
        %v8187 = vshrl.u32 %v8004, 16
        %v8189 = vrot.slane %v8187, 7
        %v8190 = vshll.u32 %v8004, 16
        %v8192 = vor.u32 %v8189, %v8190
        %v8193 = vrot.slane %v8189, 4
        %v8195 = vshrl.u32 %v8005, 16
        %v8197 = vrot.slane %v8195, 7
        %v8198 = vshll.u32 %v8005, 16
        %v8200 = vor.u32 %v8197, %v8198
        %v8201 = vsel %vm3910, %v8193, %v8200
        %v8202 = vrot.slane %v8197, 4
        %v8204 = vshrl.u32 %v8006, 16
        %v8206 = vrot.slane %v8204, 7
        %v8207 = vshll.u32 %v8006, 16
        %v8209 = vor.u32 %v8206, %v8207
        %v8210 = vrot.slane %v8206, 4
        %v8212 = vshrl.u32 %v8007, 16
        %v8214 = vrot.slane %v8212, 7
        %v8215 = vshll.u32 %v8007, 16
        %v8217 = vor.u32 %v8214, %v8215
        %v8218 = vsel %vm3910, %v8210, %v8217
        %v8219 = vrot.slane %v8214, 4
        %v8221 = vshrl.u32 %v8008, 16
        %v8223 = vrot.slane %v8221, 7
        %v8224 = vshll.u32 %v8008, 16
        %v8226 = vor.u32 %v8223, %v8224
        %v8227 = vrot.slane %v8223, 4
        %v8229 = vshrl.u32 %v8009, 16
        %v8231 = vrot.slane %v8229, 7
        %v8232 = vshll.u32 %v8009, 16
        %v8234 = vor.u32 %v8231, %v8232
        %v8235 = vsel %vm3910, %v8227, %v8234
        %v8236 = vrot.slane %v8231, 4
        %v8238 = vshrl.u32 %v8010, 16
        %v8240 = vrot.slane %v8238, 7
        %v8241 = vshll.u32 %v8010, 16
        %v8243 = vor.u32 %v8240, %v8241
        %v8244 = vrot.slane %v8240, 4
        %v8246 = vshrl.u32 %v8011, 16
        %v8248 = vrot.slane %v8246, 7
        %v8249 = vshll.u32 %v8011, 16
        %v8251 = vor.u32 %v8248, %v8249
        %v8252 = vsel %vm3910, %v8244, %v8251
        %v8253 = vrot.slane %v8248, 4
        %v8255 = vshrl.u32 %v8012, 16
        %v8257 = vrot.slane %v8255, 7
        %v8258 = vshll.u32 %v8012, 16
        %v8260 = vor.u32 %v8257, %v8258
        %v8261 = vrot.slane %v8257, 4
        %v8263 = vshrl.u32 %v8013, 16
        %v8265 = vrot.slane %v8263, 7
        %v8266 = vshll.u32 %v8013, 16
        %v8268 = vor.u32 %v8265, %v8266
        %v8269 = vsel %vm3910, %v8261, %v8268
        %v8270 = vrot.slane %v8265, 4
        %v8272 = vshrl.u32 %v8014, 16
        %v8274 = vrot.slane %v8272, 7
        %v8275 = vshll.u32 %v8014, 16
        %v8277 = vor.u32 %v8274, %v8275
        %v8278 = vrot.slane %v8274, 4
        %v8280 = vshrl.u32 %v8015, 16
        %v8282 = vrot.slane %v8280, 7
        %v8283 = vshll.u32 %v8015, 16
        %v8285 = vor.u32 %v8282, %v8283
        %v8286 = vsel %vm3910, %v8278, %v8285
        %v8287 = vrot.slane %v8282, 4
        %s8336 = scalar_lea.vmem [#allocation3], 12
        %vm8337 = vcmask 191488
        %vm8338 = vmand %vm8337, %vm4233
        %v8339 = vld [vmem:[%s8336] sm:$0xf]
        %v8340 = vsel %vm8338, %v8022, %v8339
        %8341 = vst [vmem:[%s8336] sm:$0xf] %v8340
        %8342 = vst.msk [vmem:[%s8336 + $0x4] sm:$0xf] %vm7864, %v8031
        %vm8343 = vcmask 188416
        %vm8344 = vmand %vm8343, %vm3908
        %v8345 = vld [vmem:[%s8336 + $0x8] sm:$0x1]
        %v8346 = vsel %vm8344, %v8032, %v8345
        %8347 = vst [vmem:[%s8336 + $0x8] sm:$0x1] %v8346
        %v8348 = vld [vmem:[%s8336 + $0xc] sm:$0xf]
        %v8349 = vsel %vm8338, %v8039, %v8348
        %8350 = vst [vmem:[%s8336 + $0xc] sm:$0xf] %v8349
        %8351 = vst.msk [vmem:[%s8336 + $0x10] sm:$0xf] %vm7864, %v8048
        %v8352 = vld [vmem:[%s8336 + $0x14] sm:$0x1]
        %v8353 = vsel %vm8344, %v8049, %v8352
        %8354 = vst [vmem:[%s8336 + $0x14] sm:$0x1] %v8353
        %v8355 = vld [vmem:[%s8336 + $0x18] sm:$0xf]
        %v8356 = vsel %vm8338, %v8056, %v8355
        %8357 = vst [vmem:[%s8336 + $0x18] sm:$0xf] %v8356
        %8358 = vst.msk [vmem:[%s8336 + $0x1c] sm:$0xf] %vm7864, %v8065
        %v8359 = vld [vmem:[%s8336 + $0x20] sm:$0x1]
        %v8360 = vsel %vm8344, %v8066, %v8359
        %8361 = vst [vmem:[%s8336 + $0x20] sm:$0x1] %v8360
        %v8362 = vld [vmem:[%s8336 + $0x24] sm:$0xf]
        %v8363 = vsel %vm8338, %v8073, %v8362
        %8364 = vst [vmem:[%s8336 + $0x24] sm:$0xf] %v8363
        %8365 = vst.msk [vmem:[%s8336 + $0x28] sm:$0xf] %vm7864, %v8082
        %v8366 = vld [vmem:[%s8336 + $0x2c] sm:$0x1]
        %v8367 = vsel %vm8344, %v8083, %v8366
        %8368 = vst [vmem:[%s8336 + $0x2c] sm:$0x1] %v8367
        %v8369 = vld [vmem:[%s8336 + $0x30] sm:$0xf]
        %v8370 = vsel %vm8338, %v8090, %v8369
        %8371 = vst [vmem:[%s8336 + $0x30] sm:$0xf] %v8370
        %8372 = vst.msk [vmem:[%s8336 + $0x34] sm:$0xf] %vm7864, %v8099
        %v8373 = vld [vmem:[%s8336 + $0x38] sm:$0x1]
        %v8374 = vsel %vm8344, %v8100, %v8373
        %8375 = vst [vmem:[%s8336 + $0x38] sm:$0x1] %v8374
        %v8376 = vld [vmem:[%s8336 + $0x3c] sm:$0xf]
        %v8377 = vsel %vm8338, %v8107, %v8376
        %8378 = vst [vmem:[%s8336 + $0x3c] sm:$0xf] %v8377
        %8379 = vst.msk [vmem:[%s8336 + $0x40] sm:$0xf] %vm7864, %v8116
        %v8380 = vld [vmem:[%s8336 + $0x44] sm:$0x1]
        %v8381 = vsel %vm8344, %v8117, %v8380
        %8382 = vst [vmem:[%s8336 + $0x44] sm:$0x1] %v8381
        %v8383 = vld [vmem:[%s8336 + $0x48] sm:$0xf]
        %v8384 = vsel %vm8338, %v8124, %v8383
        %8385 = vst [vmem:[%s8336 + $0x48] sm:$0xf] %v8384
        %8386 = vst.msk [vmem:[%s8336 + $0x4c] sm:$0xf] %vm7864, %v8133
        %v8387 = vld [vmem:[%s8336 + $0x50] sm:$0x1]
        %v8388 = vsel %vm8344, %v8134, %v8387
        %8389 = vst [vmem:[%s8336 + $0x50] sm:$0x1] %v8388
        %v8390 = vld [vmem:[%s8336 + $0x54] sm:$0xf]
        %v8391 = vsel %vm8338, %v8141, %v8390
        %8392 = vst [vmem:[%s8336 + $0x54] sm:$0xf] %v8391
        %8393 = vst.msk [vmem:[%s8336 + $0x58] sm:$0xf] %vm7864, %v8150
        %v8394 = vld [vmem:[%s8336 + $0x5c] sm:$0x1]
        %v8395 = vsel %vm8344, %v8151, %v8394
        %8396 = vst [vmem:[%s8336 + $0x5c] sm:$0x1] %v8395
        %v8397 = vld [vmem:[%s8336 + $0x60] sm:$0xf]
        %v8398 = vsel %vm8338, %v8158, %v8397
        %8399 = vst [vmem:[%s8336 + $0x60] sm:$0xf] %v8398
        %8400 = vst.msk [vmem:[%s8336 + $0x64] sm:$0xf] %vm7864, %v8167
        %v8401 = vld [vmem:[%s8336 + $0x68] sm:$0x1]
        %v8402 = vsel %vm8344, %v8168, %v8401
        %8403 = vst [vmem:[%s8336 + $0x68] sm:$0x1] %v8402
        %v8404 = vld [vmem:[%s8336 + $0x6c] sm:$0xf]
        %v8405 = vsel %vm8338, %v8175, %v8404
        %8406 = vst [vmem:[%s8336 + $0x6c] sm:$0xf] %v8405
        %8407 = vst.msk [vmem:[%s8336 + $0x70] sm:$0xf] %vm7864, %v8184
        %v8408 = vld [vmem:[%s8336 + $0x74] sm:$0x1]
        %v8409 = vsel %vm8344, %v8185, %v8408
        %8410 = vst [vmem:[%s8336 + $0x74] sm:$0x1] %v8409
        %v8411 = vld [vmem:[%s8336 + $0x78] sm:$0xf]
        %v8412 = vsel %vm8338, %v8192, %v8411
        %8413 = vst [vmem:[%s8336 + $0x78] sm:$0xf] %v8412
        %8414 = vst.msk [vmem:[%s8336 + $0x7c] sm:$0xf] %vm7864, %v8201
        %v8415 = vld [vmem:[%s8336 + $0x80] sm:$0x1]
        %v8416 = vsel %vm8344, %v8202, %v8415
        %8417 = vst [vmem:[%s8336 + $0x80] sm:$0x1] %v8416
        %v8418 = vld [vmem:[%s8336 + $0x84] sm:$0xf]
        %v8419 = vsel %vm8338, %v8209, %v8418
        %8420 = vst [vmem:[%s8336 + $0x84] sm:$0xf] %v8419
        %8421 = vst.msk [vmem:[%s8336 + $0x88] sm:$0xf] %vm7864, %v8218
        %v8422 = vld [vmem:[%s8336 + $0x8c] sm:$0x1]
        %v8423 = vsel %vm8344, %v8219, %v8422
        %8424 = vst [vmem:[%s8336 + $0x8c] sm:$0x1] %v8423
        %v8425 = vld [vmem:[%s8336 + $0x90] sm:$0xf]
        %v8426 = vsel %vm8338, %v8226, %v8425
        %8427 = vst [vmem:[%s8336 + $0x90] sm:$0xf] %v8426
        %8428 = vst.msk [vmem:[%s8336 + $0x94] sm:$0xf] %vm7864, %v8235
        %v8429 = vld [vmem:[%s8336 + $0x98] sm:$0x1]
        %v8430 = vsel %vm8344, %v8236, %v8429
        %8431 = vst [vmem:[%s8336 + $0x98] sm:$0x1] %v8430
        %v8432 = vld [vmem:[%s8336 + $0x9c] sm:$0xf]
        %v8433 = vsel %vm8338, %v8243, %v8432
        %8434 = vst [vmem:[%s8336 + $0x9c] sm:$0xf] %v8433
        %8435 = vst.msk [vmem:[%s8336 + $0xa0] sm:$0xf] %vm7864, %v8252
        %v8436 = vld [vmem:[%s8336 + $0xa4] sm:$0x1]
        %v8437 = vsel %vm8344, %v8253, %v8436
        %8438 = vst [vmem:[%s8336 + $0xa4] sm:$0x1] %v8437
        %v8439 = vld [vmem:[%s8336 + $0xa8] sm:$0xf]
        %v8440 = vsel %vm8338, %v8260, %v8439
        %8441 = vst [vmem:[%s8336 + $0xa8] sm:$0xf] %v8440
        %8442 = vst.msk [vmem:[%s8336 + $0xac] sm:$0xf] %vm7864, %v8269
        %v8443 = vld [vmem:[%s8336 + $0xb0] sm:$0x1]
        %v8444 = vsel %vm8344, %v8270, %v8443
        %8445 = vst [vmem:[%s8336 + $0xb0] sm:$0x1] %v8444
        %v8446 = vld [vmem:[%s8336 + $0xb4] sm:$0xf]
        %v8447 = vsel %vm8338, %v8277, %v8446
        %8448 = vst [vmem:[%s8336 + $0xb4] sm:$0xf] %v8447
        %8449 = vst.msk [vmem:[%s8336 + $0xb8] sm:$0xf] %vm7864, %v8286
        %v8450 = vld [vmem:[%s8336 + $0xbc] sm:$0x1]
        %v8451 = vsel %vm8344, %v8287, %v8450
        %8452 = vst [vmem:[%s8336 + $0xbc] sm:$0x1] %v8451
        %v8453 = vld [vmem:[#allocation3] sm:$0xf]
        %v8454 = vld [vmem:[#allocation3 + $0x4] sm:$0xf]
        %v8455 = vld [vmem:[#allocation3 + $0xc] sm:$0xf]
        %v8456 = vld [vmem:[#allocation3 + $0x10] sm:$0xf]
        %v8457 = vld [vmem:[#allocation3 + $0x18] sm:$0xf]
        %v8458 = vld [vmem:[#allocation3 + $0x1c] sm:$0xf]
        %v8459 = vld [vmem:[#allocation3 + $0x24] sm:$0xf]
        %v8460 = vld [vmem:[#allocation3 + $0x28] sm:$0xf]
        %v8461 = vld [vmem:[#allocation3 + $0x30] sm:$0xf]
        %v8462 = vld [vmem:[#allocation3 + $0x34] sm:$0xf]
        %v8463 = vld [vmem:[#allocation3 + $0x3c] sm:$0xf]
        %v8464 = vld [vmem:[#allocation3 + $0x40] sm:$0xf]
        %v8465 = vld [vmem:[#allocation3 + $0x48] sm:$0xf]
        %v8466 = vld [vmem:[#allocation3 + $0x4c] sm:$0xf]
        %v8467 = vld [vmem:[#allocation3 + $0x54] sm:$0xf]
        %v8468 = vld [vmem:[#allocation3 + $0x58] sm:$0xf]
        %v8469 = vld [vmem:[#allocation3 + $0x60] sm:$0xf]
        %v8470 = vld [vmem:[#allocation3 + $0x64] sm:$0xf]
        %v8471 = vld [vmem:[#allocation3 + $0x6c] sm:$0xf]
        %v8472 = vld [vmem:[#allocation3 + $0x70] sm:$0xf]
        %v8473 = vld [vmem:[#allocation3 + $0x78] sm:$0xf]
        %v8474 = vld [vmem:[#allocation3 + $0x7c] sm:$0xf]
        %v8475 = vld [vmem:[#allocation3 + $0x84] sm:$0xf]
        %v8476 = vld [vmem:[#allocation3 + $0x88] sm:$0xf]
        %v8477 = vld [vmem:[#allocation3 + $0x90] sm:$0xf]
        %v8478 = vld [vmem:[#allocation3 + $0x94] sm:$0xf]
        %v8479 = vld [vmem:[#allocation3 + $0x9c] sm:$0xf]
        %v8480 = vld [vmem:[#allocation3 + $0xa0] sm:$0xf]
        %v8481 = vld [vmem:[#allocation3 + $0xa8] sm:$0xf]
        %v8482 = vld [vmem:[#allocation3 + $0xac] sm:$0xf]
        %v8483 = vld [vmem:[#allocation3 + $0xb4] sm:$0xf]
        %v8484 = vld [vmem:[#allocation3 + $0xb8] sm:$0xf]
        %v8485 = vld [vmem:[#allocation3 + $0x8] sm:$0x1]
        %v8486 = vld [vmem:[#allocation3 + $0x14] sm:$0x1]
        %v8487 = vld [vmem:[#allocation3 + $0x20] sm:$0x1]
        %v8488 = vld [vmem:[#allocation3 + $0x2c] sm:$0x1]
        %v8489 = vld [vmem:[#allocation3 + $0x38] sm:$0x1]
        %v8490 = vld [vmem:[#allocation3 + $0x44] sm:$0x1]
        %v8491 = vld [vmem:[#allocation3 + $0x50] sm:$0x1]
        %v8492 = vld [vmem:[#allocation3 + $0x5c] sm:$0x1]
        %v8493 = vld [vmem:[#allocation3 + $0x68] sm:$0x1]
        %v8494 = vld [vmem:[#allocation3 + $0x74] sm:$0x1]
        %v8495 = vld [vmem:[#allocation3 + $0x80] sm:$0x1]
        %v8496 = vld [vmem:[#allocation3 + $0x8c] sm:$0x1]
        %v8497 = vld [vmem:[#allocation3 + $0x98] sm:$0x1]
        %v8498 = vld [vmem:[#allocation3 + $0xa4] sm:$0x1]
        %v8499 = vld [vmem:[#allocation3 + $0xb0] sm:$0x1]
        %v8500 = vld [vmem:[#allocation3 + $0xbc] sm:$0x1]
        %v8502 = vshrl.u32 %v8453, 16
        %v8504 = vrot.slane %v8502, 4
        %v8505 = vshll.u32 %v8453, 16
        %v8507 = vrot.slane %v8505, 5
        %v8508 = vor.u32 %v8504, %v8507
        %v8509 = vrot.slane %v8508, 4
        %v8511 = vshll.u32 %v8454, 16
        %v8513 = vrot.slane %v8511, 5
        %v8514 = vsel %vm356, %v8509, %v8513
        %v8515 = vshrl.u32 %v8454, 16
        %v8517 = vrot.slane %v8515, 4
        %v8518 = vor.u32 %v8517, %v8513
        %v8519 = vrot.slane %v8518, 4
        %v8521 = vshll.u32 %v8485, 16
        %v8523 = vrot.slane %v8521, 5
        %v8524 = vsel %vm356, %v8519, %v8523
        %v8526 = vshrl.u32 %v8455, 16
        %v8528 = vrot.slane %v8526, 4
        %v8529 = vshll.u32 %v8455, 16
        %v8531 = vrot.slane %v8529, 5
        %v8532 = vor.u32 %v8528, %v8531
        %v8533 = vrot.slane %v8532, 4
        %v8535 = vshll.u32 %v8456, 16
        %v8537 = vrot.slane %v8535, 5
        %v8538 = vsel %vm356, %v8533, %v8537
        %v8539 = vshrl.u32 %v8456, 16
        %v8541 = vrot.slane %v8539, 4
        %v8542 = vor.u32 %v8541, %v8537
        %v8543 = vrot.slane %v8542, 4
        %v8545 = vshll.u32 %v8486, 16
        %v8547 = vrot.slane %v8545, 5
        %v8548 = vsel %vm356, %v8543, %v8547
        %v8550 = vshrl.u32 %v8457, 16
        %v8552 = vrot.slane %v8550, 4
        %v8553 = vshll.u32 %v8457, 16
        %v8555 = vrot.slane %v8553, 5
        %v8556 = vor.u32 %v8552, %v8555
        %v8557 = vrot.slane %v8556, 4
        %v8559 = vshll.u32 %v8458, 16
        %v8561 = vrot.slane %v8559, 5
        %v8562 = vsel %vm356, %v8557, %v8561
        %v8563 = vshrl.u32 %v8458, 16
        %v8565 = vrot.slane %v8563, 4
        %v8566 = vor.u32 %v8565, %v8561
        %v8567 = vrot.slane %v8566, 4
        %v8569 = vshll.u32 %v8487, 16
        %v8571 = vrot.slane %v8569, 5
        %v8572 = vsel %vm356, %v8567, %v8571
        %v8574 = vshrl.u32 %v8459, 16
        %v8576 = vrot.slane %v8574, 4
        %v8577 = vshll.u32 %v8459, 16
        %v8579 = vrot.slane %v8577, 5
        %v8580 = vor.u32 %v8576, %v8579
        %v8581 = vrot.slane %v8580, 4
        %v8583 = vshll.u32 %v8460, 16
        %v8585 = vrot.slane %v8583, 5
        %v8586 = vsel %vm356, %v8581, %v8585
        %v8587 = vshrl.u32 %v8460, 16
        %v8589 = vrot.slane %v8587, 4
        %v8590 = vor.u32 %v8589, %v8585
        %v8591 = vrot.slane %v8590, 4
        %v8593 = vshll.u32 %v8488, 16
        %v8595 = vrot.slane %v8593, 5
        %v8596 = vsel %vm356, %v8591, %v8595
        %v8598 = vshrl.u32 %v8461, 16
        %v8600 = vrot.slane %v8598, 4
        %v8601 = vshll.u32 %v8461, 16
        %v8603 = vrot.slane %v8601, 5
        %v8604 = vor.u32 %v8600, %v8603
        %v8605 = vrot.slane %v8604, 4
        %v8607 = vshll.u32 %v8462, 16
        %v8609 = vrot.slane %v8607, 5
        %v8610 = vsel %vm356, %v8605, %v8609
        %v8611 = vshrl.u32 %v8462, 16
        %v8613 = vrot.slane %v8611, 4
        %v8614 = vor.u32 %v8613, %v8609
        %v8615 = vrot.slane %v8614, 4
        %v8617 = vshll.u32 %v8489, 16
        %v8619 = vrot.slane %v8617, 5
        %v8620 = vsel %vm356, %v8615, %v8619
        %v8622 = vshrl.u32 %v8463, 16
        %v8624 = vrot.slane %v8622, 4
        %v8625 = vshll.u32 %v8463, 16
        %v8627 = vrot.slane %v8625, 5
        %v8628 = vor.u32 %v8624, %v8627
        %v8629 = vrot.slane %v8628, 4
        %v8631 = vshll.u32 %v8464, 16
        %v8633 = vrot.slane %v8631, 5
        %v8634 = vsel %vm356, %v8629, %v8633
        %v8635 = vshrl.u32 %v8464, 16
        %v8637 = vrot.slane %v8635, 4
        %v8638 = vor.u32 %v8637, %v8633
        %v8639 = vrot.slane %v8638, 4
        %v8641 = vshll.u32 %v8490, 16
        %v8643 = vrot.slane %v8641, 5
        %v8644 = vsel %vm356, %v8639, %v8643
        %v8646 = vshrl.u32 %v8465, 16
        %v8648 = vrot.slane %v8646, 4
        %v8649 = vshll.u32 %v8465, 16
        %v8651 = vrot.slane %v8649, 5
        %v8652 = vor.u32 %v8648, %v8651
        %v8653 = vrot.slane %v8652, 4
        %v8655 = vshll.u32 %v8466, 16
        %v8657 = vrot.slane %v8655, 5
        %v8658 = vsel %vm356, %v8653, %v8657
        %v8659 = vshrl.u32 %v8466, 16
        %v8661 = vrot.slane %v8659, 4
        %v8662 = vor.u32 %v8661, %v8657
        %v8663 = vrot.slane %v8662, 4
        %v8665 = vshll.u32 %v8491, 16
        %v8667 = vrot.slane %v8665, 5
        %v8668 = vsel %vm356, %v8663, %v8667
        %v8670 = vshrl.u32 %v8467, 16
        %v8672 = vrot.slane %v8670, 4
        %v8673 = vshll.u32 %v8467, 16
        %v8675 = vrot.slane %v8673, 5
        %v8676 = vor.u32 %v8672, %v8675
        %v8677 = vrot.slane %v8676, 4
        %v8679 = vshll.u32 %v8468, 16
        %v8681 = vrot.slane %v8679, 5
        %v8682 = vsel %vm356, %v8677, %v8681
        %v8683 = vshrl.u32 %v8468, 16
        %v8685 = vrot.slane %v8683, 4
        %v8686 = vor.u32 %v8685, %v8681
        %v8687 = vrot.slane %v8686, 4
        %v8689 = vshll.u32 %v8492, 16
        %v8691 = vrot.slane %v8689, 5
        %v8692 = vsel %vm356, %v8687, %v8691
        %v8694 = vshrl.u32 %v8469, 16
        %v8696 = vrot.slane %v8694, 4
        %v8697 = vshll.u32 %v8469, 16
        %v8699 = vrot.slane %v8697, 5
        %v8700 = vor.u32 %v8696, %v8699
        %v8701 = vrot.slane %v8700, 4
        %v8703 = vshll.u32 %v8470, 16
        %v8705 = vrot.slane %v8703, 5
        %v8706 = vsel %vm356, %v8701, %v8705
        %v8707 = vshrl.u32 %v8470, 16
        %v8709 = vrot.slane %v8707, 4
        %v8710 = vor.u32 %v8709, %v8705
        %v8711 = vrot.slane %v8710, 4
        %v8713 = vshll.u32 %v8493, 16
        %v8715 = vrot.slane %v8713, 5
        %v8716 = vsel %vm356, %v8711, %v8715
        %v8718 = vshrl.u32 %v8471, 16
        %v8720 = vrot.slane %v8718, 4
        %v8721 = vshll.u32 %v8471, 16
        %v8723 = vrot.slane %v8721, 5
        %v8724 = vor.u32 %v8720, %v8723
        %v8725 = vrot.slane %v8724, 4
        %v8727 = vshll.u32 %v8472, 16
        %v8729 = vrot.slane %v8727, 5
        %v8730 = vsel %vm356, %v8725, %v8729
        %v8731 = vshrl.u32 %v8472, 16
        %v8733 = vrot.slane %v8731, 4
        %v8734 = vor.u32 %v8733, %v8729
        %v8735 = vrot.slane %v8734, 4
        %v8737 = vshll.u32 %v8494, 16
        %v8739 = vrot.slane %v8737, 5
        %v8740 = vsel %vm356, %v8735, %v8739
        %v8742 = vshrl.u32 %v8473, 16
        %v8744 = vrot.slane %v8742, 4
        %v8745 = vshll.u32 %v8473, 16
        %v8747 = vrot.slane %v8745, 5
        %v8748 = vor.u32 %v8744, %v8747
        %v8749 = vrot.slane %v8748, 4
        %v8751 = vshll.u32 %v8474, 16
        %v8753 = vrot.slane %v8751, 5
        %v8754 = vsel %vm356, %v8749, %v8753
        %v8755 = vshrl.u32 %v8474, 16
        %v8757 = vrot.slane %v8755, 4
        %v8758 = vor.u32 %v8757, %v8753
        %v8759 = vrot.slane %v8758, 4
        %v8761 = vshll.u32 %v8495, 16
        %v8763 = vrot.slane %v8761, 5
        %v8764 = vsel %vm356, %v8759, %v8763
        %v8766 = vshrl.u32 %v8475, 16
        %v8768 = vrot.slane %v8766, 4
        %v8769 = vshll.u32 %v8475, 16
        %v8771 = vrot.slane %v8769, 5
        %v8772 = vor.u32 %v8768, %v8771
        %v8773 = vrot.slane %v8772, 4
        %v8775 = vshll.u32 %v8476, 16
        %v8777 = vrot.slane %v8775, 5
        %v8778 = vsel %vm356, %v8773, %v8777
        %v8779 = vshrl.u32 %v8476, 16
        %v8781 = vrot.slane %v8779, 4
        %v8782 = vor.u32 %v8781, %v8777
        %v8783 = vrot.slane %v8782, 4
        %v8785 = vshll.u32 %v8496, 16
        %v8787 = vrot.slane %v8785, 5
        %v8788 = vsel %vm356, %v8783, %v8787
        %v8790 = vshrl.u32 %v8477, 16
        %v8792 = vrot.slane %v8790, 4
        %v8793 = vshll.u32 %v8477, 16
        %v8795 = vrot.slane %v8793, 5
        %v8796 = vor.u32 %v8792, %v8795
        %v8797 = vrot.slane %v8796, 4
        %v8799 = vshll.u32 %v8478, 16
        %v8801 = vrot.slane %v8799, 5
        %v8802 = vsel %vm356, %v8797, %v8801
        %v8803 = vshrl.u32 %v8478, 16
        %v8805 = vrot.slane %v8803, 4
        %v8806 = vor.u32 %v8805, %v8801
        %v8807 = vrot.slane %v8806, 4
        %v8809 = vshll.u32 %v8497, 16
        %v8811 = vrot.slane %v8809, 5
        %v8812 = vsel %vm356, %v8807, %v8811
        %v8814 = vshrl.u32 %v8479, 16
        %v8816 = vrot.slane %v8814, 4
        %v8817 = vshll.u32 %v8479, 16
        %v8819 = vrot.slane %v8817, 5
        %v8820 = vor.u32 %v8816, %v8819
        %v8821 = vrot.slane %v8820, 4
        %v8823 = vshll.u32 %v8480, 16
        %v8825 = vrot.slane %v8823, 5
        %v8826 = vsel %vm356, %v8821, %v8825
        %v8827 = vshrl.u32 %v8480, 16
        %v8829 = vrot.slane %v8827, 4
        %v8830 = vor.u32 %v8829, %v8825
        %v8831 = vrot.slane %v8830, 4
        %v8833 = vshll.u32 %v8498, 16
        %v8835 = vrot.slane %v8833, 5
        %v8836 = vsel %vm356, %v8831, %v8835
        %v8838 = vshrl.u32 %v8481, 16
        %v8840 = vrot.slane %v8838, 4
        %v8841 = vshll.u32 %v8481, 16
        %v8843 = vrot.slane %v8841, 5
        %v8844 = vor.u32 %v8840, %v8843
        %v8845 = vrot.slane %v8844, 4
        %v8847 = vshll.u32 %v8482, 16
        %v8849 = vrot.slane %v8847, 5
        %v8850 = vsel %vm356, %v8845, %v8849
        %v8851 = vshrl.u32 %v8482, 16
        %v8853 = vrot.slane %v8851, 4
        %v8854 = vor.u32 %v8853, %v8849
        %v8855 = vrot.slane %v8854, 4
        %v8857 = vshll.u32 %v8499, 16
        %v8859 = vrot.slane %v8857, 5
        %v8860 = vsel %vm356, %v8855, %v8859
        %v8862 = vshrl.u32 %v8483, 16
        %v8864 = vrot.slane %v8862, 4
        %v8865 = vshll.u32 %v8483, 16
        %v8867 = vrot.slane %v8865, 5
        %v8868 = vor.u32 %v8864, %v8867
        %v8869 = vrot.slane %v8868, 4
        %v8871 = vshll.u32 %v8484, 16
        %v8873 = vrot.slane %v8871, 5
        %v8874 = vsel %vm356, %v8869, %v8873
        %v8875 = vshrl.u32 %v8484, 16
        %v8877 = vrot.slane %v8875, 4
        %v8878 = vor.u32 %v8877, %v8873
        %v8879 = vrot.slane %v8878, 4
        %v8881 = vshll.u32 %v8500, 16
        %v8883 = vrot.slane %v8881, 5
        %v8884 = vsel %vm356, %v8879, %v8883
        %v8885 = vld [vmem:[#allocation3] sm:$0xe]
        %v8886 = vld [vmem:[#allocation3 + $0xc] sm:$0xe]
        %v8887 = vld [vmem:[#allocation3 + $0x18] sm:$0xe]
        %v8888 = vld [vmem:[#allocation3 + $0x24] sm:$0xe]
        %v8889 = vld [vmem:[#allocation3 + $0x30] sm:$0xe]
        %v8890 = vld [vmem:[#allocation3 + $0x3c] sm:$0xe]
        %v8891 = vld [vmem:[#allocation3 + $0x48] sm:$0xe]
        %v8892 = vld [vmem:[#allocation3 + $0x54] sm:$0xe]
        %v8893 = vld [vmem:[#allocation3 + $0x60] sm:$0xe]
        %v8894 = vld [vmem:[#allocation3 + $0x6c] sm:$0xe]
        %v8895 = vld [vmem:[#allocation3 + $0x78] sm:$0xe]
        %v8896 = vld [vmem:[#allocation3 + $0x84] sm:$0xe]
        %v8897 = vld [vmem:[#allocation3 + $0x90] sm:$0xe]
        %v8898 = vld [vmem:[#allocation3 + $0x9c] sm:$0xe]
        %v8899 = vld [vmem:[#allocation3 + $0xa8] sm:$0xe]
        %v8900 = vld [vmem:[#allocation3 + $0xb4] sm:$0xe]
        %v8949 = vrot.slane %v8885, 5
        %v8950 = vrot.slane %v8949, 4
        %v8951 = vrot.slane %v8454, 5
        %v8952 = vsel %vm1271, %v8950, %v8951
        %v8953 = vrot.slane %v8951, 4
        %v8954 = vrot.slane %v8485, 5
        %v8955 = vsel %vm1271, %v8953, %v8954
        %v8956 = vrot.slane %v8886, 5
        %v8957 = vrot.slane %v8956, 4
        %v8958 = vrot.slane %v8456, 5
        %v8959 = vsel %vm1271, %v8957, %v8958
        %v8960 = vrot.slane %v8958, 4
        %v8961 = vrot.slane %v8486, 5
        %v8962 = vsel %vm1271, %v8960, %v8961
        %v8963 = vrot.slane %v8887, 5
        %v8964 = vrot.slane %v8963, 4
        %v8965 = vrot.slane %v8458, 5
        %v8966 = vsel %vm1271, %v8964, %v8965
        %v8967 = vrot.slane %v8965, 4
        %v8968 = vrot.slane %v8487, 5
        %v8969 = vsel %vm1271, %v8967, %v8968
        %v8970 = vrot.slane %v8888, 5
        %v8971 = vrot.slane %v8970, 4
        %v8972 = vrot.slane %v8460, 5
        %v8973 = vsel %vm1271, %v8971, %v8972
        %v8974 = vrot.slane %v8972, 4
        %v8975 = vrot.slane %v8488, 5
        %v8976 = vsel %vm1271, %v8974, %v8975
        %v8977 = vrot.slane %v8889, 5
        %v8978 = vrot.slane %v8977, 4
        %v8979 = vrot.slane %v8462, 5
        %v8980 = vsel %vm1271, %v8978, %v8979
        %v8981 = vrot.slane %v8979, 4
        %v8982 = vrot.slane %v8489, 5
        %v8983 = vsel %vm1271, %v8981, %v8982
        %v8984 = vrot.slane %v8890, 5
        %v8985 = vrot.slane %v8984, 4
        %v8986 = vrot.slane %v8464, 5
        %v8987 = vsel %vm1271, %v8985, %v8986
        %v8988 = vrot.slane %v8986, 4
        %v8989 = vrot.slane %v8490, 5
        %v8990 = vsel %vm1271, %v8988, %v8989
        %v8991 = vrot.slane %v8891, 5
        %v8992 = vrot.slane %v8991, 4
        %v8993 = vrot.slane %v8466, 5
        %v8994 = vsel %vm1271, %v8992, %v8993
        %v8995 = vrot.slane %v8993, 4
        %v8996 = vrot.slane %v8491, 5
        %v8997 = vsel %vm1271, %v8995, %v8996
        %v8998 = vrot.slane %v8892, 5
        %v8999 = vrot.slane %v8998, 4
        %v9000 = vrot.slane %v8468, 5
        %v9001 = vsel %vm1271, %v8999, %v9000
        %v9002 = vrot.slane %v9000, 4
        %v9003 = vrot.slane %v8492, 5
        %v9004 = vsel %vm1271, %v9002, %v9003
        %v9005 = vrot.slane %v8893, 5
        %v9006 = vrot.slane %v9005, 4
        %v9007 = vrot.slane %v8470, 5
        %v9008 = vsel %vm1271, %v9006, %v9007
        %v9009 = vrot.slane %v9007, 4
        %v9010 = vrot.slane %v8493, 5
        %v9011 = vsel %vm1271, %v9009, %v9010
        %v9012 = vrot.slane %v8894, 5
        %v9013 = vrot.slane %v9012, 4
        %v9014 = vrot.slane %v8472, 5
        %v9015 = vsel %vm1271, %v9013, %v9014
        %v9016 = vrot.slane %v9014, 4
        %v9017 = vrot.slane %v8494, 5
        %v9018 = vsel %vm1271, %v9016, %v9017
        %v9019 = vrot.slane %v8895, 5
        %v9020 = vrot.slane %v9019, 4
        %v9021 = vrot.slane %v8474, 5
        %v9022 = vsel %vm1271, %v9020, %v9021
        %v9023 = vrot.slane %v9021, 4
        %v9024 = vrot.slane %v8495, 5
        %v9025 = vsel %vm1271, %v9023, %v9024
        %v9026 = vrot.slane %v8896, 5
        %v9027 = vrot.slane %v9026, 4
        %v9028 = vrot.slane %v8476, 5
        %v9029 = vsel %vm1271, %v9027, %v9028
        %v9030 = vrot.slane %v9028, 4
        %v9031 = vrot.slane %v8496, 5
        %v9032 = vsel %vm1271, %v9030, %v9031
        %v9033 = vrot.slane %v8897, 5
        %v9034 = vrot.slane %v9033, 4
        %v9035 = vrot.slane %v8478, 5
        %v9036 = vsel %vm1271, %v9034, %v9035
        %v9037 = vrot.slane %v9035, 4
        %v9038 = vrot.slane %v8497, 5
        %v9039 = vsel %vm1271, %v9037, %v9038
        %v9040 = vrot.slane %v8898, 5
        %v9041 = vrot.slane %v9040, 4
        %v9042 = vrot.slane %v8480, 5
        %v9043 = vsel %vm1271, %v9041, %v9042
        %v9044 = vrot.slane %v9042, 4
        %v9045 = vrot.slane %v8498, 5
        %v9046 = vsel %vm1271, %v9044, %v9045
        %v9047 = vrot.slane %v8899, 5
        %v9048 = vrot.slane %v9047, 4
        %v9049 = vrot.slane %v8482, 5
        %v9050 = vsel %vm1271, %v9048, %v9049
        %v9051 = vrot.slane %v9049, 4
        %v9052 = vrot.slane %v8499, 5
        %v9053 = vsel %vm1271, %v9051, %v9052
        %v9054 = vrot.slane %v8900, 5
        %v9055 = vrot.slane %v9054, 4
        %v9056 = vrot.slane %v8484, 5
        %v9057 = vsel %vm1271, %v9055, %v9056
        %v9058 = vrot.slane %v9056, 4
        %v9059 = vrot.slane %v8500, 5
        %v9060 = vsel %vm1271, %v9058, %v9059
        %v9061 = vld [vmem:[%s8336] sm:$0xf]
        %v9062 = vld [vmem:[%s8336 + $0x4] sm:$0xf]
        %v9063 = vld [vmem:[%s8336 + $0xc] sm:$0xf]
        %v9064 = vld [vmem:[%s8336 + $0x10] sm:$0xf]
        %v9065 = vld [vmem:[%s8336 + $0x18] sm:$0xf]
        %v9066 = vld [vmem:[%s8336 + $0x1c] sm:$0xf]
        %v9067 = vld [vmem:[%s8336 + $0x24] sm:$0xf]
        %v9068 = vld [vmem:[%s8336 + $0x28] sm:$0xf]
        %v9069 = vld [vmem:[%s8336 + $0x30] sm:$0xf]
        %v9070 = vld [vmem:[%s8336 + $0x34] sm:$0xf]
        %v9071 = vld [vmem:[%s8336 + $0x3c] sm:$0xf]
        %v9072 = vld [vmem:[%s8336 + $0x40] sm:$0xf]
        %v9073 = vld [vmem:[%s8336 + $0x48] sm:$0xf]
        %v9074 = vld [vmem:[%s8336 + $0x4c] sm:$0xf]
        %v9075 = vld [vmem:[%s8336 + $0x54] sm:$0xf]
        %v9076 = vld [vmem:[%s8336 + $0x58] sm:$0xf]
        %v9077 = vld [vmem:[%s8336 + $0x60] sm:$0xf]
        %v9078 = vld [vmem:[%s8336 + $0x64] sm:$0xf]
        %v9079 = vld [vmem:[%s8336 + $0x6c] sm:$0xf]
        %v9080 = vld [vmem:[%s8336 + $0x70] sm:$0xf]
        %v9081 = vld [vmem:[%s8336 + $0x78] sm:$0xf]
        %v9082 = vld [vmem:[%s8336 + $0x7c] sm:$0xf]
        %v9083 = vld [vmem:[%s8336 + $0x84] sm:$0xf]
        %v9084 = vld [vmem:[%s8336 + $0x88] sm:$0xf]
        %v9085 = vld [vmem:[%s8336 + $0x90] sm:$0xf]
        %v9086 = vld [vmem:[%s8336 + $0x94] sm:$0xf]
        %v9087 = vld [vmem:[%s8336 + $0x9c] sm:$0xf]
        %v9088 = vld [vmem:[%s8336 + $0xa0] sm:$0xf]
        %v9089 = vld [vmem:[%s8336 + $0xa8] sm:$0xf]
        %v9090 = vld [vmem:[%s8336 + $0xac] sm:$0xf]
        %v9091 = vld [vmem:[%s8336 + $0xb4] sm:$0xf]
        %v9092 = vld [vmem:[%s8336 + $0xb8] sm:$0xf]
        %v9093 = vld [vmem:[%s8336 + $0x8] sm:$0x1]
        %v9094 = vld [vmem:[%s8336 + $0x14] sm:$0x1]
        %v9095 = vld [vmem:[%s8336 + $0x20] sm:$0x1]
        %v9096 = vld [vmem:[%s8336 + $0x2c] sm:$0x1]
        %v9097 = vld [vmem:[%s8336 + $0x38] sm:$0x1]
        %v9098 = vld [vmem:[%s8336 + $0x44] sm:$0x1]
        %v9099 = vld [vmem:[%s8336 + $0x50] sm:$0x1]
        %v9100 = vld [vmem:[%s8336 + $0x5c] sm:$0x1]
        %v9101 = vld [vmem:[%s8336 + $0x68] sm:$0x1]
        %v9102 = vld [vmem:[%s8336 + $0x74] sm:$0x1]
        %v9103 = vld [vmem:[%s8336 + $0x80] sm:$0x1]
        %v9104 = vld [vmem:[%s8336 + $0x8c] sm:$0x1]
        %v9105 = vld [vmem:[%s8336 + $0x98] sm:$0x1]
        %v9106 = vld [vmem:[%s8336 + $0xa4] sm:$0x1]
        %v9107 = vld [vmem:[%s8336 + $0xb0] sm:$0x1]
        %v9108 = vld [vmem:[%s8336 + $0xbc] sm:$0x1]
        %v9110 = vshrl.u32 %v9061, 16
        %v9112 = vrot.slane %v9110, 4
        %v9113 = vshll.u32 %v9061, 16
        %v9115 = vrot.slane %v9113, 5
        %v9116 = vor.u32 %v9112, %v9115
        %v9117 = vrot.slane %v9116, 4
        %v9119 = vshll.u32 %v9062, 16
        %v9121 = vrot.slane %v9119, 5
        %v9122 = vsel %vm356, %v9117, %v9121
        %v9123 = vshrl.u32 %v9062, 16
        %v9125 = vrot.slane %v9123, 4
        %v9126 = vor.u32 %v9125, %v9121
        %v9127 = vrot.slane %v9126, 4
        %v9129 = vshll.u32 %v9093, 16
        %v9131 = vrot.slane %v9129, 5
        %v9132 = vsel %vm356, %v9127, %v9131
        %v9134 = vshrl.u32 %v9063, 16
        %v9136 = vrot.slane %v9134, 4
        %v9137 = vshll.u32 %v9063, 16
        %v9139 = vrot.slane %v9137, 5
        %v9140 = vor.u32 %v9136, %v9139
        %v9141 = vrot.slane %v9140, 4
        %v9143 = vshll.u32 %v9064, 16
        %v9145 = vrot.slane %v9143, 5
        %v9146 = vsel %vm356, %v9141, %v9145
        %v9147 = vshrl.u32 %v9064, 16
        %v9149 = vrot.slane %v9147, 4
        %v9150 = vor.u32 %v9149, %v9145
        %v9151 = vrot.slane %v9150, 4
        %v9153 = vshll.u32 %v9094, 16
        %v9155 = vrot.slane %v9153, 5
        %v9156 = vsel %vm356, %v9151, %v9155
        %v9158 = vshrl.u32 %v9065, 16
        %v9160 = vrot.slane %v9158, 4
        %v9161 = vshll.u32 %v9065, 16
        %v9163 = vrot.slane %v9161, 5
        %v9164 = vor.u32 %v9160, %v9163
        %v9165 = vrot.slane %v9164, 4
        %v9167 = vshll.u32 %v9066, 16
        %v9169 = vrot.slane %v9167, 5
        %v9170 = vsel %vm356, %v9165, %v9169
        %v9171 = vshrl.u32 %v9066, 16
        %v9173 = vrot.slane %v9171, 4
        %v9174 = vor.u32 %v9173, %v9169
        %v9175 = vrot.slane %v9174, 4
        %v9177 = vshll.u32 %v9095, 16
        %v9179 = vrot.slane %v9177, 5
        %v9180 = vsel %vm356, %v9175, %v9179
        %v9182 = vshrl.u32 %v9067, 16
        %v9184 = vrot.slane %v9182, 4
        %v9185 = vshll.u32 %v9067, 16
        %v9187 = vrot.slane %v9185, 5
        %v9188 = vor.u32 %v9184, %v9187
        %v9189 = vrot.slane %v9188, 4
        %v9191 = vshll.u32 %v9068, 16
        %v9193 = vrot.slane %v9191, 5
        %v9194 = vsel %vm356, %v9189, %v9193
        %v9195 = vshrl.u32 %v9068, 16
        %v9197 = vrot.slane %v9195, 4
        %v9198 = vor.u32 %v9197, %v9193
        %v9199 = vrot.slane %v9198, 4
        %v9201 = vshll.u32 %v9096, 16
        %v9203 = vrot.slane %v9201, 5
        %v9204 = vsel %vm356, %v9199, %v9203
        %v9206 = vshrl.u32 %v9069, 16
        %v9208 = vrot.slane %v9206, 4
        %v9209 = vshll.u32 %v9069, 16
        %v9211 = vrot.slane %v9209, 5
        %v9212 = vor.u32 %v9208, %v9211
        %v9213 = vrot.slane %v9212, 4
        %v9215 = vshll.u32 %v9070, 16
        %v9217 = vrot.slane %v9215, 5
        %v9218 = vsel %vm356, %v9213, %v9217
        %v9219 = vshrl.u32 %v9070, 16
        %v9221 = vrot.slane %v9219, 4
        %v9222 = vor.u32 %v9221, %v9217
        %v9223 = vrot.slane %v9222, 4
        %v9225 = vshll.u32 %v9097, 16
        %v9227 = vrot.slane %v9225, 5
        %v9228 = vsel %vm356, %v9223, %v9227
        %v9230 = vshrl.u32 %v9071, 16
        %v9232 = vrot.slane %v9230, 4
        %v9233 = vshll.u32 %v9071, 16
        %v9235 = vrot.slane %v9233, 5
        %v9236 = vor.u32 %v9232, %v9235
        %v9237 = vrot.slane %v9236, 4
        %v9239 = vshll.u32 %v9072, 16
        %v9241 = vrot.slane %v9239, 5
        %v9242 = vsel %vm356, %v9237, %v9241
        %v9243 = vshrl.u32 %v9072, 16
        %v9245 = vrot.slane %v9243, 4
        %v9246 = vor.u32 %v9245, %v9241
        %v9247 = vrot.slane %v9246, 4
        %v9249 = vshll.u32 %v9098, 16
        %v9251 = vrot.slane %v9249, 5
        %v9252 = vsel %vm356, %v9247, %v9251
        %v9254 = vshrl.u32 %v9073, 16
        %v9256 = vrot.slane %v9254, 4
        %v9257 = vshll.u32 %v9073, 16
        %v9259 = vrot.slane %v9257, 5
        %v9260 = vor.u32 %v9256, %v9259
        %v9261 = vrot.slane %v9260, 4
        %v9263 = vshll.u32 %v9074, 16
        %v9265 = vrot.slane %v9263, 5
        %v9266 = vsel %vm356, %v9261, %v9265
        %v9267 = vshrl.u32 %v9074, 16
        %v9269 = vrot.slane %v9267, 4
        %v9270 = vor.u32 %v9269, %v9265
        %v9271 = vrot.slane %v9270, 4
        %v9273 = vshll.u32 %v9099, 16
        %v9275 = vrot.slane %v9273, 5
        %v9276 = vsel %vm356, %v9271, %v9275
        %v9278 = vshrl.u32 %v9075, 16
        %v9280 = vrot.slane %v9278, 4
        %v9281 = vshll.u32 %v9075, 16
        %v9283 = vrot.slane %v9281, 5
        %v9284 = vor.u32 %v9280, %v9283
        %v9285 = vrot.slane %v9284, 4
        %v9287 = vshll.u32 %v9076, 16
        %v9289 = vrot.slane %v9287, 5
        %v9290 = vsel %vm356, %v9285, %v9289
        %v9291 = vshrl.u32 %v9076, 16
        %v9293 = vrot.slane %v9291, 4
        %v9294 = vor.u32 %v9293, %v9289
        %v9295 = vrot.slane %v9294, 4
        %v9297 = vshll.u32 %v9100, 16
        %v9299 = vrot.slane %v9297, 5
        %v9300 = vsel %vm356, %v9295, %v9299
        %v9302 = vshrl.u32 %v9077, 16
        %v9304 = vrot.slane %v9302, 4
        %v9305 = vshll.u32 %v9077, 16
        %v9307 = vrot.slane %v9305, 5
        %v9308 = vor.u32 %v9304, %v9307
        %v9309 = vrot.slane %v9308, 4
        %v9311 = vshll.u32 %v9078, 16
        %v9313 = vrot.slane %v9311, 5
        %v9314 = vsel %vm356, %v9309, %v9313
        %v9315 = vshrl.u32 %v9078, 16
        %v9317 = vrot.slane %v9315, 4
        %v9318 = vor.u32 %v9317, %v9313
        %v9319 = vrot.slane %v9318, 4
        %v9321 = vshll.u32 %v9101, 16
        %v9323 = vrot.slane %v9321, 5
        %v9324 = vsel %vm356, %v9319, %v9323
        %v9326 = vshrl.u32 %v9079, 16
        %v9328 = vrot.slane %v9326, 4
        %v9329 = vshll.u32 %v9079, 16
        %v9331 = vrot.slane %v9329, 5
        %v9332 = vor.u32 %v9328, %v9331
        %v9333 = vrot.slane %v9332, 4
        %v9335 = vshll.u32 %v9080, 16
        %v9337 = vrot.slane %v9335, 5
        %v9338 = vsel %vm356, %v9333, %v9337
        %v9339 = vshrl.u32 %v9080, 16
        %v9341 = vrot.slane %v9339, 4
        %v9342 = vor.u32 %v9341, %v9337
        %v9343 = vrot.slane %v9342, 4
        %v9345 = vshll.u32 %v9102, 16
        %v9347 = vrot.slane %v9345, 5
        %v9348 = vsel %vm356, %v9343, %v9347
        %v9350 = vshrl.u32 %v9081, 16
        %v9352 = vrot.slane %v9350, 4
        %v9353 = vshll.u32 %v9081, 16
        %v9355 = vrot.slane %v9353, 5
        %v9356 = vor.u32 %v9352, %v9355
        %v9357 = vrot.slane %v9356, 4
        %v9359 = vshll.u32 %v9082, 16
        %v9361 = vrot.slane %v9359, 5
        %v9362 = vsel %vm356, %v9357, %v9361
        %v9363 = vshrl.u32 %v9082, 16
        %v9365 = vrot.slane %v9363, 4
        %v9366 = vor.u32 %v9365, %v9361
        %v9367 = vrot.slane %v9366, 4
        %v9369 = vshll.u32 %v9103, 16
        %v9371 = vrot.slane %v9369, 5
        %v9372 = vsel %vm356, %v9367, %v9371
        %v9374 = vshrl.u32 %v9083, 16
        %v9376 = vrot.slane %v9374, 4
        %v9377 = vshll.u32 %v9083, 16
        %v9379 = vrot.slane %v9377, 5
        %v9380 = vor.u32 %v9376, %v9379
        %v9381 = vrot.slane %v9380, 4
        %v9383 = vshll.u32 %v9084, 16
        %v9385 = vrot.slane %v9383, 5
        %v9386 = vsel %vm356, %v9381, %v9385
        %v9387 = vshrl.u32 %v9084, 16
        %v9389 = vrot.slane %v9387, 4
        %v9390 = vor.u32 %v9389, %v9385
        %v9391 = vrot.slane %v9390, 4
        %v9393 = vshll.u32 %v9104, 16
        %v9395 = vrot.slane %v9393, 5
        %v9396 = vsel %vm356, %v9391, %v9395
        %v9398 = vshrl.u32 %v9085, 16
        %v9400 = vrot.slane %v9398, 4
        %v9401 = vshll.u32 %v9085, 16
        %v9403 = vrot.slane %v9401, 5
        %v9404 = vor.u32 %v9400, %v9403
        %v9405 = vrot.slane %v9404, 4
        %v9407 = vshll.u32 %v9086, 16
        %v9409 = vrot.slane %v9407, 5
        %v9410 = vsel %vm356, %v9405, %v9409
        %v9411 = vshrl.u32 %v9086, 16
        %v9413 = vrot.slane %v9411, 4
        %v9414 = vor.u32 %v9413, %v9409
        %v9415 = vrot.slane %v9414, 4
        %v9417 = vshll.u32 %v9105, 16
        %v9419 = vrot.slane %v9417, 5
        %v9420 = vsel %vm356, %v9415, %v9419
        %v9422 = vshrl.u32 %v9087, 16
        %v9424 = vrot.slane %v9422, 4
        %v9425 = vshll.u32 %v9087, 16
        %v9427 = vrot.slane %v9425, 5
        %v9428 = vor.u32 %v9424, %v9427
        %v9429 = vrot.slane %v9428, 4
        %v9431 = vshll.u32 %v9088, 16
        %v9433 = vrot.slane %v9431, 5
        %v9434 = vsel %vm356, %v9429, %v9433
        %v9435 = vshrl.u32 %v9088, 16
        %v9437 = vrot.slane %v9435, 4
        %v9438 = vor.u32 %v9437, %v9433
        %v9439 = vrot.slane %v9438, 4
        %v9441 = vshll.u32 %v9106, 16
        %v9443 = vrot.slane %v9441, 5
        %v9444 = vsel %vm356, %v9439, %v9443
        %v9446 = vshrl.u32 %v9089, 16
        %v9448 = vrot.slane %v9446, 4
        %v9449 = vshll.u32 %v9089, 16
        %v9451 = vrot.slane %v9449, 5
        %v9452 = vor.u32 %v9448, %v9451
        %v9453 = vrot.slane %v9452, 4
        %v9455 = vshll.u32 %v9090, 16
        %v9457 = vrot.slane %v9455, 5
        %v9458 = vsel %vm356, %v9453, %v9457
        %v9459 = vshrl.u32 %v9090, 16
        %v9461 = vrot.slane %v9459, 4
        %v9462 = vor.u32 %v9461, %v9457
        %v9463 = vrot.slane %v9462, 4
        %v9465 = vshll.u32 %v9107, 16
        %v9467 = vrot.slane %v9465, 5
        %v9468 = vsel %vm356, %v9463, %v9467
        %v9470 = vshrl.u32 %v9091, 16
        %v9472 = vrot.slane %v9470, 4
        %v9473 = vshll.u32 %v9091, 16
        %v9475 = vrot.slane %v9473, 5
        %v9476 = vor.u32 %v9472, %v9475
        %v9477 = vrot.slane %v9476, 4
        %v9479 = vshll.u32 %v9092, 16
        %v9481 = vrot.slane %v9479, 5
        %v9482 = vsel %vm356, %v9477, %v9481
        %v9483 = vshrl.u32 %v9092, 16
        %v9485 = vrot.slane %v9483, 4
        %v9486 = vor.u32 %v9485, %v9481
        %v9487 = vrot.slane %v9486, 4
        %v9489 = vshll.u32 %v9108, 16
        %v9491 = vrot.slane %v9489, 5
        %v9492 = vsel %vm356, %v9487, %v9491
        %v9493 = vld [vmem:[%s8336] sm:$0xe]
        %v9494 = vld [vmem:[%s8336 + $0xc] sm:$0xe]
        %v9495 = vld [vmem:[%s8336 + $0x18] sm:$0xe]
        %v9496 = vld [vmem:[%s8336 + $0x24] sm:$0xe]
        %v9497 = vld [vmem:[%s8336 + $0x30] sm:$0xe]
        %v9498 = vld [vmem:[%s8336 + $0x3c] sm:$0xe]
        %v9499 = vld [vmem:[%s8336 + $0x48] sm:$0xe]
        %v9500 = vld [vmem:[%s8336 + $0x54] sm:$0xe]
        %v9501 = vld [vmem:[%s8336 + $0x60] sm:$0xe]
        %v9502 = vld [vmem:[%s8336 + $0x6c] sm:$0xe]
        %v9503 = vld [vmem:[%s8336 + $0x78] sm:$0xe]
        %v9504 = vld [vmem:[%s8336 + $0x84] sm:$0xe]
        %v9505 = vld [vmem:[%s8336 + $0x90] sm:$0xe]
        %v9506 = vld [vmem:[%s8336 + $0x9c] sm:$0xe]
        %v9507 = vld [vmem:[%s8336 + $0xa8] sm:$0xe]
        %v9508 = vld [vmem:[%s8336 + $0xb4] sm:$0xe]
        %v9557 = vrot.slane %v9493, 5
        %v9558 = vrot.slane %v9557, 4
        %v9559 = vrot.slane %v9062, 5
        %v9560 = vsel %vm1271, %v9558, %v9559
        %v9561 = vrot.slane %v9559, 4
        %v9562 = vrot.slane %v9093, 5
        %v9563 = vsel %vm1271, %v9561, %v9562
        %v9564 = vrot.slane %v9494, 5
        %v9565 = vrot.slane %v9564, 4
        %v9566 = vrot.slane %v9064, 5
        %v9567 = vsel %vm1271, %v9565, %v9566
        %v9568 = vrot.slane %v9566, 4
        %v9569 = vrot.slane %v9094, 5
        %v9570 = vsel %vm1271, %v9568, %v9569
        %v9571 = vrot.slane %v9495, 5
        %v9572 = vrot.slane %v9571, 4
        %v9573 = vrot.slane %v9066, 5
        %v9574 = vsel %vm1271, %v9572, %v9573
        %v9575 = vrot.slane %v9573, 4
        %v9576 = vrot.slane %v9095, 5
        %v9577 = vsel %vm1271, %v9575, %v9576
        %v9578 = vrot.slane %v9496, 5
        %v9579 = vrot.slane %v9578, 4
        %v9580 = vrot.slane %v9068, 5
        %v9581 = vsel %vm1271, %v9579, %v9580
        %v9582 = vrot.slane %v9580, 4
        %v9583 = vrot.slane %v9096, 5
        %v9584 = vsel %vm1271, %v9582, %v9583
        %v9585 = vrot.slane %v9497, 5
        %v9586 = vrot.slane %v9585, 4
        %v9587 = vrot.slane %v9070, 5
        %v9588 = vsel %vm1271, %v9586, %v9587
        %v9589 = vrot.slane %v9587, 4
        %v9590 = vrot.slane %v9097, 5
        %v9591 = vsel %vm1271, %v9589, %v9590
        %v9592 = vrot.slane %v9498, 5
        %v9593 = vrot.slane %v9592, 4
        %v9594 = vrot.slane %v9072, 5
        %v9595 = vsel %vm1271, %v9593, %v9594
        %v9596 = vrot.slane %v9594, 4
        %v9597 = vrot.slane %v9098, 5
        %v9598 = vsel %vm1271, %v9596, %v9597
        %v9599 = vrot.slane %v9499, 5
        %v9600 = vrot.slane %v9599, 4
        %v9601 = vrot.slane %v9074, 5
        %v9602 = vsel %vm1271, %v9600, %v9601
        %v9603 = vrot.slane %v9601, 4
        %v9604 = vrot.slane %v9099, 5
        %v9605 = vsel %vm1271, %v9603, %v9604
        %v9606 = vrot.slane %v9500, 5
        %v9607 = vrot.slane %v9606, 4
        %v9608 = vrot.slane %v9076, 5
        %v9609 = vsel %vm1271, %v9607, %v9608
        %v9610 = vrot.slane %v9608, 4
        %v9611 = vrot.slane %v9100, 5
        %v9612 = vsel %vm1271, %v9610, %v9611
        %v9613 = vrot.slane %v9501, 5
        %v9614 = vrot.slane %v9613, 4
        %v9615 = vrot.slane %v9078, 5
        %v9616 = vsel %vm1271, %v9614, %v9615
        %v9617 = vrot.slane %v9615, 4
        %v9618 = vrot.slane %v9101, 5
        %v9619 = vsel %vm1271, %v9617, %v9618
        %v9620 = vrot.slane %v9502, 5
        %v9621 = vrot.slane %v9620, 4
        %v9622 = vrot.slane %v9080, 5
        %v9623 = vsel %vm1271, %v9621, %v9622
        %v9624 = vrot.slane %v9622, 4
        %v9625 = vrot.slane %v9102, 5
        %v9626 = vsel %vm1271, %v9624, %v9625
        %v9627 = vrot.slane %v9503, 5
        %v9628 = vrot.slane %v9627, 4
        %v9629 = vrot.slane %v9082, 5
        %v9630 = vsel %vm1271, %v9628, %v9629
        %v9631 = vrot.slane %v9629, 4
        %v9632 = vrot.slane %v9103, 5
        %v9633 = vsel %vm1271, %v9631, %v9632
        %v9634 = vrot.slane %v9504, 5
        %v9635 = vrot.slane %v9634, 4
        %v9636 = vrot.slane %v9084, 5
        %v9637 = vsel %vm1271, %v9635, %v9636
        %v9638 = vrot.slane %v9636, 4
        %v9639 = vrot.slane %v9104, 5
        %v9640 = vsel %vm1271, %v9638, %v9639
        %v9641 = vrot.slane %v9505, 5
        %v9642 = vrot.slane %v9641, 4
        %v9643 = vrot.slane %v9086, 5
        %v9644 = vsel %vm1271, %v9642, %v9643
        %v9645 = vrot.slane %v9643, 4
        %v9646 = vrot.slane %v9105, 5
        %v9647 = vsel %vm1271, %v9645, %v9646
        %v9648 = vrot.slane %v9506, 5
        %v9649 = vrot.slane %v9648, 4
        %v9650 = vrot.slane %v9088, 5
        %v9651 = vsel %vm1271, %v9649, %v9650
        %v9652 = vrot.slane %v9650, 4
        %v9653 = vrot.slane %v9106, 5
        %v9654 = vsel %vm1271, %v9652, %v9653
        %v9655 = vrot.slane %v9507, 5
        %v9656 = vrot.slane %v9655, 4
        %v9657 = vrot.slane %v9090, 5
        %v9658 = vsel %vm1271, %v9656, %v9657
        %v9659 = vrot.slane %v9657, 4
        %v9660 = vrot.slane %v9107, 5
        %v9661 = vsel %vm1271, %v9659, %v9660
        %v9662 = vrot.slane %v9508, 5
        %v9663 = vrot.slane %v9662, 4
        %v9664 = vrot.slane %v9092, 5
        %v9665 = vsel %vm1271, %v9663, %v9664
        %v9666 = vrot.slane %v9664, 4
        %v9667 = vrot.slane %v9108, 5
        %v9668 = vsel %vm1271, %v9666, %v9667
        %s9669 = scalar_lea.vmem [#allocation3], 24
        %v9670 = vld [vmem:[%s9669] sm:$0xf]
        %v9671 = vld [vmem:[%s9669 + $0x4] sm:$0xf]
        %v9672 = vld [vmem:[%s9669 + $0xc] sm:$0xf]
        %v9673 = vld [vmem:[%s9669 + $0x10] sm:$0xf]
        %v9674 = vld [vmem:[%s9669 + $0x18] sm:$0xf]
        %v9675 = vld [vmem:[%s9669 + $0x1c] sm:$0xf]
        %v9676 = vld [vmem:[%s9669 + $0x24] sm:$0xf]
        %v9677 = vld [vmem:[%s9669 + $0x28] sm:$0xf]
        %v9678 = vld [vmem:[%s9669 + $0x30] sm:$0xf]
        %v9679 = vld [vmem:[%s9669 + $0x34] sm:$0xf]
        %v9680 = vld [vmem:[%s9669 + $0x3c] sm:$0xf]
        %v9681 = vld [vmem:[%s9669 + $0x40] sm:$0xf]
        %v9682 = vld [vmem:[%s9669 + $0x48] sm:$0xf]
        %v9683 = vld [vmem:[%s9669 + $0x4c] sm:$0xf]
        %v9684 = vld [vmem:[%s9669 + $0x54] sm:$0xf]
        %v9685 = vld [vmem:[%s9669 + $0x58] sm:$0xf]
        %v9686 = vld [vmem:[%s9669 + $0x60] sm:$0xf]
        %v9687 = vld [vmem:[%s9669 + $0x64] sm:$0xf]
        %v9688 = vld [vmem:[%s9669 + $0x6c] sm:$0xf]
        %v9689 = vld [vmem:[%s9669 + $0x70] sm:$0xf]
        %v9690 = vld [vmem:[%s9669 + $0x78] sm:$0xf]
        %v9691 = vld [vmem:[%s9669 + $0x7c] sm:$0xf]
        %v9692 = vld [vmem:[%s9669 + $0x84] sm:$0xf]
        %v9693 = vld [vmem:[%s9669 + $0x88] sm:$0xf]
        %v9694 = vld [vmem:[%s9669 + $0x90] sm:$0xf]
        %v9695 = vld [vmem:[%s9669 + $0x94] sm:$0xf]
        %v9696 = vld [vmem:[%s9669 + $0x9c] sm:$0xf]
        %v9697 = vld [vmem:[%s9669 + $0xa0] sm:$0xf]
        %v9698 = vld [vmem:[%s9669 + $0xa8] sm:$0xf]
        %v9699 = vld [vmem:[%s9669 + $0xac] sm:$0xf]
        %v9700 = vld [vmem:[%s9669 + $0xb4] sm:$0xf]
        %v9701 = vld [vmem:[%s9669 + $0xb8] sm:$0xf]
        %v9702 = vld [vmem:[%s9669 + $0x8] sm:$0x1]
        %v9703 = vld [vmem:[%s9669 + $0x14] sm:$0x1]
        %v9704 = vld [vmem:[%s9669 + $0x20] sm:$0x1]
        %v9705 = vld [vmem:[%s9669 + $0x2c] sm:$0x1]
        %v9706 = vld [vmem:[%s9669 + $0x38] sm:$0x1]
        %v9707 = vld [vmem:[%s9669 + $0x44] sm:$0x1]
        %v9708 = vld [vmem:[%s9669 + $0x50] sm:$0x1]
        %v9709 = vld [vmem:[%s9669 + $0x5c] sm:$0x1]
        %v9710 = vld [vmem:[%s9669 + $0x68] sm:$0x1]
        %v9711 = vld [vmem:[%s9669 + $0x74] sm:$0x1]
        %v9712 = vld [vmem:[%s9669 + $0x80] sm:$0x1]
        %v9713 = vld [vmem:[%s9669 + $0x8c] sm:$0x1]
        %v9714 = vld [vmem:[%s9669 + $0x98] sm:$0x1]
        %v9715 = vld [vmem:[%s9669 + $0xa4] sm:$0x1]
        %v9716 = vld [vmem:[%s9669 + $0xb0] sm:$0x1]
        %v9717 = vld [vmem:[%s9669 + $0xbc] sm:$0x1]
        %v9719 = vshrl.u32 %v9670, 16
        %v9721 = vrot.slane %v9719, 4
        %v9722 = vshll.u32 %v9670, 16
        %v9724 = vrot.slane %v9722, 5
        %v9725 = vor.u32 %v9721, %v9724
        %v9726 = vrot.slane %v9725, 4
        %v9728 = vshll.u32 %v9671, 16
        %v9730 = vrot.slane %v9728, 5
        %v9731 = vsel %vm356, %v9726, %v9730
        %v9732 = vshrl.u32 %v9671, 16
        %v9734 = vrot.slane %v9732, 4
        %v9735 = vor.u32 %v9734, %v9730
        %v9736 = vrot.slane %v9735, 4
        %v9738 = vshll.u32 %v9702, 16
        %v9740 = vrot.slane %v9738, 5
        %v9741 = vsel %vm356, %v9736, %v9740
        %v9743 = vshrl.u32 %v9672, 16
        %v9745 = vrot.slane %v9743, 4
        %v9746 = vshll.u32 %v9672, 16
        %v9748 = vrot.slane %v9746, 5
        %v9749 = vor.u32 %v9745, %v9748
        %v9750 = vrot.slane %v9749, 4
        %v9752 = vshll.u32 %v9673, 16
        %v9754 = vrot.slane %v9752, 5
        %v9755 = vsel %vm356, %v9750, %v9754
        %v9756 = vshrl.u32 %v9673, 16
        %v9758 = vrot.slane %v9756, 4
        %v9759 = vor.u32 %v9758, %v9754
        %v9760 = vrot.slane %v9759, 4
        %v9762 = vshll.u32 %v9703, 16
        %v9764 = vrot.slane %v9762, 5
        %v9765 = vsel %vm356, %v9760, %v9764
        %v9767 = vshrl.u32 %v9674, 16
        %v9769 = vrot.slane %v9767, 4
        %v9770 = vshll.u32 %v9674, 16
        %v9772 = vrot.slane %v9770, 5
        %v9773 = vor.u32 %v9769, %v9772
        %v9774 = vrot.slane %v9773, 4
        %v9776 = vshll.u32 %v9675, 16
        %v9778 = vrot.slane %v9776, 5
        %v9779 = vsel %vm356, %v9774, %v9778
        %v9780 = vshrl.u32 %v9675, 16
        %v9782 = vrot.slane %v9780, 4
        %v9783 = vor.u32 %v9782, %v9778
        %v9784 = vrot.slane %v9783, 4
        %v9786 = vshll.u32 %v9704, 16
        %v9788 = vrot.slane %v9786, 5
        %v9789 = vsel %vm356, %v9784, %v9788
        %v9791 = vshrl.u32 %v9676, 16
        %v9793 = vrot.slane %v9791, 4
        %v9794 = vshll.u32 %v9676, 16
        %v9796 = vrot.slane %v9794, 5
        %v9797 = vor.u32 %v9793, %v9796
        %v9798 = vrot.slane %v9797, 4
        %v9800 = vshll.u32 %v9677, 16
        %v9802 = vrot.slane %v9800, 5
        %v9803 = vsel %vm356, %v9798, %v9802
        %v9804 = vshrl.u32 %v9677, 16
        %v9806 = vrot.slane %v9804, 4
        %v9807 = vor.u32 %v9806, %v9802
        %v9808 = vrot.slane %v9807, 4
        %v9810 = vshll.u32 %v9705, 16
        %v9812 = vrot.slane %v9810, 5
        %v9813 = vsel %vm356, %v9808, %v9812
        %v9815 = vshrl.u32 %v9678, 16
        %v9817 = vrot.slane %v9815, 4
        %v9818 = vshll.u32 %v9678, 16
        %v9820 = vrot.slane %v9818, 5
        %v9821 = vor.u32 %v9817, %v9820
        %v9822 = vrot.slane %v9821, 4
        %v9824 = vshll.u32 %v9679, 16
        %v9826 = vrot.slane %v9824, 5
        %v9827 = vsel %vm356, %v9822, %v9826
        %v9828 = vshrl.u32 %v9679, 16
        %v9830 = vrot.slane %v9828, 4
        %v9831 = vor.u32 %v9830, %v9826
        %v9832 = vrot.slane %v9831, 4
        %v9834 = vshll.u32 %v9706, 16
        %v9836 = vrot.slane %v9834, 5
        %v9837 = vsel %vm356, %v9832, %v9836
        %v9839 = vshrl.u32 %v9680, 16
        %v9841 = vrot.slane %v9839, 4
        %v9842 = vshll.u32 %v9680, 16
        %v9844 = vrot.slane %v9842, 5
        %v9845 = vor.u32 %v9841, %v9844
        %v9846 = vrot.slane %v9845, 4
        %v9848 = vshll.u32 %v9681, 16
        %v9850 = vrot.slane %v9848, 5
        %v9851 = vsel %vm356, %v9846, %v9850
        %v9852 = vshrl.u32 %v9681, 16
        %v9854 = vrot.slane %v9852, 4
        %v9855 = vor.u32 %v9854, %v9850
        %v9856 = vrot.slane %v9855, 4
        %v9858 = vshll.u32 %v9707, 16
        %v9860 = vrot.slane %v9858, 5
        %v9861 = vsel %vm356, %v9856, %v9860
        %v9863 = vshrl.u32 %v9682, 16
        %v9865 = vrot.slane %v9863, 4
        %v9866 = vshll.u32 %v9682, 16
        %v9868 = vrot.slane %v9866, 5
        %v9869 = vor.u32 %v9865, %v9868
        %v9870 = vrot.slane %v9869, 4
        %v9872 = vshll.u32 %v9683, 16
        %v9874 = vrot.slane %v9872, 5
        %v9875 = vsel %vm356, %v9870, %v9874
        %v9876 = vshrl.u32 %v9683, 16
        %v9878 = vrot.slane %v9876, 4
        %v9879 = vor.u32 %v9878, %v9874
        %v9880 = vrot.slane %v9879, 4
        %v9882 = vshll.u32 %v9708, 16
        %v9884 = vrot.slane %v9882, 5
        %v9885 = vsel %vm356, %v9880, %v9884
        %v9887 = vshrl.u32 %v9684, 16
        %v9889 = vrot.slane %v9887, 4
        %v9890 = vshll.u32 %v9684, 16
        %v9892 = vrot.slane %v9890, 5
        %v9893 = vor.u32 %v9889, %v9892
        %v9894 = vrot.slane %v9893, 4
        %v9896 = vshll.u32 %v9685, 16
        %v9898 = vrot.slane %v9896, 5
        %v9899 = vsel %vm356, %v9894, %v9898
        %v9900 = vshrl.u32 %v9685, 16
        %v9902 = vrot.slane %v9900, 4
        %v9903 = vor.u32 %v9902, %v9898
        %v9904 = vrot.slane %v9903, 4
        %v9906 = vshll.u32 %v9709, 16
        %v9908 = vrot.slane %v9906, 5
        %v9909 = vsel %vm356, %v9904, %v9908
        %v9911 = vshrl.u32 %v9686, 16
        %v9913 = vrot.slane %v9911, 4
        %v9914 = vshll.u32 %v9686, 16
        %v9916 = vrot.slane %v9914, 5
        %v9917 = vor.u32 %v9913, %v9916
        %v9918 = vrot.slane %v9917, 4
        %v9920 = vshll.u32 %v9687, 16
        %v9922 = vrot.slane %v9920, 5
        %v9923 = vsel %vm356, %v9918, %v9922
        %v9924 = vshrl.u32 %v9687, 16
        %v9926 = vrot.slane %v9924, 4
        %v9927 = vor.u32 %v9926, %v9922
        %v9928 = vrot.slane %v9927, 4
        %v9930 = vshll.u32 %v9710, 16
        %v9932 = vrot.slane %v9930, 5
        %v9933 = vsel %vm356, %v9928, %v9932
        %v9935 = vshrl.u32 %v9688, 16
        %v9937 = vrot.slane %v9935, 4
        %v9938 = vshll.u32 %v9688, 16
        %v9940 = vrot.slane %v9938, 5
        %v9941 = vor.u32 %v9937, %v9940
        %v9942 = vrot.slane %v9941, 4
        %v9944 = vshll.u32 %v9689, 16
        %v9946 = vrot.slane %v9944, 5
        %v9947 = vsel %vm356, %v9942, %v9946
        %v9948 = vshrl.u32 %v9689, 16
        %v9950 = vrot.slane %v9948, 4
        %v9951 = vor.u32 %v9950, %v9946
        %v9952 = vrot.slane %v9951, 4
        %v9954 = vshll.u32 %v9711, 16
        %v9956 = vrot.slane %v9954, 5
        %v9957 = vsel %vm356, %v9952, %v9956
        %v9959 = vshrl.u32 %v9690, 16
        %v9961 = vrot.slane %v9959, 4
        %v9962 = vshll.u32 %v9690, 16
        %v9964 = vrot.slane %v9962, 5
        %v9965 = vor.u32 %v9961, %v9964
        %v9966 = vrot.slane %v9965, 4
        %v9968 = vshll.u32 %v9691, 16
        %v9970 = vrot.slane %v9968, 5
        %v9971 = vsel %vm356, %v9966, %v9970
        %v9972 = vshrl.u32 %v9691, 16
        %v9974 = vrot.slane %v9972, 4
        %v9975 = vor.u32 %v9974, %v9970
        %v9976 = vrot.slane %v9975, 4
        %v9978 = vshll.u32 %v9712, 16
        %v9980 = vrot.slane %v9978, 5
        %v9981 = vsel %vm356, %v9976, %v9980
        %v9983 = vshrl.u32 %v9692, 16
        %v9985 = vrot.slane %v9983, 4
        %v9986 = vshll.u32 %v9692, 16
        %v9988 = vrot.slane %v9986, 5
        %v9989 = vor.u32 %v9985, %v9988
        %v9990 = vrot.slane %v9989, 4
        %v9992 = vshll.u32 %v9693, 16
        %v9994 = vrot.slane %v9992, 5
        %v9995 = vsel %vm356, %v9990, %v9994
        %v9996 = vshrl.u32 %v9693, 16
        %v9998 = vrot.slane %v9996, 4
        %v9999 = vor.u32 %v9998, %v9994
        %v10000 = vrot.slane %v9999, 4
        %v10002 = vshll.u32 %v9713, 16
        %v10004 = vrot.slane %v10002, 5
        %v10005 = vsel %vm356, %v10000, %v10004
        %v10007 = vshrl.u32 %v9694, 16
        %v10009 = vrot.slane %v10007, 4
        %v10010 = vshll.u32 %v9694, 16
        %v10012 = vrot.slane %v10010, 5
        %v10013 = vor.u32 %v10009, %v10012
        %v10014 = vrot.slane %v10013, 4
        %v10016 = vshll.u32 %v9695, 16
        %v10018 = vrot.slane %v10016, 5
        %v10019 = vsel %vm356, %v10014, %v10018
        %v10020 = vshrl.u32 %v9695, 16
        %v10022 = vrot.slane %v10020, 4
        %v10023 = vor.u32 %v10022, %v10018
        %v10024 = vrot.slane %v10023, 4
        %v10026 = vshll.u32 %v9714, 16
        %v10028 = vrot.slane %v10026, 5
        %v10029 = vsel %vm356, %v10024, %v10028
        %v10031 = vshrl.u32 %v9696, 16
        %v10033 = vrot.slane %v10031, 4
        %v10034 = vshll.u32 %v9696, 16
        %v10036 = vrot.slane %v10034, 5
        %v10037 = vor.u32 %v10033, %v10036
        %v10038 = vrot.slane %v10037, 4
        %v10040 = vshll.u32 %v9697, 16
        %v10042 = vrot.slane %v10040, 5
        %v10043 = vsel %vm356, %v10038, %v10042
        %v10044 = vshrl.u32 %v9697, 16
        %v10046 = vrot.slane %v10044, 4
        %v10047 = vor.u32 %v10046, %v10042
        %v10048 = vrot.slane %v10047, 4
        %v10050 = vshll.u32 %v9715, 16
        %v10052 = vrot.slane %v10050, 5
        %v10053 = vsel %vm356, %v10048, %v10052
        %v10055 = vshrl.u32 %v9698, 16
        %v10057 = vrot.slane %v10055, 4
        %v10058 = vshll.u32 %v9698, 16
        %v10060 = vrot.slane %v10058, 5
        %v10061 = vor.u32 %v10057, %v10060
        %v10062 = vrot.slane %v10061, 4
        %v10064 = vshll.u32 %v9699, 16
        %v10066 = vrot.slane %v10064, 5
        %v10067 = vsel %vm356, %v10062, %v10066
        %v10068 = vshrl.u32 %v9699, 16
        %v10070 = vrot.slane %v10068, 4
        %v10071 = vor.u32 %v10070, %v10066
        %v10072 = vrot.slane %v10071, 4
        %v10074 = vshll.u32 %v9716, 16
        %v10076 = vrot.slane %v10074, 5
        %v10077 = vsel %vm356, %v10072, %v10076
        %v10079 = vshrl.u32 %v9700, 16
        %v10081 = vrot.slane %v10079, 4
        %v10082 = vshll.u32 %v9700, 16
        %v10084 = vrot.slane %v10082, 5
        %v10085 = vor.u32 %v10081, %v10084
        %v10086 = vrot.slane %v10085, 4
        %v10088 = vshll.u32 %v9701, 16
        %v10090 = vrot.slane %v10088, 5
        %v10091 = vsel %vm356, %v10086, %v10090
        %v10092 = vshrl.u32 %v9701, 16
        %v10094 = vrot.slane %v10092, 4
        %v10095 = vor.u32 %v10094, %v10090
        %v10096 = vrot.slane %v10095, 4
        %v10098 = vshll.u32 %v9717, 16
        %v10100 = vrot.slane %v10098, 5
        %v10101 = vsel %vm356, %v10096, %v10100
        %v10102 = vld [vmem:[%s9669] sm:$0xe]
        %v10103 = vld [vmem:[%s9669 + $0xc] sm:$0xe]
        %v10104 = vld [vmem:[%s9669 + $0x18] sm:$0xe]
        %v10105 = vld [vmem:[%s9669 + $0x24] sm:$0xe]
        %v10106 = vld [vmem:[%s9669 + $0x30] sm:$0xe]
        %v10107 = vld [vmem:[%s9669 + $0x3c] sm:$0xe]
        %v10108 = vld [vmem:[%s9669 + $0x48] sm:$0xe]
        %v10109 = vld [vmem:[%s9669 + $0x54] sm:$0xe]
        %v10110 = vld [vmem:[%s9669 + $0x60] sm:$0xe]
        %v10111 = vld [vmem:[%s9669 + $0x6c] sm:$0xe]
        %v10112 = vld [vmem:[%s9669 + $0x78] sm:$0xe]
        %v10113 = vld [vmem:[%s9669 + $0x84] sm:$0xe]
        %v10114 = vld [vmem:[%s9669 + $0x90] sm:$0xe]
        %v10115 = vld [vmem:[%s9669 + $0x9c] sm:$0xe]
        %v10116 = vld [vmem:[%s9669 + $0xa8] sm:$0xe]
        %v10117 = vld [vmem:[%s9669 + $0xb4] sm:$0xe]
        %v10166 = vrot.slane %v10102, 5
        %v10167 = vrot.slane %v10166, 4
        %v10168 = vrot.slane %v9671, 5
        %v10169 = vsel %vm1271, %v10167, %v10168
        %v10170 = vrot.slane %v10168, 4
        %v10171 = vrot.slane %v9702, 5
        %v10172 = vsel %vm1271, %v10170, %v10171
        %v10173 = vrot.slane %v10103, 5
        %v10174 = vrot.slane %v10173, 4
        %v10175 = vrot.slane %v9673, 5
        %v10176 = vsel %vm1271, %v10174, %v10175
        %v10177 = vrot.slane %v10175, 4
        %v10178 = vrot.slane %v9703, 5
        %v10179 = vsel %vm1271, %v10177, %v10178
        %v10180 = vrot.slane %v10104, 5
        %v10181 = vrot.slane %v10180, 4
        %v10182 = vrot.slane %v9675, 5
        %v10183 = vsel %vm1271, %v10181, %v10182
        %v10184 = vrot.slane %v10182, 4
        %v10185 = vrot.slane %v9704, 5
        %v10186 = vsel %vm1271, %v10184, %v10185
        %v10187 = vrot.slane %v10105, 5
        %v10188 = vrot.slane %v10187, 4
        %v10189 = vrot.slane %v9677, 5
        %v10190 = vsel %vm1271, %v10188, %v10189
        %v10191 = vrot.slane %v10189, 4
        %v10192 = vrot.slane %v9705, 5
        %v10193 = vsel %vm1271, %v10191, %v10192
        %v10194 = vrot.slane %v10106, 5
        %v10195 = vrot.slane %v10194, 4
        %v10196 = vrot.slane %v9679, 5
        %v10197 = vsel %vm1271, %v10195, %v10196
        %v10198 = vrot.slane %v10196, 4
        %v10199 = vrot.slane %v9706, 5
        %v10200 = vsel %vm1271, %v10198, %v10199
        %v10201 = vrot.slane %v10107, 5
        %v10202 = vrot.slane %v10201, 4
        %v10203 = vrot.slane %v9681, 5
        %v10204 = vsel %vm1271, %v10202, %v10203
        %v10205 = vrot.slane %v10203, 4
        %v10206 = vrot.slane %v9707, 5
        %v10207 = vsel %vm1271, %v10205, %v10206
        %v10208 = vrot.slane %v10108, 5
        %v10209 = vrot.slane %v10208, 4
        %v10210 = vrot.slane %v9683, 5
        %v10211 = vsel %vm1271, %v10209, %v10210
        %v10212 = vrot.slane %v10210, 4
        %v10213 = vrot.slane %v9708, 5
        %v10214 = vsel %vm1271, %v10212, %v10213
        %v10215 = vrot.slane %v10109, 5
        %v10216 = vrot.slane %v10215, 4
        %v10217 = vrot.slane %v9685, 5
        %v10218 = vsel %vm1271, %v10216, %v10217
        %v10219 = vrot.slane %v10217, 4
        %v10220 = vrot.slane %v9709, 5
        %v10221 = vsel %vm1271, %v10219, %v10220
        %v10222 = vrot.slane %v10110, 5
        %v10223 = vrot.slane %v10222, 4
        %v10224 = vrot.slane %v9687, 5
        %v10225 = vsel %vm1271, %v10223, %v10224
        %v10226 = vrot.slane %v10224, 4
        %v10227 = vrot.slane %v9710, 5
        %v10228 = vsel %vm1271, %v10226, %v10227
        %v10229 = vrot.slane %v10111, 5
        %v10230 = vrot.slane %v10229, 4
        %v10231 = vrot.slane %v9689, 5
        %v10232 = vsel %vm1271, %v10230, %v10231
        %v10233 = vrot.slane %v10231, 4
        %v10234 = vrot.slane %v9711, 5
        %v10235 = vsel %vm1271, %v10233, %v10234
        %v10236 = vrot.slane %v10112, 5
        %v10237 = vrot.slane %v10236, 4
        %v10238 = vrot.slane %v9691, 5
        %v10239 = vsel %vm1271, %v10237, %v10238
        %v10240 = vrot.slane %v10238, 4
        %v10241 = vrot.slane %v9712, 5
        %v10242 = vsel %vm1271, %v10240, %v10241
        %v10243 = vrot.slane %v10113, 5
        %v10244 = vrot.slane %v10243, 4
        %v10245 = vrot.slane %v9693, 5
        %v10246 = vsel %vm1271, %v10244, %v10245
        %v10247 = vrot.slane %v10245, 4
        %v10248 = vrot.slane %v9713, 5
        %v10249 = vsel %vm1271, %v10247, %v10248
        %v10250 = vrot.slane %v10114, 5
        %v10251 = vrot.slane %v10250, 4
        %v10252 = vrot.slane %v9695, 5
        %v10253 = vsel %vm1271, %v10251, %v10252
        %v10254 = vrot.slane %v10252, 4
        %v10255 = vrot.slane %v9714, 5
        %v10256 = vsel %vm1271, %v10254, %v10255
        %v10257 = vrot.slane %v10115, 5
        %v10258 = vrot.slane %v10257, 4
        %v10259 = vrot.slane %v9697, 5
        %v10260 = vsel %vm1271, %v10258, %v10259
        %v10261 = vrot.slane %v10259, 4
        %v10262 = vrot.slane %v9715, 5
        %v10263 = vsel %vm1271, %v10261, %v10262
        %v10264 = vrot.slane %v10116, 5
        %v10265 = vrot.slane %v10264, 4
        %v10266 = vrot.slane %v9699, 5
        %v10267 = vsel %vm1271, %v10265, %v10266
        %v10268 = vrot.slane %v10266, 4
        %v10269 = vrot.slane %v9716, 5
        %v10270 = vsel %vm1271, %v10268, %v10269
        %v10271 = vrot.slane %v10117, 5
        %v10272 = vrot.slane %v10271, 4
        %v10273 = vrot.slane %v9701, 5
        %v10274 = vsel %vm1271, %v10272, %v10273
        %v10275 = vrot.slane %v10273, 4
        %v10276 = vrot.slane %v9717, 5
        %v10277 = vsel %vm1271, %v10275, %v10276
        %v10294 = vunpack.c.l.b16 %v8453
        %v10295 = vunpack.c.l.b16 %v8454
        %v10296 = vunpack.c.l.b16 %v8455
        %v10297 = vunpack.c.l.b16 %v8456
        %v10298 = vunpack.c.l.b16 %v8457
        %v10299 = vunpack.c.l.b16 %v8458
        %v10300 = vunpack.c.l.b16 %v8459
        %v10301 = vunpack.c.l.b16 %v8460
        %v10302 = vunpack.c.l.b16 %v8461
        %v10303 = vunpack.c.l.b16 %v8462
        %v10304 = vunpack.c.l.b16 %v8463
        %v10305 = vunpack.c.l.b16 %v8464
        %v10306 = vunpack.c.l.b16 %v8465
        %v10307 = vunpack.c.l.b16 %v8466
        %v10308 = vunpack.c.l.b16 %v8467
        %v10309 = vunpack.c.l.b16 %v8468
        %v10310 = vunpack.c.l.b16 %v8469
        %v10311 = vunpack.c.l.b16 %v8470
        %v10312 = vunpack.c.l.b16 %v8471
        %v10313 = vunpack.c.l.b16 %v8472
        %v10314 = vunpack.c.l.b16 %v8473
        %v10315 = vunpack.c.l.b16 %v8474
        %v10316 = vunpack.c.l.b16 %v8475
        %v10317 = vunpack.c.l.b16 %v8476
        %v10318 = vunpack.c.l.b16 %v8477
        %v10319 = vunpack.c.l.b16 %v8478
        %v10320 = vunpack.c.l.b16 %v8479
        %v10321 = vunpack.c.l.b16 %v8480
        %v10322 = vunpack.c.l.b16 %v8481
        %v10323 = vunpack.c.l.b16 %v8482
        %v10324 = vunpack.c.l.b16 %v8483
        %v10325 = vunpack.c.l.b16 %v8484
        %v10326 = vpack.c.b16 %v10295, %v10294
        %v10327 = vpack.c.b16 %v10297, %v10296
        %v10328 = vpack.c.b16 %v10299, %v10298
        %v10329 = vpack.c.b16 %v10301, %v10300
        %v10330 = vpack.c.b16 %v10303, %v10302
        %v10331 = vpack.c.b16 %v10305, %v10304
        %v10332 = vpack.c.b16 %v10307, %v10306
        %v10333 = vpack.c.b16 %v10309, %v10308
        %v10334 = vpack.c.b16 %v10311, %v10310
        %v10335 = vpack.c.b16 %v10313, %v10312
        %v10336 = vpack.c.b16 %v10315, %v10314
        %v10337 = vpack.c.b16 %v10317, %v10316
        %v10338 = vpack.c.b16 %v10319, %v10318
        %v10339 = vpack.c.b16 %v10321, %v10320
        %v10340 = vpack.c.b16 %v10323, %v10322
        %v10341 = vpack.c.b16 %v10325, %v10324
        %v10342 = vunpack.c.l.b16 %v8514
        %v10343 = vunpack.c.l.b16 %v8524
        %v10344 = vunpack.c.l.b16 %v8538
        %v10345 = vunpack.c.l.b16 %v8548
        %v10346 = vunpack.c.l.b16 %v8562
        %v10347 = vunpack.c.l.b16 %v8572
        %v10348 = vunpack.c.l.b16 %v8586
        %v10349 = vunpack.c.l.b16 %v8596
        %v10350 = vunpack.c.l.b16 %v8610
        %v10351 = vunpack.c.l.b16 %v8620
        %v10352 = vunpack.c.l.b16 %v8634
        %v10353 = vunpack.c.l.b16 %v8644
        %v10354 = vunpack.c.l.b16 %v8658
        %v10355 = vunpack.c.l.b16 %v8668
        %v10356 = vunpack.c.l.b16 %v8682
        %v10357 = vunpack.c.l.b16 %v8692
        %v10358 = vunpack.c.l.b16 %v8706
        %v10359 = vunpack.c.l.b16 %v8716
        %v10360 = vunpack.c.l.b16 %v8730
        %v10361 = vunpack.c.l.b16 %v8740
        %v10362 = vunpack.c.l.b16 %v8754
        %v10363 = vunpack.c.l.b16 %v8764
        %v10364 = vunpack.c.l.b16 %v8778
        %v10365 = vunpack.c.l.b16 %v8788
        %v10366 = vunpack.c.l.b16 %v8802
        %v10367 = vunpack.c.l.b16 %v8812
        %v10368 = vunpack.c.l.b16 %v8826
        %v10369 = vunpack.c.l.b16 %v8836
        %v10370 = vunpack.c.l.b16 %v8850
        %v10371 = vunpack.c.l.b16 %v8860
        %v10372 = vunpack.c.l.b16 %v8874
        %v10373 = vunpack.c.l.b16 %v8884
        %v10374 = vpack.c.b16 %v10343, %v10342
        %v10375 = vpack.c.b16 %v10345, %v10344
        %v10376 = vpack.c.b16 %v10347, %v10346
        %v10377 = vpack.c.b16 %v10349, %v10348
        %v10378 = vpack.c.b16 %v10351, %v10350
        %v10379 = vpack.c.b16 %v10353, %v10352
        %v10380 = vpack.c.b16 %v10355, %v10354
        %v10381 = vpack.c.b16 %v10357, %v10356
        %v10382 = vpack.c.b16 %v10359, %v10358
        %v10383 = vpack.c.b16 %v10361, %v10360
        %v10384 = vpack.c.b16 %v10363, %v10362
        %v10385 = vpack.c.b16 %v10365, %v10364
        %v10386 = vpack.c.b16 %v10367, %v10366
        %v10387 = vpack.c.b16 %v10369, %v10368
        %v10388 = vpack.c.b16 %v10371, %v10370
        %v10389 = vpack.c.b16 %v10373, %v10372
        %10390 = vrot.lane.b32.xlu0 %v10374, 24
        %v10391 = vpop.permute.xlu0 %10390
        %10392 = vrot.lane.b32.xlu0 %v10375, 24
        %v10393 = vpop.permute.xlu0 %10392
        %10394 = vrot.lane.b32.xlu0 %v10376, 24
        %v10395 = vpop.permute.xlu0 %10394
        %10396 = vrot.lane.b32.xlu0 %v10377, 24
        %v10397 = vpop.permute.xlu0 %10396
        %10398 = vrot.lane.b32.xlu0 %v10378, 24
        %v10399 = vpop.permute.xlu0 %10398
        %10400 = vrot.lane.b32.xlu0 %v10379, 24
        %v10401 = vpop.permute.xlu0 %10400
        %10402 = vrot.lane.b32.xlu0 %v10380, 24
        %v10403 = vpop.permute.xlu0 %10402
        %10404 = vrot.lane.b32.xlu0 %v10381, 24
        %v10405 = vpop.permute.xlu0 %10404
        %10406 = vrot.lane.b32.xlu0 %v10382, 24
        %v10407 = vpop.permute.xlu0 %10406
        %10408 = vrot.lane.b32.xlu0 %v10383, 24
        %v10409 = vpop.permute.xlu0 %10408
        %10410 = vrot.lane.b32.xlu0 %v10384, 24
        %v10411 = vpop.permute.xlu0 %10410
        %10412 = vrot.lane.b32.xlu0 %v10385, 24
        %v10413 = vpop.permute.xlu0 %10412
        %10414 = vrot.lane.b32.xlu0 %v10386, 24
        %v10415 = vpop.permute.xlu0 %10414
        %10416 = vrot.lane.b32.xlu0 %v10387, 24
        %v10417 = vpop.permute.xlu0 %10416
        %10418 = vrot.lane.b32.xlu0 %v10388, 24
        %v10419 = vpop.permute.xlu0 %10418
        %10420 = vrot.lane.b32.xlu0 %v10389, 24
        %v10421 = vpop.permute.xlu0 %10420
        %v10422 = vunpack.c.l.b16 %v8952
        %v10423 = vunpack.c.l.b16 %v8955
        %v10424 = vunpack.c.l.b16 %v8959
        %v10425 = vunpack.c.l.b16 %v8962
        %v10426 = vunpack.c.l.b16 %v8966
        %v10427 = vunpack.c.l.b16 %v8969
        %v10428 = vunpack.c.l.b16 %v8973
        %v10429 = vunpack.c.l.b16 %v8976
        %v10430 = vunpack.c.l.b16 %v8980
        %v10431 = vunpack.c.l.b16 %v8983
        %v10432 = vunpack.c.l.b16 %v8987
        %v10433 = vunpack.c.l.b16 %v8990
        %v10434 = vunpack.c.l.b16 %v8994
        %v10435 = vunpack.c.l.b16 %v8997
        %v10436 = vunpack.c.l.b16 %v9001
        %v10437 = vunpack.c.l.b16 %v9004
        %v10438 = vunpack.c.l.b16 %v9008
        %v10439 = vunpack.c.l.b16 %v9011
        %v10440 = vunpack.c.l.b16 %v9015
        %v10441 = vunpack.c.l.b16 %v9018
        %v10442 = vunpack.c.l.b16 %v9022
        %v10443 = vunpack.c.l.b16 %v9025
        %v10444 = vunpack.c.l.b16 %v9029
        %v10445 = vunpack.c.l.b16 %v9032
        %v10446 = vunpack.c.l.b16 %v9036
        %v10447 = vunpack.c.l.b16 %v9039
        %v10448 = vunpack.c.l.b16 %v9043
        %v10449 = vunpack.c.l.b16 %v9046
        %v10450 = vunpack.c.l.b16 %v9050
        %v10451 = vunpack.c.l.b16 %v9053
        %v10452 = vunpack.c.l.b16 %v9057
        %v10453 = vunpack.c.l.b16 %v9060
        %v10454 = vpack.c.b16 %v10423, %v10422
        %v10455 = vpack.c.b16 %v10425, %v10424
        %v10456 = vpack.c.b16 %v10427, %v10426
        %v10457 = vpack.c.b16 %v10429, %v10428
        %v10458 = vpack.c.b16 %v10431, %v10430
        %v10459 = vpack.c.b16 %v10433, %v10432
        %v10460 = vpack.c.b16 %v10435, %v10434
        %v10461 = vpack.c.b16 %v10437, %v10436
        %v10462 = vpack.c.b16 %v10439, %v10438
        %v10463 = vpack.c.b16 %v10441, %v10440
        %v10464 = vpack.c.b16 %v10443, %v10442
        %v10465 = vpack.c.b16 %v10445, %v10444
        %v10466 = vpack.c.b16 %v10447, %v10446
        %v10467 = vpack.c.b16 %v10449, %v10448
        %v10468 = vpack.c.b16 %v10451, %v10450
        %v10469 = vpack.c.b16 %v10453, %v10452
        %10470 = vrot.lane.b32.xlu0 %v10454, 48
        %v10471 = vpop.permute.xlu0 %10470
        %10472 = vrot.lane.b32.xlu0 %v10455, 48
        %v10473 = vpop.permute.xlu0 %10472
        %10474 = vrot.lane.b32.xlu0 %v10456, 48
        %v10475 = vpop.permute.xlu0 %10474
        %10476 = vrot.lane.b32.xlu0 %v10457, 48
        %v10477 = vpop.permute.xlu0 %10476
        %10478 = vrot.lane.b32.xlu0 %v10458, 48
        %v10479 = vpop.permute.xlu0 %10478
        %10480 = vrot.lane.b32.xlu0 %v10459, 48
        %v10481 = vpop.permute.xlu0 %10480
        %10482 = vrot.lane.b32.xlu0 %v10460, 48
        %v10483 = vpop.permute.xlu0 %10482
        %10484 = vrot.lane.b32.xlu0 %v10461, 48
        %v10485 = vpop.permute.xlu0 %10484
        %10486 = vrot.lane.b32.xlu0 %v10462, 48
        %v10487 = vpop.permute.xlu0 %10486
        %10488 = vrot.lane.b32.xlu0 %v10463, 48
        %v10489 = vpop.permute.xlu0 %10488
        %10490 = vrot.lane.b32.xlu0 %v10464, 48
        %v10491 = vpop.permute.xlu0 %10490
        %10492 = vrot.lane.b32.xlu0 %v10465, 48
        %v10493 = vpop.permute.xlu0 %10492
        %10494 = vrot.lane.b32.xlu0 %v10466, 48
        %v10495 = vpop.permute.xlu0 %10494
        %10496 = vrot.lane.b32.xlu0 %v10467, 48
        %v10497 = vpop.permute.xlu0 %10496
        %10498 = vrot.lane.b32.xlu0 %v10468, 48
        %v10499 = vpop.permute.xlu0 %10498
        %10500 = vrot.lane.b32.xlu0 %v10469, 48
        %v10501 = vpop.permute.xlu0 %10500
        %v10518 = vunpack.c.l.b16 %v9061
        %v10519 = vunpack.c.l.b16 %v9062
        %v10520 = vunpack.c.l.b16 %v9063
        %v10521 = vunpack.c.l.b16 %v9064
        %v10522 = vunpack.c.l.b16 %v9065
        %v10523 = vunpack.c.l.b16 %v9066
        %v10524 = vunpack.c.l.b16 %v9067
        %v10525 = vunpack.c.l.b16 %v9068
        %v10526 = vunpack.c.l.b16 %v9069
        %v10527 = vunpack.c.l.b16 %v9070
        %v10528 = vunpack.c.l.b16 %v9071
        %v10529 = vunpack.c.l.b16 %v9072
        %v10530 = vunpack.c.l.b16 %v9073
        %v10531 = vunpack.c.l.b16 %v9074
        %v10532 = vunpack.c.l.b16 %v9075
        %v10533 = vunpack.c.l.b16 %v9076
        %v10534 = vunpack.c.l.b16 %v9077
        %v10535 = vunpack.c.l.b16 %v9078
        %v10536 = vunpack.c.l.b16 %v9079
        %v10537 = vunpack.c.l.b16 %v9080
        %v10538 = vunpack.c.l.b16 %v9081
        %v10539 = vunpack.c.l.b16 %v9082
        %v10540 = vunpack.c.l.b16 %v9083
        %v10541 = vunpack.c.l.b16 %v9084
        %v10542 = vunpack.c.l.b16 %v9085
        %v10543 = vunpack.c.l.b16 %v9086
        %v10544 = vunpack.c.l.b16 %v9087
        %v10545 = vunpack.c.l.b16 %v9088
        %v10546 = vunpack.c.l.b16 %v9089
        %v10547 = vunpack.c.l.b16 %v9090
        %v10548 = vunpack.c.l.b16 %v9091
        %v10549 = vunpack.c.l.b16 %v9092
        %v10550 = vpack.c.b16 %v10519, %v10518
        %v10551 = vpack.c.b16 %v10521, %v10520
        %v10552 = vpack.c.b16 %v10523, %v10522
        %v10553 = vpack.c.b16 %v10525, %v10524
        %v10554 = vpack.c.b16 %v10527, %v10526
        %v10555 = vpack.c.b16 %v10529, %v10528
        %v10556 = vpack.c.b16 %v10531, %v10530
        %v10557 = vpack.c.b16 %v10533, %v10532
        %v10558 = vpack.c.b16 %v10535, %v10534
        %v10559 = vpack.c.b16 %v10537, %v10536
        %v10560 = vpack.c.b16 %v10539, %v10538
        %v10561 = vpack.c.b16 %v10541, %v10540
        %v10562 = vpack.c.b16 %v10543, %v10542
        %v10563 = vpack.c.b16 %v10545, %v10544
        %v10564 = vpack.c.b16 %v10547, %v10546
        %v10565 = vpack.c.b16 %v10549, %v10548
        %10566 = vrot.lane.b32.xlu0 %v10550, 72
        %v10567 = vpop.permute.xlu0 %10566
        %10568 = vrot.lane.b32.xlu0 %v10551, 72
        %v10569 = vpop.permute.xlu0 %10568
        %10570 = vrot.lane.b32.xlu0 %v10552, 72
        %v10571 = vpop.permute.xlu0 %10570
        %10572 = vrot.lane.b32.xlu0 %v10553, 72
        %v10573 = vpop.permute.xlu0 %10572
        %10574 = vrot.lane.b32.xlu0 %v10554, 72
        %v10575 = vpop.permute.xlu0 %10574
        %10576 = vrot.lane.b32.xlu0 %v10555, 72
        %v10577 = vpop.permute.xlu0 %10576
        %10578 = vrot.lane.b32.xlu0 %v10556, 72
        %v10579 = vpop.permute.xlu0 %10578
        %10580 = vrot.lane.b32.xlu0 %v10557, 72
        %v10581 = vpop.permute.xlu0 %10580
        %10582 = vrot.lane.b32.xlu0 %v10558, 72
        %v10583 = vpop.permute.xlu0 %10582
        %10584 = vrot.lane.b32.xlu0 %v10559, 72
        %v10585 = vpop.permute.xlu0 %10584
        %10586 = vrot.lane.b32.xlu0 %v10560, 72
        %v10587 = vpop.permute.xlu0 %10586
        %10588 = vrot.lane.b32.xlu0 %v10561, 72
        %v10589 = vpop.permute.xlu0 %10588
        %10590 = vrot.lane.b32.xlu0 %v10562, 72
        %v10591 = vpop.permute.xlu0 %10590
        %10592 = vrot.lane.b32.xlu0 %v10563, 72
        %v10593 = vpop.permute.xlu0 %10592
        %10594 = vrot.lane.b32.xlu0 %v10564, 72
        %v10595 = vpop.permute.xlu0 %10594
        %10596 = vrot.lane.b32.xlu0 %v10565, 72
        %v10597 = vpop.permute.xlu0 %10596
        %v10598 = vunpack.c.l.b16 %v9122
        %v10599 = vunpack.c.l.b16 %v9132
        %v10600 = vunpack.c.l.b16 %v9146
        %v10601 = vunpack.c.l.b16 %v9156
        %v10602 = vunpack.c.l.b16 %v9170
        %v10603 = vunpack.c.l.b16 %v9180
        %v10604 = vunpack.c.l.b16 %v9194
        %v10605 = vunpack.c.l.b16 %v9204
        %v10606 = vunpack.c.l.b16 %v9218
        %v10607 = vunpack.c.l.b16 %v9228
        %v10608 = vunpack.c.l.b16 %v9242
        %v10609 = vunpack.c.l.b16 %v9252
        %v10610 = vunpack.c.l.b16 %v9266
        %v10611 = vunpack.c.l.b16 %v9276
        %v10612 = vunpack.c.l.b16 %v9290
        %v10613 = vunpack.c.l.b16 %v9300
        %v10614 = vunpack.c.l.b16 %v9314
        %v10615 = vunpack.c.l.b16 %v9324
        %v10616 = vunpack.c.l.b16 %v9338
        %v10617 = vunpack.c.l.b16 %v9348
        %v10618 = vunpack.c.l.b16 %v9362
        %v10619 = vunpack.c.l.b16 %v9372
        %v10620 = vunpack.c.l.b16 %v9386
        %v10621 = vunpack.c.l.b16 %v9396
        %v10622 = vunpack.c.l.b16 %v9410
        %v10623 = vunpack.c.l.b16 %v9420
        %v10624 = vunpack.c.l.b16 %v9434
        %v10625 = vunpack.c.l.b16 %v9444
        %v10626 = vunpack.c.l.b16 %v9458
        %v10627 = vunpack.c.l.b16 %v9468
        %v10628 = vunpack.c.l.b16 %v9482
        %v10629 = vunpack.c.l.b16 %v9492
        %v10630 = vpack.c.b16 %v10599, %v10598
        %v10631 = vpack.c.b16 %v10601, %v10600
        %v10632 = vpack.c.b16 %v10603, %v10602
        %v10633 = vpack.c.b16 %v10605, %v10604
        %v10634 = vpack.c.b16 %v10607, %v10606
        %v10635 = vpack.c.b16 %v10609, %v10608
        %v10636 = vpack.c.b16 %v10611, %v10610
        %v10637 = vpack.c.b16 %v10613, %v10612
        %v10638 = vpack.c.b16 %v10615, %v10614
        %v10639 = vpack.c.b16 %v10617, %v10616
        %v10640 = vpack.c.b16 %v10619, %v10618
        %v10641 = vpack.c.b16 %v10621, %v10620
        %v10642 = vpack.c.b16 %v10623, %v10622
        %v10643 = vpack.c.b16 %v10625, %v10624
        %v10644 = vpack.c.b16 %v10627, %v10626
        %v10645 = vpack.c.b16 %v10629, %v10628
        %10646 = vrot.lane.b32.xlu0 %v10630, 96
        %v10647 = vpop.permute.xlu0 %10646
        %10648 = vrot.lane.b32.xlu0 %v10631, 96
        %v10649 = vpop.permute.xlu0 %10648
        %10650 = vrot.lane.b32.xlu0 %v10632, 96
        %v10651 = vpop.permute.xlu0 %10650
        %10652 = vrot.lane.b32.xlu0 %v10633, 96
        %v10653 = vpop.permute.xlu0 %10652
        %10654 = vrot.lane.b32.xlu0 %v10634, 96
        %v10655 = vpop.permute.xlu0 %10654
        %10656 = vrot.lane.b32.xlu0 %v10635, 96
        %v10657 = vpop.permute.xlu0 %10656
        %10658 = vrot.lane.b32.xlu0 %v10636, 96
        %v10659 = vpop.permute.xlu0 %10658
        %10660 = vrot.lane.b32.xlu0 %v10637, 96
        %v10661 = vpop.permute.xlu0 %10660
        %10662 = vrot.lane.b32.xlu0 %v10638, 96
        %v10663 = vpop.permute.xlu0 %10662
        %10664 = vrot.lane.b32.xlu0 %v10639, 96
        %v10665 = vpop.permute.xlu0 %10664
        %10666 = vrot.lane.b32.xlu0 %v10640, 96
        %v10667 = vpop.permute.xlu0 %10666
        %10668 = vrot.lane.b32.xlu0 %v10641, 96
        %v10669 = vpop.permute.xlu0 %10668
        %10670 = vrot.lane.b32.xlu0 %v10642, 96
        %v10671 = vpop.permute.xlu0 %10670
        %10672 = vrot.lane.b32.xlu0 %v10643, 96
        %v10673 = vpop.permute.xlu0 %10672
        %10674 = vrot.lane.b32.xlu0 %v10644, 96
        %v10675 = vpop.permute.xlu0 %10674
        %10676 = vrot.lane.b32.xlu0 %v10645, 96
        %v10677 = vpop.permute.xlu0 %10676
        %v10678 = vunpack.c.l.b16 %v9560
        %v10679 = vunpack.c.l.b16 %v9563
        %v10680 = vunpack.c.l.b16 %v9567
        %v10681 = vunpack.c.l.b16 %v9570
        %v10682 = vunpack.c.l.b16 %v9574
        %v10683 = vunpack.c.l.b16 %v9577
        %v10684 = vunpack.c.l.b16 %v9581
        %v10685 = vunpack.c.l.b16 %v9584
        %v10686 = vunpack.c.l.b16 %v9588
        %v10687 = vunpack.c.l.b16 %v9591
        %v10688 = vunpack.c.l.b16 %v9595
        %v10689 = vunpack.c.l.b16 %v9598
        %v10690 = vunpack.c.l.b16 %v9602
        %v10691 = vunpack.c.l.b16 %v9605
        %v10692 = vunpack.c.l.b16 %v9609
        %v10693 = vunpack.c.l.b16 %v9612
        %v10694 = vunpack.c.l.b16 %v9616
        %v10695 = vunpack.c.l.b16 %v9619
        %v10696 = vunpack.c.l.b16 %v9623
        %v10697 = vunpack.c.l.b16 %v9626
        %v10698 = vunpack.c.l.b16 %v9630
        %v10699 = vunpack.c.l.b16 %v9633
        %v10700 = vunpack.c.l.b16 %v9637
        %v10701 = vunpack.c.l.b16 %v9640
        %v10702 = vunpack.c.l.b16 %v9644
        %v10703 = vunpack.c.l.b16 %v9647
        %v10704 = vunpack.c.l.b16 %v9651
        %v10705 = vunpack.c.l.b16 %v9654
        %v10706 = vunpack.c.l.b16 %v9658
        %v10707 = vunpack.c.l.b16 %v9661
        %v10708 = vunpack.c.l.b16 %v9665
        %v10709 = vunpack.c.l.b16 %v9668
        %v10710 = vpack.c.b16 %v10679, %v10678
        %v10711 = vpack.c.b16 %v10681, %v10680
        %v10712 = vpack.c.b16 %v10683, %v10682
        %v10713 = vpack.c.b16 %v10685, %v10684
        %v10714 = vpack.c.b16 %v10687, %v10686
        %v10715 = vpack.c.b16 %v10689, %v10688
        %v10716 = vpack.c.b16 %v10691, %v10690
        %v10717 = vpack.c.b16 %v10693, %v10692
        %v10718 = vpack.c.b16 %v10695, %v10694
        %v10719 = vpack.c.b16 %v10697, %v10696
        %v10720 = vpack.c.b16 %v10699, %v10698
        %v10721 = vpack.c.b16 %v10701, %v10700
        %v10722 = vpack.c.b16 %v10703, %v10702
        %v10723 = vpack.c.b16 %v10705, %v10704
        %v10724 = vpack.c.b16 %v10707, %v10706
        %v10725 = vpack.c.b16 %v10709, %v10708
        %10726 = vrot.lane.b32.xlu0 %v10710, 120
        %v10727 = vpop.permute.xlu0 %10726
        %10728 = vrot.lane.b32.xlu0 %v10711, 120
        %v10729 = vpop.permute.xlu0 %10728
        %10730 = vrot.lane.b32.xlu0 %v10712, 120
        %v10731 = vpop.permute.xlu0 %10730
        %10732 = vrot.lane.b32.xlu0 %v10713, 120
        %v10733 = vpop.permute.xlu0 %10732
        %10734 = vrot.lane.b32.xlu0 %v10714, 120
        %v10735 = vpop.permute.xlu0 %10734
        %10736 = vrot.lane.b32.xlu0 %v10715, 120
        %v10737 = vpop.permute.xlu0 %10736
        %10738 = vrot.lane.b32.xlu0 %v10716, 120
        %v10739 = vpop.permute.xlu0 %10738
        %10740 = vrot.lane.b32.xlu0 %v10717, 120
        %v10741 = vpop.permute.xlu0 %10740
        %10742 = vrot.lane.b32.xlu0 %v10718, 120
        %v10743 = vpop.permute.xlu0 %10742
        %10744 = vrot.lane.b32.xlu0 %v10719, 120
        %v10745 = vpop.permute.xlu0 %10744
        %10746 = vrot.lane.b32.xlu0 %v10720, 120
        %v10747 = vpop.permute.xlu0 %10746
        %10748 = vrot.lane.b32.xlu0 %v10721, 120
        %v10749 = vpop.permute.xlu0 %10748
        %10750 = vrot.lane.b32.xlu0 %v10722, 120
        %v10751 = vpop.permute.xlu0 %10750
        %10752 = vrot.lane.b32.xlu0 %v10723, 120
        %v10753 = vpop.permute.xlu0 %10752
        %10754 = vrot.lane.b32.xlu0 %v10724, 120
        %v10755 = vpop.permute.xlu0 %10754
        %10756 = vrot.lane.b32.xlu0 %v10725, 120
        %v10757 = vpop.permute.xlu0 %10756
        %v10774 = vunpack.c.l.b16 %v9670
        %v10775 = vunpack.c.l.b16 %v9671
        %v10776 = vunpack.c.l.b16 %v9672
        %v10777 = vunpack.c.l.b16 %v9673
        %v10778 = vunpack.c.l.b16 %v9674
        %v10779 = vunpack.c.l.b16 %v9675
        %v10780 = vunpack.c.l.b16 %v9676
        %v10781 = vunpack.c.l.b16 %v9677
        %v10782 = vunpack.c.l.b16 %v9678
        %v10783 = vunpack.c.l.b16 %v9679
        %v10784 = vunpack.c.l.b16 %v9680
        %v10785 = vunpack.c.l.b16 %v9681
        %v10786 = vunpack.c.l.b16 %v9682
        %v10787 = vunpack.c.l.b16 %v9683
        %v10788 = vunpack.c.l.b16 %v9684
        %v10789 = vunpack.c.l.b16 %v9685
        %v10790 = vunpack.c.l.b16 %v9686
        %v10791 = vunpack.c.l.b16 %v9687
        %v10792 = vunpack.c.l.b16 %v9688
        %v10793 = vunpack.c.l.b16 %v9689
        %v10794 = vunpack.c.l.b16 %v9690
        %v10795 = vunpack.c.l.b16 %v9691
        %v10796 = vunpack.c.l.b16 %v9692
        %v10797 = vunpack.c.l.b16 %v9693
        %v10798 = vunpack.c.l.b16 %v9694
        %v10799 = vunpack.c.l.b16 %v9695
        %v10800 = vunpack.c.l.b16 %v9696
        %v10801 = vunpack.c.l.b16 %v9697
        %v10802 = vunpack.c.l.b16 %v9698
        %v10803 = vunpack.c.l.b16 %v9699
        %v10804 = vunpack.c.l.b16 %v9700
        %v10805 = vunpack.c.l.b16 %v9701
        %v10806 = vpack.c.b16 %v10775, %v10774
        %v10807 = vpack.c.b16 %v10777, %v10776
        %v10808 = vpack.c.b16 %v10779, %v10778
        %v10809 = vpack.c.b16 %v10781, %v10780
        %v10810 = vpack.c.b16 %v10783, %v10782
        %v10811 = vpack.c.b16 %v10785, %v10784
        %v10812 = vpack.c.b16 %v10787, %v10786
        %v10813 = vpack.c.b16 %v10789, %v10788
        %v10814 = vpack.c.b16 %v10791, %v10790
        %v10815 = vpack.c.b16 %v10793, %v10792
        %v10816 = vpack.c.b16 %v10795, %v10794
        %v10817 = vpack.c.b16 %v10797, %v10796
        %v10818 = vpack.c.b16 %v10799, %v10798
        %v10819 = vpack.c.b16 %v10801, %v10800
        %v10820 = vpack.c.b16 %v10803, %v10802
        %v10821 = vpack.c.b16 %v10805, %v10804
        %10822 = vrot.lane.b32.xlu0 %v10806, 16
        %v10823 = vpop.permute.xlu0 %10822
        %10824 = vrot.lane.b32.xlu0 %v10807, 16
        %v10825 = vpop.permute.xlu0 %10824
        %10826 = vrot.lane.b32.xlu0 %v10808, 16
        %v10827 = vpop.permute.xlu0 %10826
        %10828 = vrot.lane.b32.xlu0 %v10809, 16
        %v10829 = vpop.permute.xlu0 %10828
        %10830 = vrot.lane.b32.xlu0 %v10810, 16
        %v10831 = vpop.permute.xlu0 %10830
        %10832 = vrot.lane.b32.xlu0 %v10811, 16
        %v10833 = vpop.permute.xlu0 %10832
        %10834 = vrot.lane.b32.xlu0 %v10812, 16
        %v10835 = vpop.permute.xlu0 %10834
        %10836 = vrot.lane.b32.xlu0 %v10813, 16
        %v10837 = vpop.permute.xlu0 %10836
        %10838 = vrot.lane.b32.xlu0 %v10814, 16
        %v10839 = vpop.permute.xlu0 %10838
        %10840 = vrot.lane.b32.xlu0 %v10815, 16
        %v10841 = vpop.permute.xlu0 %10840
        %10842 = vrot.lane.b32.xlu0 %v10816, 16
        %v10843 = vpop.permute.xlu0 %10842
        %10844 = vrot.lane.b32.xlu0 %v10817, 16
        %v10845 = vpop.permute.xlu0 %10844
        %10846 = vrot.lane.b32.xlu0 %v10818, 16
        %v10847 = vpop.permute.xlu0 %10846
        %10848 = vrot.lane.b32.xlu0 %v10819, 16
        %v10849 = vpop.permute.xlu0 %10848
        %10850 = vrot.lane.b32.xlu0 %v10820, 16
        %v10851 = vpop.permute.xlu0 %10850
        %10852 = vrot.lane.b32.xlu0 %v10821, 16
        %v10853 = vpop.permute.xlu0 %10852
        %v10854 = vunpack.c.l.b16 %v9731
        %v10855 = vunpack.c.l.b16 %v9741
        %v10856 = vunpack.c.l.b16 %v9755
        %v10857 = vunpack.c.l.b16 %v9765
        %v10858 = vunpack.c.l.b16 %v9779
        %v10859 = vunpack.c.l.b16 %v9789
        %v10860 = vunpack.c.l.b16 %v9803
        %v10861 = vunpack.c.l.b16 %v9813
        %v10862 = vunpack.c.l.b16 %v9827
        %v10863 = vunpack.c.l.b16 %v9837
        %v10864 = vunpack.c.l.b16 %v9851
        %v10865 = vunpack.c.l.b16 %v9861
        %v10866 = vunpack.c.l.b16 %v9875
        %v10867 = vunpack.c.l.b16 %v9885
        %v10868 = vunpack.c.l.b16 %v9899
        %v10869 = vunpack.c.l.b16 %v9909
        %v10870 = vunpack.c.l.b16 %v9923
        %v10871 = vunpack.c.l.b16 %v9933
        %v10872 = vunpack.c.l.b16 %v9947
        %v10873 = vunpack.c.l.b16 %v9957
        %v10874 = vunpack.c.l.b16 %v9971
        %v10875 = vunpack.c.l.b16 %v9981
        %v10876 = vunpack.c.l.b16 %v9995
        %v10877 = vunpack.c.l.b16 %v10005
        %v10878 = vunpack.c.l.b16 %v10019
        %v10879 = vunpack.c.l.b16 %v10029
        %v10880 = vunpack.c.l.b16 %v10043
        %v10881 = vunpack.c.l.b16 %v10053
        %v10882 = vunpack.c.l.b16 %v10067
        %v10883 = vunpack.c.l.b16 %v10077
        %v10884 = vunpack.c.l.b16 %v10091
        %v10885 = vunpack.c.l.b16 %v10101
        %v10886 = vpack.c.b16 %v10855, %v10854
        %v10887 = vpack.c.b16 %v10857, %v10856
        %v10888 = vpack.c.b16 %v10859, %v10858
        %v10889 = vpack.c.b16 %v10861, %v10860
        %v10890 = vpack.c.b16 %v10863, %v10862
        %v10891 = vpack.c.b16 %v10865, %v10864
        %v10892 = vpack.c.b16 %v10867, %v10866
        %v10893 = vpack.c.b16 %v10869, %v10868
        %v10894 = vpack.c.b16 %v10871, %v10870
        %v10895 = vpack.c.b16 %v10873, %v10872
        %v10896 = vpack.c.b16 %v10875, %v10874
        %v10897 = vpack.c.b16 %v10877, %v10876
        %v10898 = vpack.c.b16 %v10879, %v10878
        %v10899 = vpack.c.b16 %v10881, %v10880
        %v10900 = vpack.c.b16 %v10883, %v10882
        %v10901 = vpack.c.b16 %v10885, %v10884
        %10902 = vrot.lane.b32.xlu0 %v10886, 40
        %v10903 = vpop.permute.xlu0 %10902
        %10904 = vrot.lane.b32.xlu0 %v10887, 40
        %v10905 = vpop.permute.xlu0 %10904
        %10906 = vrot.lane.b32.xlu0 %v10888, 40
        %v10907 = vpop.permute.xlu0 %10906
        %10908 = vrot.lane.b32.xlu0 %v10889, 40
        %v10909 = vpop.permute.xlu0 %10908
        %10910 = vrot.lane.b32.xlu0 %v10890, 40
        %v10911 = vpop.permute.xlu0 %10910
        %10912 = vrot.lane.b32.xlu0 %v10891, 40
        %v10913 = vpop.permute.xlu0 %10912
        %10914 = vrot.lane.b32.xlu0 %v10892, 40
        %v10915 = vpop.permute.xlu0 %10914
        %10916 = vrot.lane.b32.xlu0 %v10893, 40
        %v10917 = vpop.permute.xlu0 %10916
        %10918 = vrot.lane.b32.xlu0 %v10894, 40
        %v10919 = vpop.permute.xlu0 %10918
        %10920 = vrot.lane.b32.xlu0 %v10895, 40
        %v10921 = vpop.permute.xlu0 %10920
        %10922 = vrot.lane.b32.xlu0 %v10896, 40
        %v10923 = vpop.permute.xlu0 %10922
        %10924 = vrot.lane.b32.xlu0 %v10897, 40
        %v10925 = vpop.permute.xlu0 %10924
        %10926 = vrot.lane.b32.xlu0 %v10898, 40
        %v10927 = vpop.permute.xlu0 %10926
        %10928 = vrot.lane.b32.xlu0 %v10899, 40
        %v10929 = vpop.permute.xlu0 %10928
        %10930 = vrot.lane.b32.xlu0 %v10900, 40
        %v10931 = vpop.permute.xlu0 %10930
        %10932 = vrot.lane.b32.xlu0 %v10901, 40
        %v10933 = vpop.permute.xlu0 %10932
        %v10934 = vunpack.c.l.b16 %v10169
        %v10935 = vunpack.c.l.b16 %v10172
        %v10936 = vunpack.c.l.b16 %v10176
        %v10937 = vunpack.c.l.b16 %v10179
        %v10938 = vunpack.c.l.b16 %v10183
        %v10939 = vunpack.c.l.b16 %v10186
        %v10940 = vunpack.c.l.b16 %v10190
        %v10941 = vunpack.c.l.b16 %v10193
        %v10942 = vunpack.c.l.b16 %v10197
        %v10943 = vunpack.c.l.b16 %v10200
        %v10944 = vunpack.c.l.b16 %v10204
        %v10945 = vunpack.c.l.b16 %v10207
        %v10946 = vunpack.c.l.b16 %v10211
        %v10947 = vunpack.c.l.b16 %v10214
        %v10948 = vunpack.c.l.b16 %v10218
        %v10949 = vunpack.c.l.b16 %v10221
        %v10950 = vunpack.c.l.b16 %v10225
        %v10951 = vunpack.c.l.b16 %v10228
        %v10952 = vunpack.c.l.b16 %v10232
        %v10953 = vunpack.c.l.b16 %v10235
        %v10954 = vunpack.c.l.b16 %v10239
        %v10955 = vunpack.c.l.b16 %v10242
        %v10956 = vunpack.c.l.b16 %v10246
        %v10957 = vunpack.c.l.b16 %v10249
        %v10958 = vunpack.c.l.b16 %v10253
        %v10959 = vunpack.c.l.b16 %v10256
        %v10960 = vunpack.c.l.b16 %v10260
        %v10961 = vunpack.c.l.b16 %v10263
        %v10962 = vunpack.c.l.b16 %v10267
        %v10963 = vunpack.c.l.b16 %v10270
        %v10964 = vunpack.c.l.b16 %v10274
        %v10965 = vunpack.c.l.b16 %v10277
        %v10966 = vpack.c.b16 %v10935, %v10934
        %v10967 = vpack.c.b16 %v10937, %v10936
        %v10968 = vpack.c.b16 %v10939, %v10938
        %v10969 = vpack.c.b16 %v10941, %v10940
        %v10970 = vpack.c.b16 %v10943, %v10942
        %v10971 = vpack.c.b16 %v10945, %v10944
        %v10972 = vpack.c.b16 %v10947, %v10946
        %v10973 = vpack.c.b16 %v10949, %v10948
        %v10974 = vpack.c.b16 %v10951, %v10950
        %v10975 = vpack.c.b16 %v10953, %v10952
        %v10976 = vpack.c.b16 %v10955, %v10954
        %v10977 = vpack.c.b16 %v10957, %v10956
        %v10978 = vpack.c.b16 %v10959, %v10958
        %v10979 = vpack.c.b16 %v10961, %v10960
        %v10980 = vpack.c.b16 %v10963, %v10962
        %v10981 = vpack.c.b16 %v10965, %v10964
        %10982 = vrot.lane.b32.xlu0 %v10966, 64
        %v10983 = vpop.permute.xlu0 %10982
        %10984 = vrot.lane.b32.xlu0 %v10967, 64
        %v10985 = vpop.permute.xlu0 %10984
        %10986 = vrot.lane.b32.xlu0 %v10968, 64
        %v10987 = vpop.permute.xlu0 %10986
        %10988 = vrot.lane.b32.xlu0 %v10969, 64
        %v10989 = vpop.permute.xlu0 %10988
        %10990 = vrot.lane.b32.xlu0 %v10970, 64
        %v10991 = vpop.permute.xlu0 %10990
        %10992 = vrot.lane.b32.xlu0 %v10971, 64
        %v10993 = vpop.permute.xlu0 %10992
        %10994 = vrot.lane.b32.xlu0 %v10972, 64
        %v10995 = vpop.permute.xlu0 %10994
        %10996 = vrot.lane.b32.xlu0 %v10973, 64
        %v10997 = vpop.permute.xlu0 %10996
        %10998 = vrot.lane.b32.xlu0 %v10974, 64
        %v10999 = vpop.permute.xlu0 %10998
        %11000 = vrot.lane.b32.xlu0 %v10975, 64
        %v11001 = vpop.permute.xlu0 %11000
        %11002 = vrot.lane.b32.xlu0 %v10976, 64
        %v11003 = vpop.permute.xlu0 %11002
        %11004 = vrot.lane.b32.xlu0 %v10977, 64
        %v11005 = vpop.permute.xlu0 %11004
        %11006 = vrot.lane.b32.xlu0 %v10978, 64
        %v11007 = vpop.permute.xlu0 %11006
        %11008 = vrot.lane.b32.xlu0 %v10979, 64
        %v11009 = vpop.permute.xlu0 %11008
        %11010 = vrot.lane.b32.xlu0 %v10980, 64
        %v11011 = vpop.permute.xlu0 %11010
        %11012 = vrot.lane.b32.xlu0 %v10981, 64
        %v11013 = vpop.permute.xlu0 %11012
        %vm11014 = vcmask 195584
        %v11017 = vsel %vm11014, %v10326, %v10391
        %v11020 = vsel %vm11014, %v10327, %v10393
        %v11023 = vsel %vm11014, %v10328, %v10395
        %v11026 = vsel %vm11014, %v10329, %v10397
        %v11029 = vsel %vm11014, %v10330, %v10399
        %v11032 = vsel %vm11014, %v10331, %v10401
        %v11035 = vsel %vm11014, %v10332, %v10403
        %v11038 = vsel %vm11014, %v10333, %v10405
        %v11041 = vsel %vm11014, %v10334, %v10407
        %v11044 = vsel %vm11014, %v10335, %v10409
        %v11047 = vsel %vm11014, %v10336, %v10411
        %v11050 = vsel %vm11014, %v10337, %v10413
        %v11053 = vsel %vm11014, %v10338, %v10415
        %v11056 = vsel %vm11014, %v10339, %v10417
        %v11059 = vsel %vm11014, %v10340, %v10419
        %v11062 = vsel %vm11014, %v10341, %v10421
        %vm11063 = vcmask 392192
        %v11065 = vsel %vm11063, %v11017, %v10471
        %v11067 = vsel %vm11063, %v11020, %v10473
        %v11069 = vsel %vm11063, %v11023, %v10475
        %v11071 = vsel %vm11063, %v11026, %v10477
        %v11073 = vsel %vm11063, %v11029, %v10479
        %v11075 = vsel %vm11063, %v11032, %v10481
        %v11077 = vsel %vm11063, %v11035, %v10483
        %v11079 = vsel %vm11063, %v11038, %v10485
        %v11081 = vsel %vm11063, %v11041, %v10487
        %v11083 = vsel %vm11063, %v11044, %v10489
        %v11085 = vsel %vm11063, %v11047, %v10491
        %v11087 = vsel %vm11063, %v11050, %v10493
        %v11089 = vsel %vm11063, %v11053, %v10495
        %v11091 = vsel %vm11063, %v11056, %v10497
        %v11093 = vsel %vm11063, %v11059, %v10499
        %v11095 = vsel %vm11063, %v11062, %v10501
        %vm11096 = vcmask 588800
        %v11098 = vsel %vm11096, %v11065, %v10567
        %v11100 = vsel %vm11096, %v11067, %v10569
        %v11102 = vsel %vm11096, %v11069, %v10571
        %v11104 = vsel %vm11096, %v11071, %v10573
        %v11106 = vsel %vm11096, %v11073, %v10575
        %v11108 = vsel %vm11096, %v11075, %v10577
        %v11110 = vsel %vm11096, %v11077, %v10579
        %v11112 = vsel %vm11096, %v11079, %v10581
        %v11114 = vsel %vm11096, %v11081, %v10583
        %v11116 = vsel %vm11096, %v11083, %v10585
        %v11118 = vsel %vm11096, %v11085, %v10587
        %v11120 = vsel %vm11096, %v11087, %v10589
        %v11122 = vsel %vm11096, %v11089, %v10591
        %v11124 = vsel %vm11096, %v11091, %v10593
        %v11126 = vsel %vm11096, %v11093, %v10595
        %v11128 = vsel %vm11096, %v11095, %v10597
        %v11130 = vsel %vm2923, %v11098, %v10647
        %v11132 = vsel %vm2923, %v11100, %v10649
        %v11134 = vsel %vm2923, %v11102, %v10651
        %v11136 = vsel %vm2923, %v11104, %v10653
        %v11138 = vsel %vm2923, %v11106, %v10655
        %v11140 = vsel %vm2923, %v11108, %v10657
        %v11142 = vsel %vm2923, %v11110, %v10659
        %v11144 = vsel %vm2923, %v11112, %v10661
        %v11146 = vsel %vm2923, %v11114, %v10663
        %v11148 = vsel %vm2923, %v11116, %v10665
        %v11150 = vsel %vm2923, %v11118, %v10667
        %v11152 = vsel %vm2923, %v11120, %v10669
        %v11154 = vsel %vm2923, %v11122, %v10671
        %v11156 = vsel %vm2923, %v11124, %v10673
        %v11158 = vsel %vm2923, %v11126, %v10675
        %v11160 = vsel %vm2923, %v11128, %v10677
        %vm11161 = vcmask 982016
        %v11163 = vsel %vm11161, %v11130, %v10727
        %v11166 = vsel %vm11161, %v11132, %v10729
        %v11169 = vsel %vm11161, %v11134, %v10731
        %v11172 = vsel %vm11161, %v11136, %v10733
        %v11175 = vsel %vm11161, %v11138, %v10735
        %v11178 = vsel %vm11161, %v11140, %v10737
        %v11181 = vsel %vm11161, %v11142, %v10739
        %v11184 = vsel %vm11161, %v11144, %v10741
        %v11187 = vsel %vm11161, %v11146, %v10743
        %v11190 = vsel %vm11161, %v11148, %v10745
        %v11193 = vsel %vm11161, %v11150, %v10747
        %v11196 = vsel %vm11161, %v11152, %v10749
        %v11199 = vsel %vm11161, %v11154, %v10751
        %v11202 = vsel %vm11161, %v11156, %v10753
        %v11205 = vsel %vm11161, %v11158, %v10755
        %v11208 = vsel %vm11161, %v11160, %v10757
        %vm11210 = vcmask 130048
        %v11212 = vsel %vm11210, %v10727, %v10823
        %v11214 = vsel %vm11210, %v10729, %v10825
        %v11216 = vsel %vm11210, %v10731, %v10827
        %v11218 = vsel %vm11210, %v10733, %v10829
        %v11220 = vsel %vm11210, %v10735, %v10831
        %v11222 = vsel %vm11210, %v10737, %v10833
        %v11224 = vsel %vm11210, %v10739, %v10835
        %v11226 = vsel %vm11210, %v10741, %v10837
        %v11228 = vsel %vm11210, %v10743, %v10839
        %v11230 = vsel %vm11210, %v10745, %v10841
        %v11232 = vsel %vm11210, %v10747, %v10843
        %v11234 = vsel %vm11210, %v10749, %v10845
        %v11236 = vsel %vm11210, %v10751, %v10847
        %v11238 = vsel %vm11210, %v10753, %v10849
        %v11240 = vsel %vm11210, %v10755, %v10851
        %v11242 = vsel %vm11210, %v10757, %v10853
        %vm11243 = vcmask 326656
        %v11245 = vsel %vm11243, %v11212, %v10903
        %v11247 = vsel %vm11243, %v11214, %v10905
        %v11249 = vsel %vm11243, %v11216, %v10907
        %v11251 = vsel %vm11243, %v11218, %v10909
        %v11253 = vsel %vm11243, %v11220, %v10911
        %v11255 = vsel %vm11243, %v11222, %v10913
        %v11257 = vsel %vm11243, %v11224, %v10915
        %v11259 = vsel %vm11243, %v11226, %v10917
        %v11261 = vsel %vm11243, %v11228, %v10919
        %v11263 = vsel %vm11243, %v11230, %v10921
        %v11265 = vsel %vm11243, %v11232, %v10923
        %v11267 = vsel %vm11243, %v11234, %v10925
        %v11269 = vsel %vm11243, %v11236, %v10927
        %v11271 = vsel %vm11243, %v11238, %v10929
        %v11273 = vsel %vm11243, %v11240, %v10931
        %v11275 = vsel %vm11243, %v11242, %v10933
        %v11277 = vsel %vm2890, %v11245, %v10983
        %v11279 = vsel %vm2890, %v11247, %v10985
        %v11281 = vsel %vm2890, %v11249, %v10987
        %v11283 = vsel %vm2890, %v11251, %v10989
        %v11285 = vsel %vm2890, %v11253, %v10991
        %v11287 = vsel %vm2890, %v11255, %v10993
        %v11289 = vsel %vm2890, %v11257, %v10995
        %v11291 = vsel %vm2890, %v11259, %v10997
        %v11293 = vsel %vm2890, %v11261, %v10999
        %v11295 = vsel %vm2890, %v11263, %v11001
        %v11297 = vsel %vm2890, %v11265, %v11003
        %v11299 = vsel %vm2890, %v11267, %v11005
        %v11301 = vsel %vm2890, %v11269, %v11007
        %v11303 = vsel %vm2890, %v11271, %v11009
        %v11305 = vsel %vm2890, %v11273, %v11011
        %v11307 = vsel %vm2890, %v11275, %v11013
        %v11308 = vld [vmem:[%s6] sm:$0xf]
        %v11309 = vld [vmem:[%s6 + $0x4] sm:$0xf]
        %v11310 = vld [vmem:[%s6 + $0x8] sm:$0xf]
        %v11311 = vld [vmem:[%s6 + $0xc] sm:$0xf]
        %v11312 = vld [vmem:[%s6 + $0x10] sm:$0xf]
        %v11313 = vld [vmem:[%s6 + $0x14] sm:$0xf]
        %v11314 = vld [vmem:[%s6 + $0x18] sm:$0xf]
        %v11315 = vld [vmem:[%s6 + $0x1c] sm:$0xf]
        %v11316 = vld [vmem:[%s6 + $0x20] sm:$0xf]
        %v11317 = vld [vmem:[%s6 + $0x24] sm:$0xf]
        %v11318 = vld [vmem:[%s6 + $0x28] sm:$0xf]
        %v11319 = vld [vmem:[%s6 + $0x2c] sm:$0xf]
        %v11320 = vld [vmem:[%s6 + $0x30] sm:$0xf]
        %v11321 = vld [vmem:[%s6 + $0x34] sm:$0xf]
        %v11322 = vld [vmem:[%s6 + $0x38] sm:$0xf]
        %v11323 = vld [vmem:[%s6 + $0x3c] sm:$0xf]
        %v11324 = vld [vmem:[%s6 + $0x40] sm:$0xf]
        %v11325 = vld [vmem:[%s6 + $0x44] sm:$0xf]
        %v11326 = vld [vmem:[%s6 + $0x48] sm:$0xf]
        %v11327 = vld [vmem:[%s6 + $0x4c] sm:$0xf]
        %v11328 = vld [vmem:[%s6 + $0x50] sm:$0xf]
        %v11329 = vld [vmem:[%s6 + $0x54] sm:$0xf]
        %v11330 = vld [vmem:[%s6 + $0x58] sm:$0xf]
        %v11331 = vld [vmem:[%s6 + $0x5c] sm:$0xf]
        %v11332 = vld [vmem:[%s6 + $0x60] sm:$0xf]
        %v11333 = vld [vmem:[%s6 + $0x64] sm:$0xf]
        %v11334 = vld [vmem:[%s6 + $0x68] sm:$0xf]
        %v11335 = vld [vmem:[%s7] sm:$0x1]
        %v11337 = vlaneseq
        %v11338 = vshrl.u32 %v11337, 7
        %v11339 = vsub.s32 0, %v11338
        %v11340 = vrot.slane %v11335, %v11339
        %v11369 = vunpack.c.l.b16 %v11308
        %v11370 = vunpack.c.l.b16 %v11309
        %v11371 = vunpack.c.l.b16 %v11310
        %v11372 = vunpack.c.l.b16 %v11311
        %v11373 = vunpack.c.l.b16 %v11312
        %v11374 = vunpack.c.l.b16 %v11313
        %v11375 = vunpack.c.l.b16 %v11314
        %v11376 = vunpack.c.l.b16 %v11315
        %v11377 = vunpack.c.l.b16 %v11316
        %v11378 = vunpack.c.l.b16 %v11317
        %v11379 = vunpack.c.l.b16 %v11318
        %v11380 = vunpack.c.l.b16 %v11319
        %v11381 = vunpack.c.l.b16 %v11320
        %v11382 = vunpack.c.l.b16 %v11321
        %v11383 = vunpack.c.l.b16 %v11322
        %v11384 = vunpack.c.l.b16 %v11323
        %v11385 = vunpack.c.l.b16 %v11324
        %v11386 = vunpack.c.l.b16 %v11325
        %v11387 = vunpack.c.l.b16 %v11326
        %v11388 = vunpack.c.l.b16 %v11327
        %v11389 = vunpack.c.l.b16 %v11328
        %v11390 = vunpack.c.l.b16 %v11329
        %v11391 = vunpack.c.l.b16 %v11330
        %v11392 = vunpack.c.l.b16 %v11331
        %v11393 = vunpack.c.l.b16 %v11332
        %v11394 = vunpack.c.l.b16 %v11333
        %v11395 = vunpack.c.l.b16 %v11334
        %v11396 = vpack.c.b16 %v11370, %v11369
        %v11397 = vpack.c.b16 %v11372, %v11371
        %v11398 = vpack.c.b16 %v11374, %v11373
        %v11399 = vpack.c.b16 %v11376, %v11375
        %v11400 = vpack.c.b16 %v11378, %v11377
        %v11401 = vpack.c.b16 %v11380, %v11379
        %v11402 = vpack.c.b16 %v11382, %v11381
        %v11403 = vpack.c.b16 %v11384, %v11383
        %v11404 = vpack.c.b16 %v11386, %v11385
        %v11405 = vpack.c.b16 %v11388, %v11387
        %v11406 = vpack.c.b16 %v11390, %v11389
        %v11407 = vpack.c.b16 %v11392, %v11391
        %v11408 = vpack.c.b16 %v11394, %v11393
        %v11409 = vpack.c.b16 %v11395, %v11395
        %vm11423 = vcmask 719872
        %v11424 = vsel %vm11423, %v11277, 0
        %v11426 = vsel %vm11423, %v11279, 0
        %v11428 = vsel %vm11423, %v11281, 0
        %v11430 = vsel %vm11423, %v11283, 0
        %v11432 = vsel %vm11423, %v11285, 0
        %v11434 = vsel %vm11423, %v11287, 0
        %v11436 = vsel %vm11423, %v11289, 0
        %v11438 = vsel %vm11423, %v11291, 0
        %v11440 = vsel %vm11423, %v11293, 0
        %v11442 = vsel %vm11423, %v11295, 0
        %v11444 = vsel %vm11423, %v11297, 0
        %v11446 = vsel %vm11423, %v11299, 0
        %v11448 = vsel %vm11423, %v11301, 0
        %v11450 = vsel %vm11423, %v11303, 0
        %v11452 = vsel %vm11423, %v11305, 0
        %v11454 = vsel %vm11423, %v11307, 0
        %vm11456 = vcmask 1043456
        %v11458 = vsel %vm11456, %v11409, 0
        %11460 = vmatprep.subr.bf16.mxu0 0
        %11461 = vmatpush1.bf16.msra.mxu0 %v11396
        %11462 = vmatprep.subr.bf16.mxu0 0
        %11463 = vmatpush1.bf16.msra.mxu0 %v11397
        %11464 = vmatprep.subr.bf16.mxu0 0
        %11465 = vmatpush1.bf16.msra.mxu0 %v11398
        %11466 = vmatprep.subr.bf16.mxu0 0
        %11467 = vmatpush1.bf16.msra.mxu0 %v11399
        %11468 = vmatprep.subr.bf16.mxu0 0
        %11469 = vmatpush1.bf16.msra.mxu0 %v11400
        %11470 = vmatprep.subr.bf16.mxu0 0
        %11471 = vmatpush1.bf16.msra.mxu0 %v11401
        %11472 = vmatprep.subr.bf16.mxu0 0
        %11473 = vmatpush1.bf16.msra.mxu0 %v11402
        %11474 = vmatprep.subr.bf16.mxu0 0
        %11475 = vmatpush1.bf16.msra.mxu0 %v11403
        %11476 = vmatprep.subr.bf16.mxu0 0
        %11477 = vmatpush1.bf16.msra.mxu0 %v11404
        %11478 = vmatprep.subr.bf16.mxu0 0
        %11479 = vmatpush1.bf16.msra.mxu0 %v11405
        %11480 = vmatprep.subr.bf16.mxu0 0
        %11481 = vmatpush1.bf16.msra.mxu0 %v11406
        %11482 = vmatprep.subr.bf16.mxu0 0
        %11483 = vmatpush1.bf16.msra.mxu0 %v11407
        %11484 = vmatprep.subr.bf16.mxu0 0
        %11485 = vmatpush1.bf16.msra.mxu0 %v11408
        %11486 = vmatprep.subr.bf16.mxu0 0
        %11487 = vmatpush1.bf16.msra.mxu0 %v11458
        %11488 = vmatprep.subr.bf16.mxu0 0
        %11489 = vmatpush1.bf16.msra.mxu0 0
        %11490 = vmatprep.subr.bf16.mxu0 0
        %11491 = vmatpush1.bf16.msra.mxu0 0
        %11492 = vmatprep.mubr.bf16.mxu0 %v11424
        %11493 = vmatmul.mubr.bf16.gmra.mrb[0].mxu0 %v11163
        %v11494 = vpop.f32.mrb[0].mxu0
        %v11495 = vadd.f32 %v11340, %v11494
        %v11496 = vpop.f32.mrb[0].mxu0
        %v11497 = vpop.f32.mrb[0].mxu0
        %v11498 = vadd.f32 %v11340, %v11497
        %v11499 = vpop.f32.mrb[0].mxu0
        %11500 = vmatprep.mubr.bf16.mxu0 %v11426
        %11501 = vmatmul.mubr.bf16.gmra.mrb[0].mxu0 %v11166
        %v11502 = vpop.f32.mrb[0].mxu0
        %v11503 = vadd.f32 %v11340, %v11502
        %v11504 = vpop.f32.mrb[0].mxu0
        %v11505 = vpop.f32.mrb[0].mxu0
        %v11506 = vadd.f32 %v11340, %v11505
        %v11507 = vpop.f32.mrb[0].mxu0
        %11508 = vmatprep.mubr.bf16.mxu0 %v11428
        %11509 = vmatmul.mubr.bf16.gmra.mrb[0].mxu0 %v11169
        %v11510 = vpop.f32.mrb[0].mxu0
        %v11511 = vadd.f32 %v11340, %v11510
        %v11512 = vpop.f32.mrb[0].mxu0
        %v11513 = vpop.f32.mrb[0].mxu0
        %v11514 = vadd.f32 %v11340, %v11513
        %v11515 = vpop.f32.mrb[0].mxu0
        %11516 = vmatprep.mubr.bf16.mxu0 %v11430
        %11517 = vmatmul.mubr.bf16.gmra.mrb[0].mxu0 %v11172
        %v11518 = vpop.f32.mrb[0].mxu0
        %v11519 = vadd.f32 %v11340, %v11518
        %v11520 = vpop.f32.mrb[0].mxu0
        %v11521 = vpop.f32.mrb[0].mxu0
        %v11522 = vadd.f32 %v11340, %v11521
        %v11523 = vpop.f32.mrb[0].mxu0
        %11524 = vmatprep.mubr.bf16.mxu0 %v11432
        %11525 = vmatmul.mubr.bf16.gmra.mrb[0].mxu0 %v11175
        %v11526 = vpop.f32.mrb[0].mxu0
        %v11527 = vadd.f32 %v11340, %v11526
        %v11528 = vpop.f32.mrb[0].mxu0
        %v11529 = vpop.f32.mrb[0].mxu0
        %v11530 = vadd.f32 %v11340, %v11529
        %v11531 = vpop.f32.mrb[0].mxu0
        %11532 = vmatprep.mubr.bf16.mxu0 %v11434
        %11533 = vmatmul.mubr.bf16.gmra.mrb[0].mxu0 %v11178
        %v11534 = vpop.f32.mrb[0].mxu0
        %v11535 = vadd.f32 %v11340, %v11534
        %v11536 = vpop.f32.mrb[0].mxu0
        %v11537 = vpop.f32.mrb[0].mxu0
        %v11538 = vadd.f32 %v11340, %v11537
        %v11539 = vpop.f32.mrb[0].mxu0
        %11540 = vmatprep.mubr.bf16.mxu0 %v11436
        %11541 = vmatmul.mubr.bf16.gmra.mrb[0].mxu0 %v11181
        %v11542 = vpop.f32.mrb[0].mxu0
        %v11543 = vadd.f32 %v11340, %v11542
        %v11544 = vpop.f32.mrb[0].mxu0
        %v11545 = vpop.f32.mrb[0].mxu0
        %v11546 = vadd.f32 %v11340, %v11545
        %v11547 = vpop.f32.mrb[0].mxu0
        %11548 = vmatprep.mubr.bf16.mxu0 %v11438
        %11549 = vmatmul.mubr.bf16.gmra.mrb[0].mxu0 %v11184
        %v11550 = vpop.f32.mrb[0].mxu0
        %v11551 = vadd.f32 %v11340, %v11550
        %v11552 = vpop.f32.mrb[0].mxu0
        %v11553 = vpop.f32.mrb[0].mxu0
        %v11554 = vadd.f32 %v11340, %v11553
        %v11555 = vpop.f32.mrb[0].mxu0
        %11556 = vmatprep.mubr.bf16.mxu0 %v11440
        %11557 = vmatmul.mubr.bf16.gmra.mrb[0].mxu0 %v11187
        %v11558 = vpop.f32.mrb[0].mxu0
        %v11559 = vadd.f32 %v11340, %v11558
        %v11560 = vpop.f32.mrb[0].mxu0
        %v11561 = vpop.f32.mrb[0].mxu0
        %v11562 = vadd.f32 %v11340, %v11561
        %v11563 = vpop.f32.mrb[0].mxu0
        %11564 = vmatprep.mubr.bf16.mxu0 %v11442
        %11565 = vmatmul.mubr.bf16.gmra.mrb[0].mxu0 %v11190
        %v11566 = vpop.f32.mrb[0].mxu0
        %v11567 = vadd.f32 %v11340, %v11566
        %v11568 = vpop.f32.mrb[0].mxu0
        %v11569 = vpop.f32.mrb[0].mxu0
        %v11570 = vadd.f32 %v11340, %v11569
        %v11571 = vpop.f32.mrb[0].mxu0
        %11572 = vmatprep.mubr.bf16.mxu0 %v11444
        %11573 = vmatmul.mubr.bf16.gmra.mrb[0].mxu0 %v11193
        %v11574 = vpop.f32.mrb[0].mxu0
        %v11575 = vadd.f32 %v11340, %v11574
        %v11576 = vpop.f32.mrb[0].mxu0
        %v11577 = vpop.f32.mrb[0].mxu0
        %v11578 = vadd.f32 %v11340, %v11577
        %v11579 = vpop.f32.mrb[0].mxu0
        %11580 = vmatprep.mubr.bf16.mxu0 %v11446
        %11581 = vmatmul.mubr.bf16.gmra.mrb[0].mxu0 %v11196
        %v11582 = vpop.f32.mrb[0].mxu0
        %v11583 = vadd.f32 %v11340, %v11582
        %v11584 = vpop.f32.mrb[0].mxu0
        %v11585 = vpop.f32.mrb[0].mxu0
        %v11586 = vadd.f32 %v11340, %v11585
        %v11587 = vpop.f32.mrb[0].mxu0
        %11588 = vmatprep.mubr.bf16.mxu0 %v11448
        %11589 = vmatmul.mubr.bf16.gmra.mrb[0].mxu0 %v11199
        %v11590 = vpop.f32.mrb[0].mxu0
        %v11591 = vadd.f32 %v11340, %v11590
        %v11592 = vpop.f32.mrb[0].mxu0
        %v11593 = vpop.f32.mrb[0].mxu0
        %v11594 = vadd.f32 %v11340, %v11593
        %v11595 = vpop.f32.mrb[0].mxu0
        %11596 = vmatprep.mubr.bf16.mxu0 %v11450
        %11597 = vmatmul.mubr.bf16.gmra.mrb[0].mxu0 %v11202
        %v11598 = vpop.f32.mrb[0].mxu0
        %v11599 = vadd.f32 %v11340, %v11598
        %v11600 = vpop.f32.mrb[0].mxu0
        %v11601 = vpop.f32.mrb[0].mxu0
        %v11602 = vadd.f32 %v11340, %v11601
        %v11603 = vpop.f32.mrb[0].mxu0
        %11604 = vmatprep.mubr.bf16.mxu0 %v11452
        %11605 = vmatmul.mubr.bf16.gmra.mrb[0].mxu0 %v11205
        %v11606 = vpop.f32.mrb[0].mxu0
        %v11607 = vadd.f32 %v11340, %v11606
        %v11608 = vpop.f32.mrb[0].mxu0
        %v11609 = vpop.f32.mrb[0].mxu0
        %v11610 = vadd.f32 %v11340, %v11609
        %v11611 = vpop.f32.mrb[0].mxu0
        %11612 = vmatprep.mubr.bf16.mxu0 %v11454
        %11613 = vmatmul.mubr.bf16.gmra.mrb[0].mxu0 %v11208
        %v11614 = vpop.f32.mrb[0].mxu0
        %v11615 = vadd.f32 %v11340, %v11614
        %v11616 = vpop.f32.mrb[0].mxu0
        %v11617 = vpop.f32.mrb[0].mxu0
        %v11618 = vadd.f32 %v11340, %v11617
        %v11619 = vpop.f32.mrb[0].mxu0
        %11620 = vdwg.mxu0
        %v11621 = vunpack.c.l.bf16 %v370
        %v11622 = vunpack.c.l.bf16 %v380
        %v11623 = vunpack.c.l.bf16 %v394
        %v11624 = vunpack.c.l.bf16 %v404
        %v11625 = vunpack.c.l.bf16 %v418
        %v11626 = vunpack.c.l.bf16 %v428
        %v11627 = vunpack.c.l.bf16 %v442
        %v11628 = vunpack.c.l.bf16 %v452
        %v11629 = vunpack.c.l.bf16 %v466
        %v11630 = vunpack.c.l.bf16 %v476
        %v11631 = vunpack.c.l.bf16 %v490
        %v11632 = vunpack.c.l.bf16 %v500
        %v11633 = vunpack.c.l.bf16 %v514
        %v11634 = vunpack.c.l.bf16 %v524
        %v11635 = vunpack.c.l.bf16 %v538
        %v11636 = vunpack.c.l.bf16 %v548
        %v11637 = vunpack.c.l.bf16 %v562
        %v11638 = vunpack.c.l.bf16 %v572
        %v11639 = vunpack.c.l.bf16 %v586
        %v11640 = vunpack.c.l.bf16 %v596
        %v11641 = vunpack.c.l.bf16 %v610
        %v11642 = vunpack.c.l.bf16 %v620
        %v11643 = vunpack.c.l.bf16 %v634
        %v11644 = vunpack.c.l.bf16 %v644
        %v11645 = vunpack.c.l.bf16 %v658
        %v11646 = vunpack.c.l.bf16 %v668
        %v11647 = vunpack.c.l.bf16 %v682
        %v11648 = vunpack.c.l.bf16 %v692
        %v11649 = vunpack.c.l.bf16 %v706
        %v11650 = vunpack.c.l.bf16 %v716
        %v11651 = vunpack.c.l.bf16 %v730
        %v11652 = vunpack.c.l.bf16 %v740
        %v11653 = vmul.f32 %v11495, 0.1
        %v11654 = vmul.f32 %v11498, 0.1
        %v11655 = vmul.f32 %v11503, 0.1
        %v11656 = vmul.f32 %v11506, 0.1
        %v11657 = vmul.f32 %v11511, 0.1
        %v11658 = vmul.f32 %v11514, 0.1
        %v11659 = vmul.f32 %v11519, 0.1
        %v11660 = vmul.f32 %v11522, 0.1
        %v11661 = vmul.f32 %v11527, 0.1
        %v11662 = vmul.f32 %v11530, 0.1
        %v11663 = vmul.f32 %v11535, 0.1
        %v11664 = vmul.f32 %v11538, 0.1
        %v11665 = vmul.f32 %v11543, 0.1
        %v11666 = vmul.f32 %v11546, 0.1
        %v11667 = vmul.f32 %v11551, 0.1
        %v11668 = vmul.f32 %v11554, 0.1
        %v11669 = vmul.f32 %v11559, 0.1
        %v11670 = vmul.f32 %v11562, 0.1
        %v11671 = vmul.f32 %v11567, 0.1
        %v11672 = vmul.f32 %v11570, 0.1
        %v11673 = vmul.f32 %v11575, 0.1
        %v11674 = vmul.f32 %v11578, 0.1
        %v11675 = vmul.f32 %v11583, 0.1
        %v11676 = vmul.f32 %v11586, 0.1
        %v11677 = vmul.f32 %v11591, 0.1
        %v11678 = vmul.f32 %v11594, 0.1
        %v11679 = vmul.f32 %v11599, 0.1
        %v11680 = vmul.f32 %v11602, 0.1
        %v11681 = vmul.f32 %v11607, 0.1
        %v11682 = vmul.f32 %v11610, 0.1
        %v11683 = vmul.f32 %v11615, 0.1
        %v11684 = vmul.f32 %v11618, 0.1
        %v11685 = vadd.f32 %v11621, %v11653
        %v11686 = vadd.f32 %v11622, %v11654
        %v11687 = vadd.f32 %v11623, %v11655
        %v11688 = vadd.f32 %v11624, %v11656
        %v11689 = vadd.f32 %v11625, %v11657
        %v11690 = vadd.f32 %v11626, %v11658
        %v11691 = vadd.f32 %v11627, %v11659
        %v11692 = vadd.f32 %v11628, %v11660
        %v11693 = vadd.f32 %v11629, %v11661
        %v11694 = vadd.f32 %v11630, %v11662
        %v11695 = vadd.f32 %v11631, %v11663
        %v11696 = vadd.f32 %v11632, %v11664
        %v11697 = vadd.f32 %v11633, %v11665
        %v11698 = vadd.f32 %v11634, %v11666
        %v11699 = vadd.f32 %v11635, %v11667
        %v11700 = vadd.f32 %v11636, %v11668
        %v11701 = vadd.f32 %v11637, %v11669
        %v11702 = vadd.f32 %v11638, %v11670
        %v11703 = vadd.f32 %v11639, %v11671
        %v11704 = vadd.f32 %v11640, %v11672
        %v11705 = vadd.f32 %v11641, %v11673
        %v11706 = vadd.f32 %v11642, %v11674
        %v11707 = vadd.f32 %v11643, %v11675
        %v11708 = vadd.f32 %v11644, %v11676
        %v11709 = vadd.f32 %v11645, %v11677
        %v11710 = vadd.f32 %v11646, %v11678
        %v11711 = vadd.f32 %v11647, %v11679
        %v11712 = vadd.f32 %v11648, %v11680
        %v11713 = vadd.f32 %v11649, %v11681
        %v11714 = vadd.f32 %v11650, %v11682
        %v11715 = vadd.f32 %v11651, %v11683
        %v11716 = vadd.f32 %v11652, %v11684
        %11717 = vst.msk [vmem:[%s298] sm:$0xff] %vm2841, %v11685
        %11718 = vst.msk [vmem:[%s298 + $0x8] sm:$0xff] %vm2841, %v11686
        %11719 = vst.msk [vmem:[%s298 + $0x10] sm:$0xff] %vm2841, %v11687
        %11720 = vst.msk [vmem:[%s298 + $0x18] sm:$0xff] %vm2841, %v11688
        %11721 = vst.msk [vmem:[%s298 + $0x20] sm:$0xff] %vm2841, %v11689
        %11722 = vst.msk [vmem:[%s298 + $0x28] sm:$0xff] %vm2841, %v11690
        %11723 = vst.msk [vmem:[%s298 + $0x30] sm:$0xff] %vm2841, %v11691
        %11724 = vst.msk [vmem:[%s298 + $0x38] sm:$0xff] %vm2841, %v11692
        %11725 = vst.msk [vmem:[%s298 + $0x40] sm:$0xff] %vm2841, %v11693
        %11726 = vst.msk [vmem:[%s298 + $0x48] sm:$0xff] %vm2841, %v11694
        %11727 = vst.msk [vmem:[%s298 + $0x50] sm:$0xff] %vm2841, %v11695
        %11728 = vst.msk [vmem:[%s298 + $0x58] sm:$0xff] %vm2841, %v11696
        %11729 = vst.msk [vmem:[%s298 + $0x60] sm:$0xff] %vm2841, %v11697
        %11730 = vst.msk [vmem:[%s298 + $0x68] sm:$0xff] %vm2841, %v11698
        %11731 = vst.msk [vmem:[%s298 + $0x70] sm:$0xff] %vm2841, %v11699
        %11732 = vst.msk [vmem:[%s298 + $0x78] sm:$0xff] %vm2841, %v11700
        %11733 = vst.msk [vmem:[%s298 + $0x80] sm:$0xff] %vm2841, %v11701
        %11734 = vst.msk [vmem:[%s298 + $0x88] sm:$0xff] %vm2841, %v11702
        %11735 = vst.msk [vmem:[%s298 + $0x90] sm:$0xff] %vm2841, %v11703
        %11736 = vst.msk [vmem:[%s298 + $0x98] sm:$0xff] %vm2841, %v11704
        %11737 = vst.msk [vmem:[%s298 + $0xa0] sm:$0xff] %vm2841, %v11705
        %11738 = vst.msk [vmem:[%s298 + $0xa8] sm:$0xff] %vm2841, %v11706
        %11739 = vst.msk [vmem:[%s298 + $0xb0] sm:$0xff] %vm2841, %v11707
        %11740 = vst.msk [vmem:[%s298 + $0xb8] sm:$0xff] %vm2841, %v11708
        %11741 = vst.msk [vmem:[%s298 + $0xc0] sm:$0xff] %vm2841, %v11709
        %11742 = vst.msk [vmem:[%s298 + $0xc8] sm:$0xff] %vm2841, %v11710
        %11743 = vst.msk [vmem:[%s298 + $0xd0] sm:$0xff] %vm2841, %v11711
        %11744 = vst.msk [vmem:[%s298 + $0xd8] sm:$0xff] %vm2841, %v11712
        %11745 = vst.msk [vmem:[%s298 + $0xe0] sm:$0xff] %vm2841, %v11713
        %11746 = vst.msk [vmem:[%s298 + $0xe8] sm:$0xff] %vm2841, %v11714
        %11747 = vst.msk [vmem:[%s298 + $0xf0] sm:$0xff] %vm2841, %v11715
        %11748 = vst.msk [vmem:[%s298 + $0xf8] sm:$0xff] %vm2841, %v11716
        %s11749 = sand.u32 %s203, 1
        %s11750 = scalar_lea.sflag [#allocation5], %s11749
        %s11751 = sand.u32 %s203, 1
        %s11752 = smul.addr %s11751, 256
        %s11753 = scalar_lea.vmem [#allocation4], %s11752
        // Predicated region
        $region53: #{resblock_forward.1} parent=51 // pred_check
          %p11754 = pneg %p213
        $region54: #{resblock_forward.1} parent=51 // pred_check_branch
          %11756 = sbr.rel (%p11754) target = $region56
        $region55: #{resblock_forward.1} parent=51 // pred_region
          %s11758 = ssub.s32 4096, 4096
          %11759 = vsyncadd %s11750, %s11758
          %s11760 = smul.addr %s22, 32
          %s11761 = smul.addr %s11760, 128
          %s11762 = scalar_lea.hbm %s8, %s11761
          %s11763 = sshll.u32 %s11753, 4
          %s11764 = int_to_ptr.vmem [resolvable:$true] %s11763
          %11769 = dma.vmem_to_hbm [thread:$0]  %s11764, 4096, %s11762, %s11750, 128, 128, 8
        $region56: #{resblock_forward.1} parent=51 // pred_fallthru
          _
      $region52: #{resblock_forward.1} parent=5 // pred_fallthru
        _
      %p11770 = scmp.le.s32.totalorder 2, %s17
      // Predicated region
      $region57: #{resblock_forward.1} parent=5 // pred_check
        %p11771 = pneg %p11770
      $region58: #{resblock_forward.1} parent=5 // pred_check_branch
        %11773 = sbr.rel (%p11771) target = $region60
      $region59: #{resblock_forward.1} parent=5 // pred_region
        %s11774 = ssub.s32 %s17, 2
        // Predicated region
        $region61: #{resblock_forward.1} parent=59 // pred_check
          %p11775 = pneg %p219
        $region62: #{resblock_forward.1} parent=59 // pred_check_branch
          %11777 = sbr.rel (%p11775) target = $region64
        $region63: #{resblock_forward.1} parent=59 // pred_region
          %s11778 = sand.u32 %s204, 1
          %s11779 = scalar_lea.sflag [#allocation5], %s11778
          %s11780 = sand.u32 %s204, 1
          %s11781 = smul.addr %s11780, 256
          %s11782 = scalar_lea.vmem [#allocation4], %s11781
          %11783 = dma.done %s11779, 4096
        $region64: #{resblock_forward.1} parent=59 // pred_fallthru
          _
      $region60: #{resblock_forward.1} parent=5 // pred_fallthru
        _
    $region6: #{resblock_forward.1} parent=1 // loop_footer
      %s21 = sadd.s32 1, %s17
    $region7: #{resblock_forward.1} parent=1 // loop_footer_branch
      %16 = sbr.rel target = $region3
    $region8: #{resblock_forward.1} parent=1 // loop_exit
      _
    %11784 = vsyncpa [#allocation5], 1
    %s11785 = scalar_lea.sflag [#allocation5], 1
    %11786 = vsyncpa %s11785, 1

</llo_original>
